<compile_context>
chip_gen: v6e
topology: v6e:2x2x1
jax: 0.10.0
libtpu: 0.0.40
codegen_flags: <defaults>
</compile_context>

<pallas_src>
import jax
import jax.numpy as jnp
import numpy as np
from jax import lax
from jax.experimental import pallas as pl
from jax.experimental.pallas import tpu as pltpu

EPS = 1e-5          # log_categorical clamp epsilon
NEG_SLOPE = 0.01    # nn.LeakyReLU default

# Problem sizes (small, TPU-friendly: M and V multiples of 128 for lane alignment)
B = 256       # batch (tiled over the grid)
L = 16        # latent dim
M = 128       # hidden width
D = 16        # number of categorical pixels/dims
V = 256       # num_vals (categories per dim)

LOG_EPS = float(np.log(EPS))
LOG_1M_EPS = float(np.log1p(-EPS))


def _leaky_relu(x):
    return jnp.where(x > 0, x, NEG_SLOPE * x)


def decoder_logprob_kernel(z_ref, x_ref, w1_ref, b1_ref, w2_ref, b2_ref,
                           w3_ref, b3_ref, out_ref):
    bt = z_ref.shape[0]

    # --- MLP trunk: bf16 operands on the MXU, f32 accumulation / bias / activation ---
    z = z_ref[...].astype(jnp.bfloat16)                                          # (bt, L)
    h1 = _leaky_relu(jnp.dot(z, w1_ref[...],
                             preferred_element_type=jnp.float32) + b1_ref[...])  # (bt, M) f32
    h2 = _leaky_relu(jnp.dot(h1.astype(jnp.bfloat16), w2_ref[...],
                             preferred_element_type=jnp.float32) + b2_ref[...])  # (bt, M) f32
    h2b = h2.astype(jnp.bfloat16)                                                # reused by all D group matmuls

    x = x_ref[...]                                                               # (bt, D) int32
    lane = lax.broadcasted_iota(jnp.int32, (1, V), 1)                            # (1, V), tiny & hoisted

    # Two running accumulators (even / odd d): bounded live values, half-length add chain.
    # Per-iteration temporaries (hd / mask / exp) die each step; D=16 is static so the loop
    # fully unrolls with static ref slices (zero-cost views into w3/b3).
    acc0 = jnp.zeros((bt, 1), jnp.float32)
    acc1 = jnp.zeros((bt, 1), jnp.float32)
    for d in range(D):
        # Fused per-group logits: (bt, V) f32, weights/bias sliced just-in-time from the refs.
        hd = jnp.dot(h2b, w3_ref[:, d * V:(d + 1) * V],
                     preferred_element_type=jnp.float32) + b3_ref[:, d * V:(d + 1) * V]
        # Logit at the target category x[b, d] (lane-iota compare + masked sum).
        sel = jnp.sum(jnp.where(lane == x[:, d:d + 1], hd, 0.0),
                      axis=-1, keepdims=True)                                    # (bt, 1)
        # log softmax at the selected index, shifted by the selected logit (no max reduction):
        #   log p = -log(sum_j exp(hd_j - hd_sel)); +inf overflow clips to LOG_EPS (= clamped answer).
        s = jnp.log(jnp.sum(jnp.exp(hd - sel), axis=-1, keepdims=True))          # (bt, 1)
        lp = jnp.clip(-s, LOG_EPS, LOG_1M_EPS)
        if d % 2 == 0:
            acc0 = acc0 + lp
        else:
            acc1 = acc1 + lp

    out_ref[...] = acc0 + acc1                                                   # (bt, 1)


def _default_b_tile(batch):
    # v5e / v6e: single TensorCore -> one full-batch tile (grid=(1,)) removes per-step overhead.
    # v7x (and other multi-/mega-core chips): two "parallel" tiles, one per core.
    try:
        kind = jax.devices()[0].device_kind.lower()
        single_tc = any(t in kind for t in ("v5 lite", "v5e", "v6 lite", "v6e"))
    except Exception:
        single_tc = False
    tile = batch if single_tc else max(batch // 2, 1)
    if batch % tile != 0:
        tile = batch
    return tile


def decoder_log_prob(z, x, params, *, b_tile=None):
    """z: (B, L) float32, x: (B, D) int32 categories in [0, V). Returns (B,) float32."""
    w1, b1, w2, b2, w3, b3 = params
    batch = z.shape[0]
    if b_tile is None:
        b_tile = _default_b_tile(batch)
    n_tiles = batch // b_tile

    cost = pl.CostEstimate(
        flops=2 * batch * (L * M + M * M + M * D * V),
        transcendentals=batch * (D * V + D),             # exp per logit + one log per group
        bytes_accessed=(z.size * 4 + x.size * 4
                        + w1.size * 2 + b1.size * 4 + w2.size * 2 + b2.size * 4
                        + w3.size * 2 + b3.size * 4 + batch * 4),
    )

    out = pl.pallas_call(
        decoder_logprob_kernel,
        out_shape=jax.ShapeDtypeStruct((batch, 1), jnp.float32),
        grid_spec=pltpu.PrefetchScalarGridSpec(
            num_scalar_prefetch=0,
            grid=(n_tiles,),
            in_specs=[
                pl.BlockSpec((b_tile, L), lambda i: (i, 0)),     # z tile
                pl.BlockSpec((b_tile, D), lambda i: (i, 0)),     # x indices tile (int32)
                pl.BlockSpec((L, M), lambda i: (0, 0)),          # w1 (bf16, VMEM-resident)
                pl.BlockSpec((1, M), lambda i: (0, 0)),          # b1
                pl.BlockSpec((M, M), lambda i: (0, 0)),          # w2 (bf16)
                pl.BlockSpec((1, M), lambda i: (0, 0)),          # b2
                pl.BlockSpec((M, D * V), lambda i: (0, 0)),      # w3 (bf16)
                pl.BlockSpec((1, D * V), lambda i: (0, 0)),      # b3
            ],
            out_specs=pl.BlockSpec((b_tile, 1), lambda i: (i, 0)),
        ),
        compiler_params=pltpu.CompilerParams(
            dimension_semantics=("parallel",),                   # shard batch tiles across TCs (v7x)
        ),
        cost_estimate=cost,
    )(z, x, w1, b1, w2, b2, w3, b3)
    return out.reshape(batch)


def init_params(key):
    k1, k2, k3 = jax.random.split(key, 3)
    # weights stored as (in_features, out_features), bf16 (full-rate MXU operands / smaller DMA)
    w1 = (jax.random.normal(k1, (L, M), jnp.float32) * (1.0 / np.sqrt(L))).astype(jnp.bfloat16)
    b1 = jnp.zeros((1, M), jnp.float32)
    w2 = (jax.random.normal(k2, (M, M), jnp.float32) * (1.0 / np.sqrt(M))).astype(jnp.bfloat16)
    b2 = jnp.zeros((1, M), jnp.float32)
    w3 = (jax.random.normal(k3, (M, D * V), jnp.float32) * (1.0 / np.sqrt(M))).astype(jnp.bfloat16)
    b3 = jnp.zeros((1, D * V), jnp.float32)
    return (w1, b1, w2, b2, w3, b3)


def reference_log_prob(z, x, params):
    """Pure-JAX reference mirroring the PyTorch semantics (same bf16 weight quantization)."""
    w1, b1, w2, b2, w3, b3 = params
    h = _leaky_relu(jnp.dot(z.astype(jnp.bfloat16), w1,
                            preferred_element_type=jnp.float32) + b1)
    h = _leaky_relu(jnp.dot(h.astype(jnp.bfloat16), w2,
                            preferred_element_type=jnp.float32) + b2)
    logits = (jnp.dot(h.astype(jnp.bfloat16), w3,
                      preferred_element_type=jnp.float32) + b3).reshape(B, D, V)
    mu = jax.nn.softmax(logits, axis=2)
    mu = jnp.clip(mu, EPS, 1.0 - EPS)
    oh = jax.nn.one_hot(x, V, dtype=jnp.float32)
    return jnp.sum(oh * jnp.log(mu), axis=(1, 2))


if __name__ == "__main__":
    key = jax.random.PRNGKey(0)
    kp, kz, kx = jax.random.split(key, 3)
    params = init_params(kp)
    z = jax.random.normal(kz, (B, L), jnp.float32)
    x = jax.random.randint(kx, (B, D), 0, V, dtype=jnp.int32)

    log_p = decoder_log_prob(z, x, params)
    log_p = jax.block_until_ready(log_p)

    ref = reference_log_prob(z, x, params)
    np.testing.assert_allclose(np.asarray(log_p), np.asarray(ref), rtol=1e-3, atol=1e-2)

    print("KERNEL_OK")
</pallas_src>

<mosaic_0001>
module attributes {stable_mosaic.version = 11 : i64} {
  func.func @decoder_logprob_kernel(%arg0: i32, %arg1: memref<128x16xf32, #tpu.memory_space<vmem>>, %arg2: memref<128x16xi32, #tpu.memory_space<vmem>>, %arg3: memref<16x128xbf16, #tpu.memory_space<vmem>>, %arg4: memref<1x128xf32, #tpu.memory_space<vmem>>, %arg5: memref<128x128xbf16, #tpu.memory_space<vmem>>, %arg6: memref<1x128xf32, #tpu.memory_space<vmem>>, %arg7: memref<128x4096xbf16, #tpu.memory_space<vmem>>, %arg8: memref<1x4096xf32, #tpu.memory_space<vmem>>, %arg9: memref<128x1xf32, #tpu.memory_space<vmem>>) attributes {dimension_semantics = [#tpu.dimension_semantics<parallel>], iteration_bounds = array<i64: 2>, scalar_prefetch = 0 : i64, scratch_operands = 0 : i64, tpu.core_type = #tpu.core_type<tc>, window_params = [{transform_indices = @transform_0, window_bounds = array<i64: 128, 16>}, {transform_indices = @transform_1, window_bounds = array<i64: 128, 16>}, {pipeline_mode = #tpu.pipeline_mode<synchronous>, transform_indices = @transform_2, window_bounds = array<i64: 16, 128>}, {pipeline_mode = #tpu.pipeline_mode<synchronous>, transform_indices = @transform_3, window_bounds = array<i64: 1, 128>}, {pipeline_mode = #tpu.pipeline_mode<synchronous>, transform_indices = @transform_4, window_bounds = array<i64: 128, 128>}, {pipeline_mode = #tpu.pipeline_mode<synchronous>, transform_indices = @transform_5, window_bounds = array<i64: 1, 128>}, {pipeline_mode = #tpu.pipeline_mode<synchronous>, transform_indices = @transform_6, window_bounds = array<i64: 128, 4096>}, {pipeline_mode = #tpu.pipeline_mode<synchronous>, transform_indices = @transform_7, window_bounds = array<i64: 1, 4096>}, {transform_indices = @transform_8, window_bounds = array<i64: 128, 1>}]} {
    %c0 = arith.constant 0 : index
    %c0_0 = arith.constant 0 : index
    %0 = vector.load %arg1[%c0, %c0_0] : memref<128x16xf32, #tpu.memory_space<vmem>>, vector<128x16xf32>
    %1 = arith.truncf %0 : vector<128x16xf32> to vector<128x16xbf16>
    %c0_1 = arith.constant 0 : index
    %c0_2 = arith.constant 0 : index
    %2 = vector.load %arg3[%c0_1, %c0_2] : memref<16x128xbf16, #tpu.memory_space<vmem>>, vector<16x128xbf16>
    %cst = arith.constant dense<0.000000e+00> : vector<128x128xf32>
    %3 = tpu.matmul %1, %2, %cst {dimension_numbers = #tpu.dot_dimension_numbers<[1], [0], [0], [1], [0, 0, 1, 1], [], []>} : vector<128x16xbf16>, vector<16x128xbf16>, vector<128x128xf32> -> vector<128x128xf32>
    %c0_3 = arith.constant 0 : index
    %c0_4 = arith.constant 0 : index
    %4 = vector.load %arg4[%c0_3, %c0_4] : memref<1x128xf32, #tpu.memory_space<vmem>>, vector<1x128xf32>
    %5 = vector.broadcast %4 : vector<1x128xf32> to vector<128x128xf32>
    %6 = arith.addf %3, %5 : vector<128x128xf32>
    %cst_5 = arith.constant 0.000000e+00 : f32
    %7 = vector.broadcast %cst_5 : f32 to vector<128x128xf32>
    %8 = arith.cmpf ogt, %6, %7 : vector<128x128xf32>
    %cst_6 = arith.constant 0.00999999977 : f32
    %9 = vector.broadcast %cst_6 : f32 to vector<128x128xf32>
    %10 = arith.mulf %9, %6 : vector<128x128xf32>
    %11 = arith.select %8, %6, %10 : vector<128x128xi1>, vector<128x128xf32>
    %12 = arith.truncf %11 : vector<128x128xf32> to vector<128x128xbf16>
    %c0_7 = arith.constant 0 : index
    %c0_8 = arith.constant 0 : index
    %13 = vector.load %arg5[%c0_7, %c0_8] : memref<128x128xbf16, #tpu.memory_space<vmem>>, vector<128x128xbf16>
    %cst_9 = arith.constant dense<0.000000e+00> : vector<128x128xf32>
    %14 = tpu.matmul %12, %13, %cst_9 {dimension_numbers = #tpu.dot_dimension_numbers<[1], [0], [0], [1], [0, 0, 1, 1], [], []>} : vector<128x128xbf16>, vector<128x128xbf16>, vector<128x128xf32> -> vector<128x128xf32>
    %c0_10 = arith.constant 0 : index
    %c0_11 = arith.constant 0 : index
    %15 = vector.load %arg6[%c0_10, %c0_11] : memref<1x128xf32, #tpu.memory_space<vmem>>, vector<1x128xf32>
    %16 = vector.broadcast %15 : vector<1x128xf32> to vector<128x128xf32>
    %17 = arith.addf %14, %16 : vector<128x128xf32>
    %cst_12 = arith.constant 0.000000e+00 : f32
    %18 = vector.broadcast %cst_12 : f32 to vector<128x128xf32>
    %19 = arith.cmpf ogt, %17, %18 : vector<128x128xf32>
    %cst_13 = arith.constant 0.00999999977 : f32
    %20 = vector.broadcast %cst_13 : f32 to vector<128x128xf32>
    %21 = arith.mulf %20, %17 : vector<128x128xf32>
    %22 = arith.select %19, %17, %21 : vector<128x128xi1>, vector<128x128xf32>
    %23 = arith.truncf %22 : vector<128x128xf32> to vector<128x128xbf16>
    %c0_14 = arith.constant 0 : index
    %c0_15 = arith.constant 0 : index
    %24 = vector.load %arg2[%c0_14, %c0_15] : memref<128x16xi32, #tpu.memory_space<vmem>>, vector<128x16xi32>
    %25 = tpu.iota {dimensions = array<i32: 1>} : vector<1x256xi32>
    %cst_16 = arith.constant 0.000000e+00 : f32
    %26 = vector.broadcast %cst_16 : f32 to vector<128x1xf32>
    %cst_17 = arith.constant 0.000000e+00 : f32
    %27 = vector.broadcast %cst_17 : f32 to vector<128x1xf32>
    %c0_18 = arith.constant 0 : index
    %c0_19 = arith.constant 0 : index
    %28 = vector.load %arg7[%c0_18, %c0_19] : memref<128x4096xbf16, #tpu.memory_space<vmem>>, vector<128x256xbf16>
    %cst_20 = arith.constant dense<0.000000e+00> : vector<128x256xf32>
    %29 = tpu.matmul %23, %28, %cst_20 {dimension_numbers = #tpu.dot_dimension_numbers<[1], [0], [0], [1], [0, 0, 1, 1], [], []>} : vector<128x128xbf16>, vector<128x256xbf16>, vector<128x256xf32> -> vector<128x256xf32>
    %c0_21 = arith.constant 0 : index
    %c0_22 = arith.constant 0 : index
    %30 = vector.load %arg8[%c0_21, %c0_22] : memref<1x4096xf32, #tpu.memory_space<vmem>>, vector<1x256xf32>
    %31 = vector.broadcast %30 : vector<1x256xf32> to vector<128x256xf32>
    %32 = arith.addf %29, %31 : vector<128x256xf32>
    %33 = vector.extract_strided_slice %24 {offsets = [0, 0], sizes = [128, 1], strides = [1, 1]} : vector<128x16xi32> to vector<128x1xi32>
    %34 = vector.broadcast %25 : vector<1x256xi32> to vector<128x256xi32>
    %35 = vector.broadcast %33 : vector<128x1xi32> to vector<128x256xi32>
    %36 = arith.cmpi eq, %34, %35 : vector<128x256xi32>
    %cst_23 = arith.constant 0.000000e+00 : f32
    %37 = vector.broadcast %cst_23 : f32 to vector<128x256xf32>
    %38 = arith.select %36, %32, %37 : vector<128x256xi1>, vector<128x256xf32>
    %cst_24 = arith.constant dense<0.000000e+00> : vector<128xf32>
    %39 = vector.multi_reduction <add>, %38, %cst_24 [1] : vector<128x256xf32> to vector<128xf32>
    %40 = vector.shape_cast %39 : vector<128xf32> to vector<128x1xf32>
    %41 = vector.broadcast %40 : vector<128x1xf32> to vector<128x256xf32>
    %42 = arith.subf %32, %41 : vector<128x256xf32>
    %43 = math.exp %42 : vector<128x256xf32>
    %cst_25 = arith.constant dense<0.000000e+00> : vector<128xf32>
    %44 = vector.multi_reduction <add>, %43, %cst_25 [1] : vector<128x256xf32> to vector<128xf32>
    %45 = vector.shape_cast %44 : vector<128xf32> to vector<128x1xf32>
    %46 = math.log %45 : vector<128x1xf32>
    %cst_26 = arith.constant 0.000000e+00 : f32
    %47 = vector.broadcast %cst_26 : f32 to vector<128x1xf32>
    %48 = arith.subf %47, %46 : vector<128x1xf32>
    %cst_27 = arith.constant -11.5129251 : f32
    %cst_28 = arith.constant -1.00000498E-5 : f32
    %49 = vector.broadcast %cst_27 : f32 to vector<128x1xf32>
    %50 = arith.maximumf %49, %48 : vector<128x1xf32>
    %51 = vector.broadcast %cst_28 : f32 to vector<128x1xf32>
    %52 = arith.minimumf %51, %50 : vector<128x1xf32>
    %53 = arith.addf %26, %52 : vector<128x1xf32>
    %c0_29 = arith.constant 0 : index
    %c256 = arith.constant 256 : index
    %54 = vector.load %arg7[%c0_29, %c256] : memref<128x4096xbf16, #tpu.memory_space<vmem>>, vector<128x256xbf16>
    %cst_30 = arith.constant dense<0.000000e+00> : vector<128x256xf32>
    %55 = tpu.matmul %23, %54, %cst_30 {dimension_numbers = #tpu.dot_dimension_numbers<[1], [0], [0], [1], [0, 0, 1, 1], [], []>} : vector<128x128xbf16>, vector<128x256xbf16>, vector<128x256xf32> -> vector<128x256xf32>
    %c0_31 = arith.constant 0 : index
    %c256_32 = arith.constant 256 : index
    %56 = vector.load %arg8[%c0_31, %c256_32] : memref<1x4096xf32, #tpu.memory_space<vmem>>, vector<1x256xf32>
    %57 = vector.broadcast %56 : vector<1x256xf32> to vector<128x256xf32>
    %58 = arith.addf %55, %57 : vector<128x256xf32>
    %59 = vector.extract_strided_slice %24 {offsets = [0, 1], sizes = [128, 1], strides = [1, 1]} : vector<128x16xi32> to vector<128x1xi32>
    %60 = vector.broadcast %25 : vector<1x256xi32> to vector<128x256xi32>
    %61 = vector.broadcast %59 : vector<128x1xi32> to vector<128x256xi32>
    %62 = arith.cmpi eq, %60, %61 : vector<128x256xi32>
    %cst_33 = arith.constant 0.000000e+00 : f32
    %63 = vector.broadcast %cst_33 : f32 to vector<128x256xf32>
    %64 = arith.select %62, %58, %63 : vector<128x256xi1>, vector<128x256xf32>
    %cst_34 = arith.constant dense<0.000000e+00> : vector<128xf32>
    %65 = vector.multi_reduction <add>, %64, %cst_34 [1] : vector<128x256xf32> to vector<128xf32>
    %66 = vector.shape_cast %65 : vector<128xf32> to vector<128x1xf32>
    %67 = vector.broadcast %66 : vector<128x1xf32> to vector<128x256xf32>
    %68 = arith.subf %58, %67 : vector<128x256xf32>
    %69 = math.exp %68 : vector<128x256xf32>
    %cst_35 = arith.constant dense<0.000000e+00> : vector<128xf32>
    %70 = vector.multi_reduction <add>, %69, %cst_35 [1] : vector<128x256xf32> to vector<128xf32>
    %71 = vector.shape_cast %70 : vector<128xf32> to vector<128x1xf32>
    %72 = math.log %71 : vector<128x1xf32>
    %cst_36 = arith.constant 0.000000e+00 : f32
    %73 = vector.broadcast %cst_36 : f32 to vector<128x1xf32>
    %74 = arith.subf %73, %72 : vector<128x1xf32>
    %cst_37 = arith.constant -11.5129251 : f32
    %cst_38 = arith.constant -1.00000498E-5 : f32
    %75 = vector.broadcast %cst_37 : f32 to vector<128x1xf32>
    %76 = arith.maximumf %75, %74 : vector<128x1xf32>
    %77 = vector.broadcast %cst_38 : f32 to vector<128x1xf32>
    %78 = arith.minimumf %77, %76 : vector<128x1xf32>
    %79 = arith.addf %27, %78 : vector<128x1xf32>
    %c0_39 = arith.constant 0 : index
    %c512 = arith.constant 512 : index
    %80 = vector.load %arg7[%c0_39, %c512] : memref<128x4096xbf16, #tpu.memory_space<vmem>>, vector<128x256xbf16>
    %cst_40 = arith.constant dense<0.000000e+00> : vector<128x256xf32>
    %81 = tpu.matmul %23, %80, %cst_40 {dimension_numbers = #tpu.dot_dimension_numbers<[1], [0], [0], [1], [0, 0, 1, 1], [], []>} : vector<128x128xbf16>, vector<128x256xbf16>, vector<128x256xf32> -> vector<128x256xf32>
    %c0_41 = arith.constant 0 : index
    %c512_42 = arith.constant 512 : index
    %82 = vector.load %arg8[%c0_41, %c512_42] : memref<1x4096xf32, #tpu.memory_space<vmem>>, vector<1x256xf32>
    %83 = vector.broadcast %82 : vector<1x256xf32> to vector<128x256xf32>
    %84 = arith.addf %81, %83 : vector<128x256xf32>
    %85 = vector.extract_strided_slice %24 {offsets = [0, 2], sizes = [128, 1], strides = [1, 1]} : vector<128x16xi32> to vector<128x1xi32>
    %86 = vector.broadcast %25 : vector<1x256xi32> to vector<128x256xi32>
    %87 = vector.broadcast %85 : vector<128x1xi32> to vector<128x256xi32>
    %88 = arith.cmpi eq, %86, %87 : vector<128x256xi32>
    %cst_43 = arith.constant 0.000000e+00 : f32
    %89 = vector.broadcast %cst_43 : f32 to vector<128x256xf32>
    %90 = arith.select %88, %84, %89 : vector<128x256xi1>, vector<128x256xf32>
    %cst_44 = arith.constant dense<0.000000e+00> : vector<128xf32>
    %91 = vector.multi_reduction <add>, %90, %cst_44 [1] : vector<128x256xf32> to vector<128xf32>
    %92 = vector.shape_cast %91 : vector<128xf32> to vector<128x1xf32>
    %93 = vector.broadcast %92 : vector<128x1xf32> to vector<128x256xf32>
    %94 = arith.subf %84, %93 : vector<128x256xf32>
    %95 = math.exp %94 : vector<128x256xf32>
    %cst_45 = arith.constant dense<0.000000e+00> : vector<128xf32>
    %96 = vector.multi_reduction <add>, %95, %cst_45 [1] : vector<128x256xf32> to vector<128xf32>
    %97 = vector.shape_cast %96 : vector<128xf32> to vector<128x1xf32>
    %98 = math.log %97 : vector<128x1xf32>
    %cst_46 = arith.constant 0.000000e+00 : f32
    %99 = vector.broadcast %cst_46 : f32 to vector<128x1xf32>
    %100 = arith.subf %99, %98 : vector<128x1xf32>
    %cst_47 = arith.constant -11.5129251 : f32
    %cst_48 = arith.constant -1.00000498E-5 : f32
    %101 = vector.broadcast %cst_47 : f32 to vector<128x1xf32>
    %102 = arith.maximumf %101, %100 : vector<128x1xf32>
    %103 = vector.broadcast %cst_48 : f32 to vector<128x1xf32>
    %104 = arith.minimumf %103, %102 : vector<128x1xf32>
    %105 = arith.addf %53, %104 : vector<128x1xf32>
    %c0_49 = arith.constant 0 : index
    %c768 = arith.constant 768 : index
    %106 = vector.load %arg7[%c0_49, %c768] : memref<128x4096xbf16, #tpu.memory_space<vmem>>, vector<128x256xbf16>
    %cst_50 = arith.constant dense<0.000000e+00> : vector<128x256xf32>
    %107 = tpu.matmul %23, %106, %cst_50 {dimension_numbers = #tpu.dot_dimension_numbers<[1], [0], [0], [1], [0, 0, 1, 1], [], []>} : vector<128x128xbf16>, vector<128x256xbf16>, vector<128x256xf32> -> vector<128x256xf32>
    %c0_51 = arith.constant 0 : index
    %c768_52 = arith.constant 768 : index
    %108 = vector.load %arg8[%c0_51, %c768_52] : memref<1x4096xf32, #tpu.memory_space<vmem>>, vector<1x256xf32>
    %109 = vector.broadcast %108 : vector<1x256xf32> to vector<128x256xf32>
    %110 = arith.addf %107, %109 : vector<128x256xf32>
    %111 = vector.extract_strided_slice %24 {offsets = [0, 3], sizes = [128, 1], strides = [1, 1]} : vector<128x16xi32> to vector<128x1xi32>
    %112 = vector.broadcast %25 : vector<1x256xi32> to vector<128x256xi32>
    %113 = vector.broadcast %111 : vector<128x1xi32> to vector<128x256xi32>
    %114 = arith.cmpi eq, %112, %113 : vector<128x256xi32>
    %cst_53 = arith.constant 0.000000e+00 : f32
    %115 = vector.broadcast %cst_53 : f32 to vector<128x256xf32>
    %116 = arith.select %114, %110, %115 : vector<128x256xi1>, vector<128x256xf32>
    %cst_54 = arith.constant dense<0.000000e+00> : vector<128xf32>
    %117 = vector.multi_reduction <add>, %116, %cst_54 [1] : vector<128x256xf32> to vector<128xf32>
    %118 = vector.shape_cast %117 : vector<128xf32> to vector<128x1xf32>
    %119 = vector.broadcast %118 : vector<128x1xf32> to vector<128x256xf32>
    %120 = arith.subf %110, %119 : vector<128x256xf32>
    %121 = math.exp %120 : vector<128x256xf32>
    %cst_55 = arith.constant dense<0.000000e+00> : vector<128xf32>
    %122 = vector.multi_reduction <add>, %121, %cst_55 [1] : vector<128x256xf32> to vector<128xf32>
    %123 = vector.shape_cast %122 : vector<128xf32> to vector<128x1xf32>
    %124 = math.log %123 : vector<128x1xf32>
    %cst_56 = arith.constant 0.000000e+00 : f32
    %125 = vector.broadcast %cst_56 : f32 to vector<128x1xf32>
    %126 = arith.subf %125, %124 : vector<128x1xf32>
    %cst_57 = arith.constant -11.5129251 : f32
    %cst_58 = arith.constant -1.00000498E-5 : f32
    %127 = vector.broadcast %cst_57 : f32 to vector<128x1xf32>
    %128 = arith.maximumf %127, %126 : vector<128x1xf32>
    %129 = vector.broadcast %cst_58 : f32 to vector<128x1xf32>
    %130 = arith.minimumf %129, %128 : vector<128x1xf32>
    %131 = arith.addf %79, %130 : vector<128x1xf32>
    %c0_59 = arith.constant 0 : index
    %c1024 = arith.constant 1024 : index
    %132 = vector.load %arg7[%c0_59, %c1024] : memref<128x4096xbf16, #tpu.memory_space<vmem>>, vector<128x256xbf16>
    %cst_60 = arith.constant dense<0.000000e+00> : vector<128x256xf32>
    %133 = tpu.matmul %23, %132, %cst_60 {dimension_numbers = #tpu.dot_dimension_numbers<[1], [0], [0], [1], [0, 0, 1, 1], [], []>} : vector<128x128xbf16>, vector<128x256xbf16>, vector<128x256xf32> -> vector<128x256xf32>
    %c0_61 = arith.constant 0 : index
    %c1024_62 = arith.constant 1024 : index
    %134 = vector.load %arg8[%c0_61, %c1024_62] : memref<1x4096xf32, #tpu.memory_space<vmem>>, vector<1x256xf32>
    %135 = vector.broadcast %134 : vector<1x256xf32> to vector<128x256xf32>
    %136 = arith.addf %133, %135 : vector<128x256xf32>
    %137 = vector.extract_strided_slice %24 {offsets = [0, 4], sizes = [128, 1], strides = [1, 1]} : vector<128x16xi32> to vector<128x1xi32>
    %138 = vector.broadcast %25 : vector<1x256xi32> to vector<128x256xi32>
    %139 = vector.broadcast %137 : vector<128x1xi32> to vector<128x256xi32>
    %140 = arith.cmpi eq, %138, %139 : vector<128x256xi32>
    %cst_63 = arith.constant 0.000000e+00 : f32
    %141 = vector.broadcast %cst_63 : f32 to vector<128x256xf32>
    %142 = arith.select %140, %136, %141 : vector<128x256xi1>, vector<128x256xf32>
    %cst_64 = arith.constant dense<0.000000e+00> : vector<128xf32>
    %143 = vector.multi_reduction <add>, %142, %cst_64 [1] : vector<128x256xf32> to vector<128xf32>
    %144 = vector.shape_cast %143 : vector<128xf32> to vector<128x1xf32>
    %145 = vector.broadcast %144 : vector<128x1xf32> to vector<128x256xf32>
    %146 = arith.subf %136, %145 : vector<128x256xf32>
    %147 = math.exp %146 : vector<128x256xf32>
    %cst_65 = arith.constant dense<0.000000e+00> : vector<128xf32>
    %148 = vector.multi_reduction <add>, %147, %cst_65 [1] : vector<128x256xf32> to vector<128xf32>
    %149 = vector.shape_cast %148 : vector<128xf32> to vector<128x1xf32>
    %150 = math.log %149 : vector<128x1xf32>
    %cst_66 = arith.constant 0.000000e+00 : f32
    %151 = vector.broadcast %cst_66 : f32 to vector<128x1xf32>
    %152 = arith.subf %151, %150 : vector<128x1xf32>
    %cst_67 = arith.constant -11.5129251 : f32
    %cst_68 = arith.constant -1.00000498E-5 : f32
    %153 = vector.broadcast %cst_67 : f32 to vector<128x1xf32>
    %154 = arith.maximumf %153, %152 : vector<128x1xf32>
    %155 = vector.broadcast %cst_68 : f32 to vector<128x1xf32>
    %156 = arith.minimumf %155, %154 : vector<128x1xf32>
    %157 = arith.addf %105, %156 : vector<128x1xf32>
    %c0_69 = arith.constant 0 : index
    %c1280 = arith.constant 1280 : index
    %158 = vector.load %arg7[%c0_69, %c1280] : memref<128x4096xbf16, #tpu.memory_space<vmem>>, vector<128x256xbf16>
    %cst_70 = arith.constant dense<0.000000e+00> : vector<128x256xf32>
    %159 = tpu.matmul %23, %158, %cst_70 {dimension_numbers = #tpu.dot_dimension_numbers<[1], [0], [0], [1], [0, 0, 1, 1], [], []>} : vector<128x128xbf16>, vector<128x256xbf16>, vector<128x256xf32> -> vector<128x256xf32>
    %c0_71 = arith.constant 0 : index
    %c1280_72 = arith.constant 1280 : index
    %160 = vector.load %arg8[%c0_71, %c1280_72] : memref<1x4096xf32, #tpu.memory_space<vmem>>, vector<1x256xf32>
    %161 = vector.broadcast %160 : vector<1x256xf32> to vector<128x256xf32>
    %162 = arith.addf %159, %161 : vector<128x256xf32>
    %163 = vector.extract_strided_slice %24 {offsets = [0, 5], sizes = [128, 1], strides = [1, 1]} : vector<128x16xi32> to vector<128x1xi32>
    %164 = vector.broadcast %25 : vector<1x256xi32> to vector<128x256xi32>
    %165 = vector.broadcast %163 : vector<128x1xi32> to vector<128x256xi32>
    %166 = arith.cmpi eq, %164, %165 : vector<128x256xi32>
    %cst_73 = arith.constant 0.000000e+00 : f32
    %167 = vector.broadcast %cst_73 : f32 to vector<128x256xf32>
    %168 = arith.select %166, %162, %167 : vector<128x256xi1>, vector<128x256xf32>
    %cst_74 = arith.constant dense<0.000000e+00> : vector<128xf32>
    %169 = vector.multi_reduction <add>, %168, %cst_74 [1] : vector<128x256xf32> to vector<128xf32>
    %170 = vector.shape_cast %169 : vector<128xf32> to vector<128x1xf32>
    %171 = vector.broadcast %170 : vector<128x1xf32> to vector<128x256xf32>
    %172 = arith.subf %162, %171 : vector<128x256xf32>
    %173 = math.exp %172 : vector<128x256xf32>
    %cst_75 = arith.constant dense<0.000000e+00> : vector<128xf32>
    %174 = vector.multi_reduction <add>, %173, %cst_75 [1] : vector<128x256xf32> to vector<128xf32>
    %175 = vector.shape_cast %174 : vector<128xf32> to vector<128x1xf32>
    %176 = math.log %175 : vector<128x1xf32>
    %cst_76 = arith.constant 0.000000e+00 : f32
    %177 = vector.broadcast %cst_76 : f32 to vector<128x1xf32>
    %178 = arith.subf %177, %176 : vector<128x1xf32>
    %cst_77 = arith.constant -11.5129251 : f32
    %cst_78 = arith.constant -1.00000498E-5 : f32
    %179 = vector.broadcast %cst_77 : f32 to vector<128x1xf32>
    %180 = arith.maximumf %179, %178 : vector<128x1xf32>
    %181 = vector.broadcast %cst_78 : f32 to vector<128x1xf32>
    %182 = arith.minimumf %181, %180 : vector<128x1xf32>
    %183 = arith.addf %131, %182 : vector<128x1xf32>
    %c0_79 = arith.constant 0 : index
    %c1536 = arith.constant 1536 : index
    %184 = vector.load %arg7[%c0_79, %c1536] : memref<128x4096xbf16, #tpu.memory_space<vmem>>, vector<128x256xbf16>
    %cst_80 = arith.constant dense<0.000000e+00> : vector<128x256xf32>
    %185 = tpu.matmul %23, %184, %cst_80 {dimension_numbers = #tpu.dot_dimension_numbers<[1], [0], [0], [1], [0, 0, 1, 1], [], []>} : vector<128x128xbf16>, vector<128x256xbf16>, vector<128x256xf32> -> vector<128x256xf32>
    %c0_81 = arith.constant 0 : index
    %c1536_82 = arith.constant 1536 : index
    %186 = vector.load %arg8[%c0_81, %c1536_82] : memref<1x4096xf32, #tpu.memory_space<vmem>>, vector<1x256xf32>
    %187 = vector.broadcast %186 : vector<1x256xf32> to vector<128x256xf32>
    %188 = arith.addf %185, %187 : vector<128x256xf32>
    %189 = vector.extract_strided_slice %24 {offsets = [0, 6], sizes = [128, 1], strides = [1, 1]} : vector<128x16xi32> to vector<128x1xi32>
    %190 = vector.broadcast %25 : vector<1x256xi32> to vector<128x256xi32>
    %191 = vector.broadcast %189 : vector<128x1xi32> to vector<128x256xi32>
    %192 = arith.cmpi eq, %190, %191 : vector<128x256xi32>
    %cst_83 = arith.constant 0.000000e+00 : f32
    %193 = vector.broadcast %cst_83 : f32 to vector<128x256xf32>
    %194 = arith.select %192, %188, %193 : vector<128x256xi1>, vector<128x256xf32>
    %cst_84 = arith.constant dense<0.000000e+00> : vector<128xf32>
    %195 = vector.multi_reduction <add>, %194, %cst_84 [1] : vector<128x256xf32> to vector<128xf32>
    %196 = vector.shape_cast %195 : vector<128xf32> to vector<128x1xf32>
    %197 = vector.broadcast %196 : vector<128x1xf32> to vector<128x256xf32>
    %198 = arith.subf %188, %197 : vector<128x256xf32>
    %199 = math.exp %198 : vector<128x256xf32>
    %cst_85 = arith.constant dense<0.000000e+00> : vector<128xf32>
    %200 = vector.multi_reduction <add>, %199, %cst_85 [1] : vector<128x256xf32> to vector<128xf32>
    %201 = vector.shape_cast %200 : vector<128xf32> to vector<128x1xf32>
    %202 = math.log %201 : vector<128x1xf32>
    %cst_86 = arith.constant 0.000000e+00 : f32
    %203 = vector.broadcast %cst_86 : f32 to vector<128x1xf32>
    %204 = arith.subf %203, %202 : vector<128x1xf32>
    %cst_87 = arith.constant -11.5129251 : f32
    %cst_88 = arith.constant -1.00000498E-5 : f32
    %205 = vector.broadcast %cst_87 : f32 to vector<128x1xf32>
    %206 = arith.maximumf %205, %204 : vector<128x1xf32>
    %207 = vector.broadcast %cst_88 : f32 to vector<128x1xf32>
    %208 = arith.minimumf %207, %206 : vector<128x1xf32>
    %209 = arith.addf %157, %208 : vector<128x1xf32>
    %c0_89 = arith.constant 0 : index
    %c1792 = arith.constant 1792 : index
    %210 = vector.load %arg7[%c0_89, %c1792] : memref<128x4096xbf16, #tpu.memory_space<vmem>>, vector<128x256xbf16>
    %cst_90 = arith.constant dense<0.000000e+00> : vector<128x256xf32>
    %211 = tpu.matmul %23, %210, %cst_90 {dimension_numbers = #tpu.dot_dimension_numbers<[1], [0], [0], [1], [0, 0, 1, 1], [], []>} : vector<128x128xbf16>, vector<128x256xbf16>, vector<128x256xf32> -> vector<128x256xf32>
    %c0_91 = arith.constant 0 : index
    %c1792_92 = arith.constant 1792 : index
    %212 = vector.load %arg8[%c0_91, %c1792_92] : memref<1x4096xf32, #tpu.memory_space<vmem>>, vector<1x256xf32>
    %213 = vector.broadcast %212 : vector<1x256xf32> to vector<128x256xf32>
    %214 = arith.addf %211, %213 : vector<128x256xf32>
    %215 = vector.extract_strided_slice %24 {offsets = [0, 7], sizes = [128, 1], strides = [1, 1]} : vector<128x16xi32> to vector<128x1xi32>
    %216 = vector.broadcast %25 : vector<1x256xi32> to vector<128x256xi32>
    %217 = vector.broadcast %215 : vector<128x1xi32> to vector<128x256xi32>
    %218 = arith.cmpi eq, %216, %217 : vector<128x256xi32>
    %cst_93 = arith.constant 0.000000e+00 : f32
    %219 = vector.broadcast %cst_93 : f32 to vector<128x256xf32>
    %220 = arith.select %218, %214, %219 : vector<128x256xi1>, vector<128x256xf32>
    %cst_94 = arith.constant dense<0.000000e+00> : vector<128xf32>
    %221 = vector.multi_reduction <add>, %220, %cst_94 [1] : vector<128x256xf32> to vector<128xf32>
    %222 = vector.shape_cast %221 : vector<128xf32> to vector<128x1xf32>
    %223 = vector.broadcast %222 : vector<128x1xf32> to vector<128x256xf32>
    %224 = arith.subf %214, %223 : vector<128x256xf32>
    %225 = math.exp %224 : vector<128x256xf32>
    %cst_95 = arith.constant dense<0.000000e+00> : vector<128xf32>
    %226 = vector.multi_reduction <add>, %225, %cst_95 [1] : vector<128x256xf32> to vector<128xf32>
    %227 = vector.shape_cast %226 : vector<128xf32> to vector<128x1xf32>
    %228 = math.log %227 : vector<128x1xf32>
    %cst_96 = arith.constant 0.000000e+00 : f32
    %229 = vector.broadcast %cst_96 : f32 to vector<128x1xf32>
    %230 = arith.subf %229, %228 : vector<128x1xf32>
    %cst_97 = arith.constant -11.5129251 : f32
    %cst_98 = arith.constant -1.00000498E-5 : f32
    %231 = vector.broadcast %cst_97 : f32 to vector<128x1xf32>
    %232 = arith.maximumf %231, %230 : vector<128x1xf32>
    %233 = vector.broadcast %cst_98 : f32 to vector<128x1xf32>
    %234 = arith.minimumf %233, %232 : vector<128x1xf32>
    %235 = arith.addf %183, %234 : vector<128x1xf32>
    %c0_99 = arith.constant 0 : index
    %c2048 = arith.constant 2048 : index
    %236 = vector.load %arg7[%c0_99, %c2048] : memref<128x4096xbf16, #tpu.memory_space<vmem>>, vector<128x256xbf16>
    %cst_100 = arith.constant dense<0.000000e+00> : vector<128x256xf32>
    %237 = tpu.matmul %23, %236, %cst_100 {dimension_numbers = #tpu.dot_dimension_numbers<[1], [0], [0], [1], [0, 0, 1, 1], [], []>} : vector<128x128xbf16>, vector<128x256xbf16>, vector<128x256xf32> -> vector<128x256xf32>
    %c0_101 = arith.constant 0 : index
    %c2048_102 = arith.constant 2048 : index
    %238 = vector.load %arg8[%c0_101, %c2048_102] : memref<1x4096xf32, #tpu.memory_space<vmem>>, vector<1x256xf32>
    %239 = vector.broadcast %238 : vector<1x256xf32> to vector<128x256xf32>
    %240 = arith.addf %237, %239 : vector<128x256xf32>
    %241 = vector.extract_strided_slice %24 {offsets = [0, 8], sizes = [128, 1], strides = [1, 1]} : vector<128x16xi32> to vector<128x1xi32>
    %242 = vector.broadcast %25 : vector<1x256xi32> to vector<128x256xi32>
    %243 = vector.broadcast %241 : vector<128x1xi32> to vector<128x256xi32>
    %244 = arith.cmpi eq, %242, %243 : vector<128x256xi32>
    %cst_103 = arith.constant 0.000000e+00 : f32
    %245 = vector.broadcast %cst_103 : f32 to vector<128x256xf32>
    %246 = arith.select %244, %240, %245 : vector<128x256xi1>, vector<128x256xf32>
    %cst_104 = arith.constant dense<0.000000e+00> : vector<128xf32>
    %247 = vector.multi_reduction <add>, %246, %cst_104 [1] : vector<128x256xf32> to vector<128xf32>
    %248 = vector.shape_cast %247 : vector<128xf32> to vector<128x1xf32>
    %249 = vector.broadcast %248 : vector<128x1xf32> to vector<128x256xf32>
    %250 = arith.subf %240, %249 : vector<128x256xf32>
    %251 = math.exp %250 : vector<128x256xf32>
    %cst_105 = arith.constant dense<0.000000e+00> : vector<128xf32>
    %252 = vector.multi_reduction <add>, %251, %cst_105 [1] : vector<128x256xf32> to vector<128xf32>
    %253 = vector.shape_cast %252 : vector<128xf32> to vector<128x1xf32>
    %254 = math.log %253 : vector<128x1xf32>
    %cst_106 = arith.constant 0.000000e+00 : f32
    %255 = vector.broadcast %cst_106 : f32 to vector<128x1xf32>
    %256 = arith.subf %255, %254 : vector<128x1xf32>
    %cst_107 = arith.constant -11.5129251 : f32
    %cst_108 = arith.constant -1.00000498E-5 : f32
    %257 = vector.broadcast %cst_107 : f32 to vector<128x1xf32>
    %258 = arith.maximumf %257, %256 : vector<128x1xf32>
    %259 = vector.broadcast %cst_108 : f32 to vector<128x1xf32>
    %260 = arith.minimumf %259, %258 : vector<128x1xf32>
    %261 = arith.addf %209, %260 : vector<128x1xf32>
    %c0_109 = arith.constant 0 : index
    %c2304 = arith.constant 2304 : index
    %262 = vector.load %arg7[%c0_109, %c2304] : memref<128x4096xbf16, #tpu.memory_space<vmem>>, vector<128x256xbf16>
    %cst_110 = arith.constant dense<0.000000e+00> : vector<128x256xf32>
    %263 = tpu.matmul %23, %262, %cst_110 {dimension_numbers = #tpu.dot_dimension_numbers<[1], [0], [0], [1], [0, 0, 1, 1], [], []>} : vector<128x128xbf16>, vector<128x256xbf16>, vector<128x256xf32> -> vector<128x256xf32>
    %c0_111 = arith.constant 0 : index
    %c2304_112 = arith.constant 2304 : index
    %264 = vector.load %arg8[%c0_111, %c2304_112] : memref<1x4096xf32, #tpu.memory_space<vmem>>, vector<1x256xf32>
    %265 = vector.broadcast %264 : vector<1x256xf32> to vector<128x256xf32>
    %266 = arith.addf %263, %265 : vector<128x256xf32>
    %267 = vector.extract_strided_slice %24 {offsets = [0, 9], sizes = [128, 1], strides = [1, 1]} : vector<128x16xi32> to vector<128x1xi32>
    %268 = vector.broadcast %25 : vector<1x256xi32> to vector<128x256xi32>
    %269 = vector.broadcast %267 : vector<128x1xi32> to vector<128x256xi32>
    %270 = arith.cmpi eq, %268, %269 : vector<128x256xi32>
    %cst_113 = arith.constant 0.000000e+00 : f32
    %271 = vector.broadcast %cst_113 : f32 to vector<128x256xf32>
    %272 = arith.select %270, %266, %271 : vector<128x256xi1>, vector<128x256xf32>
    %cst_114 = arith.constant dense<0.000000e+00> : vector<128xf32>
    %273 = vector.multi_reduction <add>, %272, %cst_114 [1] : vector<128x256xf32> to vector<128xf32>
    %274 = vector.shape_cast %273 : vector<128xf32> to vector<128x1xf32>
    %275 = vector.broadcast %274 : vector<128x1xf32> to vector<128x256xf32>
    %276 = arith.subf %266, %275 : vector<128x256xf32>
    %277 = math.exp %276 : vector<128x256xf32>
    %cst_115 = arith.constant dense<0.000000e+00> : vector<128xf32>
    %278 = vector.multi_reduction <add>, %277, %cst_115 [1] : vector<128x256xf32> to vector<128xf32>
    %279 = vector.shape_cast %278 : vector<128xf32> to vector<128x1xf32>
    %280 = math.log %279 : vector<128x1xf32>
    %cst_116 = arith.constant 0.000000e+00 : f32
    %281 = vector.broadcast %cst_116 : f32 to vector<128x1xf32>
    %282 = arith.subf %281, %280 : vector<128x1xf32>
    %cst_117 = arith.constant -11.5129251 : f32
    %cst_118 = arith.constant -1.00000498E-5 : f32
    %283 = vector.broadcast %cst_117 : f32 to vector<128x1xf32>
    %284 = arith.maximumf %283, %282 : vector<128x1xf32>
    %285 = vector.broadcast %cst_118 : f32 to vector<128x1xf32>
    %286 = arith.minimumf %285, %284 : vector<128x1xf32>
    %287 = arith.addf %235, %286 : vector<128x1xf32>
    %c0_119 = arith.constant 0 : index
    %c2560 = arith.constant 2560 : index
    %288 = vector.load %arg7[%c0_119, %c2560] : memref<128x4096xbf16, #tpu.memory_space<vmem>>, vector<128x256xbf16>
    %cst_120 = arith.constant dense<0.000000e+00> : vector<128x256xf32>
    %289 = tpu.matmul %23, %288, %cst_120 {dimension_numbers = #tpu.dot_dimension_numbers<[1], [0], [0], [1], [0, 0, 1, 1], [], []>} : vector<128x128xbf16>, vector<128x256xbf16>, vector<128x256xf32> -> vector<128x256xf32>
    %c0_121 = arith.constant 0 : index
    %c2560_122 = arith.constant 2560 : index
    %290 = vector.load %arg8[%c0_121, %c2560_122] : memref<1x4096xf32, #tpu.memory_space<vmem>>, vector<1x256xf32>
    %291 = vector.broadcast %290 : vector<1x256xf32> to vector<128x256xf32>
    %292 = arith.addf %289, %291 : vector<128x256xf32>
    %293 = vector.extract_strided_slice %24 {offsets = [0, 10], sizes = [128, 1], strides = [1, 1]} : vector<128x16xi32> to vector<128x1xi32>
    %294 = vector.broadcast %25 : vector<1x256xi32> to vector<128x256xi32>
    %295 = vector.broadcast %293 : vector<128x1xi32> to vector<128x256xi32>
    %296 = arith.cmpi eq, %294, %295 : vector<128x256xi32>
    %cst_123 = arith.constant 0.000000e+00 : f32
    %297 = vector.broadcast %cst_123 : f32 to vector<128x256xf32>
    %298 = arith.select %296, %292, %297 : vector<128x256xi1>, vector<128x256xf32>
    %cst_124 = arith.constant dense<0.000000e+00> : vector<128xf32>
    %299 = vector.multi_reduction <add>, %298, %cst_124 [1] : vector<128x256xf32> to vector<128xf32>
    %300 = vector.shape_cast %299 : vector<128xf32> to vector<128x1xf32>
    %301 = vector.broadcast %300 : vector<128x1xf32> to vector<128x256xf32>
    %302 = arith.subf %292, %301 : vector<128x256xf32>
    %303 = math.exp %302 : vector<128x256xf32>
    %cst_125 = arith.constant dense<0.000000e+00> : vector<128xf32>
    %304 = vector.multi_reduction <add>, %303, %cst_125 [1] : vector<128x256xf32> to vector<128xf32>
    %305 = vector.shape_cast %304 : vector<128xf32> to vector<128x1xf32>
    %306 = math.log %305 : vector<128x1xf32>
    %cst_126 = arith.constant 0.000000e+00 : f32
    %307 = vector.broadcast %cst_126 : f32 to vector<128x1xf32>
    %308 = arith.subf %307, %306 : vector<128x1xf32>
    %cst_127 = arith.constant -11.5129251 : f32
    %cst_128 = arith.constant -1.00000498E-5 : f32
    %309 = vector.broadcast %cst_127 : f32 to vector<128x1xf32>
    %310 = arith.maximumf %309, %308 : vector<128x1xf32>
    %311 = vector.broadcast %cst_128 : f32 to vector<128x1xf32>
    %312 = arith.minimumf %311, %310 : vector<128x1xf32>
    %313 = arith.addf %261, %312 : vector<128x1xf32>
    %c0_129 = arith.constant 0 : index
    %c2816 = arith.constant 2816 : index
    %314 = vector.load %arg7[%c0_129, %c2816] : memref<128x4096xbf16, #tpu.memory_space<vmem>>, vector<128x256xbf16>
    %cst_130 = arith.constant dense<0.000000e+00> : vector<128x256xf32>
    %315 = tpu.matmul %23, %314, %cst_130 {dimension_numbers = #tpu.dot_dimension_numbers<[1], [0], [0], [1], [0, 0, 1, 1], [], []>} : vector<128x128xbf16>, vector<128x256xbf16>, vector<128x256xf32> -> vector<128x256xf32>
    %c0_131 = arith.constant 0 : index
    %c2816_132 = arith.constant 2816 : index
    %316 = vector.load %arg8[%c0_131, %c2816_132] : memref<1x4096xf32, #tpu.memory_space<vmem>>, vector<1x256xf32>
    %317 = vector.broadcast %316 : vector<1x256xf32> to vector<128x256xf32>
    %318 = arith.addf %315, %317 : vector<128x256xf32>
    %319 = vector.extract_strided_slice %24 {offsets = [0, 11], sizes = [128, 1], strides = [1, 1]} : vector<128x16xi32> to vector<128x1xi32>
    %320 = vector.broadcast %25 : vector<1x256xi32> to vector<128x256xi32>
    %321 = vector.broadcast %319 : vector<128x1xi32> to vector<128x256xi32>
    %322 = arith.cmpi eq, %320, %321 : vector<128x256xi32>
    %cst_133 = arith.constant 0.000000e+00 : f32
    %323 = vector.broadcast %cst_133 : f32 to vector<128x256xf32>
    %324 = arith.select %322, %318, %323 : vector<128x256xi1>, vector<128x256xf32>
    %cst_134 = arith.constant dense<0.000000e+00> : vector<128xf32>
    %325 = vector.multi_reduction <add>, %324, %cst_134 [1] : vector<128x256xf32> to vector<128xf32>
    %326 = vector.shape_cast %325 : vector<128xf32> to vector<128x1xf32>
    %327 = vector.broadcast %326 : vector<128x1xf32> to vector<128x256xf32>
    %328 = arith.subf %318, %327 : vector<128x256xf32>
    %329 = math.exp %328 : vector<128x256xf32>
    %cst_135 = arith.constant dense<0.000000e+00> : vector<128xf32>
    %330 = vector.multi_reduction <add>, %329, %cst_135 [1] : vector<128x256xf32> to vector<128xf32>
    %331 = vector.shape_cast %330 : vector<128xf32> to vector<128x1xf32>
    %332 = math.log %331 : vector<128x1xf32>
    %cst_136 = arith.constant 0.000000e+00 : f32
    %333 = vector.broadcast %cst_136 : f32 to vector<128x1xf32>
    %334 = arith.subf %333, %332 : vector<128x1xf32>
    %cst_137 = arith.constant -11.5129251 : f32
    %cst_138 = arith.constant -1.00000498E-5 : f32
    %335 = vector.broadcast %cst_137 : f32 to vector<128x1xf32>
    %336 = arith.maximumf %335, %334 : vector<128x1xf32>
    %337 = vector.broadcast %cst_138 : f32 to vector<128x1xf32>
    %338 = arith.minimumf %337, %336 : vector<128x1xf32>
    %339 = arith.addf %287, %338 : vector<128x1xf32>
    %c0_139 = arith.constant 0 : index
    %c3072 = arith.constant 3072 : index
    %340 = vector.load %arg7[%c0_139, %c3072] : memref<128x4096xbf16, #tpu.memory_space<vmem>>, vector<128x256xbf16>
    %cst_140 = arith.constant dense<0.000000e+00> : vector<128x256xf32>
    %341 = tpu.matmul %23, %340, %cst_140 {dimension_numbers = #tpu.dot_dimension_numbers<[1], [0], [0], [1], [0, 0, 1, 1], [], []>} : vector<128x128xbf16>, vector<128x256xbf16>, vector<128x256xf32> -> vector<128x256xf32>
    %c0_141 = arith.constant 0 : index
    %c3072_142 = arith.constant 3072 : index
    %342 = vector.load %arg8[%c0_141, %c3072_142] : memref<1x4096xf32, #tpu.memory_space<vmem>>, vector<1x256xf32>
    %343 = vector.broadcast %342 : vector<1x256xf32> to vector<128x256xf32>
    %344 = arith.addf %341, %343 : vector<128x256xf32>
    %345 = vector.extract_strided_slice %24 {offsets = [0, 12], sizes = [128, 1], strides = [1, 1]} : vector<128x16xi32> to vector<128x1xi32>
    %346 = vector.broadcast %25 : vector<1x256xi32> to vector<128x256xi32>
    %347 = vector.broadcast %345 : vector<128x1xi32> to vector<128x256xi32>
    %348 = arith.cmpi eq, %346, %347 : vector<128x256xi32>
    %cst_143 = arith.constant 0.000000e+00 : f32
    %349 = vector.broadcast %cst_143 : f32 to vector<128x256xf32>
    %350 = arith.select %348, %344, %349 : vector<128x256xi1>, vector<128x256xf32>
    %cst_144 = arith.constant dense<0.000000e+00> : vector<128xf32>
    %351 = vector.multi_reduction <add>, %350, %cst_144 [1] : vector<128x256xf32> to vector<128xf32>
    %352 = vector.shape_cast %351 : vector<128xf32> to vector<128x1xf32>
    %353 = vector.broadcast %352 : vector<128x1xf32> to vector<128x256xf32>
    %354 = arith.subf %344, %353 : vector<128x256xf32>
    %355 = math.exp %354 : vector<128x256xf32>
    %cst_145 = arith.constant dense<0.000000e+00> : vector<128xf32>
    %356 = vector.multi_reduction <add>, %355, %cst_145 [1] : vector<128x256xf32> to vector<128xf32>
    %357 = vector.shape_cast %356 : vector<128xf32> to vector<128x1xf32>
    %358 = math.log %357 : vector<128x1xf32>
    %cst_146 = arith.constant 0.000000e+00 : f32
    %359 = vector.broadcast %cst_146 : f32 to vector<128x1xf32>
    %360 = arith.subf %359, %358 : vector<128x1xf32>
    %cst_147 = arith.constant -11.5129251 : f32
    %cst_148 = arith.constant -1.00000498E-5 : f32
    %361 = vector.broadcast %cst_147 : f32 to vector<128x1xf32>
    %362 = arith.maximumf %361, %360 : vector<128x1xf32>
    %363 = vector.broadcast %cst_148 : f32 to vector<128x1xf32>
    %364 = arith.minimumf %363, %362 : vector<128x1xf32>
    %365 = arith.addf %313, %364 : vector<128x1xf32>
    %c0_149 = arith.constant 0 : index
    %c3328 = arith.constant 3328 : index
    %366 = vector.load %arg7[%c0_149, %c3328] : memref<128x4096xbf16, #tpu.memory_space<vmem>>, vector<128x256xbf16>
    %cst_150 = arith.constant dense<0.000000e+00> : vector<128x256xf32>
    %367 = tpu.matmul %23, %366, %cst_150 {dimension_numbers = #tpu.dot_dimension_numbers<[1], [0], [0], [1], [0, 0, 1, 1], [], []>} : vector<128x128xbf16>, vector<128x256xbf16>, vector<128x256xf32> -> vector<128x256xf32>
    %c0_151 = arith.constant 0 : index
    %c3328_152 = arith.constant 3328 : index
    %368 = vector.load %arg8[%c0_151, %c3328_152] : memref<1x4096xf32, #tpu.memory_space<vmem>>, vector<1x256xf32>
    %369 = vector.broadcast %368 : vector<1x256xf32> to vector<128x256xf32>
    %370 = arith.addf %367, %369 : vector<128x256xf32>
    %371 = vector.extract_strided_slice %24 {offsets = [0, 13], sizes = [128, 1], strides = [1, 1]} : vector<128x16xi32> to vector<128x1xi32>
    %372 = vector.broadcast %25 : vector<1x256xi32> to vector<128x256xi32>
    %373 = vector.broadcast %371 : vector<128x1xi32> to vector<128x256xi32>
    %374 = arith.cmpi eq, %372, %373 : vector<128x256xi32>
    %cst_153 = arith.constant 0.000000e+00 : f32
    %375 = vector.broadcast %cst_153 : f32 to vector<128x256xf32>
    %376 = arith.select %374, %370, %375 : vector<128x256xi1>, vector<128x256xf32>
    %cst_154 = arith.constant dense<0.000000e+00> : vector<128xf32>
    %377 = vector.multi_reduction <add>, %376, %cst_154 [1] : vector<128x256xf32> to vector<128xf32>
    %378 = vector.shape_cast %377 : vector<128xf32> to vector<128x1xf32>
    %379 = vector.broadcast %378 : vector<128x1xf32> to vector<128x256xf32>
    %380 = arith.subf %370, %379 : vector<128x256xf32>
    %381 = math.exp %380 : vector<128x256xf32>
    %cst_155 = arith.constant dense<0.000000e+00> : vector<128xf32>
    %382 = vector.multi_reduction <add>, %381, %cst_155 [1] : vector<128x256xf32> to vector<128xf32>
    %383 = vector.shape_cast %382 : vector<128xf32> to vector<128x1xf32>
    %384 = math.log %383 : vector<128x1xf32>
    %cst_156 = arith.constant 0.000000e+00 : f32
    %385 = vector.broadcast %cst_156 : f32 to vector<128x1xf32>
    %386 = arith.subf %385, %384 : vector<128x1xf32>
    %cst_157 = arith.constant -11.5129251 : f32
    %cst_158 = arith.constant -1.00000498E-5 : f32
    %387 = vector.broadcast %cst_157 : f32 to vector<128x1xf32>
    %388 = arith.maximumf %387, %386 : vector<128x1xf32>
    %389 = vector.broadcast %cst_158 : f32 to vector<128x1xf32>
    %390 = arith.minimumf %389, %388 : vector<128x1xf32>
    %391 = arith.addf %339, %390 : vector<128x1xf32>
    %c0_159 = arith.constant 0 : index
    %c3584 = arith.constant 3584 : index
    %392 = vector.load %arg7[%c0_159, %c3584] : memref<128x4096xbf16, #tpu.memory_space<vmem>>, vector<128x256xbf16>
    %cst_160 = arith.constant dense<0.000000e+00> : vector<128x256xf32>
    %393 = tpu.matmul %23, %392, %cst_160 {dimension_numbers = #tpu.dot_dimension_numbers<[1], [0], [0], [1], [0, 0, 1, 1], [], []>} : vector<128x128xbf16>, vector<128x256xbf16>, vector<128x256xf32> -> vector<128x256xf32>
    %c0_161 = arith.constant 0 : index
    %c3584_162 = arith.constant 3584 : index
    %394 = vector.load %arg8[%c0_161, %c3584_162] : memref<1x4096xf32, #tpu.memory_space<vmem>>, vector<1x256xf32>
    %395 = vector.broadcast %394 : vector<1x256xf32> to vector<128x256xf32>
    %396 = arith.addf %393, %395 : vector<128x256xf32>
    %397 = vector.extract_strided_slice %24 {offsets = [0, 14], sizes = [128, 1], strides = [1, 1]} : vector<128x16xi32> to vector<128x1xi32>
    %398 = vector.broadcast %25 : vector<1x256xi32> to vector<128x256xi32>
    %399 = vector.broadcast %397 : vector<128x1xi32> to vector<128x256xi32>
    %400 = arith.cmpi eq, %398, %399 : vector<128x256xi32>
    %cst_163 = arith.constant 0.000000e+00 : f32
    %401 = vector.broadcast %cst_163 : f32 to vector<128x256xf32>
    %402 = arith.select %400, %396, %401 : vector<128x256xi1>, vector<128x256xf32>
    %cst_164 = arith.constant dense<0.000000e+00> : vector<128xf32>
    %403 = vector.multi_reduction <add>, %402, %cst_164 [1] : vector<128x256xf32> to vector<128xf32>
    %404 = vector.shape_cast %403 : vector<128xf32> to vector<128x1xf32>
    %405 = vector.broadcast %404 : vector<128x1xf32> to vector<128x256xf32>
    %406 = arith.subf %396, %405 : vector<128x256xf32>
    %407 = math.exp %406 : vector<128x256xf32>
    %cst_165 = arith.constant dense<0.000000e+00> : vector<128xf32>
    %408 = vector.multi_reduction <add>, %407, %cst_165 [1] : vector<128x256xf32> to vector<128xf32>
    %409 = vector.shape_cast %408 : vector<128xf32> to vector<128x1xf32>
    %410 = math.log %409 : vector<128x1xf32>
    %cst_166 = arith.constant 0.000000e+00 : f32
    %411 = vector.broadcast %cst_166 : f32 to vector<128x1xf32>
    %412 = arith.subf %411, %410 : vector<128x1xf32>
    %cst_167 = arith.constant -11.5129251 : f32
    %cst_168 = arith.constant -1.00000498E-5 : f32
    %413 = vector.broadcast %cst_167 : f32 to vector<128x1xf32>
    %414 = arith.maximumf %413, %412 : vector<128x1xf32>
    %415 = vector.broadcast %cst_168 : f32 to vector<128x1xf32>
    %416 = arith.minimumf %415, %414 : vector<128x1xf32>
    %417 = arith.addf %365, %416 : vector<128x1xf32>
    %c0_169 = arith.constant 0 : index
    %c3840 = arith.constant 3840 : index
    %418 = vector.load %arg7[%c0_169, %c3840] : memref<128x4096xbf16, #tpu.memory_space<vmem>>, vector<128x256xbf16>
    %cst_170 = arith.constant dense<0.000000e+00> : vector<128x256xf32>
    %419 = tpu.matmul %23, %418, %cst_170 {dimension_numbers = #tpu.dot_dimension_numbers<[1], [0], [0], [1], [0, 0, 1, 1], [], []>} : vector<128x128xbf16>, vector<128x256xbf16>, vector<128x256xf32> -> vector<128x256xf32>
    %c0_171 = arith.constant 0 : index
    %c3840_172 = arith.constant 3840 : index
    %420 = vector.load %arg8[%c0_171, %c3840_172] : memref<1x4096xf32, #tpu.memory_space<vmem>>, vector<1x256xf32>
    %421 = vector.broadcast %420 : vector<1x256xf32> to vector<128x256xf32>
    %422 = arith.addf %419, %421 : vector<128x256xf32>
    %423 = vector.extract_strided_slice %24 {offsets = [0, 15], sizes = [128, 1], strides = [1, 1]} : vector<128x16xi32> to vector<128x1xi32>
    %424 = vector.broadcast %25 : vector<1x256xi32> to vector<128x256xi32>
    %425 = vector.broadcast %423 : vector<128x1xi32> to vector<128x256xi32>
    %426 = arith.cmpi eq, %424, %425 : vector<128x256xi32>
    %cst_173 = arith.constant 0.000000e+00 : f32
    %427 = vector.broadcast %cst_173 : f32 to vector<128x256xf32>
    %428 = arith.select %426, %422, %427 : vector<128x256xi1>, vector<128x256xf32>
    %cst_174 = arith.constant dense<0.000000e+00> : vector<128xf32>
    %429 = vector.multi_reduction <add>, %428, %cst_174 [1] : vector<128x256xf32> to vector<128xf32>
    %430 = vector.shape_cast %429 : vector<128xf32> to vector<128x1xf32>
    %431 = vector.broadcast %430 : vector<128x1xf32> to vector<128x256xf32>
    %432 = arith.subf %422, %431 : vector<128x256xf32>
    %433 = math.exp %432 : vector<128x256xf32>
    %cst_175 = arith.constant dense<0.000000e+00> : vector<128xf32>
    %434 = vector.multi_reduction <add>, %433, %cst_175 [1] : vector<128x256xf32> to vector<128xf32>
    %435 = vector.shape_cast %434 : vector<128xf32> to vector<128x1xf32>
    %436 = math.log %435 : vector<128x1xf32>
    %cst_176 = arith.constant 0.000000e+00 : f32
    %437 = vector.broadcast %cst_176 : f32 to vector<128x1xf32>
    %438 = arith.subf %437, %436 : vector<128x1xf32>
    %cst_177 = arith.constant -11.5129251 : f32
    %cst_178 = arith.constant -1.00000498E-5 : f32
    %439 = vector.broadcast %cst_177 : f32 to vector<128x1xf32>
    %440 = arith.maximumf %439, %438 : vector<128x1xf32>
    %441 = vector.broadcast %cst_178 : f32 to vector<128x1xf32>
    %442 = arith.minimumf %441, %440 : vector<128x1xf32>
    %443 = arith.addf %391, %442 : vector<128x1xf32>
    %444 = arith.addf %417, %443 : vector<128x1xf32>
    %c0_179 = arith.constant 0 : index
    %c0_180 = arith.constant 0 : index
    %445 = vector.load %arg9[%c0_179, %c0_180] : memref<128x1xf32, #tpu.memory_space<vmem>>, vector<128x1xf32>
    tpu.vector_store %arg9[%c0_179, %c0_180], %444 {strides = array<i32>} : memref<128x1xf32, #tpu.memory_space<vmem>>, vector<128x1xf32>,
    return
  }
  func.func @transform_0(%arg0: i32) -> (i32, i32) {
    %c0_i32 = arith.constant 0 : i32
    %c0_i32_0 = arith.constant 0 : i32
    return %arg0, %c0_i32 : i32, i32
  }
  func.func @transform_1(%arg0: i32) -> (i32, i32) {
    %c0_i32 = arith.constant 0 : i32
    %c0_i32_0 = arith.constant 0 : i32
    return %arg0, %c0_i32 : i32, i32
  }
  func.func @transform_2(%arg0: i32) -> (i32, i32) {
    %c0_i32 = arith.constant 0 : i32
    %c0_i32_0 = arith.constant 0 : i32
    %c0_i32_1 = arith.constant 0 : i32
    return %c0_i32, %c0_i32_0 : i32, i32
  }
  func.func @transform_3(%arg0: i32) -> (i32, i32) {
    %c0_i32 = arith.constant 0 : i32
    %c0_i32_0 = arith.constant 0 : i32
    %c0_i32_1 = arith.constant 0 : i32
    return %c0_i32, %c0_i32_0 : i32, i32
  }
  func.func @transform_4(%arg0: i32) -> (i32, i32) {
    %c0_i32 = arith.constant 0 : i32
    %c0_i32_0 = arith.constant 0 : i32
    %c0_i32_1 = arith.constant 0 : i32
    return %c0_i32, %c0_i32_0 : i32, i32
  }
  func.func @transform_5(%arg0: i32) -> (i32, i32) {
    %c0_i32 = arith.constant 0 : i32
    %c0_i32_0 = arith.constant 0 : i32
    %c0_i32_1 = arith.constant 0 : i32
    return %c0_i32, %c0_i32_0 : i32, i32
  }
  func.func @transform_6(%arg0: i32) -> (i32, i32) {
    %c0_i32 = arith.constant 0 : i32
    %c0_i32_0 = arith.constant 0 : i32
    %c0_i32_1 = arith.constant 0 : i32
    return %c0_i32, %c0_i32_0 : i32, i32
  }
  func.func @transform_7(%arg0: i32) -> (i32, i32) {
    %c0_i32 = arith.constant 0 : i32
    %c0_i32_0 = arith.constant 0 : i32
    %c0_i32_1 = arith.constant 0 : i32
    return %c0_i32, %c0_i32_0 : i32, i32
  }
  func.func @transform_8(%arg0: i32) -> (i32, i32) {
    %c0_i32 = arith.constant 0 : i32
    %c0_i32_0 = arith.constant 0 : i32
    return %arg0, %c0_i32 : i32, i32
  }
}

</mosaic_0001>

<llo_original>
// kernel: tpu_custom_call.1
$region0: #{tpu_custom_call.1}
  #allocation0 [shape = 'u32[]', space=smem, size = 0x4, offset = 0x4, fixed_abs, tag = 'smem constant byte address 0x4 - core index']
  #allocation1 [shape = 'u32[144,128]{1,0:T(1,128)}', space=vmem, size = 0x12000, scoped, tag = 'internal scratch']
  %s0 = inlined_call_operand.vmem [shape: f32[256,16], index: 0, kind: input, shape index: {}]
  %s1 = inlined_call_operand.vmem [shape: s32[256,16], index: 1, kind: input, shape index: {}]
  %s2 = inlined_call_operand.vmem [shape: bf16[16,128], index: 2, kind: input, shape index: {}]
  %s3 = inlined_call_operand.vmem [shape: f32[1,128], index: 3, kind: input, shape index: {}]
  %s4 = inlined_call_operand.vmem [shape: bf16[128,128], index: 4, kind: input, shape index: {}]
  %s5 = inlined_call_operand.vmem [shape: f32[1,128], index: 5, kind: input, shape index: {}]
  %s6 = inlined_call_operand.hbm [shape: bf16[128,4096], index: 6, kind: input, shape index: {}]
  %s7 = inlined_call_operand.vmem [shape: f32[1,4096], index: 7, kind: input, shape index: {}]
  %s8 = inlined_call_operand.vmem [shape: f32[256,1], index: 8, kind: output, shape index: {}]
  %s9 = sld [smem:[#allocation0]]
  $region69: #{tpu_custom_call.1} parent=0
    _
  %s11 = ssub.s32 1, %s9
  %s12 = scalar_select 0, %s11, %s9
  $region1: #{tpu_custom_call.1} parent=0
    #allocation2 [shape = 'u8[1048576]{0}', space=vmem, size = 0x100000, scoped, tag = 'input window, operand 6, single buffered']
    #allocation3 [shape = 's32[2]{0}', space=sflag, size = 0x8, scoped, tag = 'scoped memory for tpu_custom_call.1']
    %13 = vsyncpa [#allocation3], 0
    loop: start=0, step=1, limit=4
    $region2: #{tpu_custom_call.1} parent=1 // loop_pre_header
      _
    $region3: #{tpu_custom_call.1} parent=1 // loop_header
      %s15 = sphi 0, %s19
      %p16 = scmp.ge.s32.totalorder %s15, 4
      %s25 = sphi 0, %s27
      %s28 = sphi 0, %s25
      %s29 = sphi 0, %s28
      %s45 = sphi 0, %s29
      %s51 = sphi 0, %s53
      %s54 = sphi 0, %s51
      %s55 = sphi 0, %s54
      %s71 = sphi 0, %s55
      %s75 = sphi 0, %s75
      %s77 = sphi 0, %s75
      %s78 = sphi 0, %s77
      %s92 = sphi 0, %s78
      %s96 = sphi 0, %s96
      %s98 = sphi 0, %s96
      %s99 = sphi 0, %s98
      %s113 = sphi 0, %s99
      %s117 = sphi 0, %s117
      %s119 = sphi 0, %s117
      %s120 = sphi 0, %s119
      %s134 = sphi 0, %s120
      %s138 = sphi 0, %s138
      %s140 = sphi 0, %s138
      %s141 = sphi 0, %s140
      %s155 = sphi 0, %s141
      %s159 = sphi 0, %s159
      %s161 = sphi 0, %s159
      %s162 = sphi 0, %s161
      %s176 = sphi 0, %s162
      %s180 = sphi 0, %s180
      %s182 = sphi 0, %s180
      %s183 = sphi 0, %s182
      %s197 = sphi 0, %s183
      %s203 = sphi 0, %s205
      %s206 = sphi 0, %s203
      %s207 = sphi 0, %s206
      %s223 = sphi 0, %s207
    $region4: #{tpu_custom_call.1} parent=1 // loop_header_branch
      %18 = sbr.rel (%p16) target = $region8
    $region5: #{tpu_custom_call.1} parent=1 // loop_body
      %s20 = ssub.s32 %s15, 1
      %s21 = ssub.s32 %s15, 2
      %s22 = sadd.s32 %s15, 1
      %s23 = ssub.s32 %s15, %s22
      %p24 = scmp.eq.s32.totalorder %s23, 0
      %s26 = sadd.s32 %s25, 1
      %s27 = scalar_select %p24, %s25, %s26
      %p30 = pneg %p24
      %p31 = scmp.eq.s32.totalorder %s15, 1
      %p32 = por %p30, %p31
      %p33 = scmp.ne.s32.totalorder %s25, %s28
      %p34 = scmp.eq.s32.totalorder %s15, 0
      %p35 = por %p33, %p34
      %p36 = scmp.ne.s32.totalorder %s25, %s28
      %p37 = scmp.eq.s32.totalorder %s20, 1
      %p38 = por %p36, %p37
      %p39 = scmp.ne.s32.totalorder %s28, %s29
      %p40 = scmp.eq.s32.totalorder %s20, 0
      %p41 = por %p39, %p40
      %p42 = scmp.ne.s32.totalorder %s28, %s29
      %p43 = scmp.eq.s32.totalorder %s21, 1
      %p44 = por %p42, %p43
      %p46 = scmp.ne.s32.totalorder %s29, %s45
      %p47 = scmp.eq.s32.totalorder %s21, 0
      %p48 = por %p46, %p47
      %s49 = ssub.s32 %s15, %s22
      %p50 = scmp.eq.s32.totalorder %s49, 0
      %s52 = sadd.s32 %s51, 1
      %s53 = scalar_select %p50, %s51, %s52
      %p56 = pneg %p50
      %p57 = scmp.eq.s32.totalorder %s15, 1
      %p58 = por %p56, %p57
      %p59 = scmp.ne.s32.totalorder %s51, %s54
      %p60 = scmp.eq.s32.totalorder %s15, 0
      %p61 = por %p59, %p60
      %p62 = scmp.ne.s32.totalorder %s51, %s54
      %p63 = scmp.eq.s32.totalorder %s20, 1
      %p64 = por %p62, %p63
      %p65 = scmp.ne.s32.totalorder %s54, %s55
      %p66 = scmp.eq.s32.totalorder %s20, 0
      %p67 = por %p65, %p66
      %p68 = scmp.ne.s32.totalorder %s54, %s55
      %p69 = scmp.eq.s32.totalorder %s21, 1
      %p70 = por %p68, %p69
      %p72 = scmp.ne.s32.totalorder %s55, %s71
      %p73 = scmp.eq.s32.totalorder %s21, 0
      %p74 = por %p72, %p73
      %s76 = sadd.s32 %s75, 1
      %p79 = scmp.eq.s32.totalorder %s15, 1
      %p80 = scmp.ne.s32.totalorder %s75, %s77
      %p81 = scmp.eq.s32.totalorder %s15, 0
      %p82 = por %p80, %p81
      %p83 = scmp.ne.s32.totalorder %s75, %s77
      %p84 = scmp.eq.s32.totalorder %s20, 1
      %p85 = por %p83, %p84
      %p86 = scmp.ne.s32.totalorder %s77, %s78
      %p87 = scmp.eq.s32.totalorder %s20, 0
      %p88 = por %p86, %p87
      %p89 = scmp.ne.s32.totalorder %s77, %s78
      %p90 = scmp.eq.s32.totalorder %s21, 1
      %p91 = por %p89, %p90
      %p93 = scmp.ne.s32.totalorder %s78, %s92
      %p94 = scmp.eq.s32.totalorder %s21, 0
      %p95 = por %p93, %p94
      %s97 = sadd.s32 %s96, 1
      %p100 = scmp.eq.s32.totalorder %s15, 1
      %p101 = scmp.ne.s32.totalorder %s96, %s98
      %p102 = scmp.eq.s32.totalorder %s15, 0
      %p103 = por %p101, %p102
      %p104 = scmp.ne.s32.totalorder %s96, %s98
      %p105 = scmp.eq.s32.totalorder %s20, 1
      %p106 = por %p104, %p105
      %p107 = scmp.ne.s32.totalorder %s98, %s99
      %p108 = scmp.eq.s32.totalorder %s20, 0
      %p109 = por %p107, %p108
      %p110 = scmp.ne.s32.totalorder %s98, %s99
      %p111 = scmp.eq.s32.totalorder %s21, 1
      %p112 = por %p110, %p111
      %p114 = scmp.ne.s32.totalorder %s99, %s113
      %p115 = scmp.eq.s32.totalorder %s21, 0
      %p116 = por %p114, %p115
      %s118 = sadd.s32 %s117, 1
      %p121 = scmp.eq.s32.totalorder %s15, 1
      %p122 = scmp.ne.s32.totalorder %s117, %s119
      %p123 = scmp.eq.s32.totalorder %s15, 0
      %p124 = por %p122, %p123
      %p125 = scmp.ne.s32.totalorder %s117, %s119
      %p126 = scmp.eq.s32.totalorder %s20, 1
      %p127 = por %p125, %p126
      %p128 = scmp.ne.s32.totalorder %s119, %s120
      %p129 = scmp.eq.s32.totalorder %s20, 0
      %p130 = por %p128, %p129
      %p131 = scmp.ne.s32.totalorder %s119, %s120
      %p132 = scmp.eq.s32.totalorder %s21, 1
      %p133 = por %p131, %p132
      %p135 = scmp.ne.s32.totalorder %s120, %s134
      %p136 = scmp.eq.s32.totalorder %s21, 0
      %p137 = por %p135, %p136
      %s139 = sadd.s32 %s138, 1
      %p142 = scmp.eq.s32.totalorder %s15, 1
      %p143 = scmp.ne.s32.totalorder %s138, %s140
      %p144 = scmp.eq.s32.totalorder %s15, 0
      %p145 = por %p143, %p144
      %p146 = scmp.ne.s32.totalorder %s138, %s140
      %p147 = scmp.eq.s32.totalorder %s20, 1
      %p148 = por %p146, %p147
      %p149 = scmp.ne.s32.totalorder %s140, %s141
      %p150 = scmp.eq.s32.totalorder %s20, 0
      %p151 = por %p149, %p150
      %p152 = scmp.ne.s32.totalorder %s140, %s141
      %p153 = scmp.eq.s32.totalorder %s21, 1
      %p154 = por %p152, %p153
      %p156 = scmp.ne.s32.totalorder %s141, %s155
      %p157 = scmp.eq.s32.totalorder %s21, 0
      %p158 = por %p156, %p157
      %s160 = sadd.s32 %s159, 1
      %p163 = scmp.eq.s32.totalorder %s15, 1
      %p164 = scmp.ne.s32.totalorder %s159, %s161
      %p165 = scmp.eq.s32.totalorder %s15, 0
      %p166 = por %p164, %p165
      %p167 = scmp.ne.s32.totalorder %s159, %s161
      %p168 = scmp.eq.s32.totalorder %s20, 1
      %p169 = por %p167, %p168
      %p170 = scmp.ne.s32.totalorder %s161, %s162
      %p171 = scmp.eq.s32.totalorder %s20, 0
      %p172 = por %p170, %p171
      %p173 = scmp.ne.s32.totalorder %s161, %s162
      %p174 = scmp.eq.s32.totalorder %s21, 1
      %p175 = por %p173, %p174
      %p177 = scmp.ne.s32.totalorder %s162, %s176
      %p178 = scmp.eq.s32.totalorder %s21, 0
      %p179 = por %p177, %p178
      %s181 = sadd.s32 %s180, 1
      %p184 = scmp.eq.s32.totalorder %s15, 1
      %p185 = scmp.ne.s32.totalorder %s180, %s182
      %p186 = scmp.eq.s32.totalorder %s15, 0
      %p187 = por %p185, %p186
      %p188 = scmp.ne.s32.totalorder %s180, %s182
      %p189 = scmp.eq.s32.totalorder %s20, 1
      %p190 = por %p188, %p189
      %p191 = scmp.ne.s32.totalorder %s182, %s183
      %p192 = scmp.eq.s32.totalorder %s20, 0
      %p193 = por %p191, %p192
      %p194 = scmp.ne.s32.totalorder %s182, %s183
      %p195 = scmp.eq.s32.totalorder %s21, 1
      %p196 = por %p194, %p195
      %p198 = scmp.ne.s32.totalorder %s183, %s197
      %p199 = scmp.eq.s32.totalorder %s21, 0
      %p200 = por %p198, %p199
      %s201 = ssub.s32 %s15, %s22
      %p202 = scmp.eq.s32.totalorder %s201, 0
      %s204 = sadd.s32 %s203, 1
      %s205 = scalar_select %p202, %s203, %s204
      %p208 = pneg %p202
      %p209 = scmp.eq.s32.totalorder %s15, 1
      %p210 = por %p208, %p209
      %p211 = scmp.ne.s32.totalorder %s203, %s206
      %p212 = scmp.eq.s32.totalorder %s15, 0
      %p213 = por %p211, %p212
      %p214 = scmp.ne.s32.totalorder %s203, %s206
      %p215 = scmp.eq.s32.totalorder %s20, 1
      %p216 = por %p214, %p215
      %p217 = scmp.ne.s32.totalorder %s206, %s207
      %p218 = scmp.eq.s32.totalorder %s20, 0
      %p219 = por %p217, %p218
      %p220 = scmp.ne.s32.totalorder %s206, %s207
      %p221 = scmp.eq.s32.totalorder %s21, 1
      %p222 = por %p220, %p221
      %p224 = scmp.ne.s32.totalorder %s207, %s223
      %p225 = scmp.eq.s32.totalorder %s21, 0
      %p226 = por %p224, %p225
      %p227 = scmp.le.s32.totalorder 1, %s15
      %p228 = scmp.lt.s32.totalorder %s15, 3
      %p229 = pnand %p227, %p228
      %p230 = pneg %p229
      // Predicated region
      $region9: #{tpu_custom_call.1} parent=5 // pred_check
        _
      $region10: #{tpu_custom_call.1} parent=5 // pred_check_branch
        %232 = sbr.rel (%p229) target = $region12
      $region11: #{tpu_custom_call.1} parent=5 // pred_region
        %s233 = ssub.s32 %s15, 1
        // Predicated region
        $region13: #{tpu_custom_call.1} parent=11 // pred_check
          %p234 = pneg %p88
        $region14: #{tpu_custom_call.1} parent=11 // pred_check_branch
          %236 = sbr.rel (%p234) target = $region16
        $region15: #{tpu_custom_call.1} parent=11 // pred_region
          _
        $region16: #{tpu_custom_call.1} parent=11 // pred_fallthru
          _
        // Predicated region
        $region17: #{tpu_custom_call.1} parent=11 // pred_check
          %p237 = pneg %p109
        $region18: #{tpu_custom_call.1} parent=11 // pred_check_branch
          %239 = sbr.rel (%p237) target = $region20
        $region19: #{tpu_custom_call.1} parent=11 // pred_region
          _
        $region20: #{tpu_custom_call.1} parent=11 // pred_fallthru
          _
        // Predicated region
        $region21: #{tpu_custom_call.1} parent=11 // pred_check
          %p240 = pneg %p130
        $region22: #{tpu_custom_call.1} parent=11 // pred_check_branch
          %242 = sbr.rel (%p240) target = $region24
        $region23: #{tpu_custom_call.1} parent=11 // pred_region
          _
        $region24: #{tpu_custom_call.1} parent=11 // pred_fallthru
          _
        // Predicated region
        $region25: #{tpu_custom_call.1} parent=11 // pred_check
          %p243 = pneg %p151
        $region26: #{tpu_custom_call.1} parent=11 // pred_check_branch
          %245 = sbr.rel (%p243) target = $region28
        $region27: #{tpu_custom_call.1} parent=11 // pred_region
          _
        $region28: #{tpu_custom_call.1} parent=11 // pred_fallthru
          _
        // Predicated region
        $region29: #{tpu_custom_call.1} parent=11 // pred_check
          %p246 = pneg %p172
        $region30: #{tpu_custom_call.1} parent=11 // pred_check_branch
          %248 = sbr.rel (%p246) target = $region32
        $region31: #{tpu_custom_call.1} parent=11 // pred_region
          %s250 = ssub.s32 32768, 32768
          %251 = vsyncadd [#allocation3], %s250
          %s252 = sshll.u32 [#allocation2], 4
          %s253 = int_to_ptr.vmem [resolvable:$true] %s252
          %258 = dma.hbm_to_vmem [thread:$0]  %s6, 32768, %s253, [#allocation3], 2048, 2048, 128
        $region32: #{tpu_custom_call.1} parent=11 // pred_fallthru
          _
        // Predicated region
        $region33: #{tpu_custom_call.1} parent=11 // pred_check
          %p259 = pneg %p193
        $region34: #{tpu_custom_call.1} parent=11 // pred_check_branch
          %261 = sbr.rel (%p259) target = $region36
        $region35: #{tpu_custom_call.1} parent=11 // pred_region
          _
        $region36: #{tpu_custom_call.1} parent=11 // pred_fallthru
          _
      $region12: #{tpu_custom_call.1} parent=5 // pred_fallthru
        _
      %p262 = scmp.lt.s32.totalorder %s15, 2
      // Predicated region
      $region37: #{tpu_custom_call.1} parent=5 // pred_check
        %p263 = pneg %p262
      $region38: #{tpu_custom_call.1} parent=5 // pred_check_branch
        %265 = sbr.rel (%p263) target = $region40
      $region39: #{tpu_custom_call.1} parent=5 // pred_region
        // Predicated region
        $region41: #{tpu_custom_call.1} parent=39 // pred_check
          %p266 = pneg %p35
        $region42: #{tpu_custom_call.1} parent=39 // pred_check_branch
          %268 = sbr.rel (%p266) target = $region44
        $region43: #{tpu_custom_call.1} parent=39 // pred_region
          %s269 = smul.u32 16, %s15
          %p270 = scmp.lt.s32.totalorder %s269, 31
          %s271 = scalar_select %p270, %s269, 31
          %s272 = smul.addr %s271, 8
          %s273 = scalar_lea.vmem %s0, %s272
          %s274 = smul.u32 16, %s15
        $region44: #{tpu_custom_call.1} parent=39 // pred_fallthru
          _
        // Predicated region
        $region45: #{tpu_custom_call.1} parent=39 // pred_check
          %p275 = pneg %p61
        $region46: #{tpu_custom_call.1} parent=39 // pred_check_branch
          %277 = sbr.rel (%p275) target = $region48
        $region47: #{tpu_custom_call.1} parent=39 // pred_region
          %s278 = smul.u32 16, %s15
          %p279 = scmp.lt.s32.totalorder %s278, 31
          %s280 = scalar_select %p279, %s278, 31
          %s281 = smul.addr %s280, 8
          %s282 = scalar_lea.vmem %s1, %s281
          %s283 = smul.u32 16, %s15
        $region48: #{tpu_custom_call.1} parent=39 // pred_fallthru
          _
      $region40: #{tpu_custom_call.1} parent=5 // pred_fallthru
        _
      %p284 = scmp.le.s32.totalorder 1, %s15
      %p285 = scmp.lt.s32.totalorder %s15, 3
      %p286 = pnand %p284, %p285
      %p287 = pneg %p286
      // Predicated region
      $region49: #{tpu_custom_call.1} parent=5 // pred_check
        _
      $region50: #{tpu_custom_call.1} parent=5 // pred_check_branch
        %289 = sbr.rel (%p286) target = $region52
      $region51: #{tpu_custom_call.1} parent=5 // pred_region
        %s290 = ssub.s32 %s15, 1
        // Predicated region
        $region53: #{tpu_custom_call.1} parent=51 // pred_check
          %p291 = pneg %p172
        $region54: #{tpu_custom_call.1} parent=51 // pred_check_branch
          %293 = sbr.rel (%p291) target = $region56
        $region55: #{tpu_custom_call.1} parent=51 // pred_region
          %294 = dma.done [#allocation3], 32768
        $region56: #{tpu_custom_call.1} parent=51 // pred_fallthru
          _
        %s295 = smul.u32 16, %s20
        %p296 = scmp.lt.s32.totalorder %s295, 31
        %s297 = scalar_select %p296, %s295, 31
        %s298 = smul.addr %s297, 8
        %s299 = scalar_lea.vmem %s0, %s298
        %p300 = pneg %p41
        %p301 = pneg %p38
        %s302 = smul.u32 16, %s20
        %p303 = scmp.lt.s32.totalorder %s302, 31
        %s304 = scalar_select %p303, %s302, 31
        %s305 = smul.addr %s304, 8
        %s306 = scalar_lea.vmem %s1, %s305
        %p307 = pneg %p67
        %p308 = pneg %p64
        %p309 = pneg %p88
        %p310 = pneg %p85
        %p311 = pneg %p109
        %p312 = pneg %p106
        %p313 = pneg %p130
        %p314 = pneg %p127
        %p315 = pneg %p151
        %p316 = pneg %p148
        %p317 = pneg %p172
        %p318 = pneg %p169
        %p319 = pneg %p193
        %p320 = pneg %p190
        %p321 = pneg %p219
        %p322 = pneg %p216
        %s323 = smul.u32 16, %s20
        %p324 = scmp.lt.s32.totalorder %s323, 31
        %s325 = scalar_select %p324, %s323, 31
        %s326 = smul.addr %s325, 8
        %s327 = scalar_lea.vmem %s8, %s326
        %s328 = smul.u32 16, %s20
        %p329 = scmp.lt.s32.totalorder %s328, 31
        %s330 = scalar_select %p329, %s328, 31
        %s331 = smul.addr %s330, 8
        %s332 = scalar_lea.vmem %s0, %s331
        %s333 = smul.u32 16, %s20
        %s334 = smul.u32 16, %s20
        %p335 = scmp.lt.s32.totalorder %s334, 31
        %s336 = scalar_select %p335, %s334, 31
        %s337 = smul.addr %s336, 8
        %s338 = scalar_lea.vmem %s1, %s337
        %s339 = smul.u32 16, %s20
        %s340 = smul.u32 16, %s20
        %p341 = scmp.lt.s32.totalorder %s340, 31
        %s342 = scalar_select %p341, %s340, 31
        %s343 = smul.addr %s342, 8
        %s344 = scalar_lea.vmem %s8, %s343
        %s345 = smul.u32 16, %s20
        %v347 = vld [vmem:[%s332] sm:$0xff]
        %v348 = vld [vmem:[%s332 + $0x8] sm:$0xff]
        %v349 = vld [vmem:[%s332 + $0x10] sm:$0xff]
        %v350 = vld [vmem:[%s332 + $0x18] sm:$0xff]
        %v351 = vld [vmem:[%s332 + $0x20] sm:$0xff]
        %v352 = vld [vmem:[%s332 + $0x28] sm:$0xff]
        %v353 = vld [vmem:[%s332 + $0x30] sm:$0xff]
        %v354 = vld [vmem:[%s332 + $0x38] sm:$0xff]
        %v355 = vld [vmem:[%s332 + $0x40] sm:$0xff]
        %v356 = vld [vmem:[%s332 + $0x48] sm:$0xff]
        %v357 = vld [vmem:[%s332 + $0x50] sm:$0xff]
        %v358 = vld [vmem:[%s332 + $0x58] sm:$0xff]
        %v359 = vld [vmem:[%s332 + $0x60] sm:$0xff]
        %v360 = vld [vmem:[%s332 + $0x68] sm:$0xff]
        %v361 = vld [vmem:[%s332 + $0x70] sm:$0xff]
        %v362 = vld [vmem:[%s332 + $0x78] sm:$0xff]
        %v363 = vpack.c.bf16 %v348, %v347
        %v364 = vpack.c.bf16 %v350, %v349
        %v365 = vpack.c.bf16 %v352, %v351
        %v366 = vpack.c.bf16 %v354, %v353
        %v367 = vpack.c.bf16 %v356, %v355
        %v368 = vpack.c.bf16 %v358, %v357
        %v369 = vpack.c.bf16 %v360, %v359
        %v370 = vpack.c.bf16 %v362, %v361
        %v371 = vld [vmem:[%s2] sm:$0xf]
        %v372 = vld [vmem:[%s2 + $0x4] sm:$0xf]
        %v373 = vld [vmem:[%s3] sm:$0x1]
        %v375 = vlaneseq
        %v376 = vshrl.u32 %v375, 7
        %v377 = vsub.s32 0, %v376
        %v378 = vrot.slane %v373, %v377
        %v382 = vunpack.c.l.b16 %v371
        %v383 = vunpack.c.l.b16 %v372
        %v384 = vpack.c.b16 %v383, %v382
        %vm386 = vcmask 130048
        %v388 = vsel %vm386, %v363, 0
        %v391 = vsel %vm386, %v364, 0
        %v394 = vsel %vm386, %v365, 0
        %v397 = vsel %vm386, %v366, 0
        %v400 = vsel %vm386, %v367, 0
        %v403 = vsel %vm386, %v368, 0
        %v406 = vsel %vm386, %v369, 0
        %v409 = vsel %vm386, %v370, 0
        %411 = vmatprep.subr.bf16.mxu0 0
        %412 = vmatpush1.bf16.msra.mxu0 0
        %413 = vmatprep.subr.bf16.mxu0 0
        %414 = vmatpush1.bf16.msra.mxu0 0
        %415 = vmatprep.subr.bf16.mxu0 0
        %416 = vmatpush1.bf16.msra.mxu0 0
        %417 = vmatprep.subr.bf16.mxu0 0
        %418 = vmatpush1.bf16.msra.mxu0 0
        %419 = vmatprep.subr.bf16.mxu0 0
        %420 = vmatpush1.bf16.msra.mxu0 0
        %421 = vmatprep.subr.bf16.mxu0 0
        %422 = vmatpush1.bf16.msra.mxu0 0
        %423 = vmatprep.subr.bf16.mxu0 0
        %424 = vmatpush1.bf16.msra.mxu0 0
        %425 = vmatprep.subr.bf16.mxu0 0
        %426 = vmatpush1.bf16.msra.mxu0 %v384
        %427 = vmatprep.subr.bf16.mxu0 0
        %428 = vmatpush2.bf16.msra.mxu0 0
        %429 = vmatprep.subr.bf16.mxu0 0
        %430 = vmatpush2.bf16.msra.mxu0 0
        %431 = vmatprep.subr.bf16.mxu0 0
        %432 = vmatpush2.bf16.msra.mxu0 0
        %433 = vmatprep.subr.bf16.mxu0 0
        %434 = vmatpush2.bf16.msra.mxu0 0
        %435 = vmatprep.subr.bf16.mxu0 0
        %436 = vmatpush2.bf16.msra.mxu0 0
        %437 = vmatprep.subr.bf16.mxu0 0
        %438 = vmatpush2.bf16.msra.mxu0 0
        %439 = vmatprep.subr.bf16.mxu0 0
        %440 = vmatpush2.bf16.msra.mxu0 0
        %441 = vmatprep.subr.bf16.mxu0 0
        %442 = vmatpush2.bf16.msra.mxu0 0
        %443 = vmatprep.mubr.bf16.mxu0 0
        %444 = vmatmul.mubr.bf16.gmra.mxu0 %v388
        %v445 = vpop.f32.mrf.mxu0
        %v446 = vadd.f32 %v378, %v445
        %v447 = vpop.f32.mrf.mxu0
        %v448 = vpop.f32.mrf.mxu0
        %v449 = vadd.f32 %v378, %v448
        %v450 = vpop.f32.mrf.mxu0
        %451 = vmatprep.mubr.bf16.mxu0 0
        %452 = vmatmul.mubr.bf16.gmra.mxu0 %v391
        %v453 = vpop.f32.mrf.mxu0
        %v454 = vadd.f32 %v378, %v453
        %v455 = vpop.f32.mrf.mxu0
        %v456 = vpop.f32.mrf.mxu0
        %v457 = vadd.f32 %v378, %v456
        %v458 = vpop.f32.mrf.mxu0
        %459 = vmatprep.mubr.bf16.mxu0 0
        %460 = vmatmul.mubr.bf16.gmra.mxu0 %v394
        %v461 = vpop.f32.mrf.mxu0
        %v462 = vadd.f32 %v378, %v461
        %v463 = vpop.f32.mrf.mxu0
        %v464 = vpop.f32.mrf.mxu0
        %v465 = vadd.f32 %v378, %v464
        %v466 = vpop.f32.mrf.mxu0
        %467 = vmatprep.mubr.bf16.mxu0 0
        %468 = vmatmul.mubr.bf16.gmra.mxu0 %v397
        %v469 = vpop.f32.mrf.mxu0
        %v470 = vadd.f32 %v378, %v469
        %v471 = vpop.f32.mrf.mxu0
        %v472 = vpop.f32.mrf.mxu0
        %v473 = vadd.f32 %v378, %v472
        %v474 = vpop.f32.mrf.mxu0
        %475 = vmatprep.mubr.bf16.mxu0 0
        %476 = vmatmul.mubr.bf16.gmra.mxu0 %v400
        %v477 = vpop.f32.mrf.mxu0
        %v478 = vadd.f32 %v378, %v477
        %v479 = vpop.f32.mrf.mxu0
        %v480 = vpop.f32.mrf.mxu0
        %v481 = vadd.f32 %v378, %v480
        %v482 = vpop.f32.mrf.mxu0
        %483 = vmatprep.mubr.bf16.mxu0 0
        %484 = vmatmul.mubr.bf16.gmra.mxu0 %v403
        %v485 = vpop.f32.mrf.mxu0
        %v486 = vadd.f32 %v378, %v485
        %v487 = vpop.f32.mrf.mxu0
        %v488 = vpop.f32.mrf.mxu0
        %v489 = vadd.f32 %v378, %v488
        %v490 = vpop.f32.mrf.mxu0
        %491 = vmatprep.mubr.bf16.mxu0 0
        %492 = vmatmul.mubr.bf16.gmra.mxu0 %v406
        %v493 = vpop.f32.mrf.mxu0
        %v494 = vadd.f32 %v378, %v493
        %v495 = vpop.f32.mrf.mxu0
        %v496 = vpop.f32.mrf.mxu0
        %v497 = vadd.f32 %v378, %v496
        %v498 = vpop.f32.mrf.mxu0
        %499 = vmatprep.mubr.bf16.mxu0 0
        %500 = vmatmul.mubr.bf16.gmra.mxu0 %v409
        %v501 = vpop.f32.mrf.mxu0
        %v502 = vadd.f32 %v378, %v501
        %v503 = vpop.f32.mrf.mxu0
        %v504 = vpop.f32.mrf.mxu0
        %v505 = vadd.f32 %v378, %v504
        %v506 = vpop.f32.mrf.mxu0
        %507 = vdwg.mxu0
        %vm508 = vcmp.gt.f32.partialorder %v446, 0.0
        %vm509 = vcmp.gt.f32.partialorder %v449, 0.0
        %vm510 = vcmp.gt.f32.partialorder %v454, 0.0
        %vm511 = vcmp.gt.f32.partialorder %v457, 0.0
        %vm512 = vcmp.gt.f32.partialorder %v462, 0.0
        %vm513 = vcmp.gt.f32.partialorder %v465, 0.0
        %vm514 = vcmp.gt.f32.partialorder %v470, 0.0
        %vm515 = vcmp.gt.f32.partialorder %v473, 0.0
        %vm516 = vcmp.gt.f32.partialorder %v478, 0.0
        %vm517 = vcmp.gt.f32.partialorder %v481, 0.0
        %vm518 = vcmp.gt.f32.partialorder %v486, 0.0
        %vm519 = vcmp.gt.f32.partialorder %v489, 0.0
        %vm520 = vcmp.gt.f32.partialorder %v494, 0.0
        %vm521 = vcmp.gt.f32.partialorder %v497, 0.0
        %vm522 = vcmp.gt.f32.partialorder %v502, 0.0
        %vm523 = vcmp.gt.f32.partialorder %v505, 0.0
        %v524 = vmul.f32 %v446, 0.01
        %v525 = vmul.f32 %v449, 0.01
        %v526 = vmul.f32 %v454, 0.01
        %v527 = vmul.f32 %v457, 0.01
        %v528 = vmul.f32 %v462, 0.01
        %v529 = vmul.f32 %v465, 0.01
        %v530 = vmul.f32 %v470, 0.01
        %v531 = vmul.f32 %v473, 0.01
        %v532 = vmul.f32 %v478, 0.01
        %v533 = vmul.f32 %v481, 0.01
        %v534 = vmul.f32 %v486, 0.01
        %v535 = vmul.f32 %v489, 0.01
        %v536 = vmul.f32 %v494, 0.01
        %v537 = vmul.f32 %v497, 0.01
        %v538 = vmul.f32 %v502, 0.01
        %v539 = vmul.f32 %v505, 0.01
        %v540 = vsel %vm508, %v446, %v524
        %v541 = vsel %vm509, %v449, %v525
        %v542 = vsel %vm510, %v454, %v526
        %v543 = vsel %vm511, %v457, %v527
        %v544 = vsel %vm512, %v462, %v528
        %v545 = vsel %vm513, %v465, %v529
        %v546 = vsel %vm514, %v470, %v530
        %v547 = vsel %vm515, %v473, %v531
        %v548 = vsel %vm516, %v478, %v532
        %v549 = vsel %vm517, %v481, %v533
        %v550 = vsel %vm518, %v486, %v534
        %v551 = vsel %vm519, %v489, %v535
        %v552 = vsel %vm520, %v494, %v536
        %v553 = vsel %vm521, %v497, %v537
        %v554 = vsel %vm522, %v502, %v538
        %v555 = vsel %vm523, %v505, %v539
        %v556 = vpack.c.bf16 %v541, %v540
        %v557 = vpack.c.bf16 %v543, %v542
        %v558 = vpack.c.bf16 %v545, %v544
        %v559 = vpack.c.bf16 %v547, %v546
        %v560 = vpack.c.bf16 %v549, %v548
        %v561 = vpack.c.bf16 %v551, %v550
        %v562 = vpack.c.bf16 %v553, %v552
        %v563 = vpack.c.bf16 %v555, %v554
        %v564 = vld [vmem:[%s4] sm:$0xf]
        %v565 = vld [vmem:[%s4 + $0x4] sm:$0xf]
        %v566 = vld [vmem:[%s4 + $0x8] sm:$0xf]
        %v567 = vld [vmem:[%s4 + $0xc] sm:$0xf]
        %v568 = vld [vmem:[%s4 + $0x10] sm:$0xf]
        %v569 = vld [vmem:[%s4 + $0x14] sm:$0xf]
        %v570 = vld [vmem:[%s4 + $0x18] sm:$0xf]
        %v571 = vld [vmem:[%s4 + $0x1c] sm:$0xf]
        %v572 = vld [vmem:[%s4 + $0x20] sm:$0xf]
        %v573 = vld [vmem:[%s4 + $0x24] sm:$0xf]
        %v574 = vld [vmem:[%s4 + $0x28] sm:$0xf]
        %v575 = vld [vmem:[%s4 + $0x2c] sm:$0xf]
        %v576 = vld [vmem:[%s4 + $0x30] sm:$0xf]
        %v577 = vld [vmem:[%s4 + $0x34] sm:$0xf]
        %v578 = vld [vmem:[%s4 + $0x38] sm:$0xf]
        %v579 = vld [vmem:[%s4 + $0x3c] sm:$0xf]
        %v580 = vld [vmem:[%s5] sm:$0x1]
        %v582 = vlaneseq
        %v583 = vshrl.u32 %v582, 7
        %v584 = vsub.s32 0, %v583
        %v585 = vrot.slane %v580, %v584
        %v603 = vunpack.c.l.b16 %v564
        %v604 = vunpack.c.l.b16 %v565
        %v605 = vunpack.c.l.b16 %v566
        %v606 = vunpack.c.l.b16 %v567
        %v607 = vunpack.c.l.b16 %v568
        %v608 = vunpack.c.l.b16 %v569
        %v609 = vunpack.c.l.b16 %v570
        %v610 = vunpack.c.l.b16 %v571
        %v611 = vunpack.c.l.b16 %v572
        %v612 = vunpack.c.l.b16 %v573
        %v613 = vunpack.c.l.b16 %v574
        %v614 = vunpack.c.l.b16 %v575
        %v615 = vunpack.c.l.b16 %v576
        %v616 = vunpack.c.l.b16 %v577
        %v617 = vunpack.c.l.b16 %v578
        %v618 = vunpack.c.l.b16 %v579
        %v619 = vpack.c.b16 %v604, %v603
        %v620 = vpack.c.b16 %v606, %v605
        %v621 = vpack.c.b16 %v608, %v607
        %v622 = vpack.c.b16 %v610, %v609
        %v623 = vpack.c.b16 %v612, %v611
        %v624 = vpack.c.b16 %v614, %v613
        %v625 = vpack.c.b16 %v616, %v615
        %v626 = vpack.c.b16 %v618, %v617
        %635 = vmatprep.subr.bf16.mxu0 0
        %636 = vmatpush1.bf16.msra.mxu0 %v626
        %637 = vmatprep.subr.bf16.mxu0 0
        %638 = vmatpush1.bf16.msra.mxu0 %v625
        %639 = vmatprep.subr.bf16.mxu0 0
        %640 = vmatpush1.bf16.msra.mxu0 %v624
        %641 = vmatprep.subr.bf16.mxu0 0
        %642 = vmatpush1.bf16.msra.mxu0 %v623
        %643 = vmatprep.subr.bf16.mxu0 0
        %644 = vmatpush1.bf16.msra.mxu0 %v622
        %645 = vmatprep.subr.bf16.mxu0 0
        %646 = vmatpush1.bf16.msra.mxu0 %v621
        %647 = vmatprep.subr.bf16.mxu0 0
        %648 = vmatpush1.bf16.msra.mxu0 %v620
        %649 = vmatprep.subr.bf16.mxu0 0
        %650 = vmatpush1.bf16.msra.mxu0 %v619
        %651 = vmatprep.subr.bf16.mxu0 0
        %652 = vmatpush2.bf16.msra.mxu0 0
        %653 = vmatprep.subr.bf16.mxu0 0
        %654 = vmatpush2.bf16.msra.mxu0 0
        %655 = vmatprep.subr.bf16.mxu0 0
        %656 = vmatpush2.bf16.msra.mxu0 0
        %657 = vmatprep.subr.bf16.mxu0 0
        %658 = vmatpush2.bf16.msra.mxu0 0
        %659 = vmatprep.subr.bf16.mxu0 0
        %660 = vmatpush2.bf16.msra.mxu0 0
        %661 = vmatprep.subr.bf16.mxu0 0
        %662 = vmatpush2.bf16.msra.mxu0 0
        %663 = vmatprep.subr.bf16.mxu0 0
        %664 = vmatpush2.bf16.msra.mxu0 0
        %665 = vmatprep.subr.bf16.mxu0 0
        %666 = vmatpush2.bf16.msra.mxu0 0
        %667 = vmatprep.mubr.bf16.mxu0 0
        %668 = vmatmul.mubr.bf16.gmra.mxu0 %v556
        %v669 = vpop.f32.mrf.mxu0
        %v670 = vadd.f32 %v585, %v669
        %v671 = vpop.f32.mrf.mxu0
        %v672 = vpop.f32.mrf.mxu0
        %v673 = vadd.f32 %v585, %v672
        %v674 = vpop.f32.mrf.mxu0
        %675 = vmatprep.mubr.bf16.mxu0 0
        %676 = vmatmul.mubr.bf16.gmra.mxu0 %v557
        %v677 = vpop.f32.mrf.mxu0
        %v678 = vadd.f32 %v585, %v677
        %v679 = vpop.f32.mrf.mxu0
        %v680 = vpop.f32.mrf.mxu0
        %v681 = vadd.f32 %v585, %v680
        %v682 = vpop.f32.mrf.mxu0
        %683 = vmatprep.mubr.bf16.mxu0 0
        %684 = vmatmul.mubr.bf16.gmra.mxu0 %v558
        %v685 = vpop.f32.mrf.mxu0
        %v686 = vadd.f32 %v585, %v685
        %v687 = vpop.f32.mrf.mxu0
        %v688 = vpop.f32.mrf.mxu0
        %v689 = vadd.f32 %v585, %v688
        %v690 = vpop.f32.mrf.mxu0
        %691 = vmatprep.mubr.bf16.mxu0 0
        %692 = vmatmul.mubr.bf16.gmra.mxu0 %v559
        %v693 = vpop.f32.mrf.mxu0
        %v694 = vadd.f32 %v585, %v693
        %v695 = vpop.f32.mrf.mxu0
        %v696 = vpop.f32.mrf.mxu0
        %v697 = vadd.f32 %v585, %v696
        %v698 = vpop.f32.mrf.mxu0
        %699 = vmatprep.mubr.bf16.mxu0 0
        %700 = vmatmul.mubr.bf16.gmra.mxu0 %v560
        %v701 = vpop.f32.mrf.mxu0
        %v702 = vadd.f32 %v585, %v701
        %v703 = vpop.f32.mrf.mxu0
        %v704 = vpop.f32.mrf.mxu0
        %v705 = vadd.f32 %v585, %v704
        %v706 = vpop.f32.mrf.mxu0
        %707 = vmatprep.mubr.bf16.mxu0 0
        %708 = vmatmul.mubr.bf16.gmra.mxu0 %v561
        %v709 = vpop.f32.mrf.mxu0
        %v710 = vadd.f32 %v585, %v709
        %v711 = vpop.f32.mrf.mxu0
        %v712 = vpop.f32.mrf.mxu0
        %v713 = vadd.f32 %v585, %v712
        %v714 = vpop.f32.mrf.mxu0
        %715 = vmatprep.mubr.bf16.mxu0 0
        %716 = vmatmul.mubr.bf16.gmra.mxu0 %v562
        %v717 = vpop.f32.mrf.mxu0
        %v718 = vadd.f32 %v585, %v717
        %v719 = vpop.f32.mrf.mxu0
        %v720 = vpop.f32.mrf.mxu0
        %v721 = vadd.f32 %v585, %v720
        %v722 = vpop.f32.mrf.mxu0
        %723 = vmatprep.mubr.bf16.mxu0 0
        %724 = vmatmul.mubr.bf16.gmra.mxu0 %v563
        %v725 = vpop.f32.mrf.mxu0
        %v726 = vadd.f32 %v585, %v725
        %v727 = vpop.f32.mrf.mxu0
        %v728 = vpop.f32.mrf.mxu0
        %v729 = vadd.f32 %v585, %v728
        %v730 = vpop.f32.mrf.mxu0
        %731 = vdwg.mxu0
        %vm732 = vcmp.gt.f32.partialorder %v670, 0.0
        %vm733 = vcmp.gt.f32.partialorder %v673, 0.0
        %vm734 = vcmp.gt.f32.partialorder %v678, 0.0
        %vm735 = vcmp.gt.f32.partialorder %v681, 0.0
        %vm736 = vcmp.gt.f32.partialorder %v686, 0.0
        %vm737 = vcmp.gt.f32.partialorder %v689, 0.0
        %vm738 = vcmp.gt.f32.partialorder %v694, 0.0
        %vm739 = vcmp.gt.f32.partialorder %v697, 0.0
        %vm740 = vcmp.gt.f32.partialorder %v702, 0.0
        %vm741 = vcmp.gt.f32.partialorder %v705, 0.0
        %vm742 = vcmp.gt.f32.partialorder %v710, 0.0
        %vm743 = vcmp.gt.f32.partialorder %v713, 0.0
        %vm744 = vcmp.gt.f32.partialorder %v718, 0.0
        %vm745 = vcmp.gt.f32.partialorder %v721, 0.0
        %vm746 = vcmp.gt.f32.partialorder %v726, 0.0
        %vm747 = vcmp.gt.f32.partialorder %v729, 0.0
        %v748 = vmul.f32 %v670, 0.01
        %v749 = vmul.f32 %v673, 0.01
        %v750 = vmul.f32 %v678, 0.01
        %v751 = vmul.f32 %v681, 0.01
        %v752 = vmul.f32 %v686, 0.01
        %v753 = vmul.f32 %v689, 0.01
        %v754 = vmul.f32 %v694, 0.01
        %v755 = vmul.f32 %v697, 0.01
        %v756 = vmul.f32 %v702, 0.01
        %v757 = vmul.f32 %v705, 0.01
        %v758 = vmul.f32 %v710, 0.01
        %v759 = vmul.f32 %v713, 0.01
        %v760 = vmul.f32 %v718, 0.01
        %v761 = vmul.f32 %v721, 0.01
        %v762 = vmul.f32 %v726, 0.01
        %v763 = vmul.f32 %v729, 0.01
        %v764 = vsel %vm732, %v670, %v748
        %v765 = vsel %vm733, %v673, %v749
        %v766 = vsel %vm734, %v678, %v750
        %v767 = vsel %vm735, %v681, %v751
        %v768 = vsel %vm736, %v686, %v752
        %v769 = vsel %vm737, %v689, %v753
        %v770 = vsel %vm738, %v694, %v754
        %v771 = vsel %vm739, %v697, %v755
        %v772 = vsel %vm740, %v702, %v756
        %v773 = vsel %vm741, %v705, %v757
        %v774 = vsel %vm742, %v710, %v758
        %v775 = vsel %vm743, %v713, %v759
        %v776 = vsel %vm744, %v718, %v760
        %v777 = vsel %vm745, %v721, %v761
        %v778 = vsel %vm746, %v726, %v762
        %v779 = vsel %vm747, %v729, %v763
        %v780 = vpack.c.bf16 %v765, %v764
        %v781 = vpack.c.bf16 %v767, %v766
        %v782 = vpack.c.bf16 %v769, %v768
        %v783 = vpack.c.bf16 %v771, %v770
        %v784 = vpack.c.bf16 %v773, %v772
        %v785 = vpack.c.bf16 %v775, %v774
        %v786 = vpack.c.bf16 %v777, %v776
        %v787 = vpack.c.bf16 %v779, %v778
        %v788 = vld [vmem:[%s338] sm:$0xff]
        %v789 = vld [vmem:[%s338 + $0x8] sm:$0xff]
        %v790 = vld [vmem:[%s338 + $0x10] sm:$0xff]
        %v791 = vld [vmem:[%s338 + $0x18] sm:$0xff]
        %v792 = vld [vmem:[%s338 + $0x20] sm:$0xff]
        %v793 = vld [vmem:[%s338 + $0x28] sm:$0xff]
        %v794 = vld [vmem:[%s338 + $0x30] sm:$0xff]
        %v795 = vld [vmem:[%s338 + $0x38] sm:$0xff]
        %v796 = vld [vmem:[%s338 + $0x40] sm:$0xff]
        %v797 = vld [vmem:[%s338 + $0x48] sm:$0xff]
        %v798 = vld [vmem:[%s338 + $0x50] sm:$0xff]
        %v799 = vld [vmem:[%s338 + $0x58] sm:$0xff]
        %v800 = vld [vmem:[%s338 + $0x60] sm:$0xff]
        %v801 = vld [vmem:[%s338 + $0x68] sm:$0xff]
        %v802 = vld [vmem:[%s338 + $0x70] sm:$0xff]
        %v803 = vld [vmem:[%s338 + $0x78] sm:$0xff]
        %v804 = vlaneseq
        %v805 = vand.u32 %v804, 127
        %v806 = vadd.s32 %v805, 128
        %v807 = vld [vmem:[#allocation2] sm:$0xff]
        %v808 = vld [vmem:[#allocation2 + $0x80] sm:$0xff]
        %v809 = vld [vmem:[#allocation2 + $0x100] sm:$0xff]
        %v810 = vld [vmem:[#allocation2 + $0x180] sm:$0xff]
        %v811 = vld [vmem:[#allocation2 + $0x200] sm:$0xff]
        %v812 = vld [vmem:[#allocation2 + $0x280] sm:$0xff]
        %v813 = vld [vmem:[#allocation2 + $0x300] sm:$0xff]
        %v814 = vld [vmem:[#allocation2 + $0x380] sm:$0xff]
        %v815 = vld [vmem:[#allocation2 + $0x400] sm:$0xff]
        %v816 = vld [vmem:[#allocation2 + $0x480] sm:$0xff]
        %v817 = vld [vmem:[#allocation2 + $0x500] sm:$0xff]
        %v818 = vld [vmem:[#allocation2 + $0x580] sm:$0xff]
        %v819 = vld [vmem:[#allocation2 + $0x600] sm:$0xff]
        %v820 = vld [vmem:[#allocation2 + $0x680] sm:$0xff]
        %v821 = vld [vmem:[#allocation2 + $0x700] sm:$0xff]
        %v822 = vld [vmem:[#allocation2 + $0x780] sm:$0xff]
        %v823 = vld [vmem:[%s7] sm:$0x3]
        %v825 = vlaneseq
        %v826 = vshrl.u32 %v825, 7
        %v827 = vsub.s32 0, %v826
        %v828 = vrot.slane %v823, %v827
        %v829 = vlaneseq
        %v830 = vshrl.u32 %v829, 7
        %v831 = vsub.s32 1, %v830
        %v832 = vrot.slane %v823, %v831
        %v851 = vunpack.c.l.b16 %v807
        %v852 = vunpack.c.h.b16 %v807
        %v853 = vunpack.c.l.b16 %v808
        %v854 = vunpack.c.h.b16 %v808
        %v855 = vunpack.c.l.b16 %v809
        %v856 = vunpack.c.h.b16 %v809
        %v857 = vunpack.c.l.b16 %v810
        %v858 = vunpack.c.h.b16 %v810
        %v859 = vunpack.c.l.b16 %v811
        %v860 = vunpack.c.h.b16 %v811
        %v861 = vunpack.c.l.b16 %v812
        %v862 = vunpack.c.h.b16 %v812
        %v863 = vunpack.c.l.b16 %v813
        %v864 = vunpack.c.h.b16 %v813
        %v865 = vunpack.c.l.b16 %v814
        %v866 = vunpack.c.h.b16 %v814
        %v867 = vunpack.c.l.b16 %v815
        %v868 = vunpack.c.h.b16 %v815
        %v869 = vunpack.c.l.b16 %v816
        %v870 = vunpack.c.h.b16 %v816
        %v871 = vunpack.c.l.b16 %v817
        %v872 = vunpack.c.h.b16 %v817
        %v873 = vunpack.c.l.b16 %v818
        %v874 = vunpack.c.h.b16 %v818
        %v875 = vunpack.c.l.b16 %v819
        %v876 = vunpack.c.h.b16 %v819
        %v877 = vunpack.c.l.b16 %v820
        %v878 = vunpack.c.h.b16 %v820
        %v879 = vunpack.c.l.b16 %v821
        %v880 = vunpack.c.h.b16 %v821
        %v881 = vunpack.c.l.b16 %v822
        %v882 = vunpack.c.h.b16 %v822
        %v883 = vpack.c.b16 %v853, %v851
        %v884 = vpack.c.b16 %v854, %v852
        %v885 = vpack.c.b16 %v857, %v855
        %v886 = vpack.c.b16 %v858, %v856
        %v887 = vpack.c.b16 %v861, %v859
        %v888 = vpack.c.b16 %v862, %v860
        %v889 = vpack.c.b16 %v865, %v863
        %v890 = vpack.c.b16 %v866, %v864
        %v891 = vpack.c.b16 %v869, %v867
        %v892 = vpack.c.b16 %v870, %v868
        %v893 = vpack.c.b16 %v873, %v871
        %v894 = vpack.c.b16 %v874, %v872
        %v895 = vpack.c.b16 %v877, %v875
        %v896 = vpack.c.b16 %v878, %v876
        %v897 = vpack.c.b16 %v881, %v879
        %v898 = vpack.c.b16 %v882, %v880
        %915 = vmatprep.subr.bf16.mxu0 %v898
        %916 = vmatpush1.bf16.msra.mxu0 %v897
        %917 = vmatprep.subr.bf16.mxu0 %v896
        %918 = vmatpush1.bf16.msra.mxu0 %v895
        %919 = vmatprep.subr.bf16.mxu0 %v894
        %920 = vmatpush1.bf16.msra.mxu0 %v893
        %921 = vmatprep.subr.bf16.mxu0 %v892
        %922 = vmatpush1.bf16.msra.mxu0 %v891
        %923 = vmatprep.subr.bf16.mxu0 %v890
        %924 = vmatpush1.bf16.msra.mxu0 %v889
        %925 = vmatprep.subr.bf16.mxu0 %v888
        %926 = vmatpush1.bf16.msra.mxu0 %v887
        %927 = vmatprep.subr.bf16.mxu0 %v886
        %928 = vmatpush1.bf16.msra.mxu0 %v885
        %929 = vmatprep.subr.bf16.mxu0 %v884
        %930 = vmatpush1.bf16.msra.mxu0 %v883
        %931 = vmatprep.subr.bf16.mxu0 0
        %932 = vmatpush2.bf16.msra.mxu0 0
        %933 = vmatprep.subr.bf16.mxu0 0
        %934 = vmatpush2.bf16.msra.mxu0 0
        %935 = vmatprep.subr.bf16.mxu0 0
        %936 = vmatpush2.bf16.msra.mxu0 0
        %937 = vmatprep.subr.bf16.mxu0 0
        %938 = vmatpush2.bf16.msra.mxu0 0
        %939 = vmatprep.subr.bf16.mxu0 0
        %940 = vmatpush2.bf16.msra.mxu0 0
        %941 = vmatprep.subr.bf16.mxu0 0
        %942 = vmatpush2.bf16.msra.mxu0 0
        %943 = vmatprep.subr.bf16.mxu0 0
        %944 = vmatpush2.bf16.msra.mxu0 0
        %945 = vmatprep.subr.bf16.mxu0 0
        %946 = vmatpush2.bf16.msra.mxu0 0
        %947 = vmatprep.mubr.bf16.mxu0 0
        %948 = vmatmul.mubr.bf16.gmra.mxu0 %v780
        %v949 = vpop.f32.mrf.mxu0
        %v950 = vadd.f32 %v828, %v949
        %v951 = vpop.f32.mrf.mxu0
        %v952 = vadd.f32 %v832, %v951
        %v953 = vpop.f32.mrf.mxu0
        %v954 = vadd.f32 %v828, %v953
        %v955 = vpop.f32.mrf.mxu0
        %v956 = vadd.f32 %v832, %v955
        %957 = vmatprep.mubr.bf16.mxu0 0
        %958 = vmatmul.mubr.bf16.gmra.mxu0 %v781
        %v959 = vpop.f32.mrf.mxu0
        %v960 = vadd.f32 %v828, %v959
        %v961 = vpop.f32.mrf.mxu0
        %v962 = vadd.f32 %v832, %v961
        %v963 = vpop.f32.mrf.mxu0
        %v964 = vadd.f32 %v828, %v963
        %v965 = vpop.f32.mrf.mxu0
        %v966 = vadd.f32 %v832, %v965
        %967 = vmatprep.mubr.bf16.mxu0 0
        %968 = vmatmul.mubr.bf16.gmra.mxu0 %v782
        %v969 = vpop.f32.mrf.mxu0
        %v970 = vadd.f32 %v828, %v969
        %v971 = vpop.f32.mrf.mxu0
        %v972 = vadd.f32 %v832, %v971
        %v973 = vpop.f32.mrf.mxu0
        %v974 = vadd.f32 %v828, %v973
        %v975 = vpop.f32.mrf.mxu0
        %v976 = vadd.f32 %v832, %v975
        %977 = vmatprep.mubr.bf16.mxu0 0
        %978 = vmatmul.mubr.bf16.gmra.mxu0 %v783
        %v979 = vpop.f32.mrf.mxu0
        %v980 = vadd.f32 %v828, %v979
        %v981 = vpop.f32.mrf.mxu0
        %v982 = vadd.f32 %v832, %v981
        %v983 = vpop.f32.mrf.mxu0
        %v984 = vadd.f32 %v828, %v983
        %v985 = vpop.f32.mrf.mxu0
        %v986 = vadd.f32 %v832, %v985
        %987 = vmatprep.mubr.bf16.mxu0 0
        %988 = vmatmul.mubr.bf16.gmra.mxu0 %v784
        %v989 = vpop.f32.mrf.mxu0
        %v990 = vadd.f32 %v828, %v989
        %v991 = vpop.f32.mrf.mxu0
        %v992 = vadd.f32 %v832, %v991
        %v993 = vpop.f32.mrf.mxu0
        %v994 = vadd.f32 %v828, %v993
        %v995 = vpop.f32.mrf.mxu0
        %v996 = vadd.f32 %v832, %v995
        %997 = vmatprep.mubr.bf16.mxu0 0
        %998 = vmatmul.mubr.bf16.gmra.mxu0 %v785
        %v999 = vpop.f32.mrf.mxu0
        %v1000 = vadd.f32 %v828, %v999
        %v1001 = vpop.f32.mrf.mxu0
        %v1002 = vadd.f32 %v832, %v1001
        %v1003 = vpop.f32.mrf.mxu0
        %v1004 = vadd.f32 %v828, %v1003
        %v1005 = vpop.f32.mrf.mxu0
        %v1006 = vadd.f32 %v832, %v1005
        %1007 = vmatprep.mubr.bf16.mxu0 0
        %1008 = vmatmul.mubr.bf16.gmra.mxu0 %v786
        %v1009 = vpop.f32.mrf.mxu0
        %v1010 = vadd.f32 %v828, %v1009
        %v1011 = vpop.f32.mrf.mxu0
        %v1012 = vadd.f32 %v832, %v1011
        %v1013 = vpop.f32.mrf.mxu0
        %v1014 = vadd.f32 %v828, %v1013
        %v1015 = vpop.f32.mrf.mxu0
        %v1016 = vadd.f32 %v832, %v1015
        %1017 = vmatprep.mubr.bf16.mxu0 0
        %1018 = vmatmul.mubr.bf16.gmra.mxu0 %v787
        %v1019 = vpop.f32.mrf.mxu0
        %v1020 = vadd.f32 %v828, %v1019
        %v1021 = vpop.f32.mrf.mxu0
        %v1022 = vadd.f32 %v832, %v1021
        %v1023 = vpop.f32.mrf.mxu0
        %v1024 = vadd.f32 %v828, %v1023
        %v1025 = vpop.f32.mrf.mxu0
        %v1026 = vadd.f32 %v832, %v1025
        %1027 = vdwg.mxu0
        %1028 = vset.pattern.permute.xlu0 0
        %1029 = vperm.xlu0 %1028, %v788
        %v1030 = vpop.permute.xlu0 %1029
        %1031 = vset.pattern.permute.xlu0 0
        %1032 = vperm.xlu0 %1031, %v789
        %v1033 = vpop.permute.xlu0 %1032
        %1034 = vset.pattern.permute.xlu0 0
        %1035 = vperm.xlu0 %1034, %v790
        %v1036 = vpop.permute.xlu0 %1035
        %1037 = vset.pattern.permute.xlu0 0
        %1038 = vperm.xlu0 %1037, %v791
        %v1039 = vpop.permute.xlu0 %1038
        %1040 = vset.pattern.permute.xlu0 0
        %1041 = vperm.xlu0 %1040, %v792
        %v1042 = vpop.permute.xlu0 %1041
        %1043 = vset.pattern.permute.xlu0 0
        %1044 = vperm.xlu0 %1043, %v793
        %v1045 = vpop.permute.xlu0 %1044
        %1046 = vset.pattern.permute.xlu0 0
        %1047 = vperm.xlu0 %1046, %v794
        %v1048 = vpop.permute.xlu0 %1047
        %1049 = vset.pattern.permute.xlu0 0
        %1050 = vperm.xlu0 %1049, %v795
        %v1051 = vpop.permute.xlu0 %1050
        %1052 = vset.pattern.permute.xlu0 0
        %1053 = vperm.xlu0 %1052, %v796
        %v1054 = vpop.permute.xlu0 %1053
        %1055 = vset.pattern.permute.xlu0 0
        %1056 = vperm.xlu0 %1055, %v797
        %v1057 = vpop.permute.xlu0 %1056
        %1058 = vset.pattern.permute.xlu0 0
        %1059 = vperm.xlu0 %1058, %v798
        %v1060 = vpop.permute.xlu0 %1059
        %1061 = vset.pattern.permute.xlu0 0
        %1062 = vperm.xlu0 %1061, %v799
        %v1063 = vpop.permute.xlu0 %1062
        %1064 = vset.pattern.permute.xlu0 0
        %1065 = vperm.xlu0 %1064, %v800
        %v1066 = vpop.permute.xlu0 %1065
        %1067 = vset.pattern.permute.xlu0 0
        %1068 = vperm.xlu0 %1067, %v801
        %v1069 = vpop.permute.xlu0 %1068
        %1070 = vset.pattern.permute.xlu0 0
        %1071 = vperm.xlu0 %1070, %v802
        %v1072 = vpop.permute.xlu0 %1071
        %1073 = vset.pattern.permute.xlu0 0
        %1074 = vperm.xlu0 %1073, %v803
        %v1075 = vpop.permute.xlu0 %1074
        %vm1076 = vcmp.eq.s32.totalorder %v805, %v1030
        %vm1077 = vcmp.eq.s32.totalorder %v806, %v1030
        %vm1078 = vcmp.eq.s32.totalorder %v805, %v1033
        %vm1079 = vcmp.eq.s32.totalorder %v806, %v1033
        %vm1080 = vcmp.eq.s32.totalorder %v805, %v1036
        %vm1081 = vcmp.eq.s32.totalorder %v806, %v1036
        %vm1082 = vcmp.eq.s32.totalorder %v805, %v1039
        %vm1083 = vcmp.eq.s32.totalorder %v806, %v1039
        %vm1084 = vcmp.eq.s32.totalorder %v805, %v1042
        %vm1085 = vcmp.eq.s32.totalorder %v806, %v1042
        %vm1086 = vcmp.eq.s32.totalorder %v805, %v1045
        %vm1087 = vcmp.eq.s32.totalorder %v806, %v1045
        %vm1088 = vcmp.eq.s32.totalorder %v805, %v1048
        %vm1089 = vcmp.eq.s32.totalorder %v806, %v1048
        %vm1090 = vcmp.eq.s32.totalorder %v805, %v1051
        %vm1091 = vcmp.eq.s32.totalorder %v806, %v1051
        %vm1092 = vcmp.eq.s32.totalorder %v805, %v1054
        %vm1093 = vcmp.eq.s32.totalorder %v806, %v1054
        %vm1094 = vcmp.eq.s32.totalorder %v805, %v1057
        %vm1095 = vcmp.eq.s32.totalorder %v806, %v1057
        %vm1096 = vcmp.eq.s32.totalorder %v805, %v1060
        %vm1097 = vcmp.eq.s32.totalorder %v806, %v1060
        %vm1098 = vcmp.eq.s32.totalorder %v805, %v1063
        %vm1099 = vcmp.eq.s32.totalorder %v806, %v1063
        %vm1100 = vcmp.eq.s32.totalorder %v805, %v1066
        %vm1101 = vcmp.eq.s32.totalorder %v806, %v1066
        %vm1102 = vcmp.eq.s32.totalorder %v805, %v1069
        %vm1103 = vcmp.eq.s32.totalorder %v806, %v1069
        %vm1104 = vcmp.eq.s32.totalorder %v805, %v1072
        %vm1105 = vcmp.eq.s32.totalorder %v806, %v1072
        %vm1106 = vcmp.eq.s32.totalorder %v805, %v1075
        %vm1107 = vcmp.eq.s32.totalorder %v806, %v1075
        %v1108 = vsel %vm1076, %v950, 0.0
        %v1109 = vsel %vm1077, %v952, 0.0
        %v1110 = vsel %vm1078, %v954, 0.0
        %v1111 = vsel %vm1079, %v956, 0.0
        %v1112 = vsel %vm1080, %v960, 0.0
        %v1113 = vsel %vm1081, %v962, 0.0
        %v1114 = vsel %vm1082, %v964, 0.0
        %v1115 = vsel %vm1083, %v966, 0.0
        %v1116 = vsel %vm1084, %v970, 0.0
        %v1117 = vsel %vm1085, %v972, 0.0
        %v1118 = vsel %vm1086, %v974, 0.0
        %v1119 = vsel %vm1087, %v976, 0.0
        %v1120 = vsel %vm1088, %v980, 0.0
        %v1121 = vsel %vm1089, %v982, 0.0
        %v1122 = vsel %vm1090, %v984, 0.0
        %v1123 = vsel %vm1091, %v986, 0.0
        %v1124 = vsel %vm1092, %v990, 0.0
        %v1125 = vsel %vm1093, %v992, 0.0
        %v1126 = vsel %vm1094, %v994, 0.0
        %v1127 = vsel %vm1095, %v996, 0.0
        %v1128 = vsel %vm1096, %v1000, 0.0
        %v1129 = vsel %vm1097, %v1002, 0.0
        %v1130 = vsel %vm1098, %v1004, 0.0
        %v1131 = vsel %vm1099, %v1006, 0.0
        %v1132 = vsel %vm1100, %v1010, 0.0
        %v1133 = vsel %vm1101, %v1012, 0.0
        %v1134 = vsel %vm1102, %v1014, 0.0
        %v1135 = vsel %vm1103, %v1016, 0.0
        %v1136 = vsel %vm1104, %v1020, 0.0
        %v1137 = vsel %vm1105, %v1022, 0.0
        %v1138 = vsel %vm1106, %v1024, 0.0
        %v1139 = vsel %vm1107, %v1026, 0.0
        %v1140 = vadd.f32 %v1108, %v1109
        %1141 = vadd.xlane.f32.xlu0 %v1140
        %v1142 = vpop.xlane.xlu0 %1141
        %v1143 = vadd.f32 %v1110, %v1111
        %1144 = vadd.xlane.f32.xlu0 %v1143
        %v1145 = vpop.xlane.xlu0 %1144
        %v1146 = vadd.f32 %v1112, %v1113
        %1147 = vadd.xlane.f32.xlu0 %v1146
        %v1148 = vpop.xlane.xlu0 %1147
        %v1149 = vadd.f32 %v1114, %v1115
        %1150 = vadd.xlane.f32.xlu0 %v1149
        %v1151 = vpop.xlane.xlu0 %1150
        %v1152 = vadd.f32 %v1116, %v1117
        %1153 = vadd.xlane.f32.xlu0 %v1152
        %v1154 = vpop.xlane.xlu0 %1153
        %v1155 = vadd.f32 %v1118, %v1119
        %1156 = vadd.xlane.f32.xlu0 %v1155
        %v1157 = vpop.xlane.xlu0 %1156
        %v1158 = vadd.f32 %v1120, %v1121
        %1159 = vadd.xlane.f32.xlu0 %v1158
        %v1160 = vpop.xlane.xlu0 %1159
        %v1161 = vadd.f32 %v1122, %v1123
        %1162 = vadd.xlane.f32.xlu0 %v1161
        %v1163 = vpop.xlane.xlu0 %1162
        %v1164 = vadd.f32 %v1124, %v1125
        %1165 = vadd.xlane.f32.xlu0 %v1164
        %v1166 = vpop.xlane.xlu0 %1165
        %v1167 = vadd.f32 %v1126, %v1127
        %1168 = vadd.xlane.f32.xlu0 %v1167
        %v1169 = vpop.xlane.xlu0 %1168
        %v1170 = vadd.f32 %v1128, %v1129
        %1171 = vadd.xlane.f32.xlu0 %v1170
        %v1172 = vpop.xlane.xlu0 %1171
        %v1173 = vadd.f32 %v1130, %v1131
        %1174 = vadd.xlane.f32.xlu0 %v1173
        %v1175 = vpop.xlane.xlu0 %1174
        %v1176 = vadd.f32 %v1132, %v1133
        %1177 = vadd.xlane.f32.xlu0 %v1176
        %v1178 = vpop.xlane.xlu0 %1177
        %v1179 = vadd.f32 %v1134, %v1135
        %1180 = vadd.xlane.f32.xlu0 %v1179
        %v1181 = vpop.xlane.xlu0 %1180
        %v1182 = vadd.f32 %v1136, %v1137
        %1183 = vadd.xlane.f32.xlu0 %v1182
        %v1184 = vpop.xlane.xlu0 %1183
        %v1185 = vadd.f32 %v1138, %v1139
        %1186 = vadd.xlane.f32.xlu0 %v1185
        %v1187 = vpop.xlane.xlu0 %1186
        %v1188 = vsub.f32 %v950, %v1142
        %v1189 = vsub.f32 %v952, %v1142
        %v1190 = vsub.f32 %v954, %v1145
        %v1191 = vsub.f32 %v956, %v1145
        %v1192 = vsub.f32 %v960, %v1148
        %v1193 = vsub.f32 %v962, %v1148
        %v1194 = vsub.f32 %v964, %v1151
        %v1195 = vsub.f32 %v966, %v1151
        %v1196 = vsub.f32 %v970, %v1154
        %v1197 = vsub.f32 %v972, %v1154
        %v1198 = vsub.f32 %v974, %v1157
        %v1199 = vsub.f32 %v976, %v1157
        %v1200 = vsub.f32 %v980, %v1160
        %v1201 = vsub.f32 %v982, %v1160
        %v1202 = vsub.f32 %v984, %v1163
        %v1203 = vsub.f32 %v986, %v1163
        %v1204 = vsub.f32 %v990, %v1166
        %v1205 = vsub.f32 %v992, %v1166
        %v1206 = vsub.f32 %v994, %v1169
        %v1207 = vsub.f32 %v996, %v1169
        %v1208 = vsub.f32 %v1000, %v1172
        %v1209 = vsub.f32 %v1002, %v1172
        %v1210 = vsub.f32 %v1004, %v1175
        %v1211 = vsub.f32 %v1006, %v1175
        %v1212 = vsub.f32 %v1010, %v1178
        %v1213 = vsub.f32 %v1012, %v1178
        %v1214 = vsub.f32 %v1014, %v1181
        %v1215 = vsub.f32 %v1016, %v1181
        %v1216 = vsub.f32 %v1020, %v1184
        %v1217 = vsub.f32 %v1022, %v1184
        %v1218 = vsub.f32 %v1024, %v1187
        %v1219 = vsub.f32 %v1026, %v1187
        %v1220 = vmul.f32 %v1188, 1.442695
        %v1221 = vpow.pop %v1220
        %v1222 = vmul.f32 %v1189, 1.442695
        %v1223 = vpow.pop %v1222
        %v1224 = vmul.f32 %v1190, 1.442695
        %v1225 = vpow.pop %v1224
        %v1226 = vmul.f32 %v1191, 1.442695
        %v1227 = vpow.pop %v1226
        %v1228 = vmul.f32 %v1192, 1.442695
        %v1229 = vpow.pop %v1228
        %v1230 = vmul.f32 %v1193, 1.442695
        %v1231 = vpow.pop %v1230
        %v1232 = vmul.f32 %v1194, 1.442695
        %v1233 = vpow.pop %v1232
        %v1234 = vmul.f32 %v1195, 1.442695
        %v1235 = vpow.pop %v1234
        %v1236 = vmul.f32 %v1196, 1.442695
        %v1237 = vpow.pop %v1236
        %v1238 = vmul.f32 %v1197, 1.442695
        %v1239 = vpow.pop %v1238
        %v1240 = vmul.f32 %v1198, 1.442695
        %v1241 = vpow.pop %v1240
        %v1242 = vmul.f32 %v1199, 1.442695
        %v1243 = vpow.pop %v1242
        %v1244 = vmul.f32 %v1200, 1.442695
        %v1245 = vpow.pop %v1244
        %v1246 = vmul.f32 %v1201, 1.442695
        %v1247 = vpow.pop %v1246
        %v1248 = vmul.f32 %v1202, 1.442695
        %v1249 = vpow.pop %v1248
        %v1250 = vmul.f32 %v1203, 1.442695
        %v1251 = vpow.pop %v1250
        %v1252 = vmul.f32 %v1204, 1.442695
        %v1253 = vpow.pop %v1252
        %v1254 = vmul.f32 %v1205, 1.442695
        %v1255 = vpow.pop %v1254
        %v1256 = vmul.f32 %v1206, 1.442695
        %v1257 = vpow.pop %v1256
        %v1258 = vmul.f32 %v1207, 1.442695
        %v1259 = vpow.pop %v1258
        %v1260 = vmul.f32 %v1208, 1.442695
        %v1261 = vpow.pop %v1260
        %v1262 = vmul.f32 %v1209, 1.442695
        %v1263 = vpow.pop %v1262
        %v1264 = vmul.f32 %v1210, 1.442695
        %v1265 = vpow.pop %v1264
        %v1266 = vmul.f32 %v1211, 1.442695
        %v1267 = vpow.pop %v1266
        %v1268 = vmul.f32 %v1212, 1.442695
        %v1269 = vpow.pop %v1268
        %v1270 = vmul.f32 %v1213, 1.442695
        %v1271 = vpow.pop %v1270
        %v1272 = vmul.f32 %v1214, 1.442695
        %v1273 = vpow.pop %v1272
        %v1274 = vmul.f32 %v1215, 1.442695
        %v1275 = vpow.pop %v1274
        %v1276 = vmul.f32 %v1216, 1.442695
        %v1277 = vpow.pop %v1276
        %v1278 = vmul.f32 %v1217, 1.442695
        %v1279 = vpow.pop %v1278
        %v1280 = vmul.f32 %v1218, 1.442695
        %v1281 = vpow.pop %v1280
        %v1282 = vmul.f32 %v1219, 1.442695
        %v1283 = vpow.pop %v1282
        %v1284 = vadd.f32 %v1221, %v1223
        %1285 = vadd.xlane.f32.xlu0 %v1284
        %v1286 = vpop.xlane.xlu0 %1285
        %v1287 = vadd.f32 %v1225, %v1227
        %1288 = vadd.xlane.f32.xlu0 %v1287
        %v1289 = vpop.xlane.xlu0 %1288
        %v1290 = vadd.f32 %v1229, %v1231
        %1291 = vadd.xlane.f32.xlu0 %v1290
        %v1292 = vpop.xlane.xlu0 %1291
        %v1293 = vadd.f32 %v1233, %v1235
        %1294 = vadd.xlane.f32.xlu0 %v1293
        %v1295 = vpop.xlane.xlu0 %1294
        %v1296 = vadd.f32 %v1237, %v1239
        %1297 = vadd.xlane.f32.xlu0 %v1296
        %v1298 = vpop.xlane.xlu0 %1297
        %v1299 = vadd.f32 %v1241, %v1243
        %1300 = vadd.xlane.f32.xlu0 %v1299
        %v1301 = vpop.xlane.xlu0 %1300
        %v1302 = vadd.f32 %v1245, %v1247
        %1303 = vadd.xlane.f32.xlu0 %v1302
        %v1304 = vpop.xlane.xlu0 %1303
        %v1305 = vadd.f32 %v1249, %v1251
        %1306 = vadd.xlane.f32.xlu0 %v1305
        %v1307 = vpop.xlane.xlu0 %1306
        %v1308 = vadd.f32 %v1253, %v1255
        %1309 = vadd.xlane.f32.xlu0 %v1308
        %v1310 = vpop.xlane.xlu0 %1309
        %v1311 = vadd.f32 %v1257, %v1259
        %1312 = vadd.xlane.f32.xlu0 %v1311
        %v1313 = vpop.xlane.xlu0 %1312
        %v1314 = vadd.f32 %v1261, %v1263
        %1315 = vadd.xlane.f32.xlu0 %v1314
        %v1316 = vpop.xlane.xlu0 %1315
        %v1317 = vadd.f32 %v1265, %v1267
        %1318 = vadd.xlane.f32.xlu0 %v1317
        %v1319 = vpop.xlane.xlu0 %1318
        %v1320 = vadd.f32 %v1269, %v1271
        %1321 = vadd.xlane.f32.xlu0 %v1320
        %v1322 = vpop.xlane.xlu0 %1321
        %v1323 = vadd.f32 %v1273, %v1275
        %1324 = vadd.xlane.f32.xlu0 %v1323
        %v1325 = vpop.xlane.xlu0 %1324
        %v1326 = vadd.f32 %v1277, %v1279
        %1327 = vadd.xlane.f32.xlu0 %v1326
        %v1328 = vpop.xlane.xlu0 %1327
        %v1329 = vadd.f32 %v1281, %v1283
        %1330 = vadd.xlane.f32.xlu0 %v1329
        %v1331 = vpop.xlane.xlu0 %1330
        %v1332 = vlog2.pop %v1286
        %v1333 = vmul.f32 %v1332, 0.6931472
        %v1334 = vlog2.pop %v1289
        %v1335 = vmul.f32 %v1334, 0.6931472
        %v1336 = vlog2.pop %v1292
        %v1337 = vmul.f32 %v1336, 0.6931472
        %v1338 = vlog2.pop %v1295
        %v1339 = vmul.f32 %v1338, 0.6931472
        %v1340 = vlog2.pop %v1298
        %v1341 = vmul.f32 %v1340, 0.6931472
        %v1342 = vlog2.pop %v1301
        %v1343 = vmul.f32 %v1342, 0.6931472
        %v1344 = vlog2.pop %v1304
        %v1345 = vmul.f32 %v1344, 0.6931472
        %v1346 = vlog2.pop %v1307
        %v1347 = vmul.f32 %v1346, 0.6931472
        %v1348 = vlog2.pop %v1310
        %v1349 = vmul.f32 %v1348, 0.6931472
        %v1350 = vlog2.pop %v1313
        %v1351 = vmul.f32 %v1350, 0.6931472
        %v1352 = vlog2.pop %v1316
        %v1353 = vmul.f32 %v1352, 0.6931472
        %v1354 = vlog2.pop %v1319
        %v1355 = vmul.f32 %v1354, 0.6931472
        %v1356 = vlog2.pop %v1322
        %v1357 = vmul.f32 %v1356, 0.6931472
        %v1358 = vlog2.pop %v1325
        %v1359 = vmul.f32 %v1358, 0.6931472
        %v1360 = vlog2.pop %v1328
        %v1361 = vmul.f32 %v1360, 0.6931472
        %v1362 = vlog2.pop %v1331
        %v1363 = vmul.f32 %v1362, 0.6931472
        %v1364 = vsub.f32 0.0, %v1333
        %v1365 = vsub.f32 0.0, %v1335
        %v1366 = vsub.f32 0.0, %v1337
        %v1367 = vsub.f32 0.0, %v1339
        %v1368 = vsub.f32 0.0, %v1341
        %v1369 = vsub.f32 0.0, %v1343
        %v1370 = vsub.f32 0.0, %v1345
        %v1371 = vsub.f32 0.0, %v1347
        %v1372 = vsub.f32 0.0, %v1349
        %v1373 = vsub.f32 0.0, %v1351
        %v1374 = vsub.f32 0.0, %v1353
        %v1375 = vsub.f32 0.0, %v1355
        %v1376 = vsub.f32 0.0, %v1357
        %v1377 = vsub.f32 0.0, %v1359
        %v1378 = vsub.f32 0.0, %v1361
        %v1379 = vsub.f32 0.0, %v1363
        %v1380 = vmax.f32 %v1364, -11.512925
        %v1381 = vmax.f32 %v1365, -11.512925
        %v1382 = vmax.f32 %v1366, -11.512925
        %v1383 = vmax.f32 %v1367, -11.512925
        %v1384 = vmax.f32 %v1368, -11.512925
        %v1385 = vmax.f32 %v1369, -11.512925
        %v1386 = vmax.f32 %v1370, -11.512925
        %v1387 = vmax.f32 %v1371, -11.512925
        %v1388 = vmax.f32 %v1372, -11.512925
        %v1389 = vmax.f32 %v1373, -11.512925
        %v1390 = vmax.f32 %v1374, -11.512925
        %v1391 = vmax.f32 %v1375, -11.512925
        %v1392 = vmax.f32 %v1376, -11.512925
        %v1393 = vmax.f32 %v1377, -11.512925
        %v1394 = vmax.f32 %v1378, -11.512925
        %v1395 = vmax.f32 %v1379, -11.512925
        %v1396 = vmin.f32 %v1380, -1.000005e-05
        %v1397 = vmin.f32 %v1381, -1.000005e-05
        %v1398 = vmin.f32 %v1382, -1.000005e-05
        %v1399 = vmin.f32 %v1383, -1.000005e-05
        %v1400 = vmin.f32 %v1384, -1.000005e-05
        %v1401 = vmin.f32 %v1385, -1.000005e-05
        %v1402 = vmin.f32 %v1386, -1.000005e-05
        %v1403 = vmin.f32 %v1387, -1.000005e-05
        %v1404 = vmin.f32 %v1388, -1.000005e-05
        %v1405 = vmin.f32 %v1389, -1.000005e-05
        %v1406 = vmin.f32 %v1390, -1.000005e-05
        %v1407 = vmin.f32 %v1391, -1.000005e-05
        %v1408 = vmin.f32 %v1392, -1.000005e-05
        %v1409 = vmin.f32 %v1393, -1.000005e-05
        %v1410 = vmin.f32 %v1394, -1.000005e-05
        %v1411 = vmin.f32 %v1395, -1.000005e-05
        %v1412 = vadd.f32 %v1396, 0.0
        %v1413 = vadd.f32 %v1397, 0.0
        %v1414 = vadd.f32 %v1398, 0.0
        %v1415 = vadd.f32 %v1399, 0.0
        %v1416 = vadd.f32 %v1400, 0.0
        %v1417 = vadd.f32 %v1401, 0.0
        %v1418 = vadd.f32 %v1402, 0.0
        %v1419 = vadd.f32 %v1403, 0.0
        %v1420 = vadd.f32 %v1404, 0.0
        %v1421 = vadd.f32 %v1405, 0.0
        %v1422 = vadd.f32 %v1406, 0.0
        %v1423 = vadd.f32 %v1407, 0.0
        %v1424 = vadd.f32 %v1408, 0.0
        %v1425 = vadd.f32 %v1409, 0.0
        %v1426 = vadd.f32 %v1410, 0.0
        %v1427 = vadd.f32 %v1411, 0.0
        %v1428 = vld [vmem:[#allocation2 + $0x8] sm:$0xff]
        %v1429 = vld [vmem:[#allocation2 + $0x88] sm:$0xff]
        %v1430 = vld [vmem:[#allocation2 + $0x108] sm:$0xff]
        %v1431 = vld [vmem:[#allocation2 + $0x188] sm:$0xff]
        %v1432 = vld [vmem:[#allocation2 + $0x208] sm:$0xff]
        %v1433 = vld [vmem:[#allocation2 + $0x288] sm:$0xff]
        %v1434 = vld [vmem:[#allocation2 + $0x308] sm:$0xff]
        %v1435 = vld [vmem:[#allocation2 + $0x388] sm:$0xff]
        %v1436 = vld [vmem:[#allocation2 + $0x408] sm:$0xff]
        %v1437 = vld [vmem:[#allocation2 + $0x488] sm:$0xff]
        %v1438 = vld [vmem:[#allocation2 + $0x508] sm:$0xff]
        %v1439 = vld [vmem:[#allocation2 + $0x588] sm:$0xff]
        %v1440 = vld [vmem:[#allocation2 + $0x608] sm:$0xff]
        %v1441 = vld [vmem:[#allocation2 + $0x688] sm:$0xff]
        %v1442 = vld [vmem:[#allocation2 + $0x708] sm:$0xff]
        %v1443 = vld [vmem:[#allocation2 + $0x788] sm:$0xff]
        %v1444 = vld [vmem:[%s7 + $0x2] sm:$0x3]
        %v1446 = vlaneseq
        %v1447 = vshrl.u32 %v1446, 7
        %v1448 = vsub.s32 0, %v1447
        %v1449 = vrot.slane %v1444, %v1448
        %v1450 = vlaneseq
        %v1451 = vshrl.u32 %v1450, 7
        %v1452 = vsub.s32 1, %v1451
        %v1453 = vrot.slane %v1444, %v1452
        %v1472 = vunpack.c.l.b16 %v1428
        %v1473 = vunpack.c.h.b16 %v1428
        %v1474 = vunpack.c.l.b16 %v1429
        %v1475 = vunpack.c.h.b16 %v1429
        %v1476 = vunpack.c.l.b16 %v1430
        %v1477 = vunpack.c.h.b16 %v1430
        %v1478 = vunpack.c.l.b16 %v1431
        %v1479 = vunpack.c.h.b16 %v1431
        %v1480 = vunpack.c.l.b16 %v1432
        %v1481 = vunpack.c.h.b16 %v1432
        %v1482 = vunpack.c.l.b16 %v1433
        %v1483 = vunpack.c.h.b16 %v1433
        %v1484 = vunpack.c.l.b16 %v1434
        %v1485 = vunpack.c.h.b16 %v1434
        %v1486 = vunpack.c.l.b16 %v1435
        %v1487 = vunpack.c.h.b16 %v1435
        %v1488 = vunpack.c.l.b16 %v1436
        %v1489 = vunpack.c.h.b16 %v1436
        %v1490 = vunpack.c.l.b16 %v1437
        %v1491 = vunpack.c.h.b16 %v1437
        %v1492 = vunpack.c.l.b16 %v1438
        %v1493 = vunpack.c.h.b16 %v1438
        %v1494 = vunpack.c.l.b16 %v1439
        %v1495 = vunpack.c.h.b16 %v1439
        %v1496 = vunpack.c.l.b16 %v1440
        %v1497 = vunpack.c.h.b16 %v1440
        %v1498 = vunpack.c.l.b16 %v1441
        %v1499 = vunpack.c.h.b16 %v1441
        %v1500 = vunpack.c.l.b16 %v1442
        %v1501 = vunpack.c.h.b16 %v1442
        %v1502 = vunpack.c.l.b16 %v1443
        %v1503 = vunpack.c.h.b16 %v1443
        %v1504 = vpack.c.b16 %v1474, %v1472
        %v1505 = vpack.c.b16 %v1475, %v1473
        %v1506 = vpack.c.b16 %v1478, %v1476
        %v1507 = vpack.c.b16 %v1479, %v1477
        %v1508 = vpack.c.b16 %v1482, %v1480
        %v1509 = vpack.c.b16 %v1483, %v1481
        %v1510 = vpack.c.b16 %v1486, %v1484
        %v1511 = vpack.c.b16 %v1487, %v1485
        %v1512 = vpack.c.b16 %v1490, %v1488
        %v1513 = vpack.c.b16 %v1491, %v1489
        %v1514 = vpack.c.b16 %v1494, %v1492
        %v1515 = vpack.c.b16 %v1495, %v1493
        %v1516 = vpack.c.b16 %v1498, %v1496
        %v1517 = vpack.c.b16 %v1499, %v1497
        %v1518 = vpack.c.b16 %v1502, %v1500
        %v1519 = vpack.c.b16 %v1503, %v1501
        %1536 = vmatprep.subr.bf16.mxu0 %v1519
        %1537 = vmatpush1.bf16.msra.mxu0 %v1518
        %1538 = vmatprep.subr.bf16.mxu0 %v1517
        %1539 = vmatpush1.bf16.msra.mxu0 %v1516
        %1540 = vmatprep.subr.bf16.mxu0 %v1515
        %1541 = vmatpush1.bf16.msra.mxu0 %v1514
        %1542 = vmatprep.subr.bf16.mxu0 %v1513
        %1543 = vmatpush1.bf16.msra.mxu0 %v1512
        %1544 = vmatprep.subr.bf16.mxu0 %v1511
        %1545 = vmatpush1.bf16.msra.mxu0 %v1510
        %1546 = vmatprep.subr.bf16.mxu0 %v1509
        %1547 = vmatpush1.bf16.msra.mxu0 %v1508
        %1548 = vmatprep.subr.bf16.mxu0 %v1507
        %1549 = vmatpush1.bf16.msra.mxu0 %v1506
        %1550 = vmatprep.subr.bf16.mxu0 %v1505
        %1551 = vmatpush1.bf16.msra.mxu0 %v1504
        %1552 = vmatprep.subr.bf16.mxu0 0
        %1553 = vmatpush2.bf16.msra.mxu0 0
        %1554 = vmatprep.subr.bf16.mxu0 0
        %1555 = vmatpush2.bf16.msra.mxu0 0
        %1556 = vmatprep.subr.bf16.mxu0 0
        %1557 = vmatpush2.bf16.msra.mxu0 0
        %1558 = vmatprep.subr.bf16.mxu0 0
        %1559 = vmatpush2.bf16.msra.mxu0 0
        %1560 = vmatprep.subr.bf16.mxu0 0
        %1561 = vmatpush2.bf16.msra.mxu0 0
        %1562 = vmatprep.subr.bf16.mxu0 0
        %1563 = vmatpush2.bf16.msra.mxu0 0
        %1564 = vmatprep.subr.bf16.mxu0 0
        %1565 = vmatpush2.bf16.msra.mxu0 0
        %1566 = vmatprep.subr.bf16.mxu0 0
        %1567 = vmatpush2.bf16.msra.mxu0 0
        %1568 = vmatprep.mubr.bf16.mxu0 0
        %1569 = vmatmul.mubr.bf16.gmra.mxu0 %v780
        %v1570 = vpop.f32.mrf.mxu0
        %v1571 = vadd.f32 %v1449, %v1570
        %v1572 = vpop.f32.mrf.mxu0
        %v1573 = vadd.f32 %v1453, %v1572
        %v1574 = vpop.f32.mrf.mxu0
        %v1575 = vadd.f32 %v1449, %v1574
        %v1576 = vpop.f32.mrf.mxu0
        %v1577 = vadd.f32 %v1453, %v1576
        %1578 = vmatprep.mubr.bf16.mxu0 0
        %1579 = vmatmul.mubr.bf16.gmra.mxu0 %v781
        %v1580 = vpop.f32.mrf.mxu0
        %v1581 = vadd.f32 %v1449, %v1580
        %v1582 = vpop.f32.mrf.mxu0
        %v1583 = vadd.f32 %v1453, %v1582
        %v1584 = vpop.f32.mrf.mxu0
        %v1585 = vadd.f32 %v1449, %v1584
        %v1586 = vpop.f32.mrf.mxu0
        %v1587 = vadd.f32 %v1453, %v1586
        %1588 = vmatprep.mubr.bf16.mxu0 0
        %1589 = vmatmul.mubr.bf16.gmra.mxu0 %v782
        %v1590 = vpop.f32.mrf.mxu0
        %v1591 = vadd.f32 %v1449, %v1590
        %v1592 = vpop.f32.mrf.mxu0
        %v1593 = vadd.f32 %v1453, %v1592
        %v1594 = vpop.f32.mrf.mxu0
        %v1595 = vadd.f32 %v1449, %v1594
        %v1596 = vpop.f32.mrf.mxu0
        %v1597 = vadd.f32 %v1453, %v1596
        %1598 = vmatprep.mubr.bf16.mxu0 0
        %1599 = vmatmul.mubr.bf16.gmra.mxu0 %v783
        %v1600 = vpop.f32.mrf.mxu0
        %v1601 = vadd.f32 %v1449, %v1600
        %v1602 = vpop.f32.mrf.mxu0
        %v1603 = vadd.f32 %v1453, %v1602
        %v1604 = vpop.f32.mrf.mxu0
        %v1605 = vadd.f32 %v1449, %v1604
        %v1606 = vpop.f32.mrf.mxu0
        %v1607 = vadd.f32 %v1453, %v1606
        %1608 = vmatprep.mubr.bf16.mxu0 0
        %1609 = vmatmul.mubr.bf16.gmra.mxu0 %v784
        %v1610 = vpop.f32.mrf.mxu0
        %v1611 = vadd.f32 %v1449, %v1610
        %v1612 = vpop.f32.mrf.mxu0
        %v1613 = vadd.f32 %v1453, %v1612
        %v1614 = vpop.f32.mrf.mxu0
        %v1615 = vadd.f32 %v1449, %v1614
        %v1616 = vpop.f32.mrf.mxu0
        %v1617 = vadd.f32 %v1453, %v1616
        %1618 = vmatprep.mubr.bf16.mxu0 0
        %1619 = vmatmul.mubr.bf16.gmra.mxu0 %v785
        %v1620 = vpop.f32.mrf.mxu0
        %v1621 = vadd.f32 %v1449, %v1620
        %v1622 = vpop.f32.mrf.mxu0
        %v1623 = vadd.f32 %v1453, %v1622
        %v1624 = vpop.f32.mrf.mxu0
        %v1625 = vadd.f32 %v1449, %v1624
        %v1626 = vpop.f32.mrf.mxu0
        %v1627 = vadd.f32 %v1453, %v1626
        %1628 = vmatprep.mubr.bf16.mxu0 0
        %1629 = vmatmul.mubr.bf16.gmra.mxu0 %v786
        %v1630 = vpop.f32.mrf.mxu0
        %v1631 = vadd.f32 %v1449, %v1630
        %v1632 = vpop.f32.mrf.mxu0
        %v1633 = vadd.f32 %v1453, %v1632
        %v1634 = vpop.f32.mrf.mxu0
        %v1635 = vadd.f32 %v1449, %v1634
        %v1636 = vpop.f32.mrf.mxu0
        %v1637 = vadd.f32 %v1453, %v1636
        %1638 = vmatprep.mubr.bf16.mxu0 0
        %1639 = vmatmul.mubr.bf16.gmra.mxu0 %v787
        %v1640 = vpop.f32.mrf.mxu0
        %v1641 = vadd.f32 %v1449, %v1640
        %v1642 = vpop.f32.mrf.mxu0
        %v1643 = vadd.f32 %v1453, %v1642
        %v1644 = vpop.f32.mrf.mxu0
        %v1645 = vadd.f32 %v1449, %v1644
        %v1646 = vpop.f32.mrf.mxu0
        %v1647 = vadd.f32 %v1453, %v1646
        %1648 = vdwg.mxu0
        %1649 = vset.pattern.permute.xlu0 1
        %1650 = vperm.xlu0 %1649, %v788
        %v1651 = vpop.permute.xlu0 %1650
        %1652 = vset.pattern.permute.xlu0 1
        %1653 = vperm.xlu0 %1652, %v789
        %v1654 = vpop.permute.xlu0 %1653
        %1655 = vset.pattern.permute.xlu0 1
        %1656 = vperm.xlu0 %1655, %v790
        %v1657 = vpop.permute.xlu0 %1656
        %1658 = vset.pattern.permute.xlu0 1
        %1659 = vperm.xlu0 %1658, %v791
        %v1660 = vpop.permute.xlu0 %1659
        %1661 = vset.pattern.permute.xlu0 1
        %1662 = vperm.xlu0 %1661, %v792
        %v1663 = vpop.permute.xlu0 %1662
        %1664 = vset.pattern.permute.xlu0 1
        %1665 = vperm.xlu0 %1664, %v793
        %v1666 = vpop.permute.xlu0 %1665
        %1667 = vset.pattern.permute.xlu0 1
        %1668 = vperm.xlu0 %1667, %v794
        %v1669 = vpop.permute.xlu0 %1668
        %1670 = vset.pattern.permute.xlu0 1
        %1671 = vperm.xlu0 %1670, %v795
        %v1672 = vpop.permute.xlu0 %1671
        %1673 = vset.pattern.permute.xlu0 1
        %1674 = vperm.xlu0 %1673, %v796
        %v1675 = vpop.permute.xlu0 %1674
        %1676 = vset.pattern.permute.xlu0 1
        %1677 = vperm.xlu0 %1676, %v797
        %v1678 = vpop.permute.xlu0 %1677
        %1679 = vset.pattern.permute.xlu0 1
        %1680 = vperm.xlu0 %1679, %v798
        %v1681 = vpop.permute.xlu0 %1680
        %1682 = vset.pattern.permute.xlu0 1
        %1683 = vperm.xlu0 %1682, %v799
        %v1684 = vpop.permute.xlu0 %1683
        %1685 = vset.pattern.permute.xlu0 1
        %1686 = vperm.xlu0 %1685, %v800
        %v1687 = vpop.permute.xlu0 %1686
        %1688 = vset.pattern.permute.xlu0 1
        %1689 = vperm.xlu0 %1688, %v801
        %v1690 = vpop.permute.xlu0 %1689
        %1691 = vset.pattern.permute.xlu0 1
        %1692 = vperm.xlu0 %1691, %v802
        %v1693 = vpop.permute.xlu0 %1692
        %1694 = vset.pattern.permute.xlu0 1
        %1695 = vperm.xlu0 %1694, %v803
        %v1696 = vpop.permute.xlu0 %1695
        %vm1697 = vcmp.eq.s32.totalorder %v805, %v1651
        %vm1698 = vcmp.eq.s32.totalorder %v806, %v1651
        %vm1699 = vcmp.eq.s32.totalorder %v805, %v1654
        %vm1700 = vcmp.eq.s32.totalorder %v806, %v1654
        %vm1701 = vcmp.eq.s32.totalorder %v805, %v1657
        %vm1702 = vcmp.eq.s32.totalorder %v806, %v1657
        %vm1703 = vcmp.eq.s32.totalorder %v805, %v1660
        %vm1704 = vcmp.eq.s32.totalorder %v806, %v1660
        %vm1705 = vcmp.eq.s32.totalorder %v805, %v1663
        %vm1706 = vcmp.eq.s32.totalorder %v806, %v1663
        %vm1707 = vcmp.eq.s32.totalorder %v805, %v1666
        %vm1708 = vcmp.eq.s32.totalorder %v806, %v1666
        %vm1709 = vcmp.eq.s32.totalorder %v805, %v1669
        %vm1710 = vcmp.eq.s32.totalorder %v806, %v1669
        %vm1711 = vcmp.eq.s32.totalorder %v805, %v1672
        %vm1712 = vcmp.eq.s32.totalorder %v806, %v1672
        %vm1713 = vcmp.eq.s32.totalorder %v805, %v1675
        %vm1714 = vcmp.eq.s32.totalorder %v806, %v1675
        %vm1715 = vcmp.eq.s32.totalorder %v805, %v1678
        %vm1716 = vcmp.eq.s32.totalorder %v806, %v1678
        %vm1717 = vcmp.eq.s32.totalorder %v805, %v1681
        %vm1718 = vcmp.eq.s32.totalorder %v806, %v1681
        %vm1719 = vcmp.eq.s32.totalorder %v805, %v1684
        %vm1720 = vcmp.eq.s32.totalorder %v806, %v1684
        %vm1721 = vcmp.eq.s32.totalorder %v805, %v1687
        %vm1722 = vcmp.eq.s32.totalorder %v806, %v1687
        %vm1723 = vcmp.eq.s32.totalorder %v805, %v1690
        %vm1724 = vcmp.eq.s32.totalorder %v806, %v1690
        %vm1725 = vcmp.eq.s32.totalorder %v805, %v1693
        %vm1726 = vcmp.eq.s32.totalorder %v806, %v1693
        %vm1727 = vcmp.eq.s32.totalorder %v805, %v1696
        %vm1728 = vcmp.eq.s32.totalorder %v806, %v1696
        %v1729 = vsel %vm1697, %v1571, 0.0
        %v1730 = vsel %vm1698, %v1573, 0.0
        %v1731 = vsel %vm1699, %v1575, 0.0
        %v1732 = vsel %vm1700, %v1577, 0.0
        %v1733 = vsel %vm1701, %v1581, 0.0
        %v1734 = vsel %vm1702, %v1583, 0.0
        %v1735 = vsel %vm1703, %v1585, 0.0
        %v1736 = vsel %vm1704, %v1587, 0.0
        %v1737 = vsel %vm1705, %v1591, 0.0
        %v1738 = vsel %vm1706, %v1593, 0.0
        %v1739 = vsel %vm1707, %v1595, 0.0
        %v1740 = vsel %vm1708, %v1597, 0.0
        %v1741 = vsel %vm1709, %v1601, 0.0
        %v1742 = vsel %vm1710, %v1603, 0.0
        %v1743 = vsel %vm1711, %v1605, 0.0
        %v1744 = vsel %vm1712, %v1607, 0.0
        %v1745 = vsel %vm1713, %v1611, 0.0
        %v1746 = vsel %vm1714, %v1613, 0.0
        %v1747 = vsel %vm1715, %v1615, 0.0
        %v1748 = vsel %vm1716, %v1617, 0.0
        %v1749 = vsel %vm1717, %v1621, 0.0
        %v1750 = vsel %vm1718, %v1623, 0.0
        %v1751 = vsel %vm1719, %v1625, 0.0
        %v1752 = vsel %vm1720, %v1627, 0.0
        %v1753 = vsel %vm1721, %v1631, 0.0
        %v1754 = vsel %vm1722, %v1633, 0.0
        %v1755 = vsel %vm1723, %v1635, 0.0
        %v1756 = vsel %vm1724, %v1637, 0.0
        %v1757 = vsel %vm1725, %v1641, 0.0
        %v1758 = vsel %vm1726, %v1643, 0.0
        %v1759 = vsel %vm1727, %v1645, 0.0
        %v1760 = vsel %vm1728, %v1647, 0.0
        %v1761 = vadd.f32 %v1729, %v1730
        %1762 = vadd.xlane.f32.xlu0 %v1761
        %v1763 = vpop.xlane.xlu0 %1762
        %v1764 = vadd.f32 %v1731, %v1732
        %1765 = vadd.xlane.f32.xlu0 %v1764
        %v1766 = vpop.xlane.xlu0 %1765
        %v1767 = vadd.f32 %v1733, %v1734
        %1768 = vadd.xlane.f32.xlu0 %v1767
        %v1769 = vpop.xlane.xlu0 %1768
        %v1770 = vadd.f32 %v1735, %v1736
        %1771 = vadd.xlane.f32.xlu0 %v1770
        %v1772 = vpop.xlane.xlu0 %1771
        %v1773 = vadd.f32 %v1737, %v1738
        %1774 = vadd.xlane.f32.xlu0 %v1773
        %v1775 = vpop.xlane.xlu0 %1774
        %v1776 = vadd.f32 %v1739, %v1740
        %1777 = vadd.xlane.f32.xlu0 %v1776
        %v1778 = vpop.xlane.xlu0 %1777
        %v1779 = vadd.f32 %v1741, %v1742
        %1780 = vadd.xlane.f32.xlu0 %v1779
        %v1781 = vpop.xlane.xlu0 %1780
        %v1782 = vadd.f32 %v1743, %v1744
        %1783 = vadd.xlane.f32.xlu0 %v1782
        %v1784 = vpop.xlane.xlu0 %1783
        %v1785 = vadd.f32 %v1745, %v1746
        %1786 = vadd.xlane.f32.xlu0 %v1785
        %v1787 = vpop.xlane.xlu0 %1786
        %v1788 = vadd.f32 %v1747, %v1748
        %1789 = vadd.xlane.f32.xlu0 %v1788
        %v1790 = vpop.xlane.xlu0 %1789
        %v1791 = vadd.f32 %v1749, %v1750
        %1792 = vadd.xlane.f32.xlu0 %v1791
        %v1793 = vpop.xlane.xlu0 %1792
        %v1794 = vadd.f32 %v1751, %v1752
        %1795 = vadd.xlane.f32.xlu0 %v1794
        %v1796 = vpop.xlane.xlu0 %1795
        %v1797 = vadd.f32 %v1753, %v1754
        %1798 = vadd.xlane.f32.xlu0 %v1797
        %v1799 = vpop.xlane.xlu0 %1798
        %v1800 = vadd.f32 %v1755, %v1756
        %1801 = vadd.xlane.f32.xlu0 %v1800
        %v1802 = vpop.xlane.xlu0 %1801
        %v1803 = vadd.f32 %v1757, %v1758
        %1804 = vadd.xlane.f32.xlu0 %v1803
        %v1805 = vpop.xlane.xlu0 %1804
        %v1806 = vadd.f32 %v1759, %v1760
        %1807 = vadd.xlane.f32.xlu0 %v1806
        %v1808 = vpop.xlane.xlu0 %1807
        %v1809 = vsub.f32 %v1571, %v1763
        %v1810 = vsub.f32 %v1573, %v1763
        %v1811 = vsub.f32 %v1575, %v1766
        %v1812 = vsub.f32 %v1577, %v1766
        %v1813 = vsub.f32 %v1581, %v1769
        %v1814 = vsub.f32 %v1583, %v1769
        %v1815 = vsub.f32 %v1585, %v1772
        %v1816 = vsub.f32 %v1587, %v1772
        %v1817 = vsub.f32 %v1591, %v1775
        %v1818 = vsub.f32 %v1593, %v1775
        %v1819 = vsub.f32 %v1595, %v1778
        %v1820 = vsub.f32 %v1597, %v1778
        %v1821 = vsub.f32 %v1601, %v1781
        %v1822 = vsub.f32 %v1603, %v1781
        %v1823 = vsub.f32 %v1605, %v1784
        %v1824 = vsub.f32 %v1607, %v1784
        %v1825 = vsub.f32 %v1611, %v1787
        %v1826 = vsub.f32 %v1613, %v1787
        %v1827 = vsub.f32 %v1615, %v1790
        %v1828 = vsub.f32 %v1617, %v1790
        %v1829 = vsub.f32 %v1621, %v1793
        %v1830 = vsub.f32 %v1623, %v1793
        %v1831 = vsub.f32 %v1625, %v1796
        %v1832 = vsub.f32 %v1627, %v1796
        %v1833 = vsub.f32 %v1631, %v1799
        %v1834 = vsub.f32 %v1633, %v1799
        %v1835 = vsub.f32 %v1635, %v1802
        %v1836 = vsub.f32 %v1637, %v1802
        %v1837 = vsub.f32 %v1641, %v1805
        %v1838 = vsub.f32 %v1643, %v1805
        %v1839 = vsub.f32 %v1645, %v1808
        %v1840 = vsub.f32 %v1647, %v1808
        %v1841 = vmul.f32 %v1809, 1.442695
        %v1842 = vpow.pop %v1841
        %v1843 = vmul.f32 %v1810, 1.442695
        %v1844 = vpow.pop %v1843
        %v1845 = vmul.f32 %v1811, 1.442695
        %v1846 = vpow.pop %v1845
        %v1847 = vmul.f32 %v1812, 1.442695
        %v1848 = vpow.pop %v1847
        %v1849 = vmul.f32 %v1813, 1.442695
        %v1850 = vpow.pop %v1849
        %v1851 = vmul.f32 %v1814, 1.442695
        %v1852 = vpow.pop %v1851
        %v1853 = vmul.f32 %v1815, 1.442695
        %v1854 = vpow.pop %v1853
        %v1855 = vmul.f32 %v1816, 1.442695
        %v1856 = vpow.pop %v1855
        %v1857 = vmul.f32 %v1817, 1.442695
        %v1858 = vpow.pop %v1857
        %v1859 = vmul.f32 %v1818, 1.442695
        %v1860 = vpow.pop %v1859
        %v1861 = vmul.f32 %v1819, 1.442695
        %v1862 = vpow.pop %v1861
        %v1863 = vmul.f32 %v1820, 1.442695
        %v1864 = vpow.pop %v1863
        %v1865 = vmul.f32 %v1821, 1.442695
        %v1866 = vpow.pop %v1865
        %v1867 = vmul.f32 %v1822, 1.442695
        %v1868 = vpow.pop %v1867
        %v1869 = vmul.f32 %v1823, 1.442695
        %v1870 = vpow.pop %v1869
        %v1871 = vmul.f32 %v1824, 1.442695
        %v1872 = vpow.pop %v1871
        %v1873 = vmul.f32 %v1825, 1.442695
        %v1874 = vpow.pop %v1873
        %v1875 = vmul.f32 %v1826, 1.442695
        %v1876 = vpow.pop %v1875
        %v1877 = vmul.f32 %v1827, 1.442695
        %v1878 = vpow.pop %v1877
        %v1879 = vmul.f32 %v1828, 1.442695
        %v1880 = vpow.pop %v1879
        %v1881 = vmul.f32 %v1829, 1.442695
        %v1882 = vpow.pop %v1881
        %v1883 = vmul.f32 %v1830, 1.442695
        %v1884 = vpow.pop %v1883
        %v1885 = vmul.f32 %v1831, 1.442695
        %v1886 = vpow.pop %v1885
        %v1887 = vmul.f32 %v1832, 1.442695
        %v1888 = vpow.pop %v1887
        %v1889 = vmul.f32 %v1833, 1.442695
        %v1890 = vpow.pop %v1889
        %v1891 = vmul.f32 %v1834, 1.442695
        %v1892 = vpow.pop %v1891
        %v1893 = vmul.f32 %v1835, 1.442695
        %v1894 = vpow.pop %v1893
        %v1895 = vmul.f32 %v1836, 1.442695
        %v1896 = vpow.pop %v1895
        %v1897 = vmul.f32 %v1837, 1.442695
        %v1898 = vpow.pop %v1897
        %v1899 = vmul.f32 %v1838, 1.442695
        %v1900 = vpow.pop %v1899
        %v1901 = vmul.f32 %v1839, 1.442695
        %v1902 = vpow.pop %v1901
        %v1903 = vmul.f32 %v1840, 1.442695
        %v1904 = vpow.pop %v1903
        %v1905 = vadd.f32 %v1842, %v1844
        %1906 = vadd.xlane.f32.xlu0 %v1905
        %v1907 = vpop.xlane.xlu0 %1906
        %v1908 = vadd.f32 %v1846, %v1848
        %1909 = vadd.xlane.f32.xlu0 %v1908
        %v1910 = vpop.xlane.xlu0 %1909
        %v1911 = vadd.f32 %v1850, %v1852
        %1912 = vadd.xlane.f32.xlu0 %v1911
        %v1913 = vpop.xlane.xlu0 %1912
        %v1914 = vadd.f32 %v1854, %v1856
        %1915 = vadd.xlane.f32.xlu0 %v1914
        %v1916 = vpop.xlane.xlu0 %1915
        %v1917 = vadd.f32 %v1858, %v1860
        %1918 = vadd.xlane.f32.xlu0 %v1917
        %v1919 = vpop.xlane.xlu0 %1918
        %v1920 = vadd.f32 %v1862, %v1864
        %1921 = vadd.xlane.f32.xlu0 %v1920
        %v1922 = vpop.xlane.xlu0 %1921
        %v1923 = vadd.f32 %v1866, %v1868
        %1924 = vadd.xlane.f32.xlu0 %v1923
        %v1925 = vpop.xlane.xlu0 %1924
        %v1926 = vadd.f32 %v1870, %v1872
        %1927 = vadd.xlane.f32.xlu0 %v1926
        %v1928 = vpop.xlane.xlu0 %1927
        %v1929 = vadd.f32 %v1874, %v1876
        %1930 = vadd.xlane.f32.xlu0 %v1929
        %v1931 = vpop.xlane.xlu0 %1930
        %v1932 = vadd.f32 %v1878, %v1880
        %1933 = vadd.xlane.f32.xlu0 %v1932
        %v1934 = vpop.xlane.xlu0 %1933
        %v1935 = vadd.f32 %v1882, %v1884
        %1936 = vadd.xlane.f32.xlu0 %v1935
        %v1937 = vpop.xlane.xlu0 %1936
        %v1938 = vadd.f32 %v1886, %v1888
        %1939 = vadd.xlane.f32.xlu0 %v1938
        %v1940 = vpop.xlane.xlu0 %1939
        %v1941 = vadd.f32 %v1890, %v1892
        %1942 = vadd.xlane.f32.xlu0 %v1941
        %v1943 = vpop.xlane.xlu0 %1942
        %v1944 = vadd.f32 %v1894, %v1896
        %1945 = vadd.xlane.f32.xlu0 %v1944
        %v1946 = vpop.xlane.xlu0 %1945
        %v1947 = vadd.f32 %v1898, %v1900
        %1948 = vadd.xlane.f32.xlu0 %v1947
        %v1949 = vpop.xlane.xlu0 %1948
        %v1950 = vadd.f32 %v1902, %v1904
        %1951 = vadd.xlane.f32.xlu0 %v1950
        %v1952 = vpop.xlane.xlu0 %1951
        %v1953 = vlog2.pop %v1907
        %v1954 = vmul.f32 %v1953, 0.6931472
        %v1955 = vlog2.pop %v1910
        %v1956 = vmul.f32 %v1955, 0.6931472
        %v1957 = vlog2.pop %v1913
        %v1958 = vmul.f32 %v1957, 0.6931472
        %v1959 = vlog2.pop %v1916
        %v1960 = vmul.f32 %v1959, 0.6931472
        %v1961 = vlog2.pop %v1919
        %v1962 = vmul.f32 %v1961, 0.6931472
        %v1963 = vlog2.pop %v1922
        %v1964 = vmul.f32 %v1963, 0.6931472
        %v1965 = vlog2.pop %v1925
        %v1966 = vmul.f32 %v1965, 0.6931472
        %v1967 = vlog2.pop %v1928
        %v1968 = vmul.f32 %v1967, 0.6931472
        %v1969 = vlog2.pop %v1931
        %v1970 = vmul.f32 %v1969, 0.6931472
        %v1971 = vlog2.pop %v1934
        %v1972 = vmul.f32 %v1971, 0.6931472
        %v1973 = vlog2.pop %v1937
        %v1974 = vmul.f32 %v1973, 0.6931472
        %v1975 = vlog2.pop %v1940
        %v1976 = vmul.f32 %v1975, 0.6931472
        %v1977 = vlog2.pop %v1943
        %v1978 = vmul.f32 %v1977, 0.6931472
        %v1979 = vlog2.pop %v1946
        %v1980 = vmul.f32 %v1979, 0.6931472
        %v1981 = vlog2.pop %v1949
        %v1982 = vmul.f32 %v1981, 0.6931472
        %v1983 = vlog2.pop %v1952
        %v1984 = vmul.f32 %v1983, 0.6931472
        %v1985 = vsub.f32 0.0, %v1954
        %v1986 = vsub.f32 0.0, %v1956
        %v1987 = vsub.f32 0.0, %v1958
        %v1988 = vsub.f32 0.0, %v1960
        %v1989 = vsub.f32 0.0, %v1962
        %v1990 = vsub.f32 0.0, %v1964
        %v1991 = vsub.f32 0.0, %v1966
        %v1992 = vsub.f32 0.0, %v1968
        %v1993 = vsub.f32 0.0, %v1970
        %v1994 = vsub.f32 0.0, %v1972
        %v1995 = vsub.f32 0.0, %v1974
        %v1996 = vsub.f32 0.0, %v1976
        %v1997 = vsub.f32 0.0, %v1978
        %v1998 = vsub.f32 0.0, %v1980
        %v1999 = vsub.f32 0.0, %v1982
        %v2000 = vsub.f32 0.0, %v1984
        %v2001 = vmax.f32 %v1985, -11.512925
        %v2002 = vmax.f32 %v1986, -11.512925
        %v2003 = vmax.f32 %v1987, -11.512925
        %v2004 = vmax.f32 %v1988, -11.512925
        %v2005 = vmax.f32 %v1989, -11.512925
        %v2006 = vmax.f32 %v1990, -11.512925
        %v2007 = vmax.f32 %v1991, -11.512925
        %v2008 = vmax.f32 %v1992, -11.512925
        %v2009 = vmax.f32 %v1993, -11.512925
        %v2010 = vmax.f32 %v1994, -11.512925
        %v2011 = vmax.f32 %v1995, -11.512925
        %v2012 = vmax.f32 %v1996, -11.512925
        %v2013 = vmax.f32 %v1997, -11.512925
        %v2014 = vmax.f32 %v1998, -11.512925
        %v2015 = vmax.f32 %v1999, -11.512925
        %v2016 = vmax.f32 %v2000, -11.512925
        %v2017 = vmin.f32 %v2001, -1.000005e-05
        %v2018 = vmin.f32 %v2002, -1.000005e-05
        %v2019 = vmin.f32 %v2003, -1.000005e-05
        %v2020 = vmin.f32 %v2004, -1.000005e-05
        %v2021 = vmin.f32 %v2005, -1.000005e-05
        %v2022 = vmin.f32 %v2006, -1.000005e-05
        %v2023 = vmin.f32 %v2007, -1.000005e-05
        %v2024 = vmin.f32 %v2008, -1.000005e-05
        %v2025 = vmin.f32 %v2009, -1.000005e-05
        %v2026 = vmin.f32 %v2010, -1.000005e-05
        %v2027 = vmin.f32 %v2011, -1.000005e-05
        %v2028 = vmin.f32 %v2012, -1.000005e-05
        %v2029 = vmin.f32 %v2013, -1.000005e-05
        %v2030 = vmin.f32 %v2014, -1.000005e-05
        %v2031 = vmin.f32 %v2015, -1.000005e-05
        %v2032 = vmin.f32 %v2016, -1.000005e-05
        %v2033 = vadd.f32 %v2017, 0.0
        %v2034 = vadd.f32 %v2018, 0.0
        %v2035 = vadd.f32 %v2019, 0.0
        %v2036 = vadd.f32 %v2020, 0.0
        %v2037 = vadd.f32 %v2021, 0.0
        %v2038 = vadd.f32 %v2022, 0.0
        %v2039 = vadd.f32 %v2023, 0.0
        %v2040 = vadd.f32 %v2024, 0.0
        %v2041 = vadd.f32 %v2025, 0.0
        %v2042 = vadd.f32 %v2026, 0.0
        %v2043 = vadd.f32 %v2027, 0.0
        %v2044 = vadd.f32 %v2028, 0.0
        %v2045 = vadd.f32 %v2029, 0.0
        %v2046 = vadd.f32 %v2030, 0.0
        %v2047 = vadd.f32 %v2031, 0.0
        %v2048 = vadd.f32 %v2032, 0.0
        %v2049 = vld [vmem:[#allocation2 + $0x10] sm:$0xff]
        %v2050 = vld [vmem:[#allocation2 + $0x90] sm:$0xff]
        %v2051 = vld [vmem:[#allocation2 + $0x110] sm:$0xff]
        %v2052 = vld [vmem:[#allocation2 + $0x190] sm:$0xff]
        %v2053 = vld [vmem:[#allocation2 + $0x210] sm:$0xff]
        %v2054 = vld [vmem:[#allocation2 + $0x290] sm:$0xff]
        %v2055 = vld [vmem:[#allocation2 + $0x310] sm:$0xff]
        %v2056 = vld [vmem:[#allocation2 + $0x390] sm:$0xff]
        %v2057 = vld [vmem:[#allocation2 + $0x410] sm:$0xff]
        %v2058 = vld [vmem:[#allocation2 + $0x490] sm:$0xff]
        %v2059 = vld [vmem:[#allocation2 + $0x510] sm:$0xff]
        %v2060 = vld [vmem:[#allocation2 + $0x590] sm:$0xff]
        %v2061 = vld [vmem:[#allocation2 + $0x610] sm:$0xff]
        %v2062 = vld [vmem:[#allocation2 + $0x690] sm:$0xff]
        %v2063 = vld [vmem:[#allocation2 + $0x710] sm:$0xff]
        %v2064 = vld [vmem:[#allocation2 + $0x790] sm:$0xff]
        %v2065 = vld [vmem:[%s7 + $0x4] sm:$0x3]
        %v2067 = vlaneseq
        %v2068 = vshrl.u32 %v2067, 7
        %v2069 = vsub.s32 0, %v2068
        %v2070 = vrot.slane %v2065, %v2069
        %v2071 = vlaneseq
        %v2072 = vshrl.u32 %v2071, 7
        %v2073 = vsub.s32 1, %v2072
        %v2074 = vrot.slane %v2065, %v2073
        %v2093 = vunpack.c.l.b16 %v2049
        %v2094 = vunpack.c.h.b16 %v2049
        %v2095 = vunpack.c.l.b16 %v2050
        %v2096 = vunpack.c.h.b16 %v2050
        %v2097 = vunpack.c.l.b16 %v2051
        %v2098 = vunpack.c.h.b16 %v2051
        %v2099 = vunpack.c.l.b16 %v2052
        %v2100 = vunpack.c.h.b16 %v2052
        %v2101 = vunpack.c.l.b16 %v2053
        %v2102 = vunpack.c.h.b16 %v2053
        %v2103 = vunpack.c.l.b16 %v2054
        %v2104 = vunpack.c.h.b16 %v2054
        %v2105 = vunpack.c.l.b16 %v2055
        %v2106 = vunpack.c.h.b16 %v2055
        %v2107 = vunpack.c.l.b16 %v2056
        %v2108 = vunpack.c.h.b16 %v2056
        %v2109 = vunpack.c.l.b16 %v2057
        %v2110 = vunpack.c.h.b16 %v2057
        %v2111 = vunpack.c.l.b16 %v2058
        %v2112 = vunpack.c.h.b16 %v2058
        %v2113 = vunpack.c.l.b16 %v2059
        %v2114 = vunpack.c.h.b16 %v2059
        %v2115 = vunpack.c.l.b16 %v2060
        %v2116 = vunpack.c.h.b16 %v2060
        %v2117 = vunpack.c.l.b16 %v2061
        %v2118 = vunpack.c.h.b16 %v2061
        %v2119 = vunpack.c.l.b16 %v2062
        %v2120 = vunpack.c.h.b16 %v2062
        %v2121 = vunpack.c.l.b16 %v2063
        %v2122 = vunpack.c.h.b16 %v2063
        %v2123 = vunpack.c.l.b16 %v2064
        %v2124 = vunpack.c.h.b16 %v2064
        %v2125 = vpack.c.b16 %v2095, %v2093
        %v2126 = vpack.c.b16 %v2096, %v2094
        %v2127 = vpack.c.b16 %v2099, %v2097
        %v2128 = vpack.c.b16 %v2100, %v2098
        %v2129 = vpack.c.b16 %v2103, %v2101
        %v2130 = vpack.c.b16 %v2104, %v2102
        %v2131 = vpack.c.b16 %v2107, %v2105
        %v2132 = vpack.c.b16 %v2108, %v2106
        %v2133 = vpack.c.b16 %v2111, %v2109
        %v2134 = vpack.c.b16 %v2112, %v2110
        %v2135 = vpack.c.b16 %v2115, %v2113
        %v2136 = vpack.c.b16 %v2116, %v2114
        %v2137 = vpack.c.b16 %v2119, %v2117
        %v2138 = vpack.c.b16 %v2120, %v2118
        %v2139 = vpack.c.b16 %v2123, %v2121
        %v2140 = vpack.c.b16 %v2124, %v2122
        %2157 = vmatprep.subr.bf16.mxu0 %v2140
        %2158 = vmatpush1.bf16.msra.mxu0 %v2139
        %2159 = vmatprep.subr.bf16.mxu0 %v2138
        %2160 = vmatpush1.bf16.msra.mxu0 %v2137
        %2161 = vmatprep.subr.bf16.mxu0 %v2136
        %2162 = vmatpush1.bf16.msra.mxu0 %v2135
        %2163 = vmatprep.subr.bf16.mxu0 %v2134
        %2164 = vmatpush1.bf16.msra.mxu0 %v2133
        %2165 = vmatprep.subr.bf16.mxu0 %v2132
        %2166 = vmatpush1.bf16.msra.mxu0 %v2131
        %2167 = vmatprep.subr.bf16.mxu0 %v2130
        %2168 = vmatpush1.bf16.msra.mxu0 %v2129
        %2169 = vmatprep.subr.bf16.mxu0 %v2128
        %2170 = vmatpush1.bf16.msra.mxu0 %v2127
        %2171 = vmatprep.subr.bf16.mxu0 %v2126
        %2172 = vmatpush1.bf16.msra.mxu0 %v2125
        %2173 = vmatprep.subr.bf16.mxu0 0
        %2174 = vmatpush2.bf16.msra.mxu0 0
        %2175 = vmatprep.subr.bf16.mxu0 0
        %2176 = vmatpush2.bf16.msra.mxu0 0
        %2177 = vmatprep.subr.bf16.mxu0 0
        %2178 = vmatpush2.bf16.msra.mxu0 0
        %2179 = vmatprep.subr.bf16.mxu0 0
        %2180 = vmatpush2.bf16.msra.mxu0 0
        %2181 = vmatprep.subr.bf16.mxu0 0
        %2182 = vmatpush2.bf16.msra.mxu0 0
        %2183 = vmatprep.subr.bf16.mxu0 0
        %2184 = vmatpush2.bf16.msra.mxu0 0
        %2185 = vmatprep.subr.bf16.mxu0 0
        %2186 = vmatpush2.bf16.msra.mxu0 0
        %2187 = vmatprep.subr.bf16.mxu0 0
        %2188 = vmatpush2.bf16.msra.mxu0 0
        %2189 = vmatprep.mubr.bf16.mxu0 0
        %2190 = vmatmul.mubr.bf16.gmra.mxu0 %v780
        %v2191 = vpop.f32.mrf.mxu0
        %v2192 = vadd.f32 %v2070, %v2191
        %v2193 = vpop.f32.mrf.mxu0
        %v2194 = vadd.f32 %v2074, %v2193
        %v2195 = vpop.f32.mrf.mxu0
        %v2196 = vadd.f32 %v2070, %v2195
        %v2197 = vpop.f32.mrf.mxu0
        %v2198 = vadd.f32 %v2074, %v2197
        %2199 = vmatprep.mubr.bf16.mxu0 0
        %2200 = vmatmul.mubr.bf16.gmra.mxu0 %v781
        %v2201 = vpop.f32.mrf.mxu0
        %v2202 = vadd.f32 %v2070, %v2201
        %v2203 = vpop.f32.mrf.mxu0
        %v2204 = vadd.f32 %v2074, %v2203
        %v2205 = vpop.f32.mrf.mxu0
        %v2206 = vadd.f32 %v2070, %v2205
        %v2207 = vpop.f32.mrf.mxu0
        %v2208 = vadd.f32 %v2074, %v2207
        %2209 = vmatprep.mubr.bf16.mxu0 0
        %2210 = vmatmul.mubr.bf16.gmra.mxu0 %v782
        %v2211 = vpop.f32.mrf.mxu0
        %v2212 = vadd.f32 %v2070, %v2211
        %v2213 = vpop.f32.mrf.mxu0
        %v2214 = vadd.f32 %v2074, %v2213
        %v2215 = vpop.f32.mrf.mxu0
        %v2216 = vadd.f32 %v2070, %v2215
        %v2217 = vpop.f32.mrf.mxu0
        %v2218 = vadd.f32 %v2074, %v2217
        %2219 = vmatprep.mubr.bf16.mxu0 0
        %2220 = vmatmul.mubr.bf16.gmra.mxu0 %v783
        %v2221 = vpop.f32.mrf.mxu0
        %v2222 = vadd.f32 %v2070, %v2221
        %v2223 = vpop.f32.mrf.mxu0
        %v2224 = vadd.f32 %v2074, %v2223
        %v2225 = vpop.f32.mrf.mxu0
        %v2226 = vadd.f32 %v2070, %v2225
        %v2227 = vpop.f32.mrf.mxu0
        %v2228 = vadd.f32 %v2074, %v2227
        %2229 = vmatprep.mubr.bf16.mxu0 0
        %2230 = vmatmul.mubr.bf16.gmra.mxu0 %v784
        %v2231 = vpop.f32.mrf.mxu0
        %v2232 = vadd.f32 %v2070, %v2231
        %v2233 = vpop.f32.mrf.mxu0
        %v2234 = vadd.f32 %v2074, %v2233
        %v2235 = vpop.f32.mrf.mxu0
        %v2236 = vadd.f32 %v2070, %v2235
        %v2237 = vpop.f32.mrf.mxu0
        %v2238 = vadd.f32 %v2074, %v2237
        %2239 = vmatprep.mubr.bf16.mxu0 0
        %2240 = vmatmul.mubr.bf16.gmra.mxu0 %v785
        %v2241 = vpop.f32.mrf.mxu0
        %v2242 = vadd.f32 %v2070, %v2241
        %v2243 = vpop.f32.mrf.mxu0
        %v2244 = vadd.f32 %v2074, %v2243
        %v2245 = vpop.f32.mrf.mxu0
        %v2246 = vadd.f32 %v2070, %v2245
        %v2247 = vpop.f32.mrf.mxu0
        %v2248 = vadd.f32 %v2074, %v2247
        %2249 = vmatprep.mubr.bf16.mxu0 0
        %2250 = vmatmul.mubr.bf16.gmra.mxu0 %v786
        %v2251 = vpop.f32.mrf.mxu0
        %v2252 = vadd.f32 %v2070, %v2251
        %v2253 = vpop.f32.mrf.mxu0
        %v2254 = vadd.f32 %v2074, %v2253
        %v2255 = vpop.f32.mrf.mxu0
        %v2256 = vadd.f32 %v2070, %v2255
        %v2257 = vpop.f32.mrf.mxu0
        %v2258 = vadd.f32 %v2074, %v2257
        %2259 = vmatprep.mubr.bf16.mxu0 0
        %2260 = vmatmul.mubr.bf16.gmra.mxu0 %v787
        %v2261 = vpop.f32.mrf.mxu0
        %v2262 = vadd.f32 %v2070, %v2261
        %v2263 = vpop.f32.mrf.mxu0
        %v2264 = vadd.f32 %v2074, %v2263
        %v2265 = vpop.f32.mrf.mxu0
        %v2266 = vadd.f32 %v2070, %v2265
        %v2267 = vpop.f32.mrf.mxu0
        %v2268 = vadd.f32 %v2074, %v2267
        %2269 = vdwg.mxu0
        %2270 = vset.pattern.permute.xlu0 2
        %2271 = vperm.xlu0 %2270, %v788
        %v2272 = vpop.permute.xlu0 %2271
        %2273 = vset.pattern.permute.xlu0 2
        %2274 = vperm.xlu0 %2273, %v789
        %v2275 = vpop.permute.xlu0 %2274
        %2276 = vset.pattern.permute.xlu0 2
        %2277 = vperm.xlu0 %2276, %v790
        %v2278 = vpop.permute.xlu0 %2277
        %2279 = vset.pattern.permute.xlu0 2
        %2280 = vperm.xlu0 %2279, %v791
        %v2281 = vpop.permute.xlu0 %2280
        %2282 = vset.pattern.permute.xlu0 2
        %2283 = vperm.xlu0 %2282, %v792
        %v2284 = vpop.permute.xlu0 %2283
        %2285 = vset.pattern.permute.xlu0 2
        %2286 = vperm.xlu0 %2285, %v793
        %v2287 = vpop.permute.xlu0 %2286
        %2288 = vset.pattern.permute.xlu0 2
        %2289 = vperm.xlu0 %2288, %v794
        %v2290 = vpop.permute.xlu0 %2289
        %2291 = vset.pattern.permute.xlu0 2
        %2292 = vperm.xlu0 %2291, %v795
        %v2293 = vpop.permute.xlu0 %2292
        %2294 = vset.pattern.permute.xlu0 2
        %2295 = vperm.xlu0 %2294, %v796
        %v2296 = vpop.permute.xlu0 %2295
        %2297 = vset.pattern.permute.xlu0 2
        %2298 = vperm.xlu0 %2297, %v797
        %v2299 = vpop.permute.xlu0 %2298
        %2300 = vset.pattern.permute.xlu0 2
        %2301 = vperm.xlu0 %2300, %v798
        %v2302 = vpop.permute.xlu0 %2301
        %2303 = vset.pattern.permute.xlu0 2
        %2304 = vperm.xlu0 %2303, %v799
        %v2305 = vpop.permute.xlu0 %2304
        %2306 = vset.pattern.permute.xlu0 2
        %2307 = vperm.xlu0 %2306, %v800
        %v2308 = vpop.permute.xlu0 %2307
        %2309 = vset.pattern.permute.xlu0 2
        %2310 = vperm.xlu0 %2309, %v801
        %v2311 = vpop.permute.xlu0 %2310
        %2312 = vset.pattern.permute.xlu0 2
        %2313 = vperm.xlu0 %2312, %v802
        %v2314 = vpop.permute.xlu0 %2313
        %2315 = vset.pattern.permute.xlu0 2
        %2316 = vperm.xlu0 %2315, %v803
        %v2317 = vpop.permute.xlu0 %2316
        %vm2318 = vcmp.eq.s32.totalorder %v805, %v2272
        %vm2319 = vcmp.eq.s32.totalorder %v806, %v2272
        %vm2320 = vcmp.eq.s32.totalorder %v805, %v2275
        %vm2321 = vcmp.eq.s32.totalorder %v806, %v2275
        %vm2322 = vcmp.eq.s32.totalorder %v805, %v2278
        %vm2323 = vcmp.eq.s32.totalorder %v806, %v2278
        %vm2324 = vcmp.eq.s32.totalorder %v805, %v2281
        %vm2325 = vcmp.eq.s32.totalorder %v806, %v2281
        %vm2326 = vcmp.eq.s32.totalorder %v805, %v2284
        %vm2327 = vcmp.eq.s32.totalorder %v806, %v2284
        %vm2328 = vcmp.eq.s32.totalorder %v805, %v2287
        %vm2329 = vcmp.eq.s32.totalorder %v806, %v2287
        %vm2330 = vcmp.eq.s32.totalorder %v805, %v2290
        %vm2331 = vcmp.eq.s32.totalorder %v806, %v2290
        %vm2332 = vcmp.eq.s32.totalorder %v805, %v2293
        %vm2333 = vcmp.eq.s32.totalorder %v806, %v2293
        %vm2334 = vcmp.eq.s32.totalorder %v805, %v2296
        %vm2335 = vcmp.eq.s32.totalorder %v806, %v2296
        %vm2336 = vcmp.eq.s32.totalorder %v805, %v2299
        %vm2337 = vcmp.eq.s32.totalorder %v806, %v2299
        %vm2338 = vcmp.eq.s32.totalorder %v805, %v2302
        %vm2339 = vcmp.eq.s32.totalorder %v806, %v2302
        %vm2340 = vcmp.eq.s32.totalorder %v805, %v2305
        %vm2341 = vcmp.eq.s32.totalorder %v806, %v2305
        %vm2342 = vcmp.eq.s32.totalorder %v805, %v2308
        %vm2343 = vcmp.eq.s32.totalorder %v806, %v2308
        %vm2344 = vcmp.eq.s32.totalorder %v805, %v2311
        %vm2345 = vcmp.eq.s32.totalorder %v806, %v2311
        %vm2346 = vcmp.eq.s32.totalorder %v805, %v2314
        %vm2347 = vcmp.eq.s32.totalorder %v806, %v2314
        %vm2348 = vcmp.eq.s32.totalorder %v805, %v2317
        %vm2349 = vcmp.eq.s32.totalorder %v806, %v2317
        %v2350 = vsel %vm2318, %v2192, 0.0
        %v2351 = vsel %vm2319, %v2194, 0.0
        %v2352 = vsel %vm2320, %v2196, 0.0
        %v2353 = vsel %vm2321, %v2198, 0.0
        %v2354 = vsel %vm2322, %v2202, 0.0
        %v2355 = vsel %vm2323, %v2204, 0.0
        %v2356 = vsel %vm2324, %v2206, 0.0
        %v2357 = vsel %vm2325, %v2208, 0.0
        %v2358 = vsel %vm2326, %v2212, 0.0
        %v2359 = vsel %vm2327, %v2214, 0.0
        %v2360 = vsel %vm2328, %v2216, 0.0
        %v2361 = vsel %vm2329, %v2218, 0.0
        %v2362 = vsel %vm2330, %v2222, 0.0
        %v2363 = vsel %vm2331, %v2224, 0.0
        %v2364 = vsel %vm2332, %v2226, 0.0
        %v2365 = vsel %vm2333, %v2228, 0.0
        %v2366 = vsel %vm2334, %v2232, 0.0
        %v2367 = vsel %vm2335, %v2234, 0.0
        %v2368 = vsel %vm2336, %v2236, 0.0
        %v2369 = vsel %vm2337, %v2238, 0.0
        %v2370 = vsel %vm2338, %v2242, 0.0
        %v2371 = vsel %vm2339, %v2244, 0.0
        %v2372 = vsel %vm2340, %v2246, 0.0
        %v2373 = vsel %vm2341, %v2248, 0.0
        %v2374 = vsel %vm2342, %v2252, 0.0
        %v2375 = vsel %vm2343, %v2254, 0.0
        %v2376 = vsel %vm2344, %v2256, 0.0
        %v2377 = vsel %vm2345, %v2258, 0.0
        %v2378 = vsel %vm2346, %v2262, 0.0
        %v2379 = vsel %vm2347, %v2264, 0.0
        %v2380 = vsel %vm2348, %v2266, 0.0
        %v2381 = vsel %vm2349, %v2268, 0.0
        %v2382 = vadd.f32 %v2350, %v2351
        %2383 = vadd.xlane.f32.xlu0 %v2382
        %v2384 = vpop.xlane.xlu0 %2383
        %v2385 = vadd.f32 %v2352, %v2353
        %2386 = vadd.xlane.f32.xlu0 %v2385
        %v2387 = vpop.xlane.xlu0 %2386
        %v2388 = vadd.f32 %v2354, %v2355
        %2389 = vadd.xlane.f32.xlu0 %v2388
        %v2390 = vpop.xlane.xlu0 %2389
        %v2391 = vadd.f32 %v2356, %v2357
        %2392 = vadd.xlane.f32.xlu0 %v2391
        %v2393 = vpop.xlane.xlu0 %2392
        %v2394 = vadd.f32 %v2358, %v2359
        %2395 = vadd.xlane.f32.xlu0 %v2394
        %v2396 = vpop.xlane.xlu0 %2395
        %v2397 = vadd.f32 %v2360, %v2361
        %2398 = vadd.xlane.f32.xlu0 %v2397
        %v2399 = vpop.xlane.xlu0 %2398
        %v2400 = vadd.f32 %v2362, %v2363
        %2401 = vadd.xlane.f32.xlu0 %v2400
        %v2402 = vpop.xlane.xlu0 %2401
        %v2403 = vadd.f32 %v2364, %v2365
        %2404 = vadd.xlane.f32.xlu0 %v2403
        %v2405 = vpop.xlane.xlu0 %2404
        %v2406 = vadd.f32 %v2366, %v2367
        %2407 = vadd.xlane.f32.xlu0 %v2406
        %v2408 = vpop.xlane.xlu0 %2407
        %v2409 = vadd.f32 %v2368, %v2369
        %2410 = vadd.xlane.f32.xlu0 %v2409
        %v2411 = vpop.xlane.xlu0 %2410
        %v2412 = vadd.f32 %v2370, %v2371
        %2413 = vadd.xlane.f32.xlu0 %v2412
        %v2414 = vpop.xlane.xlu0 %2413
        %v2415 = vadd.f32 %v2372, %v2373
        %2416 = vadd.xlane.f32.xlu0 %v2415
        %v2417 = vpop.xlane.xlu0 %2416
        %v2418 = vadd.f32 %v2374, %v2375
        %2419 = vadd.xlane.f32.xlu0 %v2418
        %v2420 = vpop.xlane.xlu0 %2419
        %v2421 = vadd.f32 %v2376, %v2377
        %2422 = vadd.xlane.f32.xlu0 %v2421
        %v2423 = vpop.xlane.xlu0 %2422
        %v2424 = vadd.f32 %v2378, %v2379
        %2425 = vadd.xlane.f32.xlu0 %v2424
        %v2426 = vpop.xlane.xlu0 %2425
        %v2427 = vadd.f32 %v2380, %v2381
        %2428 = vadd.xlane.f32.xlu0 %v2427
        %v2429 = vpop.xlane.xlu0 %2428
        %v2430 = vsub.f32 %v2192, %v2384
        %v2431 = vsub.f32 %v2194, %v2384
        %v2432 = vsub.f32 %v2196, %v2387
        %v2433 = vsub.f32 %v2198, %v2387
        %v2434 = vsub.f32 %v2202, %v2390
        %v2435 = vsub.f32 %v2204, %v2390
        %v2436 = vsub.f32 %v2206, %v2393
        %v2437 = vsub.f32 %v2208, %v2393
        %v2438 = vsub.f32 %v2212, %v2396
        %v2439 = vsub.f32 %v2214, %v2396
        %v2440 = vsub.f32 %v2216, %v2399
        %v2441 = vsub.f32 %v2218, %v2399
        %v2442 = vsub.f32 %v2222, %v2402
        %v2443 = vsub.f32 %v2224, %v2402
        %v2444 = vsub.f32 %v2226, %v2405
        %v2445 = vsub.f32 %v2228, %v2405
        %v2446 = vsub.f32 %v2232, %v2408
        %v2447 = vsub.f32 %v2234, %v2408
        %v2448 = vsub.f32 %v2236, %v2411
        %v2449 = vsub.f32 %v2238, %v2411
        %v2450 = vsub.f32 %v2242, %v2414
        %v2451 = vsub.f32 %v2244, %v2414
        %v2452 = vsub.f32 %v2246, %v2417
        %v2453 = vsub.f32 %v2248, %v2417
        %v2454 = vsub.f32 %v2252, %v2420
        %v2455 = vsub.f32 %v2254, %v2420
        %v2456 = vsub.f32 %v2256, %v2423
        %v2457 = vsub.f32 %v2258, %v2423
        %v2458 = vsub.f32 %v2262, %v2426
        %v2459 = vsub.f32 %v2264, %v2426
        %v2460 = vsub.f32 %v2266, %v2429
        %v2461 = vsub.f32 %v2268, %v2429
        %v2462 = vmul.f32 %v2430, 1.442695
        %v2463 = vpow.pop %v2462
        %v2464 = vmul.f32 %v2431, 1.442695
        %v2465 = vpow.pop %v2464
        %v2466 = vmul.f32 %v2432, 1.442695
        %v2467 = vpow.pop %v2466
        %v2468 = vmul.f32 %v2433, 1.442695
        %v2469 = vpow.pop %v2468
        %v2470 = vmul.f32 %v2434, 1.442695
        %v2471 = vpow.pop %v2470
        %v2472 = vmul.f32 %v2435, 1.442695
        %v2473 = vpow.pop %v2472
        %v2474 = vmul.f32 %v2436, 1.442695
        %v2475 = vpow.pop %v2474
        %v2476 = vmul.f32 %v2437, 1.442695
        %v2477 = vpow.pop %v2476
        %v2478 = vmul.f32 %v2438, 1.442695
        %v2479 = vpow.pop %v2478
        %v2480 = vmul.f32 %v2439, 1.442695
        %v2481 = vpow.pop %v2480
        %v2482 = vmul.f32 %v2440, 1.442695
        %v2483 = vpow.pop %v2482
        %v2484 = vmul.f32 %v2441, 1.442695
        %v2485 = vpow.pop %v2484
        %v2486 = vmul.f32 %v2442, 1.442695
        %v2487 = vpow.pop %v2486
        %v2488 = vmul.f32 %v2443, 1.442695
        %v2489 = vpow.pop %v2488
        %v2490 = vmul.f32 %v2444, 1.442695
        %v2491 = vpow.pop %v2490
        %v2492 = vmul.f32 %v2445, 1.442695
        %v2493 = vpow.pop %v2492
        %v2494 = vmul.f32 %v2446, 1.442695
        %v2495 = vpow.pop %v2494
        %v2496 = vmul.f32 %v2447, 1.442695
        %v2497 = vpow.pop %v2496
        %v2498 = vmul.f32 %v2448, 1.442695
        %v2499 = vpow.pop %v2498
        %v2500 = vmul.f32 %v2449, 1.442695
        %v2501 = vpow.pop %v2500
        %v2502 = vmul.f32 %v2450, 1.442695
        %v2503 = vpow.pop %v2502
        %v2504 = vmul.f32 %v2451, 1.442695
        %v2505 = vpow.pop %v2504
        %v2506 = vmul.f32 %v2452, 1.442695
        %v2507 = vpow.pop %v2506
        %v2508 = vmul.f32 %v2453, 1.442695
        %v2509 = vpow.pop %v2508
        %v2510 = vmul.f32 %v2454, 1.442695
        %v2511 = vpow.pop %v2510
        %v2512 = vmul.f32 %v2455, 1.442695
        %v2513 = vpow.pop %v2512
        %v2514 = vmul.f32 %v2456, 1.442695
        %v2515 = vpow.pop %v2514
        %v2516 = vmul.f32 %v2457, 1.442695
        %v2517 = vpow.pop %v2516
        %v2518 = vmul.f32 %v2458, 1.442695
        %v2519 = vpow.pop %v2518
        %v2520 = vmul.f32 %v2459, 1.442695
        %v2521 = vpow.pop %v2520
        %v2522 = vmul.f32 %v2460, 1.442695
        %v2523 = vpow.pop %v2522
        %v2524 = vmul.f32 %v2461, 1.442695
        %v2525 = vpow.pop %v2524
        %v2526 = vadd.f32 %v2463, %v2465
        %2527 = vadd.xlane.f32.xlu0 %v2526
        %v2528 = vpop.xlane.xlu0 %2527
        %v2529 = vadd.f32 %v2467, %v2469
        %2530 = vadd.xlane.f32.xlu0 %v2529
        %v2531 = vpop.xlane.xlu0 %2530
        %v2532 = vadd.f32 %v2471, %v2473
        %2533 = vadd.xlane.f32.xlu0 %v2532
        %v2534 = vpop.xlane.xlu0 %2533
        %v2535 = vadd.f32 %v2475, %v2477
        %2536 = vadd.xlane.f32.xlu0 %v2535
        %v2537 = vpop.xlane.xlu0 %2536
        %v2538 = vadd.f32 %v2479, %v2481
        %2539 = vadd.xlane.f32.xlu0 %v2538
        %v2540 = vpop.xlane.xlu0 %2539
        %v2541 = vadd.f32 %v2483, %v2485
        %2542 = vadd.xlane.f32.xlu0 %v2541
        %v2543 = vpop.xlane.xlu0 %2542
        %v2544 = vadd.f32 %v2487, %v2489
        %2545 = vadd.xlane.f32.xlu0 %v2544
        %v2546 = vpop.xlane.xlu0 %2545
        %v2547 = vadd.f32 %v2491, %v2493
        %2548 = vadd.xlane.f32.xlu0 %v2547
        %v2549 = vpop.xlane.xlu0 %2548
        %v2550 = vadd.f32 %v2495, %v2497
        %2551 = vadd.xlane.f32.xlu0 %v2550
        %v2552 = vpop.xlane.xlu0 %2551
        %v2553 = vadd.f32 %v2499, %v2501
        %2554 = vadd.xlane.f32.xlu0 %v2553
        %v2555 = vpop.xlane.xlu0 %2554
        %v2556 = vadd.f32 %v2503, %v2505
        %2557 = vadd.xlane.f32.xlu0 %v2556
        %v2558 = vpop.xlane.xlu0 %2557
        %v2559 = vadd.f32 %v2507, %v2509
        %2560 = vadd.xlane.f32.xlu0 %v2559
        %v2561 = vpop.xlane.xlu0 %2560
        %v2562 = vadd.f32 %v2511, %v2513
        %2563 = vadd.xlane.f32.xlu0 %v2562
        %v2564 = vpop.xlane.xlu0 %2563
        %v2565 = vadd.f32 %v2515, %v2517
        %2566 = vadd.xlane.f32.xlu0 %v2565
        %v2567 = vpop.xlane.xlu0 %2566
        %v2568 = vadd.f32 %v2519, %v2521
        %2569 = vadd.xlane.f32.xlu0 %v2568
        %v2570 = vpop.xlane.xlu0 %2569
        %v2571 = vadd.f32 %v2523, %v2525
        %2572 = vadd.xlane.f32.xlu0 %v2571
        %v2573 = vpop.xlane.xlu0 %2572
        %v2574 = vlog2.pop %v2528
        %v2575 = vmul.f32 %v2574, 0.6931472
        %v2576 = vlog2.pop %v2531
        %v2577 = vmul.f32 %v2576, 0.6931472
        %v2578 = vlog2.pop %v2534
        %v2579 = vmul.f32 %v2578, 0.6931472
        %v2580 = vlog2.pop %v2537
        %v2581 = vmul.f32 %v2580, 0.6931472
        %v2582 = vlog2.pop %v2540
        %v2583 = vmul.f32 %v2582, 0.6931472
        %v2584 = vlog2.pop %v2543
        %v2585 = vmul.f32 %v2584, 0.6931472
        %v2586 = vlog2.pop %v2546
        %v2587 = vmul.f32 %v2586, 0.6931472
        %v2588 = vlog2.pop %v2549
        %v2589 = vmul.f32 %v2588, 0.6931472
        %v2590 = vlog2.pop %v2552
        %v2591 = vmul.f32 %v2590, 0.6931472
        %v2592 = vlog2.pop %v2555
        %v2593 = vmul.f32 %v2592, 0.6931472
        %v2594 = vlog2.pop %v2558
        %v2595 = vmul.f32 %v2594, 0.6931472
        %v2596 = vlog2.pop %v2561
        %v2597 = vmul.f32 %v2596, 0.6931472
        %v2598 = vlog2.pop %v2564
        %v2599 = vmul.f32 %v2598, 0.6931472
        %v2600 = vlog2.pop %v2567
        %v2601 = vmul.f32 %v2600, 0.6931472
        %v2602 = vlog2.pop %v2570
        %v2603 = vmul.f32 %v2602, 0.6931472
        %v2604 = vlog2.pop %v2573
        %v2605 = vmul.f32 %v2604, 0.6931472
        %v2606 = vsub.f32 0.0, %v2575
        %v2607 = vsub.f32 0.0, %v2577
        %v2608 = vsub.f32 0.0, %v2579
        %v2609 = vsub.f32 0.0, %v2581
        %v2610 = vsub.f32 0.0, %v2583
        %v2611 = vsub.f32 0.0, %v2585
        %v2612 = vsub.f32 0.0, %v2587
        %v2613 = vsub.f32 0.0, %v2589
        %v2614 = vsub.f32 0.0, %v2591
        %v2615 = vsub.f32 0.0, %v2593
        %v2616 = vsub.f32 0.0, %v2595
        %v2617 = vsub.f32 0.0, %v2597
        %v2618 = vsub.f32 0.0, %v2599
        %v2619 = vsub.f32 0.0, %v2601
        %v2620 = vsub.f32 0.0, %v2603
        %v2621 = vsub.f32 0.0, %v2605
        %v2622 = vmax.f32 %v2606, -11.512925
        %v2623 = vmax.f32 %v2607, -11.512925
        %v2624 = vmax.f32 %v2608, -11.512925
        %v2625 = vmax.f32 %v2609, -11.512925
        %v2626 = vmax.f32 %v2610, -11.512925
        %v2627 = vmax.f32 %v2611, -11.512925
        %v2628 = vmax.f32 %v2612, -11.512925
        %v2629 = vmax.f32 %v2613, -11.512925
        %v2630 = vmax.f32 %v2614, -11.512925
        %v2631 = vmax.f32 %v2615, -11.512925
        %v2632 = vmax.f32 %v2616, -11.512925
        %v2633 = vmax.f32 %v2617, -11.512925
        %v2634 = vmax.f32 %v2618, -11.512925
        %v2635 = vmax.f32 %v2619, -11.512925
        %v2636 = vmax.f32 %v2620, -11.512925
        %v2637 = vmax.f32 %v2621, -11.512925
        %v2638 = vmin.f32 %v2622, -1.000005e-05
        %v2639 = vmin.f32 %v2623, -1.000005e-05
        %v2640 = vmin.f32 %v2624, -1.000005e-05
        %v2641 = vmin.f32 %v2625, -1.000005e-05
        %v2642 = vmin.f32 %v2626, -1.000005e-05
        %v2643 = vmin.f32 %v2627, -1.000005e-05
        %v2644 = vmin.f32 %v2628, -1.000005e-05
        %v2645 = vmin.f32 %v2629, -1.000005e-05
        %v2646 = vmin.f32 %v2630, -1.000005e-05
        %v2647 = vmin.f32 %v2631, -1.000005e-05
        %v2648 = vmin.f32 %v2632, -1.000005e-05
        %v2649 = vmin.f32 %v2633, -1.000005e-05
        %v2650 = vmin.f32 %v2634, -1.000005e-05
        %v2651 = vmin.f32 %v2635, -1.000005e-05
        %v2652 = vmin.f32 %v2636, -1.000005e-05
        %v2653 = vmin.f32 %v2637, -1.000005e-05
        %v2654 = vadd.f32 %v1412, %v2638
        %v2655 = vadd.f32 %v1413, %v2639
        %v2656 = vadd.f32 %v1414, %v2640
        %v2657 = vadd.f32 %v1415, %v2641
        %v2658 = vadd.f32 %v1416, %v2642
        %v2659 = vadd.f32 %v1417, %v2643
        %v2660 = vadd.f32 %v1418, %v2644
        %v2661 = vadd.f32 %v1419, %v2645
        %v2662 = vadd.f32 %v1420, %v2646
        %v2663 = vadd.f32 %v1421, %v2647
        %v2664 = vadd.f32 %v1422, %v2648
        %v2665 = vadd.f32 %v1423, %v2649
        %v2666 = vadd.f32 %v1424, %v2650
        %v2667 = vadd.f32 %v1425, %v2651
        %v2668 = vadd.f32 %v1426, %v2652
        %v2669 = vadd.f32 %v1427, %v2653
        %v2670 = vld [vmem:[#allocation2 + $0x18] sm:$0xff]
        %v2671 = vld [vmem:[#allocation2 + $0x98] sm:$0xff]
        %v2672 = vld [vmem:[#allocation2 + $0x118] sm:$0xff]
        %v2673 = vld [vmem:[#allocation2 + $0x198] sm:$0xff]
        %v2674 = vld [vmem:[#allocation2 + $0x218] sm:$0xff]
        %v2675 = vld [vmem:[#allocation2 + $0x298] sm:$0xff]
        %v2676 = vld [vmem:[#allocation2 + $0x318] sm:$0xff]
        %v2677 = vld [vmem:[#allocation2 + $0x398] sm:$0xff]
        %v2678 = vld [vmem:[#allocation2 + $0x418] sm:$0xff]
        %v2679 = vld [vmem:[#allocation2 + $0x498] sm:$0xff]
        %v2680 = vld [vmem:[#allocation2 + $0x518] sm:$0xff]
        %v2681 = vld [vmem:[#allocation2 + $0x598] sm:$0xff]
        %v2682 = vld [vmem:[#allocation2 + $0x618] sm:$0xff]
        %v2683 = vld [vmem:[#allocation2 + $0x698] sm:$0xff]
        %v2684 = vld [vmem:[#allocation2 + $0x718] sm:$0xff]
        %v2685 = vld [vmem:[#allocation2 + $0x798] sm:$0xff]
        %v2686 = vld [vmem:[%s7 + $0x6] sm:$0x3]
        %v2688 = vlaneseq
        %v2689 = vshrl.u32 %v2688, 7
        %v2690 = vsub.s32 0, %v2689
        %v2691 = vrot.slane %v2686, %v2690
        %v2692 = vlaneseq
        %v2693 = vshrl.u32 %v2692, 7
        %v2694 = vsub.s32 1, %v2693
        %v2695 = vrot.slane %v2686, %v2694
        %v2714 = vunpack.c.l.b16 %v2670
        %v2715 = vunpack.c.h.b16 %v2670
        %v2716 = vunpack.c.l.b16 %v2671
        %v2717 = vunpack.c.h.b16 %v2671
        %v2718 = vunpack.c.l.b16 %v2672
        %v2719 = vunpack.c.h.b16 %v2672
        %v2720 = vunpack.c.l.b16 %v2673
        %v2721 = vunpack.c.h.b16 %v2673
        %v2722 = vunpack.c.l.b16 %v2674
        %v2723 = vunpack.c.h.b16 %v2674
        %v2724 = vunpack.c.l.b16 %v2675
        %v2725 = vunpack.c.h.b16 %v2675
        %v2726 = vunpack.c.l.b16 %v2676
        %v2727 = vunpack.c.h.b16 %v2676
        %v2728 = vunpack.c.l.b16 %v2677
        %v2729 = vunpack.c.h.b16 %v2677
        %v2730 = vunpack.c.l.b16 %v2678
        %v2731 = vunpack.c.h.b16 %v2678
        %v2732 = vunpack.c.l.b16 %v2679
        %v2733 = vunpack.c.h.b16 %v2679
        %v2734 = vunpack.c.l.b16 %v2680
        %v2735 = vunpack.c.h.b16 %v2680
        %v2736 = vunpack.c.l.b16 %v2681
        %v2737 = vunpack.c.h.b16 %v2681
        %v2738 = vunpack.c.l.b16 %v2682
        %v2739 = vunpack.c.h.b16 %v2682
        %v2740 = vunpack.c.l.b16 %v2683
        %v2741 = vunpack.c.h.b16 %v2683
        %v2742 = vunpack.c.l.b16 %v2684
        %v2743 = vunpack.c.h.b16 %v2684
        %v2744 = vunpack.c.l.b16 %v2685
        %v2745 = vunpack.c.h.b16 %v2685
        %v2746 = vpack.c.b16 %v2716, %v2714
        %v2747 = vpack.c.b16 %v2717, %v2715
        %v2748 = vpack.c.b16 %v2720, %v2718
        %v2749 = vpack.c.b16 %v2721, %v2719
        %v2750 = vpack.c.b16 %v2724, %v2722
        %v2751 = vpack.c.b16 %v2725, %v2723
        %v2752 = vpack.c.b16 %v2728, %v2726
        %v2753 = vpack.c.b16 %v2729, %v2727
        %v2754 = vpack.c.b16 %v2732, %v2730
        %v2755 = vpack.c.b16 %v2733, %v2731
        %v2756 = vpack.c.b16 %v2736, %v2734
        %v2757 = vpack.c.b16 %v2737, %v2735
        %v2758 = vpack.c.b16 %v2740, %v2738
        %v2759 = vpack.c.b16 %v2741, %v2739
        %v2760 = vpack.c.b16 %v2744, %v2742
        %v2761 = vpack.c.b16 %v2745, %v2743
        %2778 = vmatprep.subr.bf16.mxu0 %v2761
        %2779 = vmatpush1.bf16.msra.mxu0 %v2760
        %2780 = vmatprep.subr.bf16.mxu0 %v2759
        %2781 = vmatpush1.bf16.msra.mxu0 %v2758
        %2782 = vmatprep.subr.bf16.mxu0 %v2757
        %2783 = vmatpush1.bf16.msra.mxu0 %v2756
        %2784 = vmatprep.subr.bf16.mxu0 %v2755
        %2785 = vmatpush1.bf16.msra.mxu0 %v2754
        %2786 = vmatprep.subr.bf16.mxu0 %v2753
        %2787 = vmatpush1.bf16.msra.mxu0 %v2752
        %2788 = vmatprep.subr.bf16.mxu0 %v2751
        %2789 = vmatpush1.bf16.msra.mxu0 %v2750
        %2790 = vmatprep.subr.bf16.mxu0 %v2749
        %2791 = vmatpush1.bf16.msra.mxu0 %v2748
        %2792 = vmatprep.subr.bf16.mxu0 %v2747
        %2793 = vmatpush1.bf16.msra.mxu0 %v2746
        %2794 = vmatprep.subr.bf16.mxu0 0
        %2795 = vmatpush2.bf16.msra.mxu0 0
        %2796 = vmatprep.subr.bf16.mxu0 0
        %2797 = vmatpush2.bf16.msra.mxu0 0
        %2798 = vmatprep.subr.bf16.mxu0 0
        %2799 = vmatpush2.bf16.msra.mxu0 0
        %2800 = vmatprep.subr.bf16.mxu0 0
        %2801 = vmatpush2.bf16.msra.mxu0 0
        %2802 = vmatprep.subr.bf16.mxu0 0
        %2803 = vmatpush2.bf16.msra.mxu0 0
        %2804 = vmatprep.subr.bf16.mxu0 0
        %2805 = vmatpush2.bf16.msra.mxu0 0
        %2806 = vmatprep.subr.bf16.mxu0 0
        %2807 = vmatpush2.bf16.msra.mxu0 0
        %2808 = vmatprep.subr.bf16.mxu0 0
        %2809 = vmatpush2.bf16.msra.mxu0 0
        %2810 = vmatprep.mubr.bf16.mxu0 0
        %2811 = vmatmul.mubr.bf16.gmra.mxu0 %v780
        %v2812 = vpop.f32.mrf.mxu0
        %v2813 = vadd.f32 %v2691, %v2812
        %v2814 = vpop.f32.mrf.mxu0
        %v2815 = vadd.f32 %v2695, %v2814
        %v2816 = vpop.f32.mrf.mxu0
        %v2817 = vadd.f32 %v2691, %v2816
        %v2818 = vpop.f32.mrf.mxu0
        %v2819 = vadd.f32 %v2695, %v2818
        %2820 = vmatprep.mubr.bf16.mxu0 0
        %2821 = vmatmul.mubr.bf16.gmra.mxu0 %v781
        %v2822 = vpop.f32.mrf.mxu0
        %v2823 = vadd.f32 %v2691, %v2822
        %v2824 = vpop.f32.mrf.mxu0
        %v2825 = vadd.f32 %v2695, %v2824
        %v2826 = vpop.f32.mrf.mxu0
        %v2827 = vadd.f32 %v2691, %v2826
        %v2828 = vpop.f32.mrf.mxu0
        %v2829 = vadd.f32 %v2695, %v2828
        %2830 = vmatprep.mubr.bf16.mxu0 0
        %2831 = vmatmul.mubr.bf16.gmra.mxu0 %v782
        %v2832 = vpop.f32.mrf.mxu0
        %v2833 = vadd.f32 %v2691, %v2832
        %v2834 = vpop.f32.mrf.mxu0
        %v2835 = vadd.f32 %v2695, %v2834
        %v2836 = vpop.f32.mrf.mxu0
        %v2837 = vadd.f32 %v2691, %v2836
        %v2838 = vpop.f32.mrf.mxu0
        %v2839 = vadd.f32 %v2695, %v2838
        %2840 = vmatprep.mubr.bf16.mxu0 0
        %2841 = vmatmul.mubr.bf16.gmra.mxu0 %v783
        %v2842 = vpop.f32.mrf.mxu0
        %v2843 = vadd.f32 %v2691, %v2842
        %v2844 = vpop.f32.mrf.mxu0
        %v2845 = vadd.f32 %v2695, %v2844
        %v2846 = vpop.f32.mrf.mxu0
        %v2847 = vadd.f32 %v2691, %v2846
        %v2848 = vpop.f32.mrf.mxu0
        %v2849 = vadd.f32 %v2695, %v2848
        %2850 = vmatprep.mubr.bf16.mxu0 0
        %2851 = vmatmul.mubr.bf16.gmra.mxu0 %v784
        %v2852 = vpop.f32.mrf.mxu0
        %v2853 = vadd.f32 %v2691, %v2852
        %v2854 = vpop.f32.mrf.mxu0
        %v2855 = vadd.f32 %v2695, %v2854
        %v2856 = vpop.f32.mrf.mxu0
        %v2857 = vadd.f32 %v2691, %v2856
        %v2858 = vpop.f32.mrf.mxu0
        %v2859 = vadd.f32 %v2695, %v2858
        %2860 = vmatprep.mubr.bf16.mxu0 0
        %2861 = vmatmul.mubr.bf16.gmra.mxu0 %v785
        %v2862 = vpop.f32.mrf.mxu0
        %v2863 = vadd.f32 %v2691, %v2862
        %v2864 = vpop.f32.mrf.mxu0
        %v2865 = vadd.f32 %v2695, %v2864
        %v2866 = vpop.f32.mrf.mxu0
        %v2867 = vadd.f32 %v2691, %v2866
        %v2868 = vpop.f32.mrf.mxu0
        %v2869 = vadd.f32 %v2695, %v2868
        %2870 = vmatprep.mubr.bf16.mxu0 0
        %2871 = vmatmul.mubr.bf16.gmra.mxu0 %v786
        %v2872 = vpop.f32.mrf.mxu0
        %v2873 = vadd.f32 %v2691, %v2872
        %v2874 = vpop.f32.mrf.mxu0
        %v2875 = vadd.f32 %v2695, %v2874
        %v2876 = vpop.f32.mrf.mxu0
        %v2877 = vadd.f32 %v2691, %v2876
        %v2878 = vpop.f32.mrf.mxu0
        %v2879 = vadd.f32 %v2695, %v2878
        %2880 = vmatprep.mubr.bf16.mxu0 0
        %2881 = vmatmul.mubr.bf16.gmra.mxu0 %v787
        %v2882 = vpop.f32.mrf.mxu0
        %v2883 = vadd.f32 %v2691, %v2882
        %v2884 = vpop.f32.mrf.mxu0
        %v2885 = vadd.f32 %v2695, %v2884
        %v2886 = vpop.f32.mrf.mxu0
        %v2887 = vadd.f32 %v2691, %v2886
        %v2888 = vpop.f32.mrf.mxu0
        %v2889 = vadd.f32 %v2695, %v2888
        %2890 = vdwg.mxu0
        %2891 = vset.pattern.permute.xlu0 3
        %2892 = vperm.xlu0 %2891, %v788
        %v2893 = vpop.permute.xlu0 %2892
        %2894 = vset.pattern.permute.xlu0 3
        %2895 = vperm.xlu0 %2894, %v789
        %v2896 = vpop.permute.xlu0 %2895
        %2897 = vset.pattern.permute.xlu0 3
        %2898 = vperm.xlu0 %2897, %v790
        %v2899 = vpop.permute.xlu0 %2898
        %2900 = vset.pattern.permute.xlu0 3
        %2901 = vperm.xlu0 %2900, %v791
        %v2902 = vpop.permute.xlu0 %2901
        %2903 = vset.pattern.permute.xlu0 3
        %2904 = vperm.xlu0 %2903, %v792
        %v2905 = vpop.permute.xlu0 %2904
        %2906 = vset.pattern.permute.xlu0 3
        %2907 = vperm.xlu0 %2906, %v793
        %v2908 = vpop.permute.xlu0 %2907
        %2909 = vset.pattern.permute.xlu0 3
        %2910 = vperm.xlu0 %2909, %v794
        %v2911 = vpop.permute.xlu0 %2910
        %2912 = vset.pattern.permute.xlu0 3
        %2913 = vperm.xlu0 %2912, %v795
        %v2914 = vpop.permute.xlu0 %2913
        %2915 = vset.pattern.permute.xlu0 3
        %2916 = vperm.xlu0 %2915, %v796
        %v2917 = vpop.permute.xlu0 %2916
        %2918 = vset.pattern.permute.xlu0 3
        %2919 = vperm.xlu0 %2918, %v797
        %v2920 = vpop.permute.xlu0 %2919
        %2921 = vset.pattern.permute.xlu0 3
        %2922 = vperm.xlu0 %2921, %v798
        %v2923 = vpop.permute.xlu0 %2922
        %2924 = vset.pattern.permute.xlu0 3
        %2925 = vperm.xlu0 %2924, %v799
        %v2926 = vpop.permute.xlu0 %2925
        %2927 = vset.pattern.permute.xlu0 3
        %2928 = vperm.xlu0 %2927, %v800
        %v2929 = vpop.permute.xlu0 %2928
        %2930 = vset.pattern.permute.xlu0 3
        %2931 = vperm.xlu0 %2930, %v801
        %v2932 = vpop.permute.xlu0 %2931
        %2933 = vset.pattern.permute.xlu0 3
        %2934 = vperm.xlu0 %2933, %v802
        %v2935 = vpop.permute.xlu0 %2934
        %2936 = vset.pattern.permute.xlu0 3
        %2937 = vperm.xlu0 %2936, %v803
        %v2938 = vpop.permute.xlu0 %2937
        %vm2939 = vcmp.eq.s32.totalorder %v805, %v2893
        %vm2940 = vcmp.eq.s32.totalorder %v806, %v2893
        %vm2941 = vcmp.eq.s32.totalorder %v805, %v2896
        %vm2942 = vcmp.eq.s32.totalorder %v806, %v2896
        %vm2943 = vcmp.eq.s32.totalorder %v805, %v2899
        %vm2944 = vcmp.eq.s32.totalorder %v806, %v2899
        %vm2945 = vcmp.eq.s32.totalorder %v805, %v2902
        %vm2946 = vcmp.eq.s32.totalorder %v806, %v2902
        %vm2947 = vcmp.eq.s32.totalorder %v805, %v2905
        %vm2948 = vcmp.eq.s32.totalorder %v806, %v2905
        %vm2949 = vcmp.eq.s32.totalorder %v805, %v2908
        %vm2950 = vcmp.eq.s32.totalorder %v806, %v2908
        %vm2951 = vcmp.eq.s32.totalorder %v805, %v2911
        %vm2952 = vcmp.eq.s32.totalorder %v806, %v2911
        %vm2953 = vcmp.eq.s32.totalorder %v805, %v2914
        %vm2954 = vcmp.eq.s32.totalorder %v806, %v2914
        %vm2955 = vcmp.eq.s32.totalorder %v805, %v2917
        %vm2956 = vcmp.eq.s32.totalorder %v806, %v2917
        %vm2957 = vcmp.eq.s32.totalorder %v805, %v2920
        %vm2958 = vcmp.eq.s32.totalorder %v806, %v2920
        %vm2959 = vcmp.eq.s32.totalorder %v805, %v2923
        %vm2960 = vcmp.eq.s32.totalorder %v806, %v2923
        %vm2961 = vcmp.eq.s32.totalorder %v805, %v2926
        %vm2962 = vcmp.eq.s32.totalorder %v806, %v2926
        %vm2963 = vcmp.eq.s32.totalorder %v805, %v2929
        %vm2964 = vcmp.eq.s32.totalorder %v806, %v2929
        %vm2965 = vcmp.eq.s32.totalorder %v805, %v2932
        %vm2966 = vcmp.eq.s32.totalorder %v806, %v2932
        %vm2967 = vcmp.eq.s32.totalorder %v805, %v2935
        %vm2968 = vcmp.eq.s32.totalorder %v806, %v2935
        %vm2969 = vcmp.eq.s32.totalorder %v805, %v2938
        %vm2970 = vcmp.eq.s32.totalorder %v806, %v2938
        %v2971 = vsel %vm2939, %v2813, 0.0
        %v2972 = vsel %vm2940, %v2815, 0.0
        %v2973 = vsel %vm2941, %v2817, 0.0
        %v2974 = vsel %vm2942, %v2819, 0.0
        %v2975 = vsel %vm2943, %v2823, 0.0
        %v2976 = vsel %vm2944, %v2825, 0.0
        %v2977 = vsel %vm2945, %v2827, 0.0
        %v2978 = vsel %vm2946, %v2829, 0.0
        %v2979 = vsel %vm2947, %v2833, 0.0
        %v2980 = vsel %vm2948, %v2835, 0.0
        %v2981 = vsel %vm2949, %v2837, 0.0
        %v2982 = vsel %vm2950, %v2839, 0.0
        %v2983 = vsel %vm2951, %v2843, 0.0
        %v2984 = vsel %vm2952, %v2845, 0.0
        %v2985 = vsel %vm2953, %v2847, 0.0
        %v2986 = vsel %vm2954, %v2849, 0.0
        %v2987 = vsel %vm2955, %v2853, 0.0
        %v2988 = vsel %vm2956, %v2855, 0.0
        %v2989 = vsel %vm2957, %v2857, 0.0
        %v2990 = vsel %vm2958, %v2859, 0.0
        %v2991 = vsel %vm2959, %v2863, 0.0
        %v2992 = vsel %vm2960, %v2865, 0.0
        %v2993 = vsel %vm2961, %v2867, 0.0
        %v2994 = vsel %vm2962, %v2869, 0.0
        %v2995 = vsel %vm2963, %v2873, 0.0
        %v2996 = vsel %vm2964, %v2875, 0.0
        %v2997 = vsel %vm2965, %v2877, 0.0
        %v2998 = vsel %vm2966, %v2879, 0.0
        %v2999 = vsel %vm2967, %v2883, 0.0
        %v3000 = vsel %vm2968, %v2885, 0.0
        %v3001 = vsel %vm2969, %v2887, 0.0
        %v3002 = vsel %vm2970, %v2889, 0.0
        %v3003 = vadd.f32 %v2971, %v2972
        %3004 = vadd.xlane.f32.xlu0 %v3003
        %v3005 = vpop.xlane.xlu0 %3004
        %v3006 = vadd.f32 %v2973, %v2974
        %3007 = vadd.xlane.f32.xlu0 %v3006
        %v3008 = vpop.xlane.xlu0 %3007
        %v3009 = vadd.f32 %v2975, %v2976
        %3010 = vadd.xlane.f32.xlu0 %v3009
        %v3011 = vpop.xlane.xlu0 %3010
        %v3012 = vadd.f32 %v2977, %v2978
        %3013 = vadd.xlane.f32.xlu0 %v3012
        %v3014 = vpop.xlane.xlu0 %3013
        %v3015 = vadd.f32 %v2979, %v2980
        %3016 = vadd.xlane.f32.xlu0 %v3015
        %v3017 = vpop.xlane.xlu0 %3016
        %v3018 = vadd.f32 %v2981, %v2982
        %3019 = vadd.xlane.f32.xlu0 %v3018
        %v3020 = vpop.xlane.xlu0 %3019
        %v3021 = vadd.f32 %v2983, %v2984
        %3022 = vadd.xlane.f32.xlu0 %v3021
        %v3023 = vpop.xlane.xlu0 %3022
        %v3024 = vadd.f32 %v2985, %v2986
        %3025 = vadd.xlane.f32.xlu0 %v3024
        %v3026 = vpop.xlane.xlu0 %3025
        %v3027 = vadd.f32 %v2987, %v2988
        %3028 = vadd.xlane.f32.xlu0 %v3027
        %v3029 = vpop.xlane.xlu0 %3028
        %v3030 = vadd.f32 %v2989, %v2990
        %3031 = vadd.xlane.f32.xlu0 %v3030
        %v3032 = vpop.xlane.xlu0 %3031
        %v3033 = vadd.f32 %v2991, %v2992
        %3034 = vadd.xlane.f32.xlu0 %v3033
        %v3035 = vpop.xlane.xlu0 %3034
        %v3036 = vadd.f32 %v2993, %v2994
        %3037 = vadd.xlane.f32.xlu0 %v3036
        %v3038 = vpop.xlane.xlu0 %3037
        %v3039 = vadd.f32 %v2995, %v2996
        %3040 = vadd.xlane.f32.xlu0 %v3039
        %v3041 = vpop.xlane.xlu0 %3040
        %v3042 = vadd.f32 %v2997, %v2998
        %3043 = vadd.xlane.f32.xlu0 %v3042
        %v3044 = vpop.xlane.xlu0 %3043
        %v3045 = vadd.f32 %v2999, %v3000
        %3046 = vadd.xlane.f32.xlu0 %v3045
        %v3047 = vpop.xlane.xlu0 %3046
        %v3048 = vadd.f32 %v3001, %v3002
        %3049 = vadd.xlane.f32.xlu0 %v3048
        %v3050 = vpop.xlane.xlu0 %3049
        %v3051 = vsub.f32 %v2813, %v3005
        %v3052 = vsub.f32 %v2815, %v3005
        %v3053 = vsub.f32 %v2817, %v3008
        %v3054 = vsub.f32 %v2819, %v3008
        %v3055 = vsub.f32 %v2823, %v3011
        %v3056 = vsub.f32 %v2825, %v3011
        %v3057 = vsub.f32 %v2827, %v3014
        %v3058 = vsub.f32 %v2829, %v3014
        %v3059 = vsub.f32 %v2833, %v3017
        %v3060 = vsub.f32 %v2835, %v3017
        %v3061 = vsub.f32 %v2837, %v3020
        %v3062 = vsub.f32 %v2839, %v3020
        %v3063 = vsub.f32 %v2843, %v3023
        %v3064 = vsub.f32 %v2845, %v3023
        %v3065 = vsub.f32 %v2847, %v3026
        %v3066 = vsub.f32 %v2849, %v3026
        %v3067 = vsub.f32 %v2853, %v3029
        %v3068 = vsub.f32 %v2855, %v3029
        %v3069 = vsub.f32 %v2857, %v3032
        %v3070 = vsub.f32 %v2859, %v3032
        %v3071 = vsub.f32 %v2863, %v3035
        %v3072 = vsub.f32 %v2865, %v3035
        %v3073 = vsub.f32 %v2867, %v3038
        %v3074 = vsub.f32 %v2869, %v3038
        %v3075 = vsub.f32 %v2873, %v3041
        %v3076 = vsub.f32 %v2875, %v3041
        %v3077 = vsub.f32 %v2877, %v3044
        %v3078 = vsub.f32 %v2879, %v3044
        %v3079 = vsub.f32 %v2883, %v3047
        %v3080 = vsub.f32 %v2885, %v3047
        %v3081 = vsub.f32 %v2887, %v3050
        %v3082 = vsub.f32 %v2889, %v3050
        %v3083 = vmul.f32 %v3051, 1.442695
        %v3084 = vpow.pop %v3083
        %v3085 = vmul.f32 %v3052, 1.442695
        %v3086 = vpow.pop %v3085
        %v3087 = vmul.f32 %v3053, 1.442695
        %v3088 = vpow.pop %v3087
        %v3089 = vmul.f32 %v3054, 1.442695
        %v3090 = vpow.pop %v3089
        %v3091 = vmul.f32 %v3055, 1.442695
        %v3092 = vpow.pop %v3091
        %v3093 = vmul.f32 %v3056, 1.442695
        %v3094 = vpow.pop %v3093
        %v3095 = vmul.f32 %v3057, 1.442695
        %v3096 = vpow.pop %v3095
        %v3097 = vmul.f32 %v3058, 1.442695
        %v3098 = vpow.pop %v3097
        %v3099 = vmul.f32 %v3059, 1.442695
        %v3100 = vpow.pop %v3099
        %v3101 = vmul.f32 %v3060, 1.442695
        %v3102 = vpow.pop %v3101
        %v3103 = vmul.f32 %v3061, 1.442695
        %v3104 = vpow.pop %v3103
        %v3105 = vmul.f32 %v3062, 1.442695
        %v3106 = vpow.pop %v3105
        %v3107 = vmul.f32 %v3063, 1.442695
        %v3108 = vpow.pop %v3107
        %v3109 = vmul.f32 %v3064, 1.442695
        %v3110 = vpow.pop %v3109
        %v3111 = vmul.f32 %v3065, 1.442695
        %v3112 = vpow.pop %v3111
        %v3113 = vmul.f32 %v3066, 1.442695
        %v3114 = vpow.pop %v3113
        %v3115 = vmul.f32 %v3067, 1.442695
        %v3116 = vpow.pop %v3115
        %v3117 = vmul.f32 %v3068, 1.442695
        %v3118 = vpow.pop %v3117
        %v3119 = vmul.f32 %v3069, 1.442695
        %v3120 = vpow.pop %v3119
        %v3121 = vmul.f32 %v3070, 1.442695
        %v3122 = vpow.pop %v3121
        %v3123 = vmul.f32 %v3071, 1.442695
        %v3124 = vpow.pop %v3123
        %v3125 = vmul.f32 %v3072, 1.442695
        %v3126 = vpow.pop %v3125
        %v3127 = vmul.f32 %v3073, 1.442695
        %v3128 = vpow.pop %v3127
        %v3129 = vmul.f32 %v3074, 1.442695
        %v3130 = vpow.pop %v3129
        %v3131 = vmul.f32 %v3075, 1.442695
        %v3132 = vpow.pop %v3131
        %v3133 = vmul.f32 %v3076, 1.442695
        %v3134 = vpow.pop %v3133
        %v3135 = vmul.f32 %v3077, 1.442695
        %v3136 = vpow.pop %v3135
        %v3137 = vmul.f32 %v3078, 1.442695
        %v3138 = vpow.pop %v3137
        %v3139 = vmul.f32 %v3079, 1.442695
        %v3140 = vpow.pop %v3139
        %v3141 = vmul.f32 %v3080, 1.442695
        %v3142 = vpow.pop %v3141
        %v3143 = vmul.f32 %v3081, 1.442695
        %v3144 = vpow.pop %v3143
        %v3145 = vmul.f32 %v3082, 1.442695
        %v3146 = vpow.pop %v3145
        %v3147 = vadd.f32 %v3084, %v3086
        %3148 = vadd.xlane.f32.xlu0 %v3147
        %v3149 = vpop.xlane.xlu0 %3148
        %v3150 = vadd.f32 %v3088, %v3090
        %3151 = vadd.xlane.f32.xlu0 %v3150
        %v3152 = vpop.xlane.xlu0 %3151
        %v3153 = vadd.f32 %v3092, %v3094
        %3154 = vadd.xlane.f32.xlu0 %v3153
        %v3155 = vpop.xlane.xlu0 %3154
        %v3156 = vadd.f32 %v3096, %v3098
        %3157 = vadd.xlane.f32.xlu0 %v3156
        %v3158 = vpop.xlane.xlu0 %3157
        %v3159 = vadd.f32 %v3100, %v3102
        %3160 = vadd.xlane.f32.xlu0 %v3159
        %v3161 = vpop.xlane.xlu0 %3160
        %v3162 = vadd.f32 %v3104, %v3106
        %3163 = vadd.xlane.f32.xlu0 %v3162
        %v3164 = vpop.xlane.xlu0 %3163
        %v3165 = vadd.f32 %v3108, %v3110
        %3166 = vadd.xlane.f32.xlu0 %v3165
        %v3167 = vpop.xlane.xlu0 %3166
        %v3168 = vadd.f32 %v3112, %v3114
        %3169 = vadd.xlane.f32.xlu0 %v3168
        %v3170 = vpop.xlane.xlu0 %3169
        %v3171 = vadd.f32 %v3116, %v3118
        %3172 = vadd.xlane.f32.xlu0 %v3171
        %v3173 = vpop.xlane.xlu0 %3172
        %v3174 = vadd.f32 %v3120, %v3122
        %3175 = vadd.xlane.f32.xlu0 %v3174
        %v3176 = vpop.xlane.xlu0 %3175
        %v3177 = vadd.f32 %v3124, %v3126
        %3178 = vadd.xlane.f32.xlu0 %v3177
        %v3179 = vpop.xlane.xlu0 %3178
        %v3180 = vadd.f32 %v3128, %v3130
        %3181 = vadd.xlane.f32.xlu0 %v3180
        %v3182 = vpop.xlane.xlu0 %3181
        %v3183 = vadd.f32 %v3132, %v3134
        %3184 = vadd.xlane.f32.xlu0 %v3183
        %v3185 = vpop.xlane.xlu0 %3184
        %v3186 = vadd.f32 %v3136, %v3138
        %3187 = vadd.xlane.f32.xlu0 %v3186
        %v3188 = vpop.xlane.xlu0 %3187
        %v3189 = vadd.f32 %v3140, %v3142
        %3190 = vadd.xlane.f32.xlu0 %v3189
        %v3191 = vpop.xlane.xlu0 %3190
        %v3192 = vadd.f32 %v3144, %v3146
        %3193 = vadd.xlane.f32.xlu0 %v3192
        %v3194 = vpop.xlane.xlu0 %3193
        %v3195 = vlog2.pop %v3149
        %v3196 = vmul.f32 %v3195, 0.6931472
        %v3197 = vlog2.pop %v3152
        %v3198 = vmul.f32 %v3197, 0.6931472
        %v3199 = vlog2.pop %v3155
        %v3200 = vmul.f32 %v3199, 0.6931472
        %v3201 = vlog2.pop %v3158
        %v3202 = vmul.f32 %v3201, 0.6931472
        %v3203 = vlog2.pop %v3161
        %v3204 = vmul.f32 %v3203, 0.6931472
        %v3205 = vlog2.pop %v3164
        %v3206 = vmul.f32 %v3205, 0.6931472
        %v3207 = vlog2.pop %v3167
        %v3208 = vmul.f32 %v3207, 0.6931472
        %v3209 = vlog2.pop %v3170
        %v3210 = vmul.f32 %v3209, 0.6931472
        %v3211 = vlog2.pop %v3173
        %v3212 = vmul.f32 %v3211, 0.6931472
        %v3213 = vlog2.pop %v3176
        %v3214 = vmul.f32 %v3213, 0.6931472
        %v3215 = vlog2.pop %v3179
        %v3216 = vmul.f32 %v3215, 0.6931472
        %v3217 = vlog2.pop %v3182
        %v3218 = vmul.f32 %v3217, 0.6931472
        %v3219 = vlog2.pop %v3185
        %v3220 = vmul.f32 %v3219, 0.6931472
        %v3221 = vlog2.pop %v3188
        %v3222 = vmul.f32 %v3221, 0.6931472
        %v3223 = vlog2.pop %v3191
        %v3224 = vmul.f32 %v3223, 0.6931472
        %v3225 = vlog2.pop %v3194
        %v3226 = vmul.f32 %v3225, 0.6931472
        %v3227 = vsub.f32 0.0, %v3196
        %v3228 = vsub.f32 0.0, %v3198
        %v3229 = vsub.f32 0.0, %v3200
        %v3230 = vsub.f32 0.0, %v3202
        %v3231 = vsub.f32 0.0, %v3204
        %v3232 = vsub.f32 0.0, %v3206
        %v3233 = vsub.f32 0.0, %v3208
        %v3234 = vsub.f32 0.0, %v3210
        %v3235 = vsub.f32 0.0, %v3212
        %v3236 = vsub.f32 0.0, %v3214
        %v3237 = vsub.f32 0.0, %v3216
        %v3238 = vsub.f32 0.0, %v3218
        %v3239 = vsub.f32 0.0, %v3220
        %v3240 = vsub.f32 0.0, %v3222
        %v3241 = vsub.f32 0.0, %v3224
        %v3242 = vsub.f32 0.0, %v3226
        %v3243 = vmax.f32 %v3227, -11.512925
        %v3244 = vmax.f32 %v3228, -11.512925
        %v3245 = vmax.f32 %v3229, -11.512925
        %v3246 = vmax.f32 %v3230, -11.512925
        %v3247 = vmax.f32 %v3231, -11.512925
        %v3248 = vmax.f32 %v3232, -11.512925
        %v3249 = vmax.f32 %v3233, -11.512925
        %v3250 = vmax.f32 %v3234, -11.512925
        %v3251 = vmax.f32 %v3235, -11.512925
        %v3252 = vmax.f32 %v3236, -11.512925
        %v3253 = vmax.f32 %v3237, -11.512925
        %v3254 = vmax.f32 %v3238, -11.512925
        %v3255 = vmax.f32 %v3239, -11.512925
        %v3256 = vmax.f32 %v3240, -11.512925
        %v3257 = vmax.f32 %v3241, -11.512925
        %v3258 = vmax.f32 %v3242, -11.512925
        %v3259 = vmin.f32 %v3243, -1.000005e-05
        %v3260 = vmin.f32 %v3244, -1.000005e-05
        %v3261 = vmin.f32 %v3245, -1.000005e-05
        %v3262 = vmin.f32 %v3246, -1.000005e-05
        %v3263 = vmin.f32 %v3247, -1.000005e-05
        %v3264 = vmin.f32 %v3248, -1.000005e-05
        %v3265 = vmin.f32 %v3249, -1.000005e-05
        %v3266 = vmin.f32 %v3250, -1.000005e-05
        %v3267 = vmin.f32 %v3251, -1.000005e-05
        %v3268 = vmin.f32 %v3252, -1.000005e-05
        %v3269 = vmin.f32 %v3253, -1.000005e-05
        %v3270 = vmin.f32 %v3254, -1.000005e-05
        %v3271 = vmin.f32 %v3255, -1.000005e-05
        %v3272 = vmin.f32 %v3256, -1.000005e-05
        %v3273 = vmin.f32 %v3257, -1.000005e-05
        %v3274 = vmin.f32 %v3258, -1.000005e-05
        %v3275 = vadd.f32 %v2033, %v3259
        %v3276 = vadd.f32 %v2034, %v3260
        %v3277 = vadd.f32 %v2035, %v3261
        %v3278 = vadd.f32 %v2036, %v3262
        %v3279 = vadd.f32 %v2037, %v3263
        %v3280 = vadd.f32 %v2038, %v3264
        %v3281 = vadd.f32 %v2039, %v3265
        %v3282 = vadd.f32 %v2040, %v3266
        %v3283 = vadd.f32 %v2041, %v3267
        %v3284 = vadd.f32 %v2042, %v3268
        %v3285 = vadd.f32 %v2043, %v3269
        %v3286 = vadd.f32 %v2044, %v3270
        %v3287 = vadd.f32 %v2045, %v3271
        %v3288 = vadd.f32 %v2046, %v3272
        %v3289 = vadd.f32 %v2047, %v3273
        %v3290 = vadd.f32 %v2048, %v3274
        %v3291 = vld [vmem:[#allocation2 + $0x20] sm:$0xff]
        %v3292 = vld [vmem:[#allocation2 + $0xa0] sm:$0xff]
        %v3293 = vld [vmem:[#allocation2 + $0x120] sm:$0xff]
        %v3294 = vld [vmem:[#allocation2 + $0x1a0] sm:$0xff]
        %v3295 = vld [vmem:[#allocation2 + $0x220] sm:$0xff]
        %v3296 = vld [vmem:[#allocation2 + $0x2a0] sm:$0xff]
        %v3297 = vld [vmem:[#allocation2 + $0x320] sm:$0xff]
        %v3298 = vld [vmem:[#allocation2 + $0x3a0] sm:$0xff]
        %v3299 = vld [vmem:[#allocation2 + $0x420] sm:$0xff]
        %v3300 = vld [vmem:[#allocation2 + $0x4a0] sm:$0xff]
        %v3301 = vld [vmem:[#allocation2 + $0x520] sm:$0xff]
        %v3302 = vld [vmem:[#allocation2 + $0x5a0] sm:$0xff]
        %v3303 = vld [vmem:[#allocation2 + $0x620] sm:$0xff]
        %v3304 = vld [vmem:[#allocation2 + $0x6a0] sm:$0xff]
        %v3305 = vld [vmem:[#allocation2 + $0x720] sm:$0xff]
        %v3306 = vld [vmem:[#allocation2 + $0x7a0] sm:$0xff]
        %v3307 = vld [vmem:[%s7 + $0x8] sm:$0x3]
        %v3309 = vlaneseq
        %v3310 = vshrl.u32 %v3309, 7
        %v3311 = vsub.s32 0, %v3310
        %v3312 = vrot.slane %v3307, %v3311
        %v3313 = vlaneseq
        %v3314 = vshrl.u32 %v3313, 7
        %v3315 = vsub.s32 1, %v3314
        %v3316 = vrot.slane %v3307, %v3315
        %v3335 = vunpack.c.l.b16 %v3291
        %v3336 = vunpack.c.h.b16 %v3291
        %v3337 = vunpack.c.l.b16 %v3292
        %v3338 = vunpack.c.h.b16 %v3292
        %v3339 = vunpack.c.l.b16 %v3293
        %v3340 = vunpack.c.h.b16 %v3293
        %v3341 = vunpack.c.l.b16 %v3294
        %v3342 = vunpack.c.h.b16 %v3294
        %v3343 = vunpack.c.l.b16 %v3295
        %v3344 = vunpack.c.h.b16 %v3295
        %v3345 = vunpack.c.l.b16 %v3296
        %v3346 = vunpack.c.h.b16 %v3296
        %v3347 = vunpack.c.l.b16 %v3297
        %v3348 = vunpack.c.h.b16 %v3297
        %v3349 = vunpack.c.l.b16 %v3298
        %v3350 = vunpack.c.h.b16 %v3298
        %v3351 = vunpack.c.l.b16 %v3299
        %v3352 = vunpack.c.h.b16 %v3299
        %v3353 = vunpack.c.l.b16 %v3300
        %v3354 = vunpack.c.h.b16 %v3300
        %v3355 = vunpack.c.l.b16 %v3301
        %v3356 = vunpack.c.h.b16 %v3301
        %v3357 = vunpack.c.l.b16 %v3302
        %v3358 = vunpack.c.h.b16 %v3302
        %v3359 = vunpack.c.l.b16 %v3303
        %v3360 = vunpack.c.h.b16 %v3303
        %v3361 = vunpack.c.l.b16 %v3304
        %v3362 = vunpack.c.h.b16 %v3304
        %v3363 = vunpack.c.l.b16 %v3305
        %v3364 = vunpack.c.h.b16 %v3305
        %v3365 = vunpack.c.l.b16 %v3306
        %v3366 = vunpack.c.h.b16 %v3306
        %v3367 = vpack.c.b16 %v3337, %v3335
        %v3368 = vpack.c.b16 %v3338, %v3336
        %v3369 = vpack.c.b16 %v3341, %v3339
        %v3370 = vpack.c.b16 %v3342, %v3340
        %v3371 = vpack.c.b16 %v3345, %v3343
        %v3372 = vpack.c.b16 %v3346, %v3344
        %v3373 = vpack.c.b16 %v3349, %v3347
        %v3374 = vpack.c.b16 %v3350, %v3348
        %v3375 = vpack.c.b16 %v3353, %v3351
        %v3376 = vpack.c.b16 %v3354, %v3352
        %v3377 = vpack.c.b16 %v3357, %v3355
        %v3378 = vpack.c.b16 %v3358, %v3356
        %v3379 = vpack.c.b16 %v3361, %v3359
        %v3380 = vpack.c.b16 %v3362, %v3360
        %v3381 = vpack.c.b16 %v3365, %v3363
        %v3382 = vpack.c.b16 %v3366, %v3364
        %3399 = vmatprep.subr.bf16.mxu0 %v3382
        %3400 = vmatpush1.bf16.msra.mxu0 %v3381
        %3401 = vmatprep.subr.bf16.mxu0 %v3380
        %3402 = vmatpush1.bf16.msra.mxu0 %v3379
        %3403 = vmatprep.subr.bf16.mxu0 %v3378
        %3404 = vmatpush1.bf16.msra.mxu0 %v3377
        %3405 = vmatprep.subr.bf16.mxu0 %v3376
        %3406 = vmatpush1.bf16.msra.mxu0 %v3375
        %3407 = vmatprep.subr.bf16.mxu0 %v3374
        %3408 = vmatpush1.bf16.msra.mxu0 %v3373
        %3409 = vmatprep.subr.bf16.mxu0 %v3372
        %3410 = vmatpush1.bf16.msra.mxu0 %v3371
        %3411 = vmatprep.subr.bf16.mxu0 %v3370
        %3412 = vmatpush1.bf16.msra.mxu0 %v3369
        %3413 = vmatprep.subr.bf16.mxu0 %v3368
        %3414 = vmatpush1.bf16.msra.mxu0 %v3367
        %3415 = vmatprep.subr.bf16.mxu0 0
        %3416 = vmatpush2.bf16.msra.mxu0 0
        %3417 = vmatprep.subr.bf16.mxu0 0
        %3418 = vmatpush2.bf16.msra.mxu0 0
        %3419 = vmatprep.subr.bf16.mxu0 0
        %3420 = vmatpush2.bf16.msra.mxu0 0
        %3421 = vmatprep.subr.bf16.mxu0 0
        %3422 = vmatpush2.bf16.msra.mxu0 0
        %3423 = vmatprep.subr.bf16.mxu0 0
        %3424 = vmatpush2.bf16.msra.mxu0 0
        %3425 = vmatprep.subr.bf16.mxu0 0
        %3426 = vmatpush2.bf16.msra.mxu0 0
        %3427 = vmatprep.subr.bf16.mxu0 0
        %3428 = vmatpush2.bf16.msra.mxu0 0
        %3429 = vmatprep.subr.bf16.mxu0 0
        %3430 = vmatpush2.bf16.msra.mxu0 0
        %3431 = vmatprep.mubr.bf16.mxu0 0
        %3432 = vmatmul.mubr.bf16.gmra.mxu0 %v780
        %v3433 = vpop.f32.mrf.mxu0
        %v3434 = vadd.f32 %v3312, %v3433
        %v3435 = vpop.f32.mrf.mxu0
        %v3436 = vadd.f32 %v3316, %v3435
        %v3437 = vpop.f32.mrf.mxu0
        %v3438 = vadd.f32 %v3312, %v3437
        %v3439 = vpop.f32.mrf.mxu0
        %v3440 = vadd.f32 %v3316, %v3439
        %3441 = vmatprep.mubr.bf16.mxu0 0
        %3442 = vmatmul.mubr.bf16.gmra.mxu0 %v781
        %v3443 = vpop.f32.mrf.mxu0
        %v3444 = vadd.f32 %v3312, %v3443
        %v3445 = vpop.f32.mrf.mxu0
        %v3446 = vadd.f32 %v3316, %v3445
        %v3447 = vpop.f32.mrf.mxu0
        %v3448 = vadd.f32 %v3312, %v3447
        %v3449 = vpop.f32.mrf.mxu0
        %v3450 = vadd.f32 %v3316, %v3449
        %3451 = vmatprep.mubr.bf16.mxu0 0
        %3452 = vmatmul.mubr.bf16.gmra.mxu0 %v782
        %v3453 = vpop.f32.mrf.mxu0
        %v3454 = vadd.f32 %v3312, %v3453
        %v3455 = vpop.f32.mrf.mxu0
        %v3456 = vadd.f32 %v3316, %v3455
        %v3457 = vpop.f32.mrf.mxu0
        %v3458 = vadd.f32 %v3312, %v3457
        %v3459 = vpop.f32.mrf.mxu0
        %v3460 = vadd.f32 %v3316, %v3459
        %3461 = vmatprep.mubr.bf16.mxu0 0
        %3462 = vmatmul.mubr.bf16.gmra.mxu0 %v783
        %v3463 = vpop.f32.mrf.mxu0
        %v3464 = vadd.f32 %v3312, %v3463
        %v3465 = vpop.f32.mrf.mxu0
        %v3466 = vadd.f32 %v3316, %v3465
        %v3467 = vpop.f32.mrf.mxu0
        %v3468 = vadd.f32 %v3312, %v3467
        %v3469 = vpop.f32.mrf.mxu0
        %v3470 = vadd.f32 %v3316, %v3469
        %3471 = vmatprep.mubr.bf16.mxu0 0
        %3472 = vmatmul.mubr.bf16.gmra.mxu0 %v784
        %v3473 = vpop.f32.mrf.mxu0
        %v3474 = vadd.f32 %v3312, %v3473
        %v3475 = vpop.f32.mrf.mxu0
        %v3476 = vadd.f32 %v3316, %v3475
        %v3477 = vpop.f32.mrf.mxu0
        %v3478 = vadd.f32 %v3312, %v3477
        %v3479 = vpop.f32.mrf.mxu0
        %v3480 = vadd.f32 %v3316, %v3479
        %3481 = vmatprep.mubr.bf16.mxu0 0
        %3482 = vmatmul.mubr.bf16.gmra.mxu0 %v785
        %v3483 = vpop.f32.mrf.mxu0
        %v3484 = vadd.f32 %v3312, %v3483
        %v3485 = vpop.f32.mrf.mxu0
        %v3486 = vadd.f32 %v3316, %v3485
        %v3487 = vpop.f32.mrf.mxu0
        %v3488 = vadd.f32 %v3312, %v3487
        %v3489 = vpop.f32.mrf.mxu0
        %v3490 = vadd.f32 %v3316, %v3489
        %3491 = vmatprep.mubr.bf16.mxu0 0
        %3492 = vmatmul.mubr.bf16.gmra.mxu0 %v786
        %v3493 = vpop.f32.mrf.mxu0
        %v3494 = vadd.f32 %v3312, %v3493
        %v3495 = vpop.f32.mrf.mxu0
        %v3496 = vadd.f32 %v3316, %v3495
        %v3497 = vpop.f32.mrf.mxu0
        %v3498 = vadd.f32 %v3312, %v3497
        %v3499 = vpop.f32.mrf.mxu0
        %v3500 = vadd.f32 %v3316, %v3499
        %3501 = vmatprep.mubr.bf16.mxu0 0
        %3502 = vmatmul.mubr.bf16.gmra.mxu0 %v787
        %v3503 = vpop.f32.mrf.mxu0
        %v3504 = vadd.f32 %v3312, %v3503
        %v3505 = vpop.f32.mrf.mxu0
        %v3506 = vadd.f32 %v3316, %v3505
        %v3507 = vpop.f32.mrf.mxu0
        %v3508 = vadd.f32 %v3312, %v3507
        %v3509 = vpop.f32.mrf.mxu0
        %v3510 = vadd.f32 %v3316, %v3509
        %3511 = vdwg.mxu0
        %3512 = vset.pattern.permute.xlu0 4
        %3513 = vperm.xlu0 %3512, %v788
        %v3514 = vpop.permute.xlu0 %3513
        %3515 = vset.pattern.permute.xlu0 4
        %3516 = vperm.xlu0 %3515, %v789
        %v3517 = vpop.permute.xlu0 %3516
        %3518 = vset.pattern.permute.xlu0 4
        %3519 = vperm.xlu0 %3518, %v790
        %v3520 = vpop.permute.xlu0 %3519
        %3521 = vset.pattern.permute.xlu0 4
        %3522 = vperm.xlu0 %3521, %v791
        %v3523 = vpop.permute.xlu0 %3522
        %3524 = vset.pattern.permute.xlu0 4
        %3525 = vperm.xlu0 %3524, %v792
        %v3526 = vpop.permute.xlu0 %3525
        %3527 = vset.pattern.permute.xlu0 4
        %3528 = vperm.xlu0 %3527, %v793
        %v3529 = vpop.permute.xlu0 %3528
        %3530 = vset.pattern.permute.xlu0 4
        %3531 = vperm.xlu0 %3530, %v794
        %v3532 = vpop.permute.xlu0 %3531
        %3533 = vset.pattern.permute.xlu0 4
        %3534 = vperm.xlu0 %3533, %v795
        %v3535 = vpop.permute.xlu0 %3534
        %3536 = vset.pattern.permute.xlu0 4
        %3537 = vperm.xlu0 %3536, %v796
        %v3538 = vpop.permute.xlu0 %3537
        %3539 = vset.pattern.permute.xlu0 4
        %3540 = vperm.xlu0 %3539, %v797
        %v3541 = vpop.permute.xlu0 %3540
        %3542 = vset.pattern.permute.xlu0 4
        %3543 = vperm.xlu0 %3542, %v798
        %v3544 = vpop.permute.xlu0 %3543
        %3545 = vset.pattern.permute.xlu0 4
        %3546 = vperm.xlu0 %3545, %v799
        %v3547 = vpop.permute.xlu0 %3546
        %3548 = vset.pattern.permute.xlu0 4
        %3549 = vperm.xlu0 %3548, %v800
        %v3550 = vpop.permute.xlu0 %3549
        %3551 = vset.pattern.permute.xlu0 4
        %3552 = vperm.xlu0 %3551, %v801
        %v3553 = vpop.permute.xlu0 %3552
        %3554 = vset.pattern.permute.xlu0 4
        %3555 = vperm.xlu0 %3554, %v802
        %v3556 = vpop.permute.xlu0 %3555
        %3557 = vset.pattern.permute.xlu0 4
        %3558 = vperm.xlu0 %3557, %v803
        %v3559 = vpop.permute.xlu0 %3558
        %vm3560 = vcmp.eq.s32.totalorder %v805, %v3514
        %vm3561 = vcmp.eq.s32.totalorder %v806, %v3514
        %vm3562 = vcmp.eq.s32.totalorder %v805, %v3517
        %vm3563 = vcmp.eq.s32.totalorder %v806, %v3517
        %vm3564 = vcmp.eq.s32.totalorder %v805, %v3520
        %vm3565 = vcmp.eq.s32.totalorder %v806, %v3520
        %vm3566 = vcmp.eq.s32.totalorder %v805, %v3523
        %vm3567 = vcmp.eq.s32.totalorder %v806, %v3523
        %vm3568 = vcmp.eq.s32.totalorder %v805, %v3526
        %vm3569 = vcmp.eq.s32.totalorder %v806, %v3526
        %vm3570 = vcmp.eq.s32.totalorder %v805, %v3529
        %vm3571 = vcmp.eq.s32.totalorder %v806, %v3529
        %vm3572 = vcmp.eq.s32.totalorder %v805, %v3532
        %vm3573 = vcmp.eq.s32.totalorder %v806, %v3532
        %vm3574 = vcmp.eq.s32.totalorder %v805, %v3535
        %vm3575 = vcmp.eq.s32.totalorder %v806, %v3535
        %vm3576 = vcmp.eq.s32.totalorder %v805, %v3538
        %vm3577 = vcmp.eq.s32.totalorder %v806, %v3538
        %vm3578 = vcmp.eq.s32.totalorder %v805, %v3541
        %vm3579 = vcmp.eq.s32.totalorder %v806, %v3541
        %vm3580 = vcmp.eq.s32.totalorder %v805, %v3544
        %vm3581 = vcmp.eq.s32.totalorder %v806, %v3544
        %vm3582 = vcmp.eq.s32.totalorder %v805, %v3547
        %vm3583 = vcmp.eq.s32.totalorder %v806, %v3547
        %vm3584 = vcmp.eq.s32.totalorder %v805, %v3550
        %vm3585 = vcmp.eq.s32.totalorder %v806, %v3550
        %vm3586 = vcmp.eq.s32.totalorder %v805, %v3553
        %vm3587 = vcmp.eq.s32.totalorder %v806, %v3553
        %vm3588 = vcmp.eq.s32.totalorder %v805, %v3556
        %vm3589 = vcmp.eq.s32.totalorder %v806, %v3556
        %vm3590 = vcmp.eq.s32.totalorder %v805, %v3559
        %vm3591 = vcmp.eq.s32.totalorder %v806, %v3559
        %v3592 = vsel %vm3560, %v3434, 0.0
        %v3593 = vsel %vm3561, %v3436, 0.0
        %v3594 = vsel %vm3562, %v3438, 0.0
        %v3595 = vsel %vm3563, %v3440, 0.0
        %v3596 = vsel %vm3564, %v3444, 0.0
        %v3597 = vsel %vm3565, %v3446, 0.0
        %v3598 = vsel %vm3566, %v3448, 0.0
        %v3599 = vsel %vm3567, %v3450, 0.0
        %v3600 = vsel %vm3568, %v3454, 0.0
        %v3601 = vsel %vm3569, %v3456, 0.0
        %v3602 = vsel %vm3570, %v3458, 0.0
        %v3603 = vsel %vm3571, %v3460, 0.0
        %v3604 = vsel %vm3572, %v3464, 0.0
        %v3605 = vsel %vm3573, %v3466, 0.0
        %v3606 = vsel %vm3574, %v3468, 0.0
        %v3607 = vsel %vm3575, %v3470, 0.0
        %v3608 = vsel %vm3576, %v3474, 0.0
        %v3609 = vsel %vm3577, %v3476, 0.0
        %v3610 = vsel %vm3578, %v3478, 0.0
        %v3611 = vsel %vm3579, %v3480, 0.0
        %v3612 = vsel %vm3580, %v3484, 0.0
        %v3613 = vsel %vm3581, %v3486, 0.0
        %v3614 = vsel %vm3582, %v3488, 0.0
        %v3615 = vsel %vm3583, %v3490, 0.0
        %v3616 = vsel %vm3584, %v3494, 0.0
        %v3617 = vsel %vm3585, %v3496, 0.0
        %v3618 = vsel %vm3586, %v3498, 0.0
        %v3619 = vsel %vm3587, %v3500, 0.0
        %v3620 = vsel %vm3588, %v3504, 0.0
        %v3621 = vsel %vm3589, %v3506, 0.0
        %v3622 = vsel %vm3590, %v3508, 0.0
        %v3623 = vsel %vm3591, %v3510, 0.0
        %v3624 = vadd.f32 %v3592, %v3593
        %3625 = vadd.xlane.f32.xlu0 %v3624
        %v3626 = vpop.xlane.xlu0 %3625
        %v3627 = vadd.f32 %v3594, %v3595
        %3628 = vadd.xlane.f32.xlu0 %v3627
        %v3629 = vpop.xlane.xlu0 %3628
        %v3630 = vadd.f32 %v3596, %v3597
        %3631 = vadd.xlane.f32.xlu0 %v3630
        %v3632 = vpop.xlane.xlu0 %3631
        %v3633 = vadd.f32 %v3598, %v3599
        %3634 = vadd.xlane.f32.xlu0 %v3633
        %v3635 = vpop.xlane.xlu0 %3634
        %v3636 = vadd.f32 %v3600, %v3601
        %3637 = vadd.xlane.f32.xlu0 %v3636
        %v3638 = vpop.xlane.xlu0 %3637
        %v3639 = vadd.f32 %v3602, %v3603
        %3640 = vadd.xlane.f32.xlu0 %v3639
        %v3641 = vpop.xlane.xlu0 %3640
        %v3642 = vadd.f32 %v3604, %v3605
        %3643 = vadd.xlane.f32.xlu0 %v3642
        %v3644 = vpop.xlane.xlu0 %3643
        %v3645 = vadd.f32 %v3606, %v3607
        %3646 = vadd.xlane.f32.xlu0 %v3645
        %v3647 = vpop.xlane.xlu0 %3646
        %v3648 = vadd.f32 %v3608, %v3609
        %3649 = vadd.xlane.f32.xlu0 %v3648
        %v3650 = vpop.xlane.xlu0 %3649
        %v3651 = vadd.f32 %v3610, %v3611
        %3652 = vadd.xlane.f32.xlu0 %v3651
        %v3653 = vpop.xlane.xlu0 %3652
        %v3654 = vadd.f32 %v3612, %v3613
        %3655 = vadd.xlane.f32.xlu0 %v3654
        %v3656 = vpop.xlane.xlu0 %3655
        %v3657 = vadd.f32 %v3614, %v3615
        %3658 = vadd.xlane.f32.xlu0 %v3657
        %v3659 = vpop.xlane.xlu0 %3658
        %v3660 = vadd.f32 %v3616, %v3617
        %3661 = vadd.xlane.f32.xlu0 %v3660
        %v3662 = vpop.xlane.xlu0 %3661
        %v3663 = vadd.f32 %v3618, %v3619
        %3664 = vadd.xlane.f32.xlu0 %v3663
        %v3665 = vpop.xlane.xlu0 %3664
        %v3666 = vadd.f32 %v3620, %v3621
        %3667 = vadd.xlane.f32.xlu0 %v3666
        %v3668 = vpop.xlane.xlu0 %3667
        %v3669 = vadd.f32 %v3622, %v3623
        %3670 = vadd.xlane.f32.xlu0 %v3669
        %v3671 = vpop.xlane.xlu0 %3670
        %v3672 = vsub.f32 %v3434, %v3626
        %v3673 = vsub.f32 %v3436, %v3626
        %v3674 = vsub.f32 %v3438, %v3629
        %v3675 = vsub.f32 %v3440, %v3629
        %v3676 = vsub.f32 %v3444, %v3632
        %v3677 = vsub.f32 %v3446, %v3632
        %v3678 = vsub.f32 %v3448, %v3635
        %v3679 = vsub.f32 %v3450, %v3635
        %v3680 = vsub.f32 %v3454, %v3638
        %v3681 = vsub.f32 %v3456, %v3638
        %v3682 = vsub.f32 %v3458, %v3641
        %v3683 = vsub.f32 %v3460, %v3641
        %v3684 = vsub.f32 %v3464, %v3644
        %v3685 = vsub.f32 %v3466, %v3644
        %v3686 = vsub.f32 %v3468, %v3647
        %v3687 = vsub.f32 %v3470, %v3647
        %v3688 = vsub.f32 %v3474, %v3650
        %v3689 = vsub.f32 %v3476, %v3650
        %v3690 = vsub.f32 %v3478, %v3653
        %v3691 = vsub.f32 %v3480, %v3653
        %v3692 = vsub.f32 %v3484, %v3656
        %v3693 = vsub.f32 %v3486, %v3656
        %v3694 = vsub.f32 %v3488, %v3659
        %v3695 = vsub.f32 %v3490, %v3659
        %v3696 = vsub.f32 %v3494, %v3662
        %v3697 = vsub.f32 %v3496, %v3662
        %v3698 = vsub.f32 %v3498, %v3665
        %v3699 = vsub.f32 %v3500, %v3665
        %v3700 = vsub.f32 %v3504, %v3668
        %v3701 = vsub.f32 %v3506, %v3668
        %v3702 = vsub.f32 %v3508, %v3671
        %v3703 = vsub.f32 %v3510, %v3671
        %v3704 = vmul.f32 %v3672, 1.442695
        %v3705 = vpow.pop %v3704
        %v3706 = vmul.f32 %v3673, 1.442695
        %v3707 = vpow.pop %v3706
        %v3708 = vmul.f32 %v3674, 1.442695
        %v3709 = vpow.pop %v3708
        %v3710 = vmul.f32 %v3675, 1.442695
        %v3711 = vpow.pop %v3710
        %v3712 = vmul.f32 %v3676, 1.442695
        %v3713 = vpow.pop %v3712
        %v3714 = vmul.f32 %v3677, 1.442695
        %v3715 = vpow.pop %v3714
        %v3716 = vmul.f32 %v3678, 1.442695
        %v3717 = vpow.pop %v3716
        %v3718 = vmul.f32 %v3679, 1.442695
        %v3719 = vpow.pop %v3718
        %v3720 = vmul.f32 %v3680, 1.442695
        %v3721 = vpow.pop %v3720
        %v3722 = vmul.f32 %v3681, 1.442695
        %v3723 = vpow.pop %v3722
        %v3724 = vmul.f32 %v3682, 1.442695
        %v3725 = vpow.pop %v3724
        %v3726 = vmul.f32 %v3683, 1.442695
        %v3727 = vpow.pop %v3726
        %v3728 = vmul.f32 %v3684, 1.442695
        %v3729 = vpow.pop %v3728
        %v3730 = vmul.f32 %v3685, 1.442695
        %v3731 = vpow.pop %v3730
        %v3732 = vmul.f32 %v3686, 1.442695
        %v3733 = vpow.pop %v3732
        %v3734 = vmul.f32 %v3687, 1.442695
        %v3735 = vpow.pop %v3734
        %v3736 = vmul.f32 %v3688, 1.442695
        %v3737 = vpow.pop %v3736
        %v3738 = vmul.f32 %v3689, 1.442695
        %v3739 = vpow.pop %v3738
        %v3740 = vmul.f32 %v3690, 1.442695
        %v3741 = vpow.pop %v3740
        %v3742 = vmul.f32 %v3691, 1.442695
        %v3743 = vpow.pop %v3742
        %v3744 = vmul.f32 %v3692, 1.442695
        %v3745 = vpow.pop %v3744
        %v3746 = vmul.f32 %v3693, 1.442695
        %v3747 = vpow.pop %v3746
        %v3748 = vmul.f32 %v3694, 1.442695
        %v3749 = vpow.pop %v3748
        %v3750 = vmul.f32 %v3695, 1.442695
        %v3751 = vpow.pop %v3750
        %v3752 = vmul.f32 %v3696, 1.442695
        %v3753 = vpow.pop %v3752
        %v3754 = vmul.f32 %v3697, 1.442695
        %v3755 = vpow.pop %v3754
        %v3756 = vmul.f32 %v3698, 1.442695
        %v3757 = vpow.pop %v3756
        %v3758 = vmul.f32 %v3699, 1.442695
        %v3759 = vpow.pop %v3758
        %v3760 = vmul.f32 %v3700, 1.442695
        %v3761 = vpow.pop %v3760
        %v3762 = vmul.f32 %v3701, 1.442695
        %v3763 = vpow.pop %v3762
        %v3764 = vmul.f32 %v3702, 1.442695
        %v3765 = vpow.pop %v3764
        %v3766 = vmul.f32 %v3703, 1.442695
        %v3767 = vpow.pop %v3766
        %v3768 = vadd.f32 %v3705, %v3707
        %3769 = vadd.xlane.f32.xlu0 %v3768
        %v3770 = vpop.xlane.xlu0 %3769
        %v3771 = vadd.f32 %v3709, %v3711
        %3772 = vadd.xlane.f32.xlu0 %v3771
        %v3773 = vpop.xlane.xlu0 %3772
        %v3774 = vadd.f32 %v3713, %v3715
        %3775 = vadd.xlane.f32.xlu0 %v3774
        %v3776 = vpop.xlane.xlu0 %3775
        %v3777 = vadd.f32 %v3717, %v3719
        %3778 = vadd.xlane.f32.xlu0 %v3777
        %v3779 = vpop.xlane.xlu0 %3778
        %v3780 = vadd.f32 %v3721, %v3723
        %3781 = vadd.xlane.f32.xlu0 %v3780
        %v3782 = vpop.xlane.xlu0 %3781
        %v3783 = vadd.f32 %v3725, %v3727
        %3784 = vadd.xlane.f32.xlu0 %v3783
        %v3785 = vpop.xlane.xlu0 %3784
        %v3786 = vadd.f32 %v3729, %v3731
        %3787 = vadd.xlane.f32.xlu0 %v3786
        %v3788 = vpop.xlane.xlu0 %3787
        %v3789 = vadd.f32 %v3733, %v3735
        %3790 = vadd.xlane.f32.xlu0 %v3789
        %v3791 = vpop.xlane.xlu0 %3790
        %v3792 = vadd.f32 %v3737, %v3739
        %3793 = vadd.xlane.f32.xlu0 %v3792
        %v3794 = vpop.xlane.xlu0 %3793
        %v3795 = vadd.f32 %v3741, %v3743
        %3796 = vadd.xlane.f32.xlu0 %v3795
        %v3797 = vpop.xlane.xlu0 %3796
        %v3798 = vadd.f32 %v3745, %v3747
        %3799 = vadd.xlane.f32.xlu0 %v3798
        %v3800 = vpop.xlane.xlu0 %3799
        %v3801 = vadd.f32 %v3749, %v3751
        %3802 = vadd.xlane.f32.xlu0 %v3801
        %v3803 = vpop.xlane.xlu0 %3802
        %v3804 = vadd.f32 %v3753, %v3755
        %3805 = vadd.xlane.f32.xlu0 %v3804
        %v3806 = vpop.xlane.xlu0 %3805
        %v3807 = vadd.f32 %v3757, %v3759
        %3808 = vadd.xlane.f32.xlu0 %v3807
        %v3809 = vpop.xlane.xlu0 %3808
        %v3810 = vadd.f32 %v3761, %v3763
        %3811 = vadd.xlane.f32.xlu0 %v3810
        %v3812 = vpop.xlane.xlu0 %3811
        %v3813 = vadd.f32 %v3765, %v3767
        %3814 = vadd.xlane.f32.xlu0 %v3813
        %v3815 = vpop.xlane.xlu0 %3814
        %v3816 = vlog2.pop %v3770
        %v3817 = vmul.f32 %v3816, 0.6931472
        %v3818 = vlog2.pop %v3773
        %v3819 = vmul.f32 %v3818, 0.6931472
        %v3820 = vlog2.pop %v3776
        %v3821 = vmul.f32 %v3820, 0.6931472
        %v3822 = vlog2.pop %v3779
        %v3823 = vmul.f32 %v3822, 0.6931472
        %v3824 = vlog2.pop %v3782
        %v3825 = vmul.f32 %v3824, 0.6931472
        %v3826 = vlog2.pop %v3785
        %v3827 = vmul.f32 %v3826, 0.6931472
        %v3828 = vlog2.pop %v3788
        %v3829 = vmul.f32 %v3828, 0.6931472
        %v3830 = vlog2.pop %v3791
        %v3831 = vmul.f32 %v3830, 0.6931472
        %v3832 = vlog2.pop %v3794
        %v3833 = vmul.f32 %v3832, 0.6931472
        %v3834 = vlog2.pop %v3797
        %v3835 = vmul.f32 %v3834, 0.6931472
        %v3836 = vlog2.pop %v3800
        %v3837 = vmul.f32 %v3836, 0.6931472
        %v3838 = vlog2.pop %v3803
        %v3839 = vmul.f32 %v3838, 0.6931472
        %v3840 = vlog2.pop %v3806
        %v3841 = vmul.f32 %v3840, 0.6931472
        %v3842 = vlog2.pop %v3809
        %v3843 = vmul.f32 %v3842, 0.6931472
        %v3844 = vlog2.pop %v3812
        %v3845 = vmul.f32 %v3844, 0.6931472
        %v3846 = vlog2.pop %v3815
        %v3847 = vmul.f32 %v3846, 0.6931472
        %v3848 = vsub.f32 0.0, %v3817
        %v3849 = vsub.f32 0.0, %v3819
        %v3850 = vsub.f32 0.0, %v3821
        %v3851 = vsub.f32 0.0, %v3823
        %v3852 = vsub.f32 0.0, %v3825
        %v3853 = vsub.f32 0.0, %v3827
        %v3854 = vsub.f32 0.0, %v3829
        %v3855 = vsub.f32 0.0, %v3831
        %v3856 = vsub.f32 0.0, %v3833
        %v3857 = vsub.f32 0.0, %v3835
        %v3858 = vsub.f32 0.0, %v3837
        %v3859 = vsub.f32 0.0, %v3839
        %v3860 = vsub.f32 0.0, %v3841
        %v3861 = vsub.f32 0.0, %v3843
        %v3862 = vsub.f32 0.0, %v3845
        %v3863 = vsub.f32 0.0, %v3847
        %v3864 = vmax.f32 %v3848, -11.512925
        %v3865 = vmax.f32 %v3849, -11.512925
        %v3866 = vmax.f32 %v3850, -11.512925
        %v3867 = vmax.f32 %v3851, -11.512925
        %v3868 = vmax.f32 %v3852, -11.512925
        %v3869 = vmax.f32 %v3853, -11.512925
        %v3870 = vmax.f32 %v3854, -11.512925
        %v3871 = vmax.f32 %v3855, -11.512925
        %v3872 = vmax.f32 %v3856, -11.512925
        %v3873 = vmax.f32 %v3857, -11.512925
        %v3874 = vmax.f32 %v3858, -11.512925
        %v3875 = vmax.f32 %v3859, -11.512925
        %v3876 = vmax.f32 %v3860, -11.512925
        %v3877 = vmax.f32 %v3861, -11.512925
        %v3878 = vmax.f32 %v3862, -11.512925
        %v3879 = vmax.f32 %v3863, -11.512925
        %v3880 = vmin.f32 %v3864, -1.000005e-05
        %v3881 = vmin.f32 %v3865, -1.000005e-05
        %v3882 = vmin.f32 %v3866, -1.000005e-05
        %v3883 = vmin.f32 %v3867, -1.000005e-05
        %v3884 = vmin.f32 %v3868, -1.000005e-05
        %v3885 = vmin.f32 %v3869, -1.000005e-05
        %v3886 = vmin.f32 %v3870, -1.000005e-05
        %v3887 = vmin.f32 %v3871, -1.000005e-05
        %v3888 = vmin.f32 %v3872, -1.000005e-05
        %v3889 = vmin.f32 %v3873, -1.000005e-05
        %v3890 = vmin.f32 %v3874, -1.000005e-05
        %v3891 = vmin.f32 %v3875, -1.000005e-05
        %v3892 = vmin.f32 %v3876, -1.000005e-05
        %v3893 = vmin.f32 %v3877, -1.000005e-05
        %v3894 = vmin.f32 %v3878, -1.000005e-05
        %v3895 = vmin.f32 %v3879, -1.000005e-05
        %v3896 = vadd.f32 %v2654, %v3880
        %v3897 = vadd.f32 %v2655, %v3881
        %v3898 = vadd.f32 %v2656, %v3882
        %v3899 = vadd.f32 %v2657, %v3883
        %v3900 = vadd.f32 %v2658, %v3884
        %v3901 = vadd.f32 %v2659, %v3885
        %v3902 = vadd.f32 %v2660, %v3886
        %v3903 = vadd.f32 %v2661, %v3887
        %v3904 = vadd.f32 %v2662, %v3888
        %v3905 = vadd.f32 %v2663, %v3889
        %v3906 = vadd.f32 %v2664, %v3890
        %v3907 = vadd.f32 %v2665, %v3891
        %v3908 = vadd.f32 %v2666, %v3892
        %v3909 = vadd.f32 %v2667, %v3893
        %v3910 = vadd.f32 %v2668, %v3894
        %v3911 = vadd.f32 %v2669, %v3895
        %v3912 = vld [vmem:[#allocation2 + $0x28] sm:$0xff]
        %v3913 = vld [vmem:[#allocation2 + $0xa8] sm:$0xff]
        %v3914 = vld [vmem:[#allocation2 + $0x128] sm:$0xff]
        %v3915 = vld [vmem:[#allocation2 + $0x1a8] sm:$0xff]
        %v3916 = vld [vmem:[#allocation2 + $0x228] sm:$0xff]
        %v3917 = vld [vmem:[#allocation2 + $0x2a8] sm:$0xff]
        %v3918 = vld [vmem:[#allocation2 + $0x328] sm:$0xff]
        %v3919 = vld [vmem:[#allocation2 + $0x3a8] sm:$0xff]
        %v3920 = vld [vmem:[#allocation2 + $0x428] sm:$0xff]
        %v3921 = vld [vmem:[#allocation2 + $0x4a8] sm:$0xff]
        %v3922 = vld [vmem:[#allocation2 + $0x528] sm:$0xff]
        %v3923 = vld [vmem:[#allocation2 + $0x5a8] sm:$0xff]
        %v3924 = vld [vmem:[#allocation2 + $0x628] sm:$0xff]
        %v3925 = vld [vmem:[#allocation2 + $0x6a8] sm:$0xff]
        %v3926 = vld [vmem:[#allocation2 + $0x728] sm:$0xff]
        %v3927 = vld [vmem:[#allocation2 + $0x7a8] sm:$0xff]
        %v3928 = vld [vmem:[%s7 + $0xa] sm:$0x3]
        %v3930 = vlaneseq
        %v3931 = vshrl.u32 %v3930, 7
        %v3932 = vsub.s32 0, %v3931
        %v3933 = vrot.slane %v3928, %v3932
        %v3934 = vlaneseq
        %v3935 = vshrl.u32 %v3934, 7
        %v3936 = vsub.s32 1, %v3935
        %v3937 = vrot.slane %v3928, %v3936
        %v3956 = vunpack.c.l.b16 %v3912
        %v3957 = vunpack.c.h.b16 %v3912
        %v3958 = vunpack.c.l.b16 %v3913
        %v3959 = vunpack.c.h.b16 %v3913
        %v3960 = vunpack.c.l.b16 %v3914
        %v3961 = vunpack.c.h.b16 %v3914
        %v3962 = vunpack.c.l.b16 %v3915
        %v3963 = vunpack.c.h.b16 %v3915
        %v3964 = vunpack.c.l.b16 %v3916
        %v3965 = vunpack.c.h.b16 %v3916
        %v3966 = vunpack.c.l.b16 %v3917
        %v3967 = vunpack.c.h.b16 %v3917
        %v3968 = vunpack.c.l.b16 %v3918
        %v3969 = vunpack.c.h.b16 %v3918
        %v3970 = vunpack.c.l.b16 %v3919
        %v3971 = vunpack.c.h.b16 %v3919
        %v3972 = vunpack.c.l.b16 %v3920
        %v3973 = vunpack.c.h.b16 %v3920
        %v3974 = vunpack.c.l.b16 %v3921
        %v3975 = vunpack.c.h.b16 %v3921
        %v3976 = vunpack.c.l.b16 %v3922
        %v3977 = vunpack.c.h.b16 %v3922
        %v3978 = vunpack.c.l.b16 %v3923
        %v3979 = vunpack.c.h.b16 %v3923
        %v3980 = vunpack.c.l.b16 %v3924
        %v3981 = vunpack.c.h.b16 %v3924
        %v3982 = vunpack.c.l.b16 %v3925
        %v3983 = vunpack.c.h.b16 %v3925
        %v3984 = vunpack.c.l.b16 %v3926
        %v3985 = vunpack.c.h.b16 %v3926
        %v3986 = vunpack.c.l.b16 %v3927
        %v3987 = vunpack.c.h.b16 %v3927
        %v3988 = vpack.c.b16 %v3958, %v3956
        %v3989 = vpack.c.b16 %v3959, %v3957
        %v3990 = vpack.c.b16 %v3962, %v3960
        %v3991 = vpack.c.b16 %v3963, %v3961
        %v3992 = vpack.c.b16 %v3966, %v3964
        %v3993 = vpack.c.b16 %v3967, %v3965
        %v3994 = vpack.c.b16 %v3970, %v3968
        %v3995 = vpack.c.b16 %v3971, %v3969
        %v3996 = vpack.c.b16 %v3974, %v3972
        %v3997 = vpack.c.b16 %v3975, %v3973
        %v3998 = vpack.c.b16 %v3978, %v3976
        %v3999 = vpack.c.b16 %v3979, %v3977
        %v4000 = vpack.c.b16 %v3982, %v3980
        %v4001 = vpack.c.b16 %v3983, %v3981
        %v4002 = vpack.c.b16 %v3986, %v3984
        %v4003 = vpack.c.b16 %v3987, %v3985
        %4020 = vmatprep.subr.bf16.mxu0 %v4003
        %4021 = vmatpush1.bf16.msra.mxu0 %v4002
        %4022 = vmatprep.subr.bf16.mxu0 %v4001
        %4023 = vmatpush1.bf16.msra.mxu0 %v4000
        %4024 = vmatprep.subr.bf16.mxu0 %v3999
        %4025 = vmatpush1.bf16.msra.mxu0 %v3998
        %4026 = vmatprep.subr.bf16.mxu0 %v3997
        %4027 = vmatpush1.bf16.msra.mxu0 %v3996
        %4028 = vmatprep.subr.bf16.mxu0 %v3995
        %4029 = vmatpush1.bf16.msra.mxu0 %v3994
        %4030 = vmatprep.subr.bf16.mxu0 %v3993
        %4031 = vmatpush1.bf16.msra.mxu0 %v3992
        %4032 = vmatprep.subr.bf16.mxu0 %v3991
        %4033 = vmatpush1.bf16.msra.mxu0 %v3990
        %4034 = vmatprep.subr.bf16.mxu0 %v3989
        %4035 = vmatpush1.bf16.msra.mxu0 %v3988
        %4036 = vmatprep.subr.bf16.mxu0 0
        %4037 = vmatpush2.bf16.msra.mxu0 0
        %4038 = vmatprep.subr.bf16.mxu0 0
        %4039 = vmatpush2.bf16.msra.mxu0 0
        %4040 = vmatprep.subr.bf16.mxu0 0
        %4041 = vmatpush2.bf16.msra.mxu0 0
        %4042 = vmatprep.subr.bf16.mxu0 0
        %4043 = vmatpush2.bf16.msra.mxu0 0
        %4044 = vmatprep.subr.bf16.mxu0 0
        %4045 = vmatpush2.bf16.msra.mxu0 0
        %4046 = vmatprep.subr.bf16.mxu0 0
        %4047 = vmatpush2.bf16.msra.mxu0 0
        %4048 = vmatprep.subr.bf16.mxu0 0
        %4049 = vmatpush2.bf16.msra.mxu0 0
        %4050 = vmatprep.subr.bf16.mxu0 0
        %4051 = vmatpush2.bf16.msra.mxu0 0
        %4052 = vmatprep.mubr.bf16.mxu0 0
        %4053 = vmatmul.mubr.bf16.gmra.mxu0 %v780
        %v4054 = vpop.f32.mrf.mxu0
        %v4055 = vadd.f32 %v3933, %v4054
        %v4056 = vpop.f32.mrf.mxu0
        %v4057 = vadd.f32 %v3937, %v4056
        %v4058 = vpop.f32.mrf.mxu0
        %v4059 = vadd.f32 %v3933, %v4058
        %v4060 = vpop.f32.mrf.mxu0
        %v4061 = vadd.f32 %v3937, %v4060
        %4062 = vmatprep.mubr.bf16.mxu0 0
        %4063 = vmatmul.mubr.bf16.gmra.mxu0 %v781
        %v4064 = vpop.f32.mrf.mxu0
        %v4065 = vadd.f32 %v3933, %v4064
        %v4066 = vpop.f32.mrf.mxu0
        %v4067 = vadd.f32 %v3937, %v4066
        %v4068 = vpop.f32.mrf.mxu0
        %v4069 = vadd.f32 %v3933, %v4068
        %v4070 = vpop.f32.mrf.mxu0
        %v4071 = vadd.f32 %v3937, %v4070
        %4072 = vmatprep.mubr.bf16.mxu0 0
        %4073 = vmatmul.mubr.bf16.gmra.mxu0 %v782
        %v4074 = vpop.f32.mrf.mxu0
        %v4075 = vadd.f32 %v3933, %v4074
        %v4076 = vpop.f32.mrf.mxu0
        %v4077 = vadd.f32 %v3937, %v4076
        %v4078 = vpop.f32.mrf.mxu0
        %v4079 = vadd.f32 %v3933, %v4078
        %v4080 = vpop.f32.mrf.mxu0
        %v4081 = vadd.f32 %v3937, %v4080
        %4082 = vmatprep.mubr.bf16.mxu0 0
        %4083 = vmatmul.mubr.bf16.gmra.mxu0 %v783
        %v4084 = vpop.f32.mrf.mxu0
        %v4085 = vadd.f32 %v3933, %v4084
        %v4086 = vpop.f32.mrf.mxu0
        %v4087 = vadd.f32 %v3937, %v4086
        %v4088 = vpop.f32.mrf.mxu0
        %v4089 = vadd.f32 %v3933, %v4088
        %v4090 = vpop.f32.mrf.mxu0
        %v4091 = vadd.f32 %v3937, %v4090
        %4092 = vmatprep.mubr.bf16.mxu0 0
        %4093 = vmatmul.mubr.bf16.gmra.mxu0 %v784
        %v4094 = vpop.f32.mrf.mxu0
        %v4095 = vadd.f32 %v3933, %v4094
        %v4096 = vpop.f32.mrf.mxu0
        %v4097 = vadd.f32 %v3937, %v4096
        %v4098 = vpop.f32.mrf.mxu0
        %v4099 = vadd.f32 %v3933, %v4098
        %v4100 = vpop.f32.mrf.mxu0
        %v4101 = vadd.f32 %v3937, %v4100
        %4102 = vmatprep.mubr.bf16.mxu0 0
        %4103 = vmatmul.mubr.bf16.gmra.mxu0 %v785
        %v4104 = vpop.f32.mrf.mxu0
        %v4105 = vadd.f32 %v3933, %v4104
        %v4106 = vpop.f32.mrf.mxu0
        %v4107 = vadd.f32 %v3937, %v4106
        %v4108 = vpop.f32.mrf.mxu0
        %v4109 = vadd.f32 %v3933, %v4108
        %v4110 = vpop.f32.mrf.mxu0
        %v4111 = vadd.f32 %v3937, %v4110
        %4112 = vmatprep.mubr.bf16.mxu0 0
        %4113 = vmatmul.mubr.bf16.gmra.mxu0 %v786
        %v4114 = vpop.f32.mrf.mxu0
        %v4115 = vadd.f32 %v3933, %v4114
        %v4116 = vpop.f32.mrf.mxu0
        %v4117 = vadd.f32 %v3937, %v4116
        %v4118 = vpop.f32.mrf.mxu0
        %v4119 = vadd.f32 %v3933, %v4118
        %v4120 = vpop.f32.mrf.mxu0
        %v4121 = vadd.f32 %v3937, %v4120
        %4122 = vmatprep.mubr.bf16.mxu0 0
        %4123 = vmatmul.mubr.bf16.gmra.mxu0 %v787
        %v4124 = vpop.f32.mrf.mxu0
        %v4125 = vadd.f32 %v3933, %v4124
        %v4126 = vpop.f32.mrf.mxu0
        %v4127 = vadd.f32 %v3937, %v4126
        %v4128 = vpop.f32.mrf.mxu0
        %v4129 = vadd.f32 %v3933, %v4128
        %v4130 = vpop.f32.mrf.mxu0
        %v4131 = vadd.f32 %v3937, %v4130
        %4132 = vdwg.mxu0
        %4133 = vset.pattern.permute.xlu0 5
        %4134 = vperm.xlu0 %4133, %v788
        %v4135 = vpop.permute.xlu0 %4134
        %4136 = vset.pattern.permute.xlu0 5
        %4137 = vperm.xlu0 %4136, %v789
        %v4138 = vpop.permute.xlu0 %4137
        %4139 = vset.pattern.permute.xlu0 5
        %4140 = vperm.xlu0 %4139, %v790
        %v4141 = vpop.permute.xlu0 %4140
        %4142 = vset.pattern.permute.xlu0 5
        %4143 = vperm.xlu0 %4142, %v791
        %v4144 = vpop.permute.xlu0 %4143
        %4145 = vset.pattern.permute.xlu0 5
        %4146 = vperm.xlu0 %4145, %v792
        %v4147 = vpop.permute.xlu0 %4146
        %4148 = vset.pattern.permute.xlu0 5
        %4149 = vperm.xlu0 %4148, %v793
        %v4150 = vpop.permute.xlu0 %4149
        %4151 = vset.pattern.permute.xlu0 5
        %4152 = vperm.xlu0 %4151, %v794
        %v4153 = vpop.permute.xlu0 %4152
        %4154 = vset.pattern.permute.xlu0 5
        %4155 = vperm.xlu0 %4154, %v795
        %v4156 = vpop.permute.xlu0 %4155
        %4157 = vset.pattern.permute.xlu0 5
        %4158 = vperm.xlu0 %4157, %v796
        %v4159 = vpop.permute.xlu0 %4158
        %4160 = vset.pattern.permute.xlu0 5
        %4161 = vperm.xlu0 %4160, %v797
        %v4162 = vpop.permute.xlu0 %4161
        %4163 = vset.pattern.permute.xlu0 5
        %4164 = vperm.xlu0 %4163, %v798
        %v4165 = vpop.permute.xlu0 %4164
        %4166 = vset.pattern.permute.xlu0 5
        %4167 = vperm.xlu0 %4166, %v799
        %v4168 = vpop.permute.xlu0 %4167
        %4169 = vset.pattern.permute.xlu0 5
        %4170 = vperm.xlu0 %4169, %v800
        %v4171 = vpop.permute.xlu0 %4170
        %4172 = vset.pattern.permute.xlu0 5
        %4173 = vperm.xlu0 %4172, %v801
        %v4174 = vpop.permute.xlu0 %4173
        %4175 = vset.pattern.permute.xlu0 5
        %4176 = vperm.xlu0 %4175, %v802
        %v4177 = vpop.permute.xlu0 %4176
        %4178 = vset.pattern.permute.xlu0 5
        %4179 = vperm.xlu0 %4178, %v803
        %v4180 = vpop.permute.xlu0 %4179
        %vm4181 = vcmp.eq.s32.totalorder %v805, %v4135
        %vm4182 = vcmp.eq.s32.totalorder %v806, %v4135
        %vm4183 = vcmp.eq.s32.totalorder %v805, %v4138
        %vm4184 = vcmp.eq.s32.totalorder %v806, %v4138
        %vm4185 = vcmp.eq.s32.totalorder %v805, %v4141
        %vm4186 = vcmp.eq.s32.totalorder %v806, %v4141
        %vm4187 = vcmp.eq.s32.totalorder %v805, %v4144
        %vm4188 = vcmp.eq.s32.totalorder %v806, %v4144
        %vm4189 = vcmp.eq.s32.totalorder %v805, %v4147
        %vm4190 = vcmp.eq.s32.totalorder %v806, %v4147
        %vm4191 = vcmp.eq.s32.totalorder %v805, %v4150
        %vm4192 = vcmp.eq.s32.totalorder %v806, %v4150
        %vm4193 = vcmp.eq.s32.totalorder %v805, %v4153
        %vm4194 = vcmp.eq.s32.totalorder %v806, %v4153
        %vm4195 = vcmp.eq.s32.totalorder %v805, %v4156
        %vm4196 = vcmp.eq.s32.totalorder %v806, %v4156
        %vm4197 = vcmp.eq.s32.totalorder %v805, %v4159
        %vm4198 = vcmp.eq.s32.totalorder %v806, %v4159
        %vm4199 = vcmp.eq.s32.totalorder %v805, %v4162
        %vm4200 = vcmp.eq.s32.totalorder %v806, %v4162
        %vm4201 = vcmp.eq.s32.totalorder %v805, %v4165
        %vm4202 = vcmp.eq.s32.totalorder %v806, %v4165
        %vm4203 = vcmp.eq.s32.totalorder %v805, %v4168
        %vm4204 = vcmp.eq.s32.totalorder %v806, %v4168
        %vm4205 = vcmp.eq.s32.totalorder %v805, %v4171
        %vm4206 = vcmp.eq.s32.totalorder %v806, %v4171
        %vm4207 = vcmp.eq.s32.totalorder %v805, %v4174
        %vm4208 = vcmp.eq.s32.totalorder %v806, %v4174
        %vm4209 = vcmp.eq.s32.totalorder %v805, %v4177
        %vm4210 = vcmp.eq.s32.totalorder %v806, %v4177
        %vm4211 = vcmp.eq.s32.totalorder %v805, %v4180
        %vm4212 = vcmp.eq.s32.totalorder %v806, %v4180
        %v4213 = vsel %vm4181, %v4055, 0.0
        %v4214 = vsel %vm4182, %v4057, 0.0
        %v4215 = vsel %vm4183, %v4059, 0.0
        %v4216 = vsel %vm4184, %v4061, 0.0
        %v4217 = vsel %vm4185, %v4065, 0.0
        %v4218 = vsel %vm4186, %v4067, 0.0
        %v4219 = vsel %vm4187, %v4069, 0.0
        %v4220 = vsel %vm4188, %v4071, 0.0
        %v4221 = vsel %vm4189, %v4075, 0.0
        %v4222 = vsel %vm4190, %v4077, 0.0
        %v4223 = vsel %vm4191, %v4079, 0.0
        %v4224 = vsel %vm4192, %v4081, 0.0
        %v4225 = vsel %vm4193, %v4085, 0.0
        %v4226 = vsel %vm4194, %v4087, 0.0
        %v4227 = vsel %vm4195, %v4089, 0.0
        %v4228 = vsel %vm4196, %v4091, 0.0
        %v4229 = vsel %vm4197, %v4095, 0.0
        %v4230 = vsel %vm4198, %v4097, 0.0
        %v4231 = vsel %vm4199, %v4099, 0.0
        %v4232 = vsel %vm4200, %v4101, 0.0
        %v4233 = vsel %vm4201, %v4105, 0.0
        %v4234 = vsel %vm4202, %v4107, 0.0
        %v4235 = vsel %vm4203, %v4109, 0.0
        %v4236 = vsel %vm4204, %v4111, 0.0
        %v4237 = vsel %vm4205, %v4115, 0.0
        %v4238 = vsel %vm4206, %v4117, 0.0
        %v4239 = vsel %vm4207, %v4119, 0.0
        %v4240 = vsel %vm4208, %v4121, 0.0
        %v4241 = vsel %vm4209, %v4125, 0.0
        %v4242 = vsel %vm4210, %v4127, 0.0
        %v4243 = vsel %vm4211, %v4129, 0.0
        %v4244 = vsel %vm4212, %v4131, 0.0
        %v4245 = vadd.f32 %v4213, %v4214
        %4246 = vadd.xlane.f32.xlu0 %v4245
        %v4247 = vpop.xlane.xlu0 %4246
        %v4248 = vadd.f32 %v4215, %v4216
        %4249 = vadd.xlane.f32.xlu0 %v4248
        %v4250 = vpop.xlane.xlu0 %4249
        %v4251 = vadd.f32 %v4217, %v4218
        %4252 = vadd.xlane.f32.xlu0 %v4251
        %v4253 = vpop.xlane.xlu0 %4252
        %v4254 = vadd.f32 %v4219, %v4220
        %4255 = vadd.xlane.f32.xlu0 %v4254
        %v4256 = vpop.xlane.xlu0 %4255
        %v4257 = vadd.f32 %v4221, %v4222
        %4258 = vadd.xlane.f32.xlu0 %v4257
        %v4259 = vpop.xlane.xlu0 %4258
        %v4260 = vadd.f32 %v4223, %v4224
        %4261 = vadd.xlane.f32.xlu0 %v4260
        %v4262 = vpop.xlane.xlu0 %4261
        %v4263 = vadd.f32 %v4225, %v4226
        %4264 = vadd.xlane.f32.xlu0 %v4263
        %v4265 = vpop.xlane.xlu0 %4264
        %v4266 = vadd.f32 %v4227, %v4228
        %4267 = vadd.xlane.f32.xlu0 %v4266
        %v4268 = vpop.xlane.xlu0 %4267
        %v4269 = vadd.f32 %v4229, %v4230
        %4270 = vadd.xlane.f32.xlu0 %v4269
        %v4271 = vpop.xlane.xlu0 %4270
        %v4272 = vadd.f32 %v4231, %v4232
        %4273 = vadd.xlane.f32.xlu0 %v4272
        %v4274 = vpop.xlane.xlu0 %4273
        %v4275 = vadd.f32 %v4233, %v4234
        %4276 = vadd.xlane.f32.xlu0 %v4275
        %v4277 = vpop.xlane.xlu0 %4276
        %v4278 = vadd.f32 %v4235, %v4236
        %4279 = vadd.xlane.f32.xlu0 %v4278
        %v4280 = vpop.xlane.xlu0 %4279
        %v4281 = vadd.f32 %v4237, %v4238
        %4282 = vadd.xlane.f32.xlu0 %v4281
        %v4283 = vpop.xlane.xlu0 %4282
        %v4284 = vadd.f32 %v4239, %v4240
        %4285 = vadd.xlane.f32.xlu0 %v4284
        %v4286 = vpop.xlane.xlu0 %4285
        %v4287 = vadd.f32 %v4241, %v4242
        %4288 = vadd.xlane.f32.xlu0 %v4287
        %v4289 = vpop.xlane.xlu0 %4288
        %v4290 = vadd.f32 %v4243, %v4244
        %4291 = vadd.xlane.f32.xlu0 %v4290
        %v4292 = vpop.xlane.xlu0 %4291
        %v4293 = vsub.f32 %v4055, %v4247
        %v4294 = vsub.f32 %v4057, %v4247
        %v4295 = vsub.f32 %v4059, %v4250
        %v4296 = vsub.f32 %v4061, %v4250
        %v4297 = vsub.f32 %v4065, %v4253
        %v4298 = vsub.f32 %v4067, %v4253
        %v4299 = vsub.f32 %v4069, %v4256
        %v4300 = vsub.f32 %v4071, %v4256
        %v4301 = vsub.f32 %v4075, %v4259
        %v4302 = vsub.f32 %v4077, %v4259
        %v4303 = vsub.f32 %v4079, %v4262
        %v4304 = vsub.f32 %v4081, %v4262
        %v4305 = vsub.f32 %v4085, %v4265
        %v4306 = vsub.f32 %v4087, %v4265
        %v4307 = vsub.f32 %v4089, %v4268
        %v4308 = vsub.f32 %v4091, %v4268
        %v4309 = vsub.f32 %v4095, %v4271
        %v4310 = vsub.f32 %v4097, %v4271
        %v4311 = vsub.f32 %v4099, %v4274
        %v4312 = vsub.f32 %v4101, %v4274
        %v4313 = vsub.f32 %v4105, %v4277
        %v4314 = vsub.f32 %v4107, %v4277
        %v4315 = vsub.f32 %v4109, %v4280
        %v4316 = vsub.f32 %v4111, %v4280
        %v4317 = vsub.f32 %v4115, %v4283
        %v4318 = vsub.f32 %v4117, %v4283
        %v4319 = vsub.f32 %v4119, %v4286
        %v4320 = vsub.f32 %v4121, %v4286
        %v4321 = vsub.f32 %v4125, %v4289
        %v4322 = vsub.f32 %v4127, %v4289
        %v4323 = vsub.f32 %v4129, %v4292
        %v4324 = vsub.f32 %v4131, %v4292
        %v4325 = vmul.f32 %v4293, 1.442695
        %v4326 = vpow.pop %v4325
        %v4327 = vmul.f32 %v4294, 1.442695
        %v4328 = vpow.pop %v4327
        %v4329 = vmul.f32 %v4295, 1.442695
        %v4330 = vpow.pop %v4329
        %v4331 = vmul.f32 %v4296, 1.442695
        %v4332 = vpow.pop %v4331
        %v4333 = vmul.f32 %v4297, 1.442695
        %v4334 = vpow.pop %v4333
        %v4335 = vmul.f32 %v4298, 1.442695
        %v4336 = vpow.pop %v4335
        %v4337 = vmul.f32 %v4299, 1.442695
        %v4338 = vpow.pop %v4337
        %v4339 = vmul.f32 %v4300, 1.442695
        %v4340 = vpow.pop %v4339
        %v4341 = vmul.f32 %v4301, 1.442695
        %v4342 = vpow.pop %v4341
        %v4343 = vmul.f32 %v4302, 1.442695
        %v4344 = vpow.pop %v4343
        %v4345 = vmul.f32 %v4303, 1.442695
        %v4346 = vpow.pop %v4345
        %v4347 = vmul.f32 %v4304, 1.442695
        %v4348 = vpow.pop %v4347
        %v4349 = vmul.f32 %v4305, 1.442695
        %v4350 = vpow.pop %v4349
        %v4351 = vmul.f32 %v4306, 1.442695
        %v4352 = vpow.pop %v4351
        %v4353 = vmul.f32 %v4307, 1.442695
        %v4354 = vpow.pop %v4353
        %v4355 = vmul.f32 %v4308, 1.442695
        %v4356 = vpow.pop %v4355
        %v4357 = vmul.f32 %v4309, 1.442695
        %v4358 = vpow.pop %v4357
        %v4359 = vmul.f32 %v4310, 1.442695
        %v4360 = vpow.pop %v4359
        %v4361 = vmul.f32 %v4311, 1.442695
        %v4362 = vpow.pop %v4361
        %v4363 = vmul.f32 %v4312, 1.442695
        %v4364 = vpow.pop %v4363
        %v4365 = vmul.f32 %v4313, 1.442695
        %v4366 = vpow.pop %v4365
        %v4367 = vmul.f32 %v4314, 1.442695
        %v4368 = vpow.pop %v4367
        %v4369 = vmul.f32 %v4315, 1.442695
        %v4370 = vpow.pop %v4369
        %v4371 = vmul.f32 %v4316, 1.442695
        %v4372 = vpow.pop %v4371
        %v4373 = vmul.f32 %v4317, 1.442695
        %v4374 = vpow.pop %v4373
        %v4375 = vmul.f32 %v4318, 1.442695
        %v4376 = vpow.pop %v4375
        %v4377 = vmul.f32 %v4319, 1.442695
        %v4378 = vpow.pop %v4377
        %v4379 = vmul.f32 %v4320, 1.442695
        %v4380 = vpow.pop %v4379
        %v4381 = vmul.f32 %v4321, 1.442695
        %v4382 = vpow.pop %v4381
        %v4383 = vmul.f32 %v4322, 1.442695
        %v4384 = vpow.pop %v4383
        %v4385 = vmul.f32 %v4323, 1.442695
        %v4386 = vpow.pop %v4385
        %v4387 = vmul.f32 %v4324, 1.442695
        %v4388 = vpow.pop %v4387
        %v4389 = vadd.f32 %v4326, %v4328
        %4390 = vadd.xlane.f32.xlu0 %v4389
        %v4391 = vpop.xlane.xlu0 %4390
        %v4392 = vadd.f32 %v4330, %v4332
        %4393 = vadd.xlane.f32.xlu0 %v4392
        %v4394 = vpop.xlane.xlu0 %4393
        %v4395 = vadd.f32 %v4334, %v4336
        %4396 = vadd.xlane.f32.xlu0 %v4395
        %v4397 = vpop.xlane.xlu0 %4396
        %v4398 = vadd.f32 %v4338, %v4340
        %4399 = vadd.xlane.f32.xlu0 %v4398
        %v4400 = vpop.xlane.xlu0 %4399
        %v4401 = vadd.f32 %v4342, %v4344
        %4402 = vadd.xlane.f32.xlu0 %v4401
        %v4403 = vpop.xlane.xlu0 %4402
        %v4404 = vadd.f32 %v4346, %v4348
        %4405 = vadd.xlane.f32.xlu0 %v4404
        %v4406 = vpop.xlane.xlu0 %4405
        %v4407 = vadd.f32 %v4350, %v4352
        %4408 = vadd.xlane.f32.xlu0 %v4407
        %v4409 = vpop.xlane.xlu0 %4408
        %v4410 = vadd.f32 %v4354, %v4356
        %4411 = vadd.xlane.f32.xlu0 %v4410
        %v4412 = vpop.xlane.xlu0 %4411
        %v4413 = vadd.f32 %v4358, %v4360
        %4414 = vadd.xlane.f32.xlu0 %v4413
        %v4415 = vpop.xlane.xlu0 %4414
        %v4416 = vadd.f32 %v4362, %v4364
        %4417 = vadd.xlane.f32.xlu0 %v4416
        %v4418 = vpop.xlane.xlu0 %4417
        %v4419 = vadd.f32 %v4366, %v4368
        %4420 = vadd.xlane.f32.xlu0 %v4419
        %v4421 = vpop.xlane.xlu0 %4420
        %v4422 = vadd.f32 %v4370, %v4372
        %4423 = vadd.xlane.f32.xlu0 %v4422
        %v4424 = vpop.xlane.xlu0 %4423
        %v4425 = vadd.f32 %v4374, %v4376
        %4426 = vadd.xlane.f32.xlu0 %v4425
        %v4427 = vpop.xlane.xlu0 %4426
        %v4428 = vadd.f32 %v4378, %v4380
        %4429 = vadd.xlane.f32.xlu0 %v4428
        %v4430 = vpop.xlane.xlu0 %4429
        %v4431 = vadd.f32 %v4382, %v4384
        %4432 = vadd.xlane.f32.xlu0 %v4431
        %v4433 = vpop.xlane.xlu0 %4432
        %v4434 = vadd.f32 %v4386, %v4388
        %4435 = vadd.xlane.f32.xlu0 %v4434
        %v4436 = vpop.xlane.xlu0 %4435
        %v4437 = vlog2.pop %v4391
        %v4438 = vmul.f32 %v4437, 0.6931472
        %v4439 = vlog2.pop %v4394
        %v4440 = vmul.f32 %v4439, 0.6931472
        %v4441 = vlog2.pop %v4397
        %v4442 = vmul.f32 %v4441, 0.6931472
        %v4443 = vlog2.pop %v4400
        %v4444 = vmul.f32 %v4443, 0.6931472
        %v4445 = vlog2.pop %v4403
        %v4446 = vmul.f32 %v4445, 0.6931472
        %v4447 = vlog2.pop %v4406
        %v4448 = vmul.f32 %v4447, 0.6931472
        %v4449 = vlog2.pop %v4409
        %v4450 = vmul.f32 %v4449, 0.6931472
        %v4451 = vlog2.pop %v4412
        %v4452 = vmul.f32 %v4451, 0.6931472
        %v4453 = vlog2.pop %v4415
        %v4454 = vmul.f32 %v4453, 0.6931472
        %v4455 = vlog2.pop %v4418
        %v4456 = vmul.f32 %v4455, 0.6931472
        %v4457 = vlog2.pop %v4421
        %v4458 = vmul.f32 %v4457, 0.6931472
        %v4459 = vlog2.pop %v4424
        %v4460 = vmul.f32 %v4459, 0.6931472
        %v4461 = vlog2.pop %v4427
        %v4462 = vmul.f32 %v4461, 0.6931472
        %v4463 = vlog2.pop %v4430
        %v4464 = vmul.f32 %v4463, 0.6931472
        %v4465 = vlog2.pop %v4433
        %v4466 = vmul.f32 %v4465, 0.6931472
        %v4467 = vlog2.pop %v4436
        %v4468 = vmul.f32 %v4467, 0.6931472
        %v4469 = vsub.f32 0.0, %v4438
        %v4470 = vsub.f32 0.0, %v4440
        %v4471 = vsub.f32 0.0, %v4442
        %v4472 = vsub.f32 0.0, %v4444
        %v4473 = vsub.f32 0.0, %v4446
        %v4474 = vsub.f32 0.0, %v4448
        %v4475 = vsub.f32 0.0, %v4450
        %v4476 = vsub.f32 0.0, %v4452
        %v4477 = vsub.f32 0.0, %v4454
        %v4478 = vsub.f32 0.0, %v4456
        %v4479 = vsub.f32 0.0, %v4458
        %v4480 = vsub.f32 0.0, %v4460
        %v4481 = vsub.f32 0.0, %v4462
        %v4482 = vsub.f32 0.0, %v4464
        %v4483 = vsub.f32 0.0, %v4466
        %v4484 = vsub.f32 0.0, %v4468
        %v4485 = vmax.f32 %v4469, -11.512925
        %v4486 = vmax.f32 %v4470, -11.512925
        %v4487 = vmax.f32 %v4471, -11.512925
        %v4488 = vmax.f32 %v4472, -11.512925
        %v4489 = vmax.f32 %v4473, -11.512925
        %v4490 = vmax.f32 %v4474, -11.512925
        %v4491 = vmax.f32 %v4475, -11.512925
        %v4492 = vmax.f32 %v4476, -11.512925
        %v4493 = vmax.f32 %v4477, -11.512925
        %v4494 = vmax.f32 %v4478, -11.512925
        %v4495 = vmax.f32 %v4479, -11.512925
        %v4496 = vmax.f32 %v4480, -11.512925
        %v4497 = vmax.f32 %v4481, -11.512925
        %v4498 = vmax.f32 %v4482, -11.512925
        %v4499 = vmax.f32 %v4483, -11.512925
        %v4500 = vmax.f32 %v4484, -11.512925
        %v4501 = vmin.f32 %v4485, -1.000005e-05
        %v4502 = vmin.f32 %v4486, -1.000005e-05
        %v4503 = vmin.f32 %v4487, -1.000005e-05
        %v4504 = vmin.f32 %v4488, -1.000005e-05
        %v4505 = vmin.f32 %v4489, -1.000005e-05
        %v4506 = vmin.f32 %v4490, -1.000005e-05
        %v4507 = vmin.f32 %v4491, -1.000005e-05
        %v4508 = vmin.f32 %v4492, -1.000005e-05
        %v4509 = vmin.f32 %v4493, -1.000005e-05
        %v4510 = vmin.f32 %v4494, -1.000005e-05
        %v4511 = vmin.f32 %v4495, -1.000005e-05
        %v4512 = vmin.f32 %v4496, -1.000005e-05
        %v4513 = vmin.f32 %v4497, -1.000005e-05
        %v4514 = vmin.f32 %v4498, -1.000005e-05
        %v4515 = vmin.f32 %v4499, -1.000005e-05
        %v4516 = vmin.f32 %v4500, -1.000005e-05
        %v4517 = vadd.f32 %v3275, %v4501
        %v4518 = vadd.f32 %v3276, %v4502
        %v4519 = vadd.f32 %v3277, %v4503
        %v4520 = vadd.f32 %v3278, %v4504
        %v4521 = vadd.f32 %v3279, %v4505
        %v4522 = vadd.f32 %v3280, %v4506
        %v4523 = vadd.f32 %v3281, %v4507
        %v4524 = vadd.f32 %v3282, %v4508
        %v4525 = vadd.f32 %v3283, %v4509
        %v4526 = vadd.f32 %v3284, %v4510
        %v4527 = vadd.f32 %v3285, %v4511
        %v4528 = vadd.f32 %v3286, %v4512
        %v4529 = vadd.f32 %v3287, %v4513
        %v4530 = vadd.f32 %v3288, %v4514
        %v4531 = vadd.f32 %v3289, %v4515
        %v4532 = vadd.f32 %v3290, %v4516
        %v4533 = vld [vmem:[#allocation2 + $0x30] sm:$0xff]
        %v4534 = vld [vmem:[#allocation2 + $0xb0] sm:$0xff]
        %v4535 = vld [vmem:[#allocation2 + $0x130] sm:$0xff]
        %v4536 = vld [vmem:[#allocation2 + $0x1b0] sm:$0xff]
        %v4537 = vld [vmem:[#allocation2 + $0x230] sm:$0xff]
        %v4538 = vld [vmem:[#allocation2 + $0x2b0] sm:$0xff]
        %v4539 = vld [vmem:[#allocation2 + $0x330] sm:$0xff]
        %v4540 = vld [vmem:[#allocation2 + $0x3b0] sm:$0xff]
        %v4541 = vld [vmem:[#allocation2 + $0x430] sm:$0xff]
        %v4542 = vld [vmem:[#allocation2 + $0x4b0] sm:$0xff]
        %v4543 = vld [vmem:[#allocation2 + $0x530] sm:$0xff]
        %v4544 = vld [vmem:[#allocation2 + $0x5b0] sm:$0xff]
        %v4545 = vld [vmem:[#allocation2 + $0x630] sm:$0xff]
        %v4546 = vld [vmem:[#allocation2 + $0x6b0] sm:$0xff]
        %v4547 = vld [vmem:[#allocation2 + $0x730] sm:$0xff]
        %v4548 = vld [vmem:[#allocation2 + $0x7b0] sm:$0xff]
        %v4549 = vld [vmem:[%s7 + $0xc] sm:$0x3]
        %v4551 = vlaneseq
        %v4552 = vshrl.u32 %v4551, 7
        %v4553 = vsub.s32 0, %v4552
        %v4554 = vrot.slane %v4549, %v4553
        %v4555 = vlaneseq
        %v4556 = vshrl.u32 %v4555, 7
        %v4557 = vsub.s32 1, %v4556
        %v4558 = vrot.slane %v4549, %v4557
        %v4577 = vunpack.c.l.b16 %v4533
        %v4578 = vunpack.c.h.b16 %v4533
        %v4579 = vunpack.c.l.b16 %v4534
        %v4580 = vunpack.c.h.b16 %v4534
        %v4581 = vunpack.c.l.b16 %v4535
        %v4582 = vunpack.c.h.b16 %v4535
        %v4583 = vunpack.c.l.b16 %v4536
        %v4584 = vunpack.c.h.b16 %v4536
        %v4585 = vunpack.c.l.b16 %v4537
        %v4586 = vunpack.c.h.b16 %v4537
        %v4587 = vunpack.c.l.b16 %v4538
        %v4588 = vunpack.c.h.b16 %v4538
        %v4589 = vunpack.c.l.b16 %v4539
        %v4590 = vunpack.c.h.b16 %v4539
        %v4591 = vunpack.c.l.b16 %v4540
        %v4592 = vunpack.c.h.b16 %v4540
        %v4593 = vunpack.c.l.b16 %v4541
        %v4594 = vunpack.c.h.b16 %v4541
        %v4595 = vunpack.c.l.b16 %v4542
        %v4596 = vunpack.c.h.b16 %v4542
        %v4597 = vunpack.c.l.b16 %v4543
        %v4598 = vunpack.c.h.b16 %v4543
        %v4599 = vunpack.c.l.b16 %v4544
        %v4600 = vunpack.c.h.b16 %v4544
        %v4601 = vunpack.c.l.b16 %v4545
        %v4602 = vunpack.c.h.b16 %v4545
        %v4603 = vunpack.c.l.b16 %v4546
        %v4604 = vunpack.c.h.b16 %v4546
        %v4605 = vunpack.c.l.b16 %v4547
        %v4606 = vunpack.c.h.b16 %v4547
        %v4607 = vunpack.c.l.b16 %v4548
        %v4608 = vunpack.c.h.b16 %v4548
        %v4609 = vpack.c.b16 %v4579, %v4577
        %v4610 = vpack.c.b16 %v4580, %v4578
        %v4611 = vpack.c.b16 %v4583, %v4581
        %v4612 = vpack.c.b16 %v4584, %v4582
        %v4613 = vpack.c.b16 %v4587, %v4585
        %v4614 = vpack.c.b16 %v4588, %v4586
        %v4615 = vpack.c.b16 %v4591, %v4589
        %v4616 = vpack.c.b16 %v4592, %v4590
        %v4617 = vpack.c.b16 %v4595, %v4593
        %v4618 = vpack.c.b16 %v4596, %v4594
        %v4619 = vpack.c.b16 %v4599, %v4597
        %v4620 = vpack.c.b16 %v4600, %v4598
        %v4621 = vpack.c.b16 %v4603, %v4601
        %v4622 = vpack.c.b16 %v4604, %v4602
        %v4623 = vpack.c.b16 %v4607, %v4605
        %v4624 = vpack.c.b16 %v4608, %v4606
        %4641 = vmatprep.subr.bf16.mxu0 %v4624
        %4642 = vmatpush1.bf16.msra.mxu0 %v4623
        %4643 = vmatprep.subr.bf16.mxu0 %v4622
        %4644 = vmatpush1.bf16.msra.mxu0 %v4621
        %4645 = vmatprep.subr.bf16.mxu0 %v4620
        %4646 = vmatpush1.bf16.msra.mxu0 %v4619
        %4647 = vmatprep.subr.bf16.mxu0 %v4618
        %4648 = vmatpush1.bf16.msra.mxu0 %v4617
        %4649 = vmatprep.subr.bf16.mxu0 %v4616
        %4650 = vmatpush1.bf16.msra.mxu0 %v4615
        %4651 = vmatprep.subr.bf16.mxu0 %v4614
        %4652 = vmatpush1.bf16.msra.mxu0 %v4613
        %4653 = vmatprep.subr.bf16.mxu0 %v4612
        %4654 = vmatpush1.bf16.msra.mxu0 %v4611
        %4655 = vmatprep.subr.bf16.mxu0 %v4610
        %4656 = vmatpush1.bf16.msra.mxu0 %v4609
        %4657 = vmatprep.subr.bf16.mxu0 0
        %4658 = vmatpush2.bf16.msra.mxu0 0
        %4659 = vmatprep.subr.bf16.mxu0 0
        %4660 = vmatpush2.bf16.msra.mxu0 0
        %4661 = vmatprep.subr.bf16.mxu0 0
        %4662 = vmatpush2.bf16.msra.mxu0 0
        %4663 = vmatprep.subr.bf16.mxu0 0
        %4664 = vmatpush2.bf16.msra.mxu0 0
        %4665 = vmatprep.subr.bf16.mxu0 0
        %4666 = vmatpush2.bf16.msra.mxu0 0
        %4667 = vmatprep.subr.bf16.mxu0 0
        %4668 = vmatpush2.bf16.msra.mxu0 0
        %4669 = vmatprep.subr.bf16.mxu0 0
        %4670 = vmatpush2.bf16.msra.mxu0 0
        %4671 = vmatprep.subr.bf16.mxu0 0
        %4672 = vmatpush2.bf16.msra.mxu0 0
        %4673 = vmatprep.mubr.bf16.mxu0 0
        %4674 = vmatmul.mubr.bf16.gmra.mxu0 %v780
        %v4675 = vpop.f32.mrf.mxu0
        %v4676 = vadd.f32 %v4554, %v4675
        %v4677 = vpop.f32.mrf.mxu0
        %v4678 = vadd.f32 %v4558, %v4677
        %v4679 = vpop.f32.mrf.mxu0
        %v4680 = vadd.f32 %v4554, %v4679
        %v4681 = vpop.f32.mrf.mxu0
        %v4682 = vadd.f32 %v4558, %v4681
        %4683 = vmatprep.mubr.bf16.mxu0 0
        %4684 = vmatmul.mubr.bf16.gmra.mxu0 %v781
        %v4685 = vpop.f32.mrf.mxu0
        %v4686 = vadd.f32 %v4554, %v4685
        %v4687 = vpop.f32.mrf.mxu0
        %v4688 = vadd.f32 %v4558, %v4687
        %v4689 = vpop.f32.mrf.mxu0
        %v4690 = vadd.f32 %v4554, %v4689
        %v4691 = vpop.f32.mrf.mxu0
        %v4692 = vadd.f32 %v4558, %v4691
        %4693 = vmatprep.mubr.bf16.mxu0 0
        %4694 = vmatmul.mubr.bf16.gmra.mxu0 %v782
        %v4695 = vpop.f32.mrf.mxu0
        %v4696 = vadd.f32 %v4554, %v4695
        %v4697 = vpop.f32.mrf.mxu0
        %v4698 = vadd.f32 %v4558, %v4697
        %v4699 = vpop.f32.mrf.mxu0
        %v4700 = vadd.f32 %v4554, %v4699
        %v4701 = vpop.f32.mrf.mxu0
        %v4702 = vadd.f32 %v4558, %v4701
        %4703 = vmatprep.mubr.bf16.mxu0 0
        %4704 = vmatmul.mubr.bf16.gmra.mxu0 %v783
        %v4705 = vpop.f32.mrf.mxu0
        %v4706 = vadd.f32 %v4554, %v4705
        %v4707 = vpop.f32.mrf.mxu0
        %v4708 = vadd.f32 %v4558, %v4707
        %v4709 = vpop.f32.mrf.mxu0
        %v4710 = vadd.f32 %v4554, %v4709
        %v4711 = vpop.f32.mrf.mxu0
        %v4712 = vadd.f32 %v4558, %v4711
        %4713 = vmatprep.mubr.bf16.mxu0 0
        %4714 = vmatmul.mubr.bf16.gmra.mxu0 %v784
        %v4715 = vpop.f32.mrf.mxu0
        %v4716 = vadd.f32 %v4554, %v4715
        %v4717 = vpop.f32.mrf.mxu0
        %v4718 = vadd.f32 %v4558, %v4717
        %v4719 = vpop.f32.mrf.mxu0
        %v4720 = vadd.f32 %v4554, %v4719
        %v4721 = vpop.f32.mrf.mxu0
        %v4722 = vadd.f32 %v4558, %v4721
        %4723 = vmatprep.mubr.bf16.mxu0 0
        %4724 = vmatmul.mubr.bf16.gmra.mxu0 %v785
        %v4725 = vpop.f32.mrf.mxu0
        %v4726 = vadd.f32 %v4554, %v4725
        %v4727 = vpop.f32.mrf.mxu0
        %v4728 = vadd.f32 %v4558, %v4727
        %v4729 = vpop.f32.mrf.mxu0
        %v4730 = vadd.f32 %v4554, %v4729
        %v4731 = vpop.f32.mrf.mxu0
        %v4732 = vadd.f32 %v4558, %v4731
        %4733 = vmatprep.mubr.bf16.mxu0 0
        %4734 = vmatmul.mubr.bf16.gmra.mxu0 %v786
        %v4735 = vpop.f32.mrf.mxu0
        %v4736 = vadd.f32 %v4554, %v4735
        %v4737 = vpop.f32.mrf.mxu0
        %v4738 = vadd.f32 %v4558, %v4737
        %v4739 = vpop.f32.mrf.mxu0
        %v4740 = vadd.f32 %v4554, %v4739
        %v4741 = vpop.f32.mrf.mxu0
        %v4742 = vadd.f32 %v4558, %v4741
        %4743 = vmatprep.mubr.bf16.mxu0 0
        %4744 = vmatmul.mubr.bf16.gmra.mxu0 %v787
        %v4745 = vpop.f32.mrf.mxu0
        %v4746 = vadd.f32 %v4554, %v4745
        %v4747 = vpop.f32.mrf.mxu0
        %v4748 = vadd.f32 %v4558, %v4747
        %v4749 = vpop.f32.mrf.mxu0
        %v4750 = vadd.f32 %v4554, %v4749
        %v4751 = vpop.f32.mrf.mxu0
        %v4752 = vadd.f32 %v4558, %v4751
        %4753 = vdwg.mxu0
        %4754 = vset.pattern.permute.xlu0 6
        %4755 = vperm.xlu0 %4754, %v788
        %v4756 = vpop.permute.xlu0 %4755
        %4757 = vset.pattern.permute.xlu0 6
        %4758 = vperm.xlu0 %4757, %v789
        %v4759 = vpop.permute.xlu0 %4758
        %4760 = vset.pattern.permute.xlu0 6
        %4761 = vperm.xlu0 %4760, %v790
        %v4762 = vpop.permute.xlu0 %4761
        %4763 = vset.pattern.permute.xlu0 6
        %4764 = vperm.xlu0 %4763, %v791
        %v4765 = vpop.permute.xlu0 %4764
        %4766 = vset.pattern.permute.xlu0 6
        %4767 = vperm.xlu0 %4766, %v792
        %v4768 = vpop.permute.xlu0 %4767
        %4769 = vset.pattern.permute.xlu0 6
        %4770 = vperm.xlu0 %4769, %v793
        %v4771 = vpop.permute.xlu0 %4770
        %4772 = vset.pattern.permute.xlu0 6
        %4773 = vperm.xlu0 %4772, %v794
        %v4774 = vpop.permute.xlu0 %4773
        %4775 = vset.pattern.permute.xlu0 6
        %4776 = vperm.xlu0 %4775, %v795
        %v4777 = vpop.permute.xlu0 %4776
        %4778 = vset.pattern.permute.xlu0 6
        %4779 = vperm.xlu0 %4778, %v796
        %v4780 = vpop.permute.xlu0 %4779
        %4781 = vset.pattern.permute.xlu0 6
        %4782 = vperm.xlu0 %4781, %v797
        %v4783 = vpop.permute.xlu0 %4782
        %4784 = vset.pattern.permute.xlu0 6
        %4785 = vperm.xlu0 %4784, %v798
        %v4786 = vpop.permute.xlu0 %4785
        %4787 = vset.pattern.permute.xlu0 6
        %4788 = vperm.xlu0 %4787, %v799
        %v4789 = vpop.permute.xlu0 %4788
        %4790 = vset.pattern.permute.xlu0 6
        %4791 = vperm.xlu0 %4790, %v800
        %v4792 = vpop.permute.xlu0 %4791
        %4793 = vset.pattern.permute.xlu0 6
        %4794 = vperm.xlu0 %4793, %v801
        %v4795 = vpop.permute.xlu0 %4794
        %4796 = vset.pattern.permute.xlu0 6
        %4797 = vperm.xlu0 %4796, %v802
        %v4798 = vpop.permute.xlu0 %4797
        %4799 = vset.pattern.permute.xlu0 6
        %4800 = vperm.xlu0 %4799, %v803
        %v4801 = vpop.permute.xlu0 %4800
        %vm4802 = vcmp.eq.s32.totalorder %v805, %v4756
        %vm4803 = vcmp.eq.s32.totalorder %v806, %v4756
        %vm4804 = vcmp.eq.s32.totalorder %v805, %v4759
        %vm4805 = vcmp.eq.s32.totalorder %v806, %v4759
        %vm4806 = vcmp.eq.s32.totalorder %v805, %v4762
        %vm4807 = vcmp.eq.s32.totalorder %v806, %v4762
        %vm4808 = vcmp.eq.s32.totalorder %v805, %v4765
        %vm4809 = vcmp.eq.s32.totalorder %v806, %v4765
        %vm4810 = vcmp.eq.s32.totalorder %v805, %v4768
        %vm4811 = vcmp.eq.s32.totalorder %v806, %v4768
        %vm4812 = vcmp.eq.s32.totalorder %v805, %v4771
        %vm4813 = vcmp.eq.s32.totalorder %v806, %v4771
        %vm4814 = vcmp.eq.s32.totalorder %v805, %v4774
        %vm4815 = vcmp.eq.s32.totalorder %v806, %v4774
        %vm4816 = vcmp.eq.s32.totalorder %v805, %v4777
        %vm4817 = vcmp.eq.s32.totalorder %v806, %v4777
        %vm4818 = vcmp.eq.s32.totalorder %v805, %v4780
        %vm4819 = vcmp.eq.s32.totalorder %v806, %v4780
        %vm4820 = vcmp.eq.s32.totalorder %v805, %v4783
        %vm4821 = vcmp.eq.s32.totalorder %v806, %v4783
        %vm4822 = vcmp.eq.s32.totalorder %v805, %v4786
        %vm4823 = vcmp.eq.s32.totalorder %v806, %v4786
        %vm4824 = vcmp.eq.s32.totalorder %v805, %v4789
        %vm4825 = vcmp.eq.s32.totalorder %v806, %v4789
        %vm4826 = vcmp.eq.s32.totalorder %v805, %v4792
        %vm4827 = vcmp.eq.s32.totalorder %v806, %v4792
        %vm4828 = vcmp.eq.s32.totalorder %v805, %v4795
        %vm4829 = vcmp.eq.s32.totalorder %v806, %v4795
        %vm4830 = vcmp.eq.s32.totalorder %v805, %v4798
        %vm4831 = vcmp.eq.s32.totalorder %v806, %v4798
        %vm4832 = vcmp.eq.s32.totalorder %v805, %v4801
        %vm4833 = vcmp.eq.s32.totalorder %v806, %v4801
        %v4834 = vsel %vm4802, %v4676, 0.0
        %v4835 = vsel %vm4803, %v4678, 0.0
        %v4836 = vsel %vm4804, %v4680, 0.0
        %v4837 = vsel %vm4805, %v4682, 0.0
        %v4838 = vsel %vm4806, %v4686, 0.0
        %v4839 = vsel %vm4807, %v4688, 0.0
        %v4840 = vsel %vm4808, %v4690, 0.0
        %v4841 = vsel %vm4809, %v4692, 0.0
        %v4842 = vsel %vm4810, %v4696, 0.0
        %v4843 = vsel %vm4811, %v4698, 0.0
        %v4844 = vsel %vm4812, %v4700, 0.0
        %v4845 = vsel %vm4813, %v4702, 0.0
        %v4846 = vsel %vm4814, %v4706, 0.0
        %v4847 = vsel %vm4815, %v4708, 0.0
        %v4848 = vsel %vm4816, %v4710, 0.0
        %v4849 = vsel %vm4817, %v4712, 0.0
        %v4850 = vsel %vm4818, %v4716, 0.0
        %v4851 = vsel %vm4819, %v4718, 0.0
        %v4852 = vsel %vm4820, %v4720, 0.0
        %v4853 = vsel %vm4821, %v4722, 0.0
        %v4854 = vsel %vm4822, %v4726, 0.0
        %v4855 = vsel %vm4823, %v4728, 0.0
        %v4856 = vsel %vm4824, %v4730, 0.0
        %v4857 = vsel %vm4825, %v4732, 0.0
        %v4858 = vsel %vm4826, %v4736, 0.0
        %v4859 = vsel %vm4827, %v4738, 0.0
        %v4860 = vsel %vm4828, %v4740, 0.0
        %v4861 = vsel %vm4829, %v4742, 0.0
        %v4862 = vsel %vm4830, %v4746, 0.0
        %v4863 = vsel %vm4831, %v4748, 0.0
        %v4864 = vsel %vm4832, %v4750, 0.0
        %v4865 = vsel %vm4833, %v4752, 0.0
        %v4866 = vadd.f32 %v4834, %v4835
        %4867 = vadd.xlane.f32.xlu0 %v4866
        %v4868 = vpop.xlane.xlu0 %4867
        %v4869 = vadd.f32 %v4836, %v4837
        %4870 = vadd.xlane.f32.xlu0 %v4869
        %v4871 = vpop.xlane.xlu0 %4870
        %v4872 = vadd.f32 %v4838, %v4839
        %4873 = vadd.xlane.f32.xlu0 %v4872
        %v4874 = vpop.xlane.xlu0 %4873
        %v4875 = vadd.f32 %v4840, %v4841
        %4876 = vadd.xlane.f32.xlu0 %v4875
        %v4877 = vpop.xlane.xlu0 %4876
        %v4878 = vadd.f32 %v4842, %v4843
        %4879 = vadd.xlane.f32.xlu0 %v4878
        %v4880 = vpop.xlane.xlu0 %4879
        %v4881 = vadd.f32 %v4844, %v4845
        %4882 = vadd.xlane.f32.xlu0 %v4881
        %v4883 = vpop.xlane.xlu0 %4882
        %v4884 = vadd.f32 %v4846, %v4847
        %4885 = vadd.xlane.f32.xlu0 %v4884
        %v4886 = vpop.xlane.xlu0 %4885
        %v4887 = vadd.f32 %v4848, %v4849
        %4888 = vadd.xlane.f32.xlu0 %v4887
        %v4889 = vpop.xlane.xlu0 %4888
        %v4890 = vadd.f32 %v4850, %v4851
        %4891 = vadd.xlane.f32.xlu0 %v4890
        %v4892 = vpop.xlane.xlu0 %4891
        %v4893 = vadd.f32 %v4852, %v4853
        %4894 = vadd.xlane.f32.xlu0 %v4893
        %v4895 = vpop.xlane.xlu0 %4894
        %v4896 = vadd.f32 %v4854, %v4855
        %4897 = vadd.xlane.f32.xlu0 %v4896
        %v4898 = vpop.xlane.xlu0 %4897
        %v4899 = vadd.f32 %v4856, %v4857
        %4900 = vadd.xlane.f32.xlu0 %v4899
        %v4901 = vpop.xlane.xlu0 %4900
        %v4902 = vadd.f32 %v4858, %v4859
        %4903 = vadd.xlane.f32.xlu0 %v4902
        %v4904 = vpop.xlane.xlu0 %4903
        %v4905 = vadd.f32 %v4860, %v4861
        %4906 = vadd.xlane.f32.xlu0 %v4905
        %v4907 = vpop.xlane.xlu0 %4906
        %v4908 = vadd.f32 %v4862, %v4863
        %4909 = vadd.xlane.f32.xlu0 %v4908
        %v4910 = vpop.xlane.xlu0 %4909
        %v4911 = vadd.f32 %v4864, %v4865
        %4912 = vadd.xlane.f32.xlu0 %v4911
        %v4913 = vpop.xlane.xlu0 %4912
        %v4914 = vsub.f32 %v4676, %v4868
        %v4915 = vsub.f32 %v4678, %v4868
        %v4916 = vsub.f32 %v4680, %v4871
        %v4917 = vsub.f32 %v4682, %v4871
        %v4918 = vsub.f32 %v4686, %v4874
        %v4919 = vsub.f32 %v4688, %v4874
        %v4920 = vsub.f32 %v4690, %v4877
        %v4921 = vsub.f32 %v4692, %v4877
        %v4922 = vsub.f32 %v4696, %v4880
        %v4923 = vsub.f32 %v4698, %v4880
        %v4924 = vsub.f32 %v4700, %v4883
        %v4925 = vsub.f32 %v4702, %v4883
        %v4926 = vsub.f32 %v4706, %v4886
        %v4927 = vsub.f32 %v4708, %v4886
        %v4928 = vsub.f32 %v4710, %v4889
        %v4929 = vsub.f32 %v4712, %v4889
        %v4930 = vsub.f32 %v4716, %v4892
        %v4931 = vsub.f32 %v4718, %v4892
        %v4932 = vsub.f32 %v4720, %v4895
        %v4933 = vsub.f32 %v4722, %v4895
        %v4934 = vsub.f32 %v4726, %v4898
        %v4935 = vsub.f32 %v4728, %v4898
        %v4936 = vsub.f32 %v4730, %v4901
        %v4937 = vsub.f32 %v4732, %v4901
        %v4938 = vsub.f32 %v4736, %v4904
        %v4939 = vsub.f32 %v4738, %v4904
        %v4940 = vsub.f32 %v4740, %v4907
        %v4941 = vsub.f32 %v4742, %v4907
        %v4942 = vsub.f32 %v4746, %v4910
        %v4943 = vsub.f32 %v4748, %v4910
        %v4944 = vsub.f32 %v4750, %v4913
        %v4945 = vsub.f32 %v4752, %v4913
        %v4946 = vmul.f32 %v4914, 1.442695
        %v4947 = vpow.pop %v4946
        %v4948 = vmul.f32 %v4915, 1.442695
        %v4949 = vpow.pop %v4948
        %v4950 = vmul.f32 %v4916, 1.442695
        %v4951 = vpow.pop %v4950
        %v4952 = vmul.f32 %v4917, 1.442695
        %v4953 = vpow.pop %v4952
        %v4954 = vmul.f32 %v4918, 1.442695
        %v4955 = vpow.pop %v4954
        %v4956 = vmul.f32 %v4919, 1.442695
        %v4957 = vpow.pop %v4956
        %v4958 = vmul.f32 %v4920, 1.442695
        %v4959 = vpow.pop %v4958
        %v4960 = vmul.f32 %v4921, 1.442695
        %v4961 = vpow.pop %v4960
        %v4962 = vmul.f32 %v4922, 1.442695
        %v4963 = vpow.pop %v4962
        %v4964 = vmul.f32 %v4923, 1.442695
        %v4965 = vpow.pop %v4964
        %v4966 = vmul.f32 %v4924, 1.442695
        %v4967 = vpow.pop %v4966
        %v4968 = vmul.f32 %v4925, 1.442695
        %v4969 = vpow.pop %v4968
        %v4970 = vmul.f32 %v4926, 1.442695
        %v4971 = vpow.pop %v4970
        %v4972 = vmul.f32 %v4927, 1.442695
        %v4973 = vpow.pop %v4972
        %v4974 = vmul.f32 %v4928, 1.442695
        %v4975 = vpow.pop %v4974
        %v4976 = vmul.f32 %v4929, 1.442695
        %v4977 = vpow.pop %v4976
        %v4978 = vmul.f32 %v4930, 1.442695
        %v4979 = vpow.pop %v4978
        %v4980 = vmul.f32 %v4931, 1.442695
        %v4981 = vpow.pop %v4980
        %v4982 = vmul.f32 %v4932, 1.442695
        %v4983 = vpow.pop %v4982
        %v4984 = vmul.f32 %v4933, 1.442695
        %v4985 = vpow.pop %v4984
        %v4986 = vmul.f32 %v4934, 1.442695
        %v4987 = vpow.pop %v4986
        %v4988 = vmul.f32 %v4935, 1.442695
        %v4989 = vpow.pop %v4988
        %v4990 = vmul.f32 %v4936, 1.442695
        %v4991 = vpow.pop %v4990
        %v4992 = vmul.f32 %v4937, 1.442695
        %v4993 = vpow.pop %v4992
        %v4994 = vmul.f32 %v4938, 1.442695
        %v4995 = vpow.pop %v4994
        %v4996 = vmul.f32 %v4939, 1.442695
        %v4997 = vpow.pop %v4996
        %v4998 = vmul.f32 %v4940, 1.442695
        %v4999 = vpow.pop %v4998
        %v5000 = vmul.f32 %v4941, 1.442695
        %v5001 = vpow.pop %v5000
        %v5002 = vmul.f32 %v4942, 1.442695
        %v5003 = vpow.pop %v5002
        %v5004 = vmul.f32 %v4943, 1.442695
        %v5005 = vpow.pop %v5004
        %v5006 = vmul.f32 %v4944, 1.442695
        %v5007 = vpow.pop %v5006
        %v5008 = vmul.f32 %v4945, 1.442695
        %v5009 = vpow.pop %v5008
        %v5010 = vadd.f32 %v4947, %v4949
        %5011 = vadd.xlane.f32.xlu0 %v5010
        %v5012 = vpop.xlane.xlu0 %5011
        %v5013 = vadd.f32 %v4951, %v4953
        %5014 = vadd.xlane.f32.xlu0 %v5013
        %v5015 = vpop.xlane.xlu0 %5014
        %v5016 = vadd.f32 %v4955, %v4957
        %5017 = vadd.xlane.f32.xlu0 %v5016
        %v5018 = vpop.xlane.xlu0 %5017
        %v5019 = vadd.f32 %v4959, %v4961
        %5020 = vadd.xlane.f32.xlu0 %v5019
        %v5021 = vpop.xlane.xlu0 %5020
        %v5022 = vadd.f32 %v4963, %v4965
        %5023 = vadd.xlane.f32.xlu0 %v5022
        %v5024 = vpop.xlane.xlu0 %5023
        %v5025 = vadd.f32 %v4967, %v4969
        %5026 = vadd.xlane.f32.xlu0 %v5025
        %v5027 = vpop.xlane.xlu0 %5026
        %v5028 = vadd.f32 %v4971, %v4973
        %5029 = vadd.xlane.f32.xlu0 %v5028
        %v5030 = vpop.xlane.xlu0 %5029
        %v5031 = vadd.f32 %v4975, %v4977
        %5032 = vadd.xlane.f32.xlu0 %v5031
        %v5033 = vpop.xlane.xlu0 %5032
        %v5034 = vadd.f32 %v4979, %v4981
        %5035 = vadd.xlane.f32.xlu0 %v5034
        %v5036 = vpop.xlane.xlu0 %5035
        %v5037 = vadd.f32 %v4983, %v4985
        %5038 = vadd.xlane.f32.xlu0 %v5037
        %v5039 = vpop.xlane.xlu0 %5038
        %v5040 = vadd.f32 %v4987, %v4989
        %5041 = vadd.xlane.f32.xlu0 %v5040
        %v5042 = vpop.xlane.xlu0 %5041
        %v5043 = vadd.f32 %v4991, %v4993
        %5044 = vadd.xlane.f32.xlu0 %v5043
        %v5045 = vpop.xlane.xlu0 %5044
        %v5046 = vadd.f32 %v4995, %v4997
        %5047 = vadd.xlane.f32.xlu0 %v5046
        %v5048 = vpop.xlane.xlu0 %5047
        %v5049 = vadd.f32 %v4999, %v5001
        %5050 = vadd.xlane.f32.xlu0 %v5049
        %v5051 = vpop.xlane.xlu0 %5050
        %v5052 = vadd.f32 %v5003, %v5005
        %5053 = vadd.xlane.f32.xlu0 %v5052
        %v5054 = vpop.xlane.xlu0 %5053
        %v5055 = vadd.f32 %v5007, %v5009
        %5056 = vadd.xlane.f32.xlu0 %v5055
        %v5057 = vpop.xlane.xlu0 %5056
        %v5058 = vlog2.pop %v5012
        %v5059 = vmul.f32 %v5058, 0.6931472
        %v5060 = vlog2.pop %v5015
        %v5061 = vmul.f32 %v5060, 0.6931472
        %v5062 = vlog2.pop %v5018
        %v5063 = vmul.f32 %v5062, 0.6931472
        %v5064 = vlog2.pop %v5021
        %v5065 = vmul.f32 %v5064, 0.6931472
        %v5066 = vlog2.pop %v5024
        %v5067 = vmul.f32 %v5066, 0.6931472
        %v5068 = vlog2.pop %v5027
        %v5069 = vmul.f32 %v5068, 0.6931472
        %v5070 = vlog2.pop %v5030
        %v5071 = vmul.f32 %v5070, 0.6931472
        %v5072 = vlog2.pop %v5033
        %v5073 = vmul.f32 %v5072, 0.6931472
        %v5074 = vlog2.pop %v5036
        %v5075 = vmul.f32 %v5074, 0.6931472
        %v5076 = vlog2.pop %v5039
        %v5077 = vmul.f32 %v5076, 0.6931472
        %v5078 = vlog2.pop %v5042
        %v5079 = vmul.f32 %v5078, 0.6931472
        %v5080 = vlog2.pop %v5045
        %v5081 = vmul.f32 %v5080, 0.6931472
        %v5082 = vlog2.pop %v5048
        %v5083 = vmul.f32 %v5082, 0.6931472
        %v5084 = vlog2.pop %v5051
        %v5085 = vmul.f32 %v5084, 0.6931472
        %v5086 = vlog2.pop %v5054
        %v5087 = vmul.f32 %v5086, 0.6931472
        %v5088 = vlog2.pop %v5057
        %v5089 = vmul.f32 %v5088, 0.6931472
        %v5090 = vsub.f32 0.0, %v5059
        %v5091 = vsub.f32 0.0, %v5061
        %v5092 = vsub.f32 0.0, %v5063
        %v5093 = vsub.f32 0.0, %v5065
        %v5094 = vsub.f32 0.0, %v5067
        %v5095 = vsub.f32 0.0, %v5069
        %v5096 = vsub.f32 0.0, %v5071
        %v5097 = vsub.f32 0.0, %v5073
        %v5098 = vsub.f32 0.0, %v5075
        %v5099 = vsub.f32 0.0, %v5077
        %v5100 = vsub.f32 0.0, %v5079
        %v5101 = vsub.f32 0.0, %v5081
        %v5102 = vsub.f32 0.0, %v5083
        %v5103 = vsub.f32 0.0, %v5085
        %v5104 = vsub.f32 0.0, %v5087
        %v5105 = vsub.f32 0.0, %v5089
        %v5106 = vmax.f32 %v5090, -11.512925
        %v5107 = vmax.f32 %v5091, -11.512925
        %v5108 = vmax.f32 %v5092, -11.512925
        %v5109 = vmax.f32 %v5093, -11.512925
        %v5110 = vmax.f32 %v5094, -11.512925
        %v5111 = vmax.f32 %v5095, -11.512925
        %v5112 = vmax.f32 %v5096, -11.512925
        %v5113 = vmax.f32 %v5097, -11.512925
        %v5114 = vmax.f32 %v5098, -11.512925
        %v5115 = vmax.f32 %v5099, -11.512925
        %v5116 = vmax.f32 %v5100, -11.512925
        %v5117 = vmax.f32 %v5101, -11.512925
        %v5118 = vmax.f32 %v5102, -11.512925
        %v5119 = vmax.f32 %v5103, -11.512925
        %v5120 = vmax.f32 %v5104, -11.512925
        %v5121 = vmax.f32 %v5105, -11.512925
        %v5122 = vmin.f32 %v5106, -1.000005e-05
        %v5123 = vmin.f32 %v5107, -1.000005e-05
        %v5124 = vmin.f32 %v5108, -1.000005e-05
        %v5125 = vmin.f32 %v5109, -1.000005e-05
        %v5126 = vmin.f32 %v5110, -1.000005e-05
        %v5127 = vmin.f32 %v5111, -1.000005e-05
        %v5128 = vmin.f32 %v5112, -1.000005e-05
        %v5129 = vmin.f32 %v5113, -1.000005e-05
        %v5130 = vmin.f32 %v5114, -1.000005e-05
        %v5131 = vmin.f32 %v5115, -1.000005e-05
        %v5132 = vmin.f32 %v5116, -1.000005e-05
        %v5133 = vmin.f32 %v5117, -1.000005e-05
        %v5134 = vmin.f32 %v5118, -1.000005e-05
        %v5135 = vmin.f32 %v5119, -1.000005e-05
        %v5136 = vmin.f32 %v5120, -1.000005e-05
        %v5137 = vmin.f32 %v5121, -1.000005e-05
        %v5138 = vadd.f32 %v3896, %v5122
        %v5139 = vadd.f32 %v3897, %v5123
        %v5140 = vadd.f32 %v3898, %v5124
        %v5141 = vadd.f32 %v3899, %v5125
        %v5142 = vadd.f32 %v3900, %v5126
        %v5143 = vadd.f32 %v3901, %v5127
        %v5144 = vadd.f32 %v3902, %v5128
        %v5145 = vadd.f32 %v3903, %v5129
        %v5146 = vadd.f32 %v3904, %v5130
        %v5147 = vadd.f32 %v3905, %v5131
        %v5148 = vadd.f32 %v3906, %v5132
        %v5149 = vadd.f32 %v3907, %v5133
        %v5150 = vadd.f32 %v3908, %v5134
        %v5151 = vadd.f32 %v3909, %v5135
        %v5152 = vadd.f32 %v3910, %v5136
        %v5153 = vadd.f32 %v3911, %v5137
        %v5154 = vld [vmem:[#allocation2 + $0x38] sm:$0xff]
        %v5155 = vld [vmem:[#allocation2 + $0xb8] sm:$0xff]
        %v5156 = vld [vmem:[#allocation2 + $0x138] sm:$0xff]
        %v5157 = vld [vmem:[#allocation2 + $0x1b8] sm:$0xff]
        %v5158 = vld [vmem:[#allocation2 + $0x238] sm:$0xff]
        %v5159 = vld [vmem:[#allocation2 + $0x2b8] sm:$0xff]
        %v5160 = vld [vmem:[#allocation2 + $0x338] sm:$0xff]
        %v5161 = vld [vmem:[#allocation2 + $0x3b8] sm:$0xff]
        %v5162 = vld [vmem:[#allocation2 + $0x438] sm:$0xff]
        %v5163 = vld [vmem:[#allocation2 + $0x4b8] sm:$0xff]
        %v5164 = vld [vmem:[#allocation2 + $0x538] sm:$0xff]
        %v5165 = vld [vmem:[#allocation2 + $0x5b8] sm:$0xff]
        %v5166 = vld [vmem:[#allocation2 + $0x638] sm:$0xff]
        %v5167 = vld [vmem:[#allocation2 + $0x6b8] sm:$0xff]
        %v5168 = vld [vmem:[#allocation2 + $0x738] sm:$0xff]
        %v5169 = vld [vmem:[#allocation2 + $0x7b8] sm:$0xff]
        %v5170 = vld [vmem:[%s7 + $0xe] sm:$0x3]
        %v5172 = vlaneseq
        %v5173 = vshrl.u32 %v5172, 7
        %v5174 = vsub.s32 0, %v5173
        %v5175 = vrot.slane %v5170, %v5174
        %v5176 = vlaneseq
        %v5177 = vshrl.u32 %v5176, 7
        %v5178 = vsub.s32 1, %v5177
        %v5179 = vrot.slane %v5170, %v5178
        %v5198 = vunpack.c.l.b16 %v5154
        %v5199 = vunpack.c.h.b16 %v5154
        %v5200 = vunpack.c.l.b16 %v5155
        %v5201 = vunpack.c.h.b16 %v5155
        %v5202 = vunpack.c.l.b16 %v5156
        %v5203 = vunpack.c.h.b16 %v5156
        %v5204 = vunpack.c.l.b16 %v5157
        %v5205 = vunpack.c.h.b16 %v5157
        %v5206 = vunpack.c.l.b16 %v5158
        %v5207 = vunpack.c.h.b16 %v5158
        %v5208 = vunpack.c.l.b16 %v5159
        %v5209 = vunpack.c.h.b16 %v5159
        %v5210 = vunpack.c.l.b16 %v5160
        %v5211 = vunpack.c.h.b16 %v5160
        %v5212 = vunpack.c.l.b16 %v5161
        %v5213 = vunpack.c.h.b16 %v5161
        %v5214 = vunpack.c.l.b16 %v5162
        %v5215 = vunpack.c.h.b16 %v5162
        %v5216 = vunpack.c.l.b16 %v5163
        %v5217 = vunpack.c.h.b16 %v5163
        %v5218 = vunpack.c.l.b16 %v5164
        %v5219 = vunpack.c.h.b16 %v5164
        %v5220 = vunpack.c.l.b16 %v5165
        %v5221 = vunpack.c.h.b16 %v5165
        %v5222 = vunpack.c.l.b16 %v5166
        %v5223 = vunpack.c.h.b16 %v5166
        %v5224 = vunpack.c.l.b16 %v5167
        %v5225 = vunpack.c.h.b16 %v5167
        %v5226 = vunpack.c.l.b16 %v5168
        %v5227 = vunpack.c.h.b16 %v5168
        %v5228 = vunpack.c.l.b16 %v5169
        %v5229 = vunpack.c.h.b16 %v5169
        %v5230 = vpack.c.b16 %v5200, %v5198
        %v5231 = vpack.c.b16 %v5201, %v5199
        %v5232 = vpack.c.b16 %v5204, %v5202
        %v5233 = vpack.c.b16 %v5205, %v5203
        %v5234 = vpack.c.b16 %v5208, %v5206
        %v5235 = vpack.c.b16 %v5209, %v5207
        %v5236 = vpack.c.b16 %v5212, %v5210
        %v5237 = vpack.c.b16 %v5213, %v5211
        %v5238 = vpack.c.b16 %v5216, %v5214
        %v5239 = vpack.c.b16 %v5217, %v5215
        %v5240 = vpack.c.b16 %v5220, %v5218
        %v5241 = vpack.c.b16 %v5221, %v5219
        %v5242 = vpack.c.b16 %v5224, %v5222
        %v5243 = vpack.c.b16 %v5225, %v5223
        %v5244 = vpack.c.b16 %v5228, %v5226
        %v5245 = vpack.c.b16 %v5229, %v5227
        %5262 = vmatprep.subr.bf16.mxu0 %v5245
        %5263 = vmatpush1.bf16.msra.mxu0 %v5244
        %5264 = vmatprep.subr.bf16.mxu0 %v5243
        %5265 = vmatpush1.bf16.msra.mxu0 %v5242
        %5266 = vmatprep.subr.bf16.mxu0 %v5241
        %5267 = vmatpush1.bf16.msra.mxu0 %v5240
        %5268 = vmatprep.subr.bf16.mxu0 %v5239
        %5269 = vmatpush1.bf16.msra.mxu0 %v5238
        %5270 = vmatprep.subr.bf16.mxu0 %v5237
        %5271 = vmatpush1.bf16.msra.mxu0 %v5236
        %5272 = vmatprep.subr.bf16.mxu0 %v5235
        %5273 = vmatpush1.bf16.msra.mxu0 %v5234
        %5274 = vmatprep.subr.bf16.mxu0 %v5233
        %5275 = vmatpush1.bf16.msra.mxu0 %v5232
        %5276 = vmatprep.subr.bf16.mxu0 %v5231
        %5277 = vmatpush1.bf16.msra.mxu0 %v5230
        %5278 = vmatprep.subr.bf16.mxu0 0
        %5279 = vmatpush2.bf16.msra.mxu0 0
        %5280 = vmatprep.subr.bf16.mxu0 0
        %5281 = vmatpush2.bf16.msra.mxu0 0
        %5282 = vmatprep.subr.bf16.mxu0 0
        %5283 = vmatpush2.bf16.msra.mxu0 0
        %5284 = vmatprep.subr.bf16.mxu0 0
        %5285 = vmatpush2.bf16.msra.mxu0 0
        %5286 = vmatprep.subr.bf16.mxu0 0
        %5287 = vmatpush2.bf16.msra.mxu0 0
        %5288 = vmatprep.subr.bf16.mxu0 0
        %5289 = vmatpush2.bf16.msra.mxu0 0
        %5290 = vmatprep.subr.bf16.mxu0 0
        %5291 = vmatpush2.bf16.msra.mxu0 0
        %5292 = vmatprep.subr.bf16.mxu0 0
        %5293 = vmatpush2.bf16.msra.mxu0 0
        %5294 = vmatprep.mubr.bf16.mxu0 0
        %5295 = vmatmul.mubr.bf16.gmra.mxu0 %v780
        %v5296 = vpop.f32.mrf.mxu0
        %v5297 = vadd.f32 %v5175, %v5296
        %v5298 = vpop.f32.mrf.mxu0
        %v5299 = vadd.f32 %v5179, %v5298
        %v5300 = vpop.f32.mrf.mxu0
        %v5301 = vadd.f32 %v5175, %v5300
        %v5302 = vpop.f32.mrf.mxu0
        %v5303 = vadd.f32 %v5179, %v5302
        %5304 = vmatprep.mubr.bf16.mxu0 0
        %5305 = vmatmul.mubr.bf16.gmra.mxu0 %v781
        %v5306 = vpop.f32.mrf.mxu0
        %v5307 = vadd.f32 %v5175, %v5306
        %v5308 = vpop.f32.mrf.mxu0
        %v5309 = vadd.f32 %v5179, %v5308
        %v5310 = vpop.f32.mrf.mxu0
        %v5311 = vadd.f32 %v5175, %v5310
        %v5312 = vpop.f32.mrf.mxu0
        %v5313 = vadd.f32 %v5179, %v5312
        %5314 = vmatprep.mubr.bf16.mxu0 0
        %5315 = vmatmul.mubr.bf16.gmra.mxu0 %v782
        %v5316 = vpop.f32.mrf.mxu0
        %v5317 = vadd.f32 %v5175, %v5316
        %v5318 = vpop.f32.mrf.mxu0
        %v5319 = vadd.f32 %v5179, %v5318
        %v5320 = vpop.f32.mrf.mxu0
        %v5321 = vadd.f32 %v5175, %v5320
        %v5322 = vpop.f32.mrf.mxu0
        %v5323 = vadd.f32 %v5179, %v5322
        %5324 = vmatprep.mubr.bf16.mxu0 0
        %5325 = vmatmul.mubr.bf16.gmra.mxu0 %v783
        %v5326 = vpop.f32.mrf.mxu0
        %v5327 = vadd.f32 %v5175, %v5326
        %v5328 = vpop.f32.mrf.mxu0
        %v5329 = vadd.f32 %v5179, %v5328
        %v5330 = vpop.f32.mrf.mxu0
        %v5331 = vadd.f32 %v5175, %v5330
        %v5332 = vpop.f32.mrf.mxu0
        %v5333 = vadd.f32 %v5179, %v5332
        %5334 = vmatprep.mubr.bf16.mxu0 0
        %5335 = vmatmul.mubr.bf16.gmra.mxu0 %v784
        %v5336 = vpop.f32.mrf.mxu0
        %v5337 = vadd.f32 %v5175, %v5336
        %v5338 = vpop.f32.mrf.mxu0
        %v5339 = vadd.f32 %v5179, %v5338
        %v5340 = vpop.f32.mrf.mxu0
        %v5341 = vadd.f32 %v5175, %v5340
        %v5342 = vpop.f32.mrf.mxu0
        %v5343 = vadd.f32 %v5179, %v5342
        %5344 = vmatprep.mubr.bf16.mxu0 0
        %5345 = vmatmul.mubr.bf16.gmra.mxu0 %v785
        %v5346 = vpop.f32.mrf.mxu0
        %v5347 = vadd.f32 %v5175, %v5346
        %v5348 = vpop.f32.mrf.mxu0
        %v5349 = vadd.f32 %v5179, %v5348
        %v5350 = vpop.f32.mrf.mxu0
        %v5351 = vadd.f32 %v5175, %v5350
        %v5352 = vpop.f32.mrf.mxu0
        %v5353 = vadd.f32 %v5179, %v5352
        %5354 = vmatprep.mubr.bf16.mxu0 0
        %5355 = vmatmul.mubr.bf16.gmra.mxu0 %v786
        %v5356 = vpop.f32.mrf.mxu0
        %v5357 = vadd.f32 %v5175, %v5356
        %v5358 = vpop.f32.mrf.mxu0
        %v5359 = vadd.f32 %v5179, %v5358
        %v5360 = vpop.f32.mrf.mxu0
        %v5361 = vadd.f32 %v5175, %v5360
        %v5362 = vpop.f32.mrf.mxu0
        %v5363 = vadd.f32 %v5179, %v5362
        %5364 = vmatprep.mubr.bf16.mxu0 0
        %5365 = vmatmul.mubr.bf16.gmra.mxu0 %v787
        %v5366 = vpop.f32.mrf.mxu0
        %v5367 = vadd.f32 %v5175, %v5366
        %v5368 = vpop.f32.mrf.mxu0
        %v5369 = vadd.f32 %v5179, %v5368
        %v5370 = vpop.f32.mrf.mxu0
        %v5371 = vadd.f32 %v5175, %v5370
        %v5372 = vpop.f32.mrf.mxu0
        %v5373 = vadd.f32 %v5179, %v5372
        %5374 = vdwg.mxu0
        %5375 = vset.pattern.permute.xlu0 7
        %5376 = vperm.xlu0 %5375, %v788
        %v5377 = vpop.permute.xlu0 %5376
        %5378 = vset.pattern.permute.xlu0 7
        %5379 = vperm.xlu0 %5378, %v789
        %v5380 = vpop.permute.xlu0 %5379
        %5381 = vset.pattern.permute.xlu0 7
        %5382 = vperm.xlu0 %5381, %v790
        %v5383 = vpop.permute.xlu0 %5382
        %5384 = vset.pattern.permute.xlu0 7
        %5385 = vperm.xlu0 %5384, %v791
        %v5386 = vpop.permute.xlu0 %5385
        %5387 = vset.pattern.permute.xlu0 7
        %5388 = vperm.xlu0 %5387, %v792
        %v5389 = vpop.permute.xlu0 %5388
        %5390 = vset.pattern.permute.xlu0 7
        %5391 = vperm.xlu0 %5390, %v793
        %v5392 = vpop.permute.xlu0 %5391
        %5393 = vset.pattern.permute.xlu0 7
        %5394 = vperm.xlu0 %5393, %v794
        %v5395 = vpop.permute.xlu0 %5394
        %5396 = vset.pattern.permute.xlu0 7
        %5397 = vperm.xlu0 %5396, %v795
        %v5398 = vpop.permute.xlu0 %5397
        %5399 = vset.pattern.permute.xlu0 7
        %5400 = vperm.xlu0 %5399, %v796
        %v5401 = vpop.permute.xlu0 %5400
        %5402 = vset.pattern.permute.xlu0 7
        %5403 = vperm.xlu0 %5402, %v797
        %v5404 = vpop.permute.xlu0 %5403
        %5405 = vset.pattern.permute.xlu0 7
        %5406 = vperm.xlu0 %5405, %v798
        %v5407 = vpop.permute.xlu0 %5406
        %5408 = vset.pattern.permute.xlu0 7
        %5409 = vperm.xlu0 %5408, %v799
        %v5410 = vpop.permute.xlu0 %5409
        %5411 = vset.pattern.permute.xlu0 7
        %5412 = vperm.xlu0 %5411, %v800
        %v5413 = vpop.permute.xlu0 %5412
        %5414 = vset.pattern.permute.xlu0 7
        %5415 = vperm.xlu0 %5414, %v801
        %v5416 = vpop.permute.xlu0 %5415
        %5417 = vset.pattern.permute.xlu0 7
        %5418 = vperm.xlu0 %5417, %v802
        %v5419 = vpop.permute.xlu0 %5418
        %5420 = vset.pattern.permute.xlu0 7
        %5421 = vperm.xlu0 %5420, %v803
        %v5422 = vpop.permute.xlu0 %5421
        %vm5423 = vcmp.eq.s32.totalorder %v805, %v5377
        %vm5424 = vcmp.eq.s32.totalorder %v806, %v5377
        %vm5425 = vcmp.eq.s32.totalorder %v805, %v5380
        %vm5426 = vcmp.eq.s32.totalorder %v806, %v5380
        %vm5427 = vcmp.eq.s32.totalorder %v805, %v5383
        %vm5428 = vcmp.eq.s32.totalorder %v806, %v5383
        %vm5429 = vcmp.eq.s32.totalorder %v805, %v5386
        %vm5430 = vcmp.eq.s32.totalorder %v806, %v5386
        %vm5431 = vcmp.eq.s32.totalorder %v805, %v5389
        %vm5432 = vcmp.eq.s32.totalorder %v806, %v5389
        %vm5433 = vcmp.eq.s32.totalorder %v805, %v5392
        %vm5434 = vcmp.eq.s32.totalorder %v806, %v5392
        %vm5435 = vcmp.eq.s32.totalorder %v805, %v5395
        %vm5436 = vcmp.eq.s32.totalorder %v806, %v5395
        %vm5437 = vcmp.eq.s32.totalorder %v805, %v5398
        %vm5438 = vcmp.eq.s32.totalorder %v806, %v5398
        %vm5439 = vcmp.eq.s32.totalorder %v805, %v5401
        %vm5440 = vcmp.eq.s32.totalorder %v806, %v5401
        %vm5441 = vcmp.eq.s32.totalorder %v805, %v5404
        %vm5442 = vcmp.eq.s32.totalorder %v806, %v5404
        %vm5443 = vcmp.eq.s32.totalorder %v805, %v5407
        %vm5444 = vcmp.eq.s32.totalorder %v806, %v5407
        %vm5445 = vcmp.eq.s32.totalorder %v805, %v5410
        %vm5446 = vcmp.eq.s32.totalorder %v806, %v5410
        %vm5447 = vcmp.eq.s32.totalorder %v805, %v5413
        %vm5448 = vcmp.eq.s32.totalorder %v806, %v5413
        %vm5449 = vcmp.eq.s32.totalorder %v805, %v5416
        %vm5450 = vcmp.eq.s32.totalorder %v806, %v5416
        %vm5451 = vcmp.eq.s32.totalorder %v805, %v5419
        %vm5452 = vcmp.eq.s32.totalorder %v806, %v5419
        %vm5453 = vcmp.eq.s32.totalorder %v805, %v5422
        %vm5454 = vcmp.eq.s32.totalorder %v806, %v5422
        %v5455 = vsel %vm5423, %v5297, 0.0
        %v5456 = vsel %vm5424, %v5299, 0.0
        %v5457 = vsel %vm5425, %v5301, 0.0
        %v5458 = vsel %vm5426, %v5303, 0.0
        %v5459 = vsel %vm5427, %v5307, 0.0
        %v5460 = vsel %vm5428, %v5309, 0.0
        %v5461 = vsel %vm5429, %v5311, 0.0
        %v5462 = vsel %vm5430, %v5313, 0.0
        %v5463 = vsel %vm5431, %v5317, 0.0
        %v5464 = vsel %vm5432, %v5319, 0.0
        %v5465 = vsel %vm5433, %v5321, 0.0
        %v5466 = vsel %vm5434, %v5323, 0.0
        %v5467 = vsel %vm5435, %v5327, 0.0
        %v5468 = vsel %vm5436, %v5329, 0.0
        %v5469 = vsel %vm5437, %v5331, 0.0
        %v5470 = vsel %vm5438, %v5333, 0.0
        %v5471 = vsel %vm5439, %v5337, 0.0
        %v5472 = vsel %vm5440, %v5339, 0.0
        %v5473 = vsel %vm5441, %v5341, 0.0
        %v5474 = vsel %vm5442, %v5343, 0.0
        %v5475 = vsel %vm5443, %v5347, 0.0
        %v5476 = vsel %vm5444, %v5349, 0.0
        %v5477 = vsel %vm5445, %v5351, 0.0
        %v5478 = vsel %vm5446, %v5353, 0.0
        %v5479 = vsel %vm5447, %v5357, 0.0
        %v5480 = vsel %vm5448, %v5359, 0.0
        %v5481 = vsel %vm5449, %v5361, 0.0
        %v5482 = vsel %vm5450, %v5363, 0.0
        %v5483 = vsel %vm5451, %v5367, 0.0
        %v5484 = vsel %vm5452, %v5369, 0.0
        %v5485 = vsel %vm5453, %v5371, 0.0
        %v5486 = vsel %vm5454, %v5373, 0.0
        %v5487 = vadd.f32 %v5455, %v5456
        %5488 = vadd.xlane.f32.xlu0 %v5487
        %v5489 = vpop.xlane.xlu0 %5488
        %v5490 = vadd.f32 %v5457, %v5458
        %5491 = vadd.xlane.f32.xlu0 %v5490
        %v5492 = vpop.xlane.xlu0 %5491
        %v5493 = vadd.f32 %v5459, %v5460
        %5494 = vadd.xlane.f32.xlu0 %v5493
        %v5495 = vpop.xlane.xlu0 %5494
        %v5496 = vadd.f32 %v5461, %v5462
        %5497 = vadd.xlane.f32.xlu0 %v5496
        %v5498 = vpop.xlane.xlu0 %5497
        %v5499 = vadd.f32 %v5463, %v5464
        %5500 = vadd.xlane.f32.xlu0 %v5499
        %v5501 = vpop.xlane.xlu0 %5500
        %v5502 = vadd.f32 %v5465, %v5466
        %5503 = vadd.xlane.f32.xlu0 %v5502
        %v5504 = vpop.xlane.xlu0 %5503
        %v5505 = vadd.f32 %v5467, %v5468
        %5506 = vadd.xlane.f32.xlu0 %v5505
        %v5507 = vpop.xlane.xlu0 %5506
        %v5508 = vadd.f32 %v5469, %v5470
        %5509 = vadd.xlane.f32.xlu0 %v5508
        %v5510 = vpop.xlane.xlu0 %5509
        %v5511 = vadd.f32 %v5471, %v5472
        %5512 = vadd.xlane.f32.xlu0 %v5511
        %v5513 = vpop.xlane.xlu0 %5512
        %v5514 = vadd.f32 %v5473, %v5474
        %5515 = vadd.xlane.f32.xlu0 %v5514
        %v5516 = vpop.xlane.xlu0 %5515
        %v5517 = vadd.f32 %v5475, %v5476
        %5518 = vadd.xlane.f32.xlu0 %v5517
        %v5519 = vpop.xlane.xlu0 %5518
        %v5520 = vadd.f32 %v5477, %v5478
        %5521 = vadd.xlane.f32.xlu0 %v5520
        %v5522 = vpop.xlane.xlu0 %5521
        %v5523 = vadd.f32 %v5479, %v5480
        %5524 = vadd.xlane.f32.xlu0 %v5523
        %v5525 = vpop.xlane.xlu0 %5524
        %v5526 = vadd.f32 %v5481, %v5482
        %5527 = vadd.xlane.f32.xlu0 %v5526
        %v5528 = vpop.xlane.xlu0 %5527
        %v5529 = vadd.f32 %v5483, %v5484
        %5530 = vadd.xlane.f32.xlu0 %v5529
        %v5531 = vpop.xlane.xlu0 %5530
        %v5532 = vadd.f32 %v5485, %v5486
        %5533 = vadd.xlane.f32.xlu0 %v5532
        %v5534 = vpop.xlane.xlu0 %5533
        %v5535 = vsub.f32 %v5297, %v5489
        %v5536 = vsub.f32 %v5299, %v5489
        %v5537 = vsub.f32 %v5301, %v5492
        %v5538 = vsub.f32 %v5303, %v5492
        %v5539 = vsub.f32 %v5307, %v5495
        %v5540 = vsub.f32 %v5309, %v5495
        %v5541 = vsub.f32 %v5311, %v5498
        %v5542 = vsub.f32 %v5313, %v5498
        %v5543 = vsub.f32 %v5317, %v5501
        %v5544 = vsub.f32 %v5319, %v5501
        %v5545 = vsub.f32 %v5321, %v5504
        %v5546 = vsub.f32 %v5323, %v5504
        %v5547 = vsub.f32 %v5327, %v5507
        %v5548 = vsub.f32 %v5329, %v5507
        %v5549 = vsub.f32 %v5331, %v5510
        %v5550 = vsub.f32 %v5333, %v5510
        %v5551 = vsub.f32 %v5337, %v5513
        %v5552 = vsub.f32 %v5339, %v5513
        %v5553 = vsub.f32 %v5341, %v5516
        %v5554 = vsub.f32 %v5343, %v5516
        %v5555 = vsub.f32 %v5347, %v5519
        %v5556 = vsub.f32 %v5349, %v5519
        %v5557 = vsub.f32 %v5351, %v5522
        %v5558 = vsub.f32 %v5353, %v5522
        %v5559 = vsub.f32 %v5357, %v5525
        %v5560 = vsub.f32 %v5359, %v5525
        %v5561 = vsub.f32 %v5361, %v5528
        %v5562 = vsub.f32 %v5363, %v5528
        %v5563 = vsub.f32 %v5367, %v5531
        %v5564 = vsub.f32 %v5369, %v5531
        %v5565 = vsub.f32 %v5371, %v5534
        %v5566 = vsub.f32 %v5373, %v5534
        %v5567 = vmul.f32 %v5535, 1.442695
        %v5568 = vpow.pop %v5567
        %v5569 = vmul.f32 %v5536, 1.442695
        %v5570 = vpow.pop %v5569
        %v5571 = vmul.f32 %v5537, 1.442695
        %v5572 = vpow.pop %v5571
        %v5573 = vmul.f32 %v5538, 1.442695
        %v5574 = vpow.pop %v5573
        %v5575 = vmul.f32 %v5539, 1.442695
        %v5576 = vpow.pop %v5575
        %v5577 = vmul.f32 %v5540, 1.442695
        %v5578 = vpow.pop %v5577
        %v5579 = vmul.f32 %v5541, 1.442695
        %v5580 = vpow.pop %v5579
        %v5581 = vmul.f32 %v5542, 1.442695
        %v5582 = vpow.pop %v5581
        %v5583 = vmul.f32 %v5543, 1.442695
        %v5584 = vpow.pop %v5583
        %v5585 = vmul.f32 %v5544, 1.442695
        %v5586 = vpow.pop %v5585
        %v5587 = vmul.f32 %v5545, 1.442695
        %v5588 = vpow.pop %v5587
        %v5589 = vmul.f32 %v5546, 1.442695
        %v5590 = vpow.pop %v5589
        %v5591 = vmul.f32 %v5547, 1.442695
        %v5592 = vpow.pop %v5591
        %v5593 = vmul.f32 %v5548, 1.442695
        %v5594 = vpow.pop %v5593
        %v5595 = vmul.f32 %v5549, 1.442695
        %v5596 = vpow.pop %v5595
        %v5597 = vmul.f32 %v5550, 1.442695
        %v5598 = vpow.pop %v5597
        %v5599 = vmul.f32 %v5551, 1.442695
        %v5600 = vpow.pop %v5599
        %v5601 = vmul.f32 %v5552, 1.442695
        %v5602 = vpow.pop %v5601
        %v5603 = vmul.f32 %v5553, 1.442695
        %v5604 = vpow.pop %v5603
        %v5605 = vmul.f32 %v5554, 1.442695
        %v5606 = vpow.pop %v5605
        %v5607 = vmul.f32 %v5555, 1.442695
        %v5608 = vpow.pop %v5607
        %v5609 = vmul.f32 %v5556, 1.442695
        %v5610 = vpow.pop %v5609
        %v5611 = vmul.f32 %v5557, 1.442695
        %v5612 = vpow.pop %v5611
        %v5613 = vmul.f32 %v5558, 1.442695
        %v5614 = vpow.pop %v5613
        %v5615 = vmul.f32 %v5559, 1.442695
        %v5616 = vpow.pop %v5615
        %v5617 = vmul.f32 %v5560, 1.442695
        %v5618 = vpow.pop %v5617
        %v5619 = vmul.f32 %v5561, 1.442695
        %v5620 = vpow.pop %v5619
        %v5621 = vmul.f32 %v5562, 1.442695
        %v5622 = vpow.pop %v5621
        %v5623 = vmul.f32 %v5563, 1.442695
        %v5624 = vpow.pop %v5623
        %v5625 = vmul.f32 %v5564, 1.442695
        %v5626 = vpow.pop %v5625
        %v5627 = vmul.f32 %v5565, 1.442695
        %v5628 = vpow.pop %v5627
        %v5629 = vmul.f32 %v5566, 1.442695
        %v5630 = vpow.pop %v5629
        %v5631 = vadd.f32 %v5568, %v5570
        %5632 = vadd.xlane.f32.xlu0 %v5631
        %v5633 = vpop.xlane.xlu0 %5632
        %v5634 = vadd.f32 %v5572, %v5574
        %5635 = vadd.xlane.f32.xlu0 %v5634
        %v5636 = vpop.xlane.xlu0 %5635
        %v5637 = vadd.f32 %v5576, %v5578
        %5638 = vadd.xlane.f32.xlu0 %v5637
        %v5639 = vpop.xlane.xlu0 %5638
        %v5640 = vadd.f32 %v5580, %v5582
        %5641 = vadd.xlane.f32.xlu0 %v5640
        %v5642 = vpop.xlane.xlu0 %5641
        %v5643 = vadd.f32 %v5584, %v5586
        %5644 = vadd.xlane.f32.xlu0 %v5643
        %v5645 = vpop.xlane.xlu0 %5644
        %v5646 = vadd.f32 %v5588, %v5590
        %5647 = vadd.xlane.f32.xlu0 %v5646
        %v5648 = vpop.xlane.xlu0 %5647
        %v5649 = vadd.f32 %v5592, %v5594
        %5650 = vadd.xlane.f32.xlu0 %v5649
        %v5651 = vpop.xlane.xlu0 %5650
        %v5652 = vadd.f32 %v5596, %v5598
        %5653 = vadd.xlane.f32.xlu0 %v5652
        %v5654 = vpop.xlane.xlu0 %5653
        %v5655 = vadd.f32 %v5600, %v5602
        %5656 = vadd.xlane.f32.xlu0 %v5655
        %v5657 = vpop.xlane.xlu0 %5656
        %v5658 = vadd.f32 %v5604, %v5606
        %5659 = vadd.xlane.f32.xlu0 %v5658
        %v5660 = vpop.xlane.xlu0 %5659
        %v5661 = vadd.f32 %v5608, %v5610
        %5662 = vadd.xlane.f32.xlu0 %v5661
        %v5663 = vpop.xlane.xlu0 %5662
        %v5664 = vadd.f32 %v5612, %v5614
        %5665 = vadd.xlane.f32.xlu0 %v5664
        %v5666 = vpop.xlane.xlu0 %5665
        %v5667 = vadd.f32 %v5616, %v5618
        %5668 = vadd.xlane.f32.xlu0 %v5667
        %v5669 = vpop.xlane.xlu0 %5668
        %v5670 = vadd.f32 %v5620, %v5622
        %5671 = vadd.xlane.f32.xlu0 %v5670
        %v5672 = vpop.xlane.xlu0 %5671
        %v5673 = vadd.f32 %v5624, %v5626
        %5674 = vadd.xlane.f32.xlu0 %v5673
        %v5675 = vpop.xlane.xlu0 %5674
        %v5676 = vadd.f32 %v5628, %v5630
        %5677 = vadd.xlane.f32.xlu0 %v5676
        %v5678 = vpop.xlane.xlu0 %5677
        %v5679 = vlog2.pop %v5633
        %v5680 = vmul.f32 %v5679, 0.6931472
        %v5681 = vlog2.pop %v5636
        %v5682 = vmul.f32 %v5681, 0.6931472
        %v5683 = vlog2.pop %v5639
        %v5684 = vmul.f32 %v5683, 0.6931472
        %v5685 = vlog2.pop %v5642
        %v5686 = vmul.f32 %v5685, 0.6931472
        %v5687 = vlog2.pop %v5645
        %v5688 = vmul.f32 %v5687, 0.6931472
        %v5689 = vlog2.pop %v5648
        %v5690 = vmul.f32 %v5689, 0.6931472
        %v5691 = vlog2.pop %v5651
        %v5692 = vmul.f32 %v5691, 0.6931472
        %v5693 = vlog2.pop %v5654
        %v5694 = vmul.f32 %v5693, 0.6931472
        %v5695 = vlog2.pop %v5657
        %v5696 = vmul.f32 %v5695, 0.6931472
        %v5697 = vlog2.pop %v5660
        %v5698 = vmul.f32 %v5697, 0.6931472
        %v5699 = vlog2.pop %v5663
        %v5700 = vmul.f32 %v5699, 0.6931472
        %v5701 = vlog2.pop %v5666
        %v5702 = vmul.f32 %v5701, 0.6931472
        %v5703 = vlog2.pop %v5669
        %v5704 = vmul.f32 %v5703, 0.6931472
        %v5705 = vlog2.pop %v5672
        %v5706 = vmul.f32 %v5705, 0.6931472
        %v5707 = vlog2.pop %v5675
        %v5708 = vmul.f32 %v5707, 0.6931472
        %v5709 = vlog2.pop %v5678
        %v5710 = vmul.f32 %v5709, 0.6931472
        %v5711 = vsub.f32 0.0, %v5680
        %v5712 = vsub.f32 0.0, %v5682
        %v5713 = vsub.f32 0.0, %v5684
        %v5714 = vsub.f32 0.0, %v5686
        %v5715 = vsub.f32 0.0, %v5688
        %v5716 = vsub.f32 0.0, %v5690
        %v5717 = vsub.f32 0.0, %v5692
        %v5718 = vsub.f32 0.0, %v5694
        %v5719 = vsub.f32 0.0, %v5696
        %v5720 = vsub.f32 0.0, %v5698
        %v5721 = vsub.f32 0.0, %v5700
        %v5722 = vsub.f32 0.0, %v5702
        %v5723 = vsub.f32 0.0, %v5704
        %v5724 = vsub.f32 0.0, %v5706
        %v5725 = vsub.f32 0.0, %v5708
        %v5726 = vsub.f32 0.0, %v5710
        %v5727 = vmax.f32 %v5711, -11.512925
        %v5728 = vmax.f32 %v5712, -11.512925
        %v5729 = vmax.f32 %v5713, -11.512925
        %v5730 = vmax.f32 %v5714, -11.512925
        %v5731 = vmax.f32 %v5715, -11.512925
        %v5732 = vmax.f32 %v5716, -11.512925
        %v5733 = vmax.f32 %v5717, -11.512925
        %v5734 = vmax.f32 %v5718, -11.512925
        %v5735 = vmax.f32 %v5719, -11.512925
        %v5736 = vmax.f32 %v5720, -11.512925
        %v5737 = vmax.f32 %v5721, -11.512925
        %v5738 = vmax.f32 %v5722, -11.512925
        %v5739 = vmax.f32 %v5723, -11.512925
        %v5740 = vmax.f32 %v5724, -11.512925
        %v5741 = vmax.f32 %v5725, -11.512925
        %v5742 = vmax.f32 %v5726, -11.512925
        %v5743 = vmin.f32 %v5727, -1.000005e-05
        %v5744 = vmin.f32 %v5728, -1.000005e-05
        %v5745 = vmin.f32 %v5729, -1.000005e-05
        %v5746 = vmin.f32 %v5730, -1.000005e-05
        %v5747 = vmin.f32 %v5731, -1.000005e-05
        %v5748 = vmin.f32 %v5732, -1.000005e-05
        %v5749 = vmin.f32 %v5733, -1.000005e-05
        %v5750 = vmin.f32 %v5734, -1.000005e-05
        %v5751 = vmin.f32 %v5735, -1.000005e-05
        %v5752 = vmin.f32 %v5736, -1.000005e-05
        %v5753 = vmin.f32 %v5737, -1.000005e-05
        %v5754 = vmin.f32 %v5738, -1.000005e-05
        %v5755 = vmin.f32 %v5739, -1.000005e-05
        %v5756 = vmin.f32 %v5740, -1.000005e-05
        %v5757 = vmin.f32 %v5741, -1.000005e-05
        %v5758 = vmin.f32 %v5742, -1.000005e-05
        %v5759 = vadd.f32 %v4517, %v5743
        %v5760 = vadd.f32 %v4518, %v5744
        %v5761 = vadd.f32 %v4519, %v5745
        %v5762 = vadd.f32 %v4520, %v5746
        %v5763 = vadd.f32 %v4521, %v5747
        %v5764 = vadd.f32 %v4522, %v5748
        %v5765 = vadd.f32 %v4523, %v5749
        %v5766 = vadd.f32 %v4524, %v5750
        %v5767 = vadd.f32 %v4525, %v5751
        %v5768 = vadd.f32 %v4526, %v5752
        %v5769 = vadd.f32 %v4527, %v5753
        %v5770 = vadd.f32 %v4528, %v5754
        %v5771 = vadd.f32 %v4529, %v5755
        %v5772 = vadd.f32 %v4530, %v5756
        %v5773 = vadd.f32 %v4531, %v5757
        %v5774 = vadd.f32 %v4532, %v5758
        %v5775 = vld [vmem:[#allocation2 + $0x40] sm:$0xff]
        %v5776 = vld [vmem:[#allocation2 + $0xc0] sm:$0xff]
        %v5777 = vld [vmem:[#allocation2 + $0x140] sm:$0xff]
        %v5778 = vld [vmem:[#allocation2 + $0x1c0] sm:$0xff]
        %v5779 = vld [vmem:[#allocation2 + $0x240] sm:$0xff]
        %v5780 = vld [vmem:[#allocation2 + $0x2c0] sm:$0xff]
        %v5781 = vld [vmem:[#allocation2 + $0x340] sm:$0xff]
        %v5782 = vld [vmem:[#allocation2 + $0x3c0] sm:$0xff]
        %v5783 = vld [vmem:[#allocation2 + $0x440] sm:$0xff]
        %v5784 = vld [vmem:[#allocation2 + $0x4c0] sm:$0xff]
        %v5785 = vld [vmem:[#allocation2 + $0x540] sm:$0xff]
        %v5786 = vld [vmem:[#allocation2 + $0x5c0] sm:$0xff]
        %v5787 = vld [vmem:[#allocation2 + $0x640] sm:$0xff]
        %v5788 = vld [vmem:[#allocation2 + $0x6c0] sm:$0xff]
        %v5789 = vld [vmem:[#allocation2 + $0x740] sm:$0xff]
        %v5790 = vld [vmem:[#allocation2 + $0x7c0] sm:$0xff]
        %v5791 = vld [vmem:[%s7 + $0x10] sm:$0x3]
        %v5793 = vlaneseq
        %v5794 = vshrl.u32 %v5793, 7
        %v5795 = vsub.s32 0, %v5794
        %v5796 = vrot.slane %v5791, %v5795
        %v5797 = vlaneseq
        %v5798 = vshrl.u32 %v5797, 7
        %v5799 = vsub.s32 1, %v5798
        %v5800 = vrot.slane %v5791, %v5799
        %v5819 = vunpack.c.l.b16 %v5775
        %v5820 = vunpack.c.h.b16 %v5775
        %v5821 = vunpack.c.l.b16 %v5776
        %v5822 = vunpack.c.h.b16 %v5776
        %v5823 = vunpack.c.l.b16 %v5777
        %v5824 = vunpack.c.h.b16 %v5777
        %v5825 = vunpack.c.l.b16 %v5778
        %v5826 = vunpack.c.h.b16 %v5778
        %v5827 = vunpack.c.l.b16 %v5779
        %v5828 = vunpack.c.h.b16 %v5779
        %v5829 = vunpack.c.l.b16 %v5780
        %v5830 = vunpack.c.h.b16 %v5780
        %v5831 = vunpack.c.l.b16 %v5781
        %v5832 = vunpack.c.h.b16 %v5781
        %v5833 = vunpack.c.l.b16 %v5782
        %v5834 = vunpack.c.h.b16 %v5782
        %v5835 = vunpack.c.l.b16 %v5783
        %v5836 = vunpack.c.h.b16 %v5783
        %v5837 = vunpack.c.l.b16 %v5784
        %v5838 = vunpack.c.h.b16 %v5784
        %v5839 = vunpack.c.l.b16 %v5785
        %v5840 = vunpack.c.h.b16 %v5785
        %v5841 = vunpack.c.l.b16 %v5786
        %v5842 = vunpack.c.h.b16 %v5786
        %v5843 = vunpack.c.l.b16 %v5787
        %v5844 = vunpack.c.h.b16 %v5787
        %v5845 = vunpack.c.l.b16 %v5788
        %v5846 = vunpack.c.h.b16 %v5788
        %v5847 = vunpack.c.l.b16 %v5789
        %v5848 = vunpack.c.h.b16 %v5789
        %v5849 = vunpack.c.l.b16 %v5790
        %v5850 = vunpack.c.h.b16 %v5790
        %v5851 = vpack.c.b16 %v5821, %v5819
        %v5852 = vpack.c.b16 %v5822, %v5820
        %v5853 = vpack.c.b16 %v5825, %v5823
        %v5854 = vpack.c.b16 %v5826, %v5824
        %v5855 = vpack.c.b16 %v5829, %v5827
        %v5856 = vpack.c.b16 %v5830, %v5828
        %v5857 = vpack.c.b16 %v5833, %v5831
        %v5858 = vpack.c.b16 %v5834, %v5832
        %v5859 = vpack.c.b16 %v5837, %v5835
        %v5860 = vpack.c.b16 %v5838, %v5836
        %v5861 = vpack.c.b16 %v5841, %v5839
        %v5862 = vpack.c.b16 %v5842, %v5840
        %v5863 = vpack.c.b16 %v5845, %v5843
        %v5864 = vpack.c.b16 %v5846, %v5844
        %v5865 = vpack.c.b16 %v5849, %v5847
        %v5866 = vpack.c.b16 %v5850, %v5848
        %5883 = vmatprep.subr.bf16.mxu0 %v5866
        %5884 = vmatpush1.bf16.msra.mxu0 %v5865
        %5885 = vmatprep.subr.bf16.mxu0 %v5864
        %5886 = vmatpush1.bf16.msra.mxu0 %v5863
        %5887 = vmatprep.subr.bf16.mxu0 %v5862
        %5888 = vmatpush1.bf16.msra.mxu0 %v5861
        %5889 = vmatprep.subr.bf16.mxu0 %v5860
        %5890 = vmatpush1.bf16.msra.mxu0 %v5859
        %5891 = vmatprep.subr.bf16.mxu0 %v5858
        %5892 = vmatpush1.bf16.msra.mxu0 %v5857
        %5893 = vmatprep.subr.bf16.mxu0 %v5856
        %5894 = vmatpush1.bf16.msra.mxu0 %v5855
        %5895 = vmatprep.subr.bf16.mxu0 %v5854
        %5896 = vmatpush1.bf16.msra.mxu0 %v5853
        %5897 = vmatprep.subr.bf16.mxu0 %v5852
        %5898 = vmatpush1.bf16.msra.mxu0 %v5851
        %5899 = vmatprep.subr.bf16.mxu0 0
        %5900 = vmatpush2.bf16.msra.mxu0 0
        %5901 = vmatprep.subr.bf16.mxu0 0
        %5902 = vmatpush2.bf16.msra.mxu0 0
        %5903 = vmatprep.subr.bf16.mxu0 0
        %5904 = vmatpush2.bf16.msra.mxu0 0
        %5905 = vmatprep.subr.bf16.mxu0 0
        %5906 = vmatpush2.bf16.msra.mxu0 0
        %5907 = vmatprep.subr.bf16.mxu0 0
        %5908 = vmatpush2.bf16.msra.mxu0 0
        %5909 = vmatprep.subr.bf16.mxu0 0
        %5910 = vmatpush2.bf16.msra.mxu0 0
        %5911 = vmatprep.subr.bf16.mxu0 0
        %5912 = vmatpush2.bf16.msra.mxu0 0
        %5913 = vmatprep.subr.bf16.mxu0 0
        %5914 = vmatpush2.bf16.msra.mxu0 0
        %5915 = vmatprep.mubr.bf16.mxu0 0
        %5916 = vmatmul.mubr.bf16.gmra.mxu0 %v780
        %v5917 = vpop.f32.mrf.mxu0
        %v5918 = vadd.f32 %v5796, %v5917
        %v5919 = vpop.f32.mrf.mxu0
        %v5920 = vadd.f32 %v5800, %v5919
        %v5921 = vpop.f32.mrf.mxu0
        %v5922 = vadd.f32 %v5796, %v5921
        %v5923 = vpop.f32.mrf.mxu0
        %v5924 = vadd.f32 %v5800, %v5923
        %5925 = vmatprep.mubr.bf16.mxu0 0
        %5926 = vmatmul.mubr.bf16.gmra.mxu0 %v781
        %v5927 = vpop.f32.mrf.mxu0
        %v5928 = vadd.f32 %v5796, %v5927
        %v5929 = vpop.f32.mrf.mxu0
        %v5930 = vadd.f32 %v5800, %v5929
        %v5931 = vpop.f32.mrf.mxu0
        %v5932 = vadd.f32 %v5796, %v5931
        %v5933 = vpop.f32.mrf.mxu0
        %v5934 = vadd.f32 %v5800, %v5933
        %5935 = vmatprep.mubr.bf16.mxu0 0
        %5936 = vmatmul.mubr.bf16.gmra.mxu0 %v782
        %v5937 = vpop.f32.mrf.mxu0
        %v5938 = vadd.f32 %v5796, %v5937
        %v5939 = vpop.f32.mrf.mxu0
        %v5940 = vadd.f32 %v5800, %v5939
        %v5941 = vpop.f32.mrf.mxu0
        %v5942 = vadd.f32 %v5796, %v5941
        %v5943 = vpop.f32.mrf.mxu0
        %v5944 = vadd.f32 %v5800, %v5943
        %5945 = vmatprep.mubr.bf16.mxu0 0
        %5946 = vmatmul.mubr.bf16.gmra.mxu0 %v783
        %v5947 = vpop.f32.mrf.mxu0
        %v5948 = vadd.f32 %v5796, %v5947
        %v5949 = vpop.f32.mrf.mxu0
        %v5950 = vadd.f32 %v5800, %v5949
        %v5951 = vpop.f32.mrf.mxu0
        %v5952 = vadd.f32 %v5796, %v5951
        %v5953 = vpop.f32.mrf.mxu0
        %v5954 = vadd.f32 %v5800, %v5953
        %5955 = vmatprep.mubr.bf16.mxu0 0
        %5956 = vmatmul.mubr.bf16.gmra.mxu0 %v784
        %v5957 = vpop.f32.mrf.mxu0
        %v5958 = vadd.f32 %v5796, %v5957
        %v5959 = vpop.f32.mrf.mxu0
        %v5960 = vadd.f32 %v5800, %v5959
        %v5961 = vpop.f32.mrf.mxu0
        %v5962 = vadd.f32 %v5796, %v5961
        %v5963 = vpop.f32.mrf.mxu0
        %v5964 = vadd.f32 %v5800, %v5963
        %5965 = vmatprep.mubr.bf16.mxu0 0
        %5966 = vmatmul.mubr.bf16.gmra.mxu0 %v785
        %v5967 = vpop.f32.mrf.mxu0
        %v5968 = vadd.f32 %v5796, %v5967
        %v5969 = vpop.f32.mrf.mxu0
        %v5970 = vadd.f32 %v5800, %v5969
        %v5971 = vpop.f32.mrf.mxu0
        %v5972 = vadd.f32 %v5796, %v5971
        %v5973 = vpop.f32.mrf.mxu0
        %v5974 = vadd.f32 %v5800, %v5973
        %5975 = vmatprep.mubr.bf16.mxu0 0
        %5976 = vmatmul.mubr.bf16.gmra.mxu0 %v786
        %v5977 = vpop.f32.mrf.mxu0
        %v5978 = vadd.f32 %v5796, %v5977
        %v5979 = vpop.f32.mrf.mxu0
        %v5980 = vadd.f32 %v5800, %v5979
        %v5981 = vpop.f32.mrf.mxu0
        %v5982 = vadd.f32 %v5796, %v5981
        %v5983 = vpop.f32.mrf.mxu0
        %v5984 = vadd.f32 %v5800, %v5983
        %5985 = vmatprep.mubr.bf16.mxu0 0
        %5986 = vmatmul.mubr.bf16.gmra.mxu0 %v787
        %v5987 = vpop.f32.mrf.mxu0
        %v5988 = vadd.f32 %v5796, %v5987
        %v5989 = vpop.f32.mrf.mxu0
        %v5990 = vadd.f32 %v5800, %v5989
        %v5991 = vpop.f32.mrf.mxu0
        %v5992 = vadd.f32 %v5796, %v5991
        %v5993 = vpop.f32.mrf.mxu0
        %v5994 = vadd.f32 %v5800, %v5993
        %5995 = vdwg.mxu0
        %5996 = vset.pattern.permute.xlu0 8
        %5997 = vperm.xlu0 %5996, %v788
        %v5998 = vpop.permute.xlu0 %5997
        %5999 = vset.pattern.permute.xlu0 8
        %6000 = vperm.xlu0 %5999, %v789
        %v6001 = vpop.permute.xlu0 %6000
        %6002 = vset.pattern.permute.xlu0 8
        %6003 = vperm.xlu0 %6002, %v790
        %v6004 = vpop.permute.xlu0 %6003
        %6005 = vset.pattern.permute.xlu0 8
        %6006 = vperm.xlu0 %6005, %v791
        %v6007 = vpop.permute.xlu0 %6006
        %6008 = vset.pattern.permute.xlu0 8
        %6009 = vperm.xlu0 %6008, %v792
        %v6010 = vpop.permute.xlu0 %6009
        %6011 = vset.pattern.permute.xlu0 8
        %6012 = vperm.xlu0 %6011, %v793
        %v6013 = vpop.permute.xlu0 %6012
        %6014 = vset.pattern.permute.xlu0 8
        %6015 = vperm.xlu0 %6014, %v794
        %v6016 = vpop.permute.xlu0 %6015
        %6017 = vset.pattern.permute.xlu0 8
        %6018 = vperm.xlu0 %6017, %v795
        %v6019 = vpop.permute.xlu0 %6018
        %6020 = vset.pattern.permute.xlu0 8
        %6021 = vperm.xlu0 %6020, %v796
        %v6022 = vpop.permute.xlu0 %6021
        %6023 = vset.pattern.permute.xlu0 8
        %6024 = vperm.xlu0 %6023, %v797
        %v6025 = vpop.permute.xlu0 %6024
        %6026 = vset.pattern.permute.xlu0 8
        %6027 = vperm.xlu0 %6026, %v798
        %v6028 = vpop.permute.xlu0 %6027
        %6029 = vset.pattern.permute.xlu0 8
        %6030 = vperm.xlu0 %6029, %v799
        %v6031 = vpop.permute.xlu0 %6030
        %6032 = vset.pattern.permute.xlu0 8
        %6033 = vperm.xlu0 %6032, %v800
        %v6034 = vpop.permute.xlu0 %6033
        %6035 = vset.pattern.permute.xlu0 8
        %6036 = vperm.xlu0 %6035, %v801
        %v6037 = vpop.permute.xlu0 %6036
        %6038 = vset.pattern.permute.xlu0 8
        %6039 = vperm.xlu0 %6038, %v802
        %v6040 = vpop.permute.xlu0 %6039
        %6041 = vset.pattern.permute.xlu0 8
        %6042 = vperm.xlu0 %6041, %v803
        %v6043 = vpop.permute.xlu0 %6042
        %vm6044 = vcmp.eq.s32.totalorder %v805, %v5998
        %vm6045 = vcmp.eq.s32.totalorder %v806, %v5998
        %vm6046 = vcmp.eq.s32.totalorder %v805, %v6001
        %vm6047 = vcmp.eq.s32.totalorder %v806, %v6001
        %vm6048 = vcmp.eq.s32.totalorder %v805, %v6004
        %vm6049 = vcmp.eq.s32.totalorder %v806, %v6004
        %vm6050 = vcmp.eq.s32.totalorder %v805, %v6007
        %vm6051 = vcmp.eq.s32.totalorder %v806, %v6007
        %vm6052 = vcmp.eq.s32.totalorder %v805, %v6010
        %vm6053 = vcmp.eq.s32.totalorder %v806, %v6010
        %vm6054 = vcmp.eq.s32.totalorder %v805, %v6013
        %vm6055 = vcmp.eq.s32.totalorder %v806, %v6013
        %vm6056 = vcmp.eq.s32.totalorder %v805, %v6016
        %vm6057 = vcmp.eq.s32.totalorder %v806, %v6016
        %vm6058 = vcmp.eq.s32.totalorder %v805, %v6019
        %vm6059 = vcmp.eq.s32.totalorder %v806, %v6019
        %vm6060 = vcmp.eq.s32.totalorder %v805, %v6022
        %vm6061 = vcmp.eq.s32.totalorder %v806, %v6022
        %vm6062 = vcmp.eq.s32.totalorder %v805, %v6025
        %vm6063 = vcmp.eq.s32.totalorder %v806, %v6025
        %vm6064 = vcmp.eq.s32.totalorder %v805, %v6028
        %vm6065 = vcmp.eq.s32.totalorder %v806, %v6028
        %vm6066 = vcmp.eq.s32.totalorder %v805, %v6031
        %vm6067 = vcmp.eq.s32.totalorder %v806, %v6031
        %vm6068 = vcmp.eq.s32.totalorder %v805, %v6034
        %vm6069 = vcmp.eq.s32.totalorder %v806, %v6034
        %vm6070 = vcmp.eq.s32.totalorder %v805, %v6037
        %vm6071 = vcmp.eq.s32.totalorder %v806, %v6037
        %vm6072 = vcmp.eq.s32.totalorder %v805, %v6040
        %vm6073 = vcmp.eq.s32.totalorder %v806, %v6040
        %vm6074 = vcmp.eq.s32.totalorder %v805, %v6043
        %vm6075 = vcmp.eq.s32.totalorder %v806, %v6043
        %v6076 = vsel %vm6044, %v5918, 0.0
        %v6077 = vsel %vm6045, %v5920, 0.0
        %v6078 = vsel %vm6046, %v5922, 0.0
        %v6079 = vsel %vm6047, %v5924, 0.0
        %v6080 = vsel %vm6048, %v5928, 0.0
        %v6081 = vsel %vm6049, %v5930, 0.0
        %v6082 = vsel %vm6050, %v5932, 0.0
        %v6083 = vsel %vm6051, %v5934, 0.0
        %v6084 = vsel %vm6052, %v5938, 0.0
        %v6085 = vsel %vm6053, %v5940, 0.0
        %v6086 = vsel %vm6054, %v5942, 0.0
        %v6087 = vsel %vm6055, %v5944, 0.0
        %v6088 = vsel %vm6056, %v5948, 0.0
        %v6089 = vsel %vm6057, %v5950, 0.0
        %v6090 = vsel %vm6058, %v5952, 0.0
        %v6091 = vsel %vm6059, %v5954, 0.0
        %v6092 = vsel %vm6060, %v5958, 0.0
        %v6093 = vsel %vm6061, %v5960, 0.0
        %v6094 = vsel %vm6062, %v5962, 0.0
        %v6095 = vsel %vm6063, %v5964, 0.0
        %v6096 = vsel %vm6064, %v5968, 0.0
        %v6097 = vsel %vm6065, %v5970, 0.0
        %v6098 = vsel %vm6066, %v5972, 0.0
        %v6099 = vsel %vm6067, %v5974, 0.0
        %v6100 = vsel %vm6068, %v5978, 0.0
        %v6101 = vsel %vm6069, %v5980, 0.0
        %v6102 = vsel %vm6070, %v5982, 0.0
        %v6103 = vsel %vm6071, %v5984, 0.0
        %v6104 = vsel %vm6072, %v5988, 0.0
        %v6105 = vsel %vm6073, %v5990, 0.0
        %v6106 = vsel %vm6074, %v5992, 0.0
        %v6107 = vsel %vm6075, %v5994, 0.0
        %v6108 = vadd.f32 %v6076, %v6077
        %6109 = vadd.xlane.f32.xlu0 %v6108
        %v6110 = vpop.xlane.xlu0 %6109
        %v6111 = vadd.f32 %v6078, %v6079
        %6112 = vadd.xlane.f32.xlu0 %v6111
        %v6113 = vpop.xlane.xlu0 %6112
        %v6114 = vadd.f32 %v6080, %v6081
        %6115 = vadd.xlane.f32.xlu0 %v6114
        %v6116 = vpop.xlane.xlu0 %6115
        %v6117 = vadd.f32 %v6082, %v6083
        %6118 = vadd.xlane.f32.xlu0 %v6117
        %v6119 = vpop.xlane.xlu0 %6118
        %v6120 = vadd.f32 %v6084, %v6085
        %6121 = vadd.xlane.f32.xlu0 %v6120
        %v6122 = vpop.xlane.xlu0 %6121
        %v6123 = vadd.f32 %v6086, %v6087
        %6124 = vadd.xlane.f32.xlu0 %v6123
        %v6125 = vpop.xlane.xlu0 %6124
        %v6126 = vadd.f32 %v6088, %v6089
        %6127 = vadd.xlane.f32.xlu0 %v6126
        %v6128 = vpop.xlane.xlu0 %6127
        %v6129 = vadd.f32 %v6090, %v6091
        %6130 = vadd.xlane.f32.xlu0 %v6129
        %v6131 = vpop.xlane.xlu0 %6130
        %v6132 = vadd.f32 %v6092, %v6093
        %6133 = vadd.xlane.f32.xlu0 %v6132
        %v6134 = vpop.xlane.xlu0 %6133
        %v6135 = vadd.f32 %v6094, %v6095
        %6136 = vadd.xlane.f32.xlu0 %v6135
        %v6137 = vpop.xlane.xlu0 %6136
        %v6138 = vadd.f32 %v6096, %v6097
        %6139 = vadd.xlane.f32.xlu0 %v6138
        %v6140 = vpop.xlane.xlu0 %6139
        %v6141 = vadd.f32 %v6098, %v6099
        %6142 = vadd.xlane.f32.xlu0 %v6141
        %v6143 = vpop.xlane.xlu0 %6142
        %v6144 = vadd.f32 %v6100, %v6101
        %6145 = vadd.xlane.f32.xlu0 %v6144
        %v6146 = vpop.xlane.xlu0 %6145
        %v6147 = vadd.f32 %v6102, %v6103
        %6148 = vadd.xlane.f32.xlu0 %v6147
        %v6149 = vpop.xlane.xlu0 %6148
        %v6150 = vadd.f32 %v6104, %v6105
        %6151 = vadd.xlane.f32.xlu0 %v6150
        %v6152 = vpop.xlane.xlu0 %6151
        %v6153 = vadd.f32 %v6106, %v6107
        %6154 = vadd.xlane.f32.xlu0 %v6153
        %v6155 = vpop.xlane.xlu0 %6154
        %v6156 = vsub.f32 %v5918, %v6110
        %v6157 = vsub.f32 %v5920, %v6110
        %v6158 = vsub.f32 %v5922, %v6113
        %v6159 = vsub.f32 %v5924, %v6113
        %v6160 = vsub.f32 %v5928, %v6116
        %v6161 = vsub.f32 %v5930, %v6116
        %v6162 = vsub.f32 %v5932, %v6119
        %v6163 = vsub.f32 %v5934, %v6119
        %v6164 = vsub.f32 %v5938, %v6122
        %v6165 = vsub.f32 %v5940, %v6122
        %v6166 = vsub.f32 %v5942, %v6125
        %v6167 = vsub.f32 %v5944, %v6125
        %v6168 = vsub.f32 %v5948, %v6128
        %v6169 = vsub.f32 %v5950, %v6128
        %v6170 = vsub.f32 %v5952, %v6131
        %v6171 = vsub.f32 %v5954, %v6131
        %v6172 = vsub.f32 %v5958, %v6134
        %v6173 = vsub.f32 %v5960, %v6134
        %v6174 = vsub.f32 %v5962, %v6137
        %v6175 = vsub.f32 %v5964, %v6137
        %v6176 = vsub.f32 %v5968, %v6140
        %v6177 = vsub.f32 %v5970, %v6140
        %v6178 = vsub.f32 %v5972, %v6143
        %v6179 = vsub.f32 %v5974, %v6143
        %v6180 = vsub.f32 %v5978, %v6146
        %v6181 = vsub.f32 %v5980, %v6146
        %v6182 = vsub.f32 %v5982, %v6149
        %v6183 = vsub.f32 %v5984, %v6149
        %v6184 = vsub.f32 %v5988, %v6152
        %v6185 = vsub.f32 %v5990, %v6152
        %v6186 = vsub.f32 %v5992, %v6155
        %v6187 = vsub.f32 %v5994, %v6155
        %v6188 = vmul.f32 %v6156, 1.442695
        %v6189 = vpow.pop %v6188
        %v6190 = vmul.f32 %v6157, 1.442695
        %v6191 = vpow.pop %v6190
        %v6192 = vmul.f32 %v6158, 1.442695
        %v6193 = vpow.pop %v6192
        %v6194 = vmul.f32 %v6159, 1.442695
        %v6195 = vpow.pop %v6194
        %v6196 = vmul.f32 %v6160, 1.442695
        %v6197 = vpow.pop %v6196
        %v6198 = vmul.f32 %v6161, 1.442695
        %v6199 = vpow.pop %v6198
        %v6200 = vmul.f32 %v6162, 1.442695
        %v6201 = vpow.pop %v6200
        %v6202 = vmul.f32 %v6163, 1.442695
        %v6203 = vpow.pop %v6202
        %v6204 = vmul.f32 %v6164, 1.442695
        %v6205 = vpow.pop %v6204
        %v6206 = vmul.f32 %v6165, 1.442695
        %v6207 = vpow.pop %v6206
        %v6208 = vmul.f32 %v6166, 1.442695
        %v6209 = vpow.pop %v6208
        %v6210 = vmul.f32 %v6167, 1.442695
        %v6211 = vpow.pop %v6210
        %v6212 = vmul.f32 %v6168, 1.442695
        %v6213 = vpow.pop %v6212
        %v6214 = vmul.f32 %v6169, 1.442695
        %v6215 = vpow.pop %v6214
        %v6216 = vmul.f32 %v6170, 1.442695
        %v6217 = vpow.pop %v6216
        %v6218 = vmul.f32 %v6171, 1.442695
        %v6219 = vpow.pop %v6218
        %v6220 = vmul.f32 %v6172, 1.442695
        %v6221 = vpow.pop %v6220
        %v6222 = vmul.f32 %v6173, 1.442695
        %v6223 = vpow.pop %v6222
        %v6224 = vmul.f32 %v6174, 1.442695
        %v6225 = vpow.pop %v6224
        %v6226 = vmul.f32 %v6175, 1.442695
        %v6227 = vpow.pop %v6226
        %v6228 = vmul.f32 %v6176, 1.442695
        %v6229 = vpow.pop %v6228
        %v6230 = vmul.f32 %v6177, 1.442695
        %v6231 = vpow.pop %v6230
        %v6232 = vmul.f32 %v6178, 1.442695
        %v6233 = vpow.pop %v6232
        %v6234 = vmul.f32 %v6179, 1.442695
        %v6235 = vpow.pop %v6234
        %v6236 = vmul.f32 %v6180, 1.442695
        %v6237 = vpow.pop %v6236
        %v6238 = vmul.f32 %v6181, 1.442695
        %v6239 = vpow.pop %v6238
        %v6240 = vmul.f32 %v6182, 1.442695
        %v6241 = vpow.pop %v6240
        %v6242 = vmul.f32 %v6183, 1.442695
        %v6243 = vpow.pop %v6242
        %v6244 = vmul.f32 %v6184, 1.442695
        %v6245 = vpow.pop %v6244
        %v6246 = vmul.f32 %v6185, 1.442695
        %v6247 = vpow.pop %v6246
        %v6248 = vmul.f32 %v6186, 1.442695
        %v6249 = vpow.pop %v6248
        %v6250 = vmul.f32 %v6187, 1.442695
        %v6251 = vpow.pop %v6250
        %v6252 = vadd.f32 %v6189, %v6191
        %6253 = vadd.xlane.f32.xlu0 %v6252
        %v6254 = vpop.xlane.xlu0 %6253
        %v6255 = vadd.f32 %v6193, %v6195
        %6256 = vadd.xlane.f32.xlu0 %v6255
        %v6257 = vpop.xlane.xlu0 %6256
        %v6258 = vadd.f32 %v6197, %v6199
        %6259 = vadd.xlane.f32.xlu0 %v6258
        %v6260 = vpop.xlane.xlu0 %6259
        %v6261 = vadd.f32 %v6201, %v6203
        %6262 = vadd.xlane.f32.xlu0 %v6261
        %v6263 = vpop.xlane.xlu0 %6262
        %v6264 = vadd.f32 %v6205, %v6207
        %6265 = vadd.xlane.f32.xlu0 %v6264
        %v6266 = vpop.xlane.xlu0 %6265
        %v6267 = vadd.f32 %v6209, %v6211
        %6268 = vadd.xlane.f32.xlu0 %v6267
        %v6269 = vpop.xlane.xlu0 %6268
        %v6270 = vadd.f32 %v6213, %v6215
        %6271 = vadd.xlane.f32.xlu0 %v6270
        %v6272 = vpop.xlane.xlu0 %6271
        %v6273 = vadd.f32 %v6217, %v6219
        %6274 = vadd.xlane.f32.xlu0 %v6273
        %v6275 = vpop.xlane.xlu0 %6274
        %v6276 = vadd.f32 %v6221, %v6223
        %6277 = vadd.xlane.f32.xlu0 %v6276
        %v6278 = vpop.xlane.xlu0 %6277
        %v6279 = vadd.f32 %v6225, %v6227
        %6280 = vadd.xlane.f32.xlu0 %v6279
        %v6281 = vpop.xlane.xlu0 %6280
        %v6282 = vadd.f32 %v6229, %v6231
        %6283 = vadd.xlane.f32.xlu0 %v6282
        %v6284 = vpop.xlane.xlu0 %6283
        %v6285 = vadd.f32 %v6233, %v6235
        %6286 = vadd.xlane.f32.xlu0 %v6285
        %v6287 = vpop.xlane.xlu0 %6286
        %v6288 = vadd.f32 %v6237, %v6239
        %6289 = vadd.xlane.f32.xlu0 %v6288
        %v6290 = vpop.xlane.xlu0 %6289
        %v6291 = vadd.f32 %v6241, %v6243
        %6292 = vadd.xlane.f32.xlu0 %v6291
        %v6293 = vpop.xlane.xlu0 %6292
        %v6294 = vadd.f32 %v6245, %v6247
        %6295 = vadd.xlane.f32.xlu0 %v6294
        %v6296 = vpop.xlane.xlu0 %6295
        %v6297 = vadd.f32 %v6249, %v6251
        %6298 = vadd.xlane.f32.xlu0 %v6297
        %v6299 = vpop.xlane.xlu0 %6298
        %v6300 = vlog2.pop %v6254
        %v6301 = vmul.f32 %v6300, 0.6931472
        %v6302 = vlog2.pop %v6257
        %v6303 = vmul.f32 %v6302, 0.6931472
        %v6304 = vlog2.pop %v6260
        %v6305 = vmul.f32 %v6304, 0.6931472
        %v6306 = vlog2.pop %v6263
        %v6307 = vmul.f32 %v6306, 0.6931472
        %v6308 = vlog2.pop %v6266
        %v6309 = vmul.f32 %v6308, 0.6931472
        %v6310 = vlog2.pop %v6269
        %v6311 = vmul.f32 %v6310, 0.6931472
        %v6312 = vlog2.pop %v6272
        %v6313 = vmul.f32 %v6312, 0.6931472
        %v6314 = vlog2.pop %v6275
        %v6315 = vmul.f32 %v6314, 0.6931472
        %v6316 = vlog2.pop %v6278
        %v6317 = vmul.f32 %v6316, 0.6931472
        %v6318 = vlog2.pop %v6281
        %v6319 = vmul.f32 %v6318, 0.6931472
        %v6320 = vlog2.pop %v6284
        %v6321 = vmul.f32 %v6320, 0.6931472
        %v6322 = vlog2.pop %v6287
        %v6323 = vmul.f32 %v6322, 0.6931472
        %v6324 = vlog2.pop %v6290
        %v6325 = vmul.f32 %v6324, 0.6931472
        %v6326 = vlog2.pop %v6293
        %v6327 = vmul.f32 %v6326, 0.6931472
        %v6328 = vlog2.pop %v6296
        %v6329 = vmul.f32 %v6328, 0.6931472
        %v6330 = vlog2.pop %v6299
        %v6331 = vmul.f32 %v6330, 0.6931472
        %v6332 = vsub.f32 0.0, %v6301
        %v6333 = vsub.f32 0.0, %v6303
        %v6334 = vsub.f32 0.0, %v6305
        %v6335 = vsub.f32 0.0, %v6307
        %v6336 = vsub.f32 0.0, %v6309
        %v6337 = vsub.f32 0.0, %v6311
        %v6338 = vsub.f32 0.0, %v6313
        %v6339 = vsub.f32 0.0, %v6315
        %v6340 = vsub.f32 0.0, %v6317
        %v6341 = vsub.f32 0.0, %v6319
        %v6342 = vsub.f32 0.0, %v6321
        %v6343 = vsub.f32 0.0, %v6323
        %v6344 = vsub.f32 0.0, %v6325
        %v6345 = vsub.f32 0.0, %v6327
        %v6346 = vsub.f32 0.0, %v6329
        %v6347 = vsub.f32 0.0, %v6331
        %v6348 = vmax.f32 %v6332, -11.512925
        %v6349 = vmax.f32 %v6333, -11.512925
        %v6350 = vmax.f32 %v6334, -11.512925
        %v6351 = vmax.f32 %v6335, -11.512925
        %v6352 = vmax.f32 %v6336, -11.512925
        %v6353 = vmax.f32 %v6337, -11.512925
        %v6354 = vmax.f32 %v6338, -11.512925
        %v6355 = vmax.f32 %v6339, -11.512925
        %v6356 = vmax.f32 %v6340, -11.512925
        %v6357 = vmax.f32 %v6341, -11.512925
        %v6358 = vmax.f32 %v6342, -11.512925
        %v6359 = vmax.f32 %v6343, -11.512925
        %v6360 = vmax.f32 %v6344, -11.512925
        %v6361 = vmax.f32 %v6345, -11.512925
        %v6362 = vmax.f32 %v6346, -11.512925
        %v6363 = vmax.f32 %v6347, -11.512925
        %v6364 = vmin.f32 %v6348, -1.000005e-05
        %v6365 = vmin.f32 %v6349, -1.000005e-05
        %v6366 = vmin.f32 %v6350, -1.000005e-05
        %v6367 = vmin.f32 %v6351, -1.000005e-05
        %v6368 = vmin.f32 %v6352, -1.000005e-05
        %v6369 = vmin.f32 %v6353, -1.000005e-05
        %v6370 = vmin.f32 %v6354, -1.000005e-05
        %v6371 = vmin.f32 %v6355, -1.000005e-05
        %v6372 = vmin.f32 %v6356, -1.000005e-05
        %v6373 = vmin.f32 %v6357, -1.000005e-05
        %v6374 = vmin.f32 %v6358, -1.000005e-05
        %v6375 = vmin.f32 %v6359, -1.000005e-05
        %v6376 = vmin.f32 %v6360, -1.000005e-05
        %v6377 = vmin.f32 %v6361, -1.000005e-05
        %v6378 = vmin.f32 %v6362, -1.000005e-05
        %v6379 = vmin.f32 %v6363, -1.000005e-05
        %v6380 = vadd.f32 %v5138, %v6364
        %v6381 = vadd.f32 %v5139, %v6365
        %v6382 = vadd.f32 %v5140, %v6366
        %v6383 = vadd.f32 %v5141, %v6367
        %v6384 = vadd.f32 %v5142, %v6368
        %v6385 = vadd.f32 %v5143, %v6369
        %v6386 = vadd.f32 %v5144, %v6370
        %v6387 = vadd.f32 %v5145, %v6371
        %v6388 = vadd.f32 %v5146, %v6372
        %v6389 = vadd.f32 %v5147, %v6373
        %v6390 = vadd.f32 %v5148, %v6374
        %v6391 = vadd.f32 %v5149, %v6375
        %v6392 = vadd.f32 %v5150, %v6376
        %v6393 = vadd.f32 %v5151, %v6377
        %v6394 = vadd.f32 %v5152, %v6378
        %v6395 = vadd.f32 %v5153, %v6379
        %v6396 = vld [vmem:[#allocation2 + $0x48] sm:$0xff]
        %v6397 = vld [vmem:[#allocation2 + $0xc8] sm:$0xff]
        %v6398 = vld [vmem:[#allocation2 + $0x148] sm:$0xff]
        %v6399 = vld [vmem:[#allocation2 + $0x1c8] sm:$0xff]
        %v6400 = vld [vmem:[#allocation2 + $0x248] sm:$0xff]
        %v6401 = vld [vmem:[#allocation2 + $0x2c8] sm:$0xff]
        %v6402 = vld [vmem:[#allocation2 + $0x348] sm:$0xff]
        %v6403 = vld [vmem:[#allocation2 + $0x3c8] sm:$0xff]
        %v6404 = vld [vmem:[#allocation2 + $0x448] sm:$0xff]
        %v6405 = vld [vmem:[#allocation2 + $0x4c8] sm:$0xff]
        %v6406 = vld [vmem:[#allocation2 + $0x548] sm:$0xff]
        %v6407 = vld [vmem:[#allocation2 + $0x5c8] sm:$0xff]
        %v6408 = vld [vmem:[#allocation2 + $0x648] sm:$0xff]
        %v6409 = vld [vmem:[#allocation2 + $0x6c8] sm:$0xff]
        %v6410 = vld [vmem:[#allocation2 + $0x748] sm:$0xff]
        %v6411 = vld [vmem:[#allocation2 + $0x7c8] sm:$0xff]
        %v6412 = vld [vmem:[%s7 + $0x12] sm:$0x3]
        %v6414 = vlaneseq
        %v6415 = vshrl.u32 %v6414, 7
        %v6416 = vsub.s32 0, %v6415
        %v6417 = vrot.slane %v6412, %v6416
        %v6418 = vlaneseq
        %v6419 = vshrl.u32 %v6418, 7
        %v6420 = vsub.s32 1, %v6419
        %v6421 = vrot.slane %v6412, %v6420
        %v6440 = vunpack.c.l.b16 %v6396
        %v6441 = vunpack.c.h.b16 %v6396
        %v6442 = vunpack.c.l.b16 %v6397
        %v6443 = vunpack.c.h.b16 %v6397
        %v6444 = vunpack.c.l.b16 %v6398
        %v6445 = vunpack.c.h.b16 %v6398
        %v6446 = vunpack.c.l.b16 %v6399
        %v6447 = vunpack.c.h.b16 %v6399
        %v6448 = vunpack.c.l.b16 %v6400
        %v6449 = vunpack.c.h.b16 %v6400
        %v6450 = vunpack.c.l.b16 %v6401
        %v6451 = vunpack.c.h.b16 %v6401
        %v6452 = vunpack.c.l.b16 %v6402
        %v6453 = vunpack.c.h.b16 %v6402
        %v6454 = vunpack.c.l.b16 %v6403
        %v6455 = vunpack.c.h.b16 %v6403
        %v6456 = vunpack.c.l.b16 %v6404
        %v6457 = vunpack.c.h.b16 %v6404
        %v6458 = vunpack.c.l.b16 %v6405
        %v6459 = vunpack.c.h.b16 %v6405
        %v6460 = vunpack.c.l.b16 %v6406
        %v6461 = vunpack.c.h.b16 %v6406
        %v6462 = vunpack.c.l.b16 %v6407
        %v6463 = vunpack.c.h.b16 %v6407
        %v6464 = vunpack.c.l.b16 %v6408
        %v6465 = vunpack.c.h.b16 %v6408
        %v6466 = vunpack.c.l.b16 %v6409
        %v6467 = vunpack.c.h.b16 %v6409
        %v6468 = vunpack.c.l.b16 %v6410
        %v6469 = vunpack.c.h.b16 %v6410
        %v6470 = vunpack.c.l.b16 %v6411
        %v6471 = vunpack.c.h.b16 %v6411
        %v6472 = vpack.c.b16 %v6442, %v6440
        %v6473 = vpack.c.b16 %v6443, %v6441
        %v6474 = vpack.c.b16 %v6446, %v6444
        %v6475 = vpack.c.b16 %v6447, %v6445
        %v6476 = vpack.c.b16 %v6450, %v6448
        %v6477 = vpack.c.b16 %v6451, %v6449
        %v6478 = vpack.c.b16 %v6454, %v6452
        %v6479 = vpack.c.b16 %v6455, %v6453
        %v6480 = vpack.c.b16 %v6458, %v6456
        %v6481 = vpack.c.b16 %v6459, %v6457
        %v6482 = vpack.c.b16 %v6462, %v6460
        %v6483 = vpack.c.b16 %v6463, %v6461
        %v6484 = vpack.c.b16 %v6466, %v6464
        %v6485 = vpack.c.b16 %v6467, %v6465
        %v6486 = vpack.c.b16 %v6470, %v6468
        %v6487 = vpack.c.b16 %v6471, %v6469
        %6504 = vmatprep.subr.bf16.mxu0 %v6487
        %6505 = vmatpush1.bf16.msra.mxu0 %v6486
        %6506 = vmatprep.subr.bf16.mxu0 %v6485
        %6507 = vmatpush1.bf16.msra.mxu0 %v6484
        %6508 = vmatprep.subr.bf16.mxu0 %v6483
        %6509 = vmatpush1.bf16.msra.mxu0 %v6482
        %6510 = vmatprep.subr.bf16.mxu0 %v6481
        %6511 = vmatpush1.bf16.msra.mxu0 %v6480
        %6512 = vmatprep.subr.bf16.mxu0 %v6479
        %6513 = vmatpush1.bf16.msra.mxu0 %v6478
        %6514 = vmatprep.subr.bf16.mxu0 %v6477
        %6515 = vmatpush1.bf16.msra.mxu0 %v6476
        %6516 = vmatprep.subr.bf16.mxu0 %v6475
        %6517 = vmatpush1.bf16.msra.mxu0 %v6474
        %6518 = vmatprep.subr.bf16.mxu0 %v6473
        %6519 = vmatpush1.bf16.msra.mxu0 %v6472
        %6520 = vmatprep.subr.bf16.mxu0 0
        %6521 = vmatpush2.bf16.msra.mxu0 0
        %6522 = vmatprep.subr.bf16.mxu0 0
        %6523 = vmatpush2.bf16.msra.mxu0 0
        %6524 = vmatprep.subr.bf16.mxu0 0
        %6525 = vmatpush2.bf16.msra.mxu0 0
        %6526 = vmatprep.subr.bf16.mxu0 0
        %6527 = vmatpush2.bf16.msra.mxu0 0
        %6528 = vmatprep.subr.bf16.mxu0 0
        %6529 = vmatpush2.bf16.msra.mxu0 0
        %6530 = vmatprep.subr.bf16.mxu0 0
        %6531 = vmatpush2.bf16.msra.mxu0 0
        %6532 = vmatprep.subr.bf16.mxu0 0
        %6533 = vmatpush2.bf16.msra.mxu0 0
        %6534 = vmatprep.subr.bf16.mxu0 0
        %6535 = vmatpush2.bf16.msra.mxu0 0
        %6536 = vmatprep.mubr.bf16.mxu0 0
        %6537 = vmatmul.mubr.bf16.gmra.mxu0 %v780
        %v6538 = vpop.f32.mrf.mxu0
        %v6539 = vadd.f32 %v6417, %v6538
        %v6540 = vpop.f32.mrf.mxu0
        %v6541 = vadd.f32 %v6421, %v6540
        %v6542 = vpop.f32.mrf.mxu0
        %v6543 = vadd.f32 %v6417, %v6542
        %v6544 = vpop.f32.mrf.mxu0
        %v6545 = vadd.f32 %v6421, %v6544
        %6546 = vmatprep.mubr.bf16.mxu0 0
        %6547 = vmatmul.mubr.bf16.gmra.mxu0 %v781
        %v6548 = vpop.f32.mrf.mxu0
        %v6549 = vadd.f32 %v6417, %v6548
        %v6550 = vpop.f32.mrf.mxu0
        %v6551 = vadd.f32 %v6421, %v6550
        %v6552 = vpop.f32.mrf.mxu0
        %v6553 = vadd.f32 %v6417, %v6552
        %v6554 = vpop.f32.mrf.mxu0
        %v6555 = vadd.f32 %v6421, %v6554
        %6556 = vmatprep.mubr.bf16.mxu0 0
        %6557 = vmatmul.mubr.bf16.gmra.mxu0 %v782
        %v6558 = vpop.f32.mrf.mxu0
        %v6559 = vadd.f32 %v6417, %v6558
        %v6560 = vpop.f32.mrf.mxu0
        %v6561 = vadd.f32 %v6421, %v6560
        %v6562 = vpop.f32.mrf.mxu0
        %v6563 = vadd.f32 %v6417, %v6562
        %v6564 = vpop.f32.mrf.mxu0
        %v6565 = vadd.f32 %v6421, %v6564
        %6566 = vmatprep.mubr.bf16.mxu0 0
        %6567 = vmatmul.mubr.bf16.gmra.mxu0 %v783
        %v6568 = vpop.f32.mrf.mxu0
        %v6569 = vadd.f32 %v6417, %v6568
        %v6570 = vpop.f32.mrf.mxu0
        %v6571 = vadd.f32 %v6421, %v6570
        %v6572 = vpop.f32.mrf.mxu0
        %v6573 = vadd.f32 %v6417, %v6572
        %v6574 = vpop.f32.mrf.mxu0
        %v6575 = vadd.f32 %v6421, %v6574
        %6576 = vmatprep.mubr.bf16.mxu0 0
        %6577 = vmatmul.mubr.bf16.gmra.mxu0 %v784
        %v6578 = vpop.f32.mrf.mxu0
        %v6579 = vadd.f32 %v6417, %v6578
        %v6580 = vpop.f32.mrf.mxu0
        %v6581 = vadd.f32 %v6421, %v6580
        %v6582 = vpop.f32.mrf.mxu0
        %v6583 = vadd.f32 %v6417, %v6582
        %v6584 = vpop.f32.mrf.mxu0
        %v6585 = vadd.f32 %v6421, %v6584
        %6586 = vmatprep.mubr.bf16.mxu0 0
        %6587 = vmatmul.mubr.bf16.gmra.mxu0 %v785
        %v6588 = vpop.f32.mrf.mxu0
        %v6589 = vadd.f32 %v6417, %v6588
        %v6590 = vpop.f32.mrf.mxu0
        %v6591 = vadd.f32 %v6421, %v6590
        %v6592 = vpop.f32.mrf.mxu0
        %v6593 = vadd.f32 %v6417, %v6592
        %v6594 = vpop.f32.mrf.mxu0
        %v6595 = vadd.f32 %v6421, %v6594
        %6596 = vmatprep.mubr.bf16.mxu0 0
        %6597 = vmatmul.mubr.bf16.gmra.mxu0 %v786
        %v6598 = vpop.f32.mrf.mxu0
        %v6599 = vadd.f32 %v6417, %v6598
        %v6600 = vpop.f32.mrf.mxu0
        %v6601 = vadd.f32 %v6421, %v6600
        %v6602 = vpop.f32.mrf.mxu0
        %v6603 = vadd.f32 %v6417, %v6602
        %v6604 = vpop.f32.mrf.mxu0
        %v6605 = vadd.f32 %v6421, %v6604
        %6606 = vmatprep.mubr.bf16.mxu0 0
        %6607 = vmatmul.mubr.bf16.gmra.mxu0 %v787
        %v6608 = vpop.f32.mrf.mxu0
        %v6609 = vadd.f32 %v6417, %v6608
        %v6610 = vpop.f32.mrf.mxu0
        %v6611 = vadd.f32 %v6421, %v6610
        %v6612 = vpop.f32.mrf.mxu0
        %v6613 = vadd.f32 %v6417, %v6612
        %v6614 = vpop.f32.mrf.mxu0
        %v6615 = vadd.f32 %v6421, %v6614
        %6616 = vdwg.mxu0
        %6617 = vset.pattern.permute.xlu0 9
        %6618 = vperm.xlu0 %6617, %v788
        %v6619 = vpop.permute.xlu0 %6618
        %6620 = vset.pattern.permute.xlu0 9
        %6621 = vperm.xlu0 %6620, %v789
        %v6622 = vpop.permute.xlu0 %6621
        %6623 = vset.pattern.permute.xlu0 9
        %6624 = vperm.xlu0 %6623, %v790
        %v6625 = vpop.permute.xlu0 %6624
        %6626 = vset.pattern.permute.xlu0 9
        %6627 = vperm.xlu0 %6626, %v791
        %v6628 = vpop.permute.xlu0 %6627
        %6629 = vset.pattern.permute.xlu0 9
        %6630 = vperm.xlu0 %6629, %v792
        %v6631 = vpop.permute.xlu0 %6630
        %6632 = vset.pattern.permute.xlu0 9
        %6633 = vperm.xlu0 %6632, %v793
        %v6634 = vpop.permute.xlu0 %6633
        %6635 = vset.pattern.permute.xlu0 9
        %6636 = vperm.xlu0 %6635, %v794
        %v6637 = vpop.permute.xlu0 %6636
        %6638 = vset.pattern.permute.xlu0 9
        %6639 = vperm.xlu0 %6638, %v795
        %v6640 = vpop.permute.xlu0 %6639
        %6641 = vset.pattern.permute.xlu0 9
        %6642 = vperm.xlu0 %6641, %v796
        %v6643 = vpop.permute.xlu0 %6642
        %6644 = vset.pattern.permute.xlu0 9
        %6645 = vperm.xlu0 %6644, %v797
        %v6646 = vpop.permute.xlu0 %6645
        %6647 = vset.pattern.permute.xlu0 9
        %6648 = vperm.xlu0 %6647, %v798
        %v6649 = vpop.permute.xlu0 %6648
        %6650 = vset.pattern.permute.xlu0 9
        %6651 = vperm.xlu0 %6650, %v799
        %v6652 = vpop.permute.xlu0 %6651
        %6653 = vset.pattern.permute.xlu0 9
        %6654 = vperm.xlu0 %6653, %v800
        %v6655 = vpop.permute.xlu0 %6654
        %6656 = vset.pattern.permute.xlu0 9
        %6657 = vperm.xlu0 %6656, %v801
        %v6658 = vpop.permute.xlu0 %6657
        %6659 = vset.pattern.permute.xlu0 9
        %6660 = vperm.xlu0 %6659, %v802
        %v6661 = vpop.permute.xlu0 %6660
        %6662 = vset.pattern.permute.xlu0 9
        %6663 = vperm.xlu0 %6662, %v803
        %v6664 = vpop.permute.xlu0 %6663
        %vm6665 = vcmp.eq.s32.totalorder %v805, %v6619
        %vm6666 = vcmp.eq.s32.totalorder %v806, %v6619
        %vm6667 = vcmp.eq.s32.totalorder %v805, %v6622
        %vm6668 = vcmp.eq.s32.totalorder %v806, %v6622
        %vm6669 = vcmp.eq.s32.totalorder %v805, %v6625
        %vm6670 = vcmp.eq.s32.totalorder %v806, %v6625
        %vm6671 = vcmp.eq.s32.totalorder %v805, %v6628
        %vm6672 = vcmp.eq.s32.totalorder %v806, %v6628
        %vm6673 = vcmp.eq.s32.totalorder %v805, %v6631
        %vm6674 = vcmp.eq.s32.totalorder %v806, %v6631
        %vm6675 = vcmp.eq.s32.totalorder %v805, %v6634
        %vm6676 = vcmp.eq.s32.totalorder %v806, %v6634
        %vm6677 = vcmp.eq.s32.totalorder %v805, %v6637
        %vm6678 = vcmp.eq.s32.totalorder %v806, %v6637
        %vm6679 = vcmp.eq.s32.totalorder %v805, %v6640
        %vm6680 = vcmp.eq.s32.totalorder %v806, %v6640
        %vm6681 = vcmp.eq.s32.totalorder %v805, %v6643
        %vm6682 = vcmp.eq.s32.totalorder %v806, %v6643
        %vm6683 = vcmp.eq.s32.totalorder %v805, %v6646
        %vm6684 = vcmp.eq.s32.totalorder %v806, %v6646
        %vm6685 = vcmp.eq.s32.totalorder %v805, %v6649
        %vm6686 = vcmp.eq.s32.totalorder %v806, %v6649
        %vm6687 = vcmp.eq.s32.totalorder %v805, %v6652
        %vm6688 = vcmp.eq.s32.totalorder %v806, %v6652
        %vm6689 = vcmp.eq.s32.totalorder %v805, %v6655
        %vm6690 = vcmp.eq.s32.totalorder %v806, %v6655
        %vm6691 = vcmp.eq.s32.totalorder %v805, %v6658
        %vm6692 = vcmp.eq.s32.totalorder %v806, %v6658
        %vm6693 = vcmp.eq.s32.totalorder %v805, %v6661
        %vm6694 = vcmp.eq.s32.totalorder %v806, %v6661
        %vm6695 = vcmp.eq.s32.totalorder %v805, %v6664
        %vm6696 = vcmp.eq.s32.totalorder %v806, %v6664
        %v6697 = vsel %vm6665, %v6539, 0.0
        %v6698 = vsel %vm6666, %v6541, 0.0
        %v6699 = vsel %vm6667, %v6543, 0.0
        %v6700 = vsel %vm6668, %v6545, 0.0
        %v6701 = vsel %vm6669, %v6549, 0.0
        %v6702 = vsel %vm6670, %v6551, 0.0
        %v6703 = vsel %vm6671, %v6553, 0.0
        %v6704 = vsel %vm6672, %v6555, 0.0
        %v6705 = vsel %vm6673, %v6559, 0.0
        %v6706 = vsel %vm6674, %v6561, 0.0
        %v6707 = vsel %vm6675, %v6563, 0.0
        %v6708 = vsel %vm6676, %v6565, 0.0
        %v6709 = vsel %vm6677, %v6569, 0.0
        %v6710 = vsel %vm6678, %v6571, 0.0
        %v6711 = vsel %vm6679, %v6573, 0.0
        %v6712 = vsel %vm6680, %v6575, 0.0
        %v6713 = vsel %vm6681, %v6579, 0.0
        %v6714 = vsel %vm6682, %v6581, 0.0
        %v6715 = vsel %vm6683, %v6583, 0.0
        %v6716 = vsel %vm6684, %v6585, 0.0
        %v6717 = vsel %vm6685, %v6589, 0.0
        %v6718 = vsel %vm6686, %v6591, 0.0
        %v6719 = vsel %vm6687, %v6593, 0.0
        %v6720 = vsel %vm6688, %v6595, 0.0
        %v6721 = vsel %vm6689, %v6599, 0.0
        %v6722 = vsel %vm6690, %v6601, 0.0
        %v6723 = vsel %vm6691, %v6603, 0.0
        %v6724 = vsel %vm6692, %v6605, 0.0
        %v6725 = vsel %vm6693, %v6609, 0.0
        %v6726 = vsel %vm6694, %v6611, 0.0
        %v6727 = vsel %vm6695, %v6613, 0.0
        %v6728 = vsel %vm6696, %v6615, 0.0
        %v6729 = vadd.f32 %v6697, %v6698
        %6730 = vadd.xlane.f32.xlu0 %v6729
        %v6731 = vpop.xlane.xlu0 %6730
        %v6732 = vadd.f32 %v6699, %v6700
        %6733 = vadd.xlane.f32.xlu0 %v6732
        %v6734 = vpop.xlane.xlu0 %6733
        %v6735 = vadd.f32 %v6701, %v6702
        %6736 = vadd.xlane.f32.xlu0 %v6735
        %v6737 = vpop.xlane.xlu0 %6736
        %v6738 = vadd.f32 %v6703, %v6704
        %6739 = vadd.xlane.f32.xlu0 %v6738
        %v6740 = vpop.xlane.xlu0 %6739
        %v6741 = vadd.f32 %v6705, %v6706
        %6742 = vadd.xlane.f32.xlu0 %v6741
        %v6743 = vpop.xlane.xlu0 %6742
        %v6744 = vadd.f32 %v6707, %v6708
        %6745 = vadd.xlane.f32.xlu0 %v6744
        %v6746 = vpop.xlane.xlu0 %6745
        %v6747 = vadd.f32 %v6709, %v6710
        %6748 = vadd.xlane.f32.xlu0 %v6747
        %v6749 = vpop.xlane.xlu0 %6748
        %v6750 = vadd.f32 %v6711, %v6712
        %6751 = vadd.xlane.f32.xlu0 %v6750
        %v6752 = vpop.xlane.xlu0 %6751
        %v6753 = vadd.f32 %v6713, %v6714
        %6754 = vadd.xlane.f32.xlu0 %v6753
        %v6755 = vpop.xlane.xlu0 %6754
        %v6756 = vadd.f32 %v6715, %v6716
        %6757 = vadd.xlane.f32.xlu0 %v6756
        %v6758 = vpop.xlane.xlu0 %6757
        %v6759 = vadd.f32 %v6717, %v6718
        %6760 = vadd.xlane.f32.xlu0 %v6759
        %v6761 = vpop.xlane.xlu0 %6760
        %v6762 = vadd.f32 %v6719, %v6720
        %6763 = vadd.xlane.f32.xlu0 %v6762
        %v6764 = vpop.xlane.xlu0 %6763
        %v6765 = vadd.f32 %v6721, %v6722
        %6766 = vadd.xlane.f32.xlu0 %v6765
        %v6767 = vpop.xlane.xlu0 %6766
        %v6768 = vadd.f32 %v6723, %v6724
        %6769 = vadd.xlane.f32.xlu0 %v6768
        %v6770 = vpop.xlane.xlu0 %6769
        %v6771 = vadd.f32 %v6725, %v6726
        %6772 = vadd.xlane.f32.xlu0 %v6771
        %v6773 = vpop.xlane.xlu0 %6772
        %v6774 = vadd.f32 %v6727, %v6728
        %6775 = vadd.xlane.f32.xlu0 %v6774
        %v6776 = vpop.xlane.xlu0 %6775
        %v6777 = vsub.f32 %v6539, %v6731
        %v6778 = vsub.f32 %v6541, %v6731
        %v6779 = vsub.f32 %v6543, %v6734
        %v6780 = vsub.f32 %v6545, %v6734
        %v6781 = vsub.f32 %v6549, %v6737
        %v6782 = vsub.f32 %v6551, %v6737
        %v6783 = vsub.f32 %v6553, %v6740
        %v6784 = vsub.f32 %v6555, %v6740
        %v6785 = vsub.f32 %v6559, %v6743
        %v6786 = vsub.f32 %v6561, %v6743
        %v6787 = vsub.f32 %v6563, %v6746
        %v6788 = vsub.f32 %v6565, %v6746
        %v6789 = vsub.f32 %v6569, %v6749
        %v6790 = vsub.f32 %v6571, %v6749
        %v6791 = vsub.f32 %v6573, %v6752
        %v6792 = vsub.f32 %v6575, %v6752
        %v6793 = vsub.f32 %v6579, %v6755
        %v6794 = vsub.f32 %v6581, %v6755
        %v6795 = vsub.f32 %v6583, %v6758
        %v6796 = vsub.f32 %v6585, %v6758
        %v6797 = vsub.f32 %v6589, %v6761
        %v6798 = vsub.f32 %v6591, %v6761
        %v6799 = vsub.f32 %v6593, %v6764
        %v6800 = vsub.f32 %v6595, %v6764
        %v6801 = vsub.f32 %v6599, %v6767
        %v6802 = vsub.f32 %v6601, %v6767
        %v6803 = vsub.f32 %v6603, %v6770
        %v6804 = vsub.f32 %v6605, %v6770
        %v6805 = vsub.f32 %v6609, %v6773
        %v6806 = vsub.f32 %v6611, %v6773
        %v6807 = vsub.f32 %v6613, %v6776
        %v6808 = vsub.f32 %v6615, %v6776
        %v6809 = vmul.f32 %v6777, 1.442695
        %v6810 = vpow.pop %v6809
        %v6811 = vmul.f32 %v6778, 1.442695
        %v6812 = vpow.pop %v6811
        %v6813 = vmul.f32 %v6779, 1.442695
        %v6814 = vpow.pop %v6813
        %v6815 = vmul.f32 %v6780, 1.442695
        %v6816 = vpow.pop %v6815
        %v6817 = vmul.f32 %v6781, 1.442695
        %v6818 = vpow.pop %v6817
        %v6819 = vmul.f32 %v6782, 1.442695
        %v6820 = vpow.pop %v6819
        %v6821 = vmul.f32 %v6783, 1.442695
        %v6822 = vpow.pop %v6821
        %v6823 = vmul.f32 %v6784, 1.442695
        %v6824 = vpow.pop %v6823
        %v6825 = vmul.f32 %v6785, 1.442695
        %v6826 = vpow.pop %v6825
        %v6827 = vmul.f32 %v6786, 1.442695
        %v6828 = vpow.pop %v6827
        %v6829 = vmul.f32 %v6787, 1.442695
        %v6830 = vpow.pop %v6829
        %v6831 = vmul.f32 %v6788, 1.442695
        %v6832 = vpow.pop %v6831
        %v6833 = vmul.f32 %v6789, 1.442695
        %v6834 = vpow.pop %v6833
        %v6835 = vmul.f32 %v6790, 1.442695
        %v6836 = vpow.pop %v6835
        %v6837 = vmul.f32 %v6791, 1.442695
        %v6838 = vpow.pop %v6837
        %v6839 = vmul.f32 %v6792, 1.442695
        %v6840 = vpow.pop %v6839
        %v6841 = vmul.f32 %v6793, 1.442695
        %v6842 = vpow.pop %v6841
        %v6843 = vmul.f32 %v6794, 1.442695
        %v6844 = vpow.pop %v6843
        %v6845 = vmul.f32 %v6795, 1.442695
        %v6846 = vpow.pop %v6845
        %v6847 = vmul.f32 %v6796, 1.442695
        %v6848 = vpow.pop %v6847
        %v6849 = vmul.f32 %v6797, 1.442695
        %v6850 = vpow.pop %v6849
        %v6851 = vmul.f32 %v6798, 1.442695
        %v6852 = vpow.pop %v6851
        %v6853 = vmul.f32 %v6799, 1.442695
        %v6854 = vpow.pop %v6853
        %v6855 = vmul.f32 %v6800, 1.442695
        %v6856 = vpow.pop %v6855
        %v6857 = vmul.f32 %v6801, 1.442695
        %v6858 = vpow.pop %v6857
        %v6859 = vmul.f32 %v6802, 1.442695
        %v6860 = vpow.pop %v6859
        %v6861 = vmul.f32 %v6803, 1.442695
        %v6862 = vpow.pop %v6861
        %v6863 = vmul.f32 %v6804, 1.442695
        %v6864 = vpow.pop %v6863
        %v6865 = vmul.f32 %v6805, 1.442695
        %v6866 = vpow.pop %v6865
        %v6867 = vmul.f32 %v6806, 1.442695
        %v6868 = vpow.pop %v6867
        %v6869 = vmul.f32 %v6807, 1.442695
        %v6870 = vpow.pop %v6869
        %v6871 = vmul.f32 %v6808, 1.442695
        %v6872 = vpow.pop %v6871
        %v6873 = vadd.f32 %v6810, %v6812
        %6874 = vadd.xlane.f32.xlu0 %v6873
        %v6875 = vpop.xlane.xlu0 %6874
        %v6876 = vadd.f32 %v6814, %v6816
        %6877 = vadd.xlane.f32.xlu0 %v6876
        %v6878 = vpop.xlane.xlu0 %6877
        %v6879 = vadd.f32 %v6818, %v6820
        %6880 = vadd.xlane.f32.xlu0 %v6879
        %v6881 = vpop.xlane.xlu0 %6880
        %v6882 = vadd.f32 %v6822, %v6824
        %6883 = vadd.xlane.f32.xlu0 %v6882
        %v6884 = vpop.xlane.xlu0 %6883
        %v6885 = vadd.f32 %v6826, %v6828
        %6886 = vadd.xlane.f32.xlu0 %v6885
        %v6887 = vpop.xlane.xlu0 %6886
        %v6888 = vadd.f32 %v6830, %v6832
        %6889 = vadd.xlane.f32.xlu0 %v6888
        %v6890 = vpop.xlane.xlu0 %6889
        %v6891 = vadd.f32 %v6834, %v6836
        %6892 = vadd.xlane.f32.xlu0 %v6891
        %v6893 = vpop.xlane.xlu0 %6892
        %v6894 = vadd.f32 %v6838, %v6840
        %6895 = vadd.xlane.f32.xlu0 %v6894
        %v6896 = vpop.xlane.xlu0 %6895
        %v6897 = vadd.f32 %v6842, %v6844
        %6898 = vadd.xlane.f32.xlu0 %v6897
        %v6899 = vpop.xlane.xlu0 %6898
        %v6900 = vadd.f32 %v6846, %v6848
        %6901 = vadd.xlane.f32.xlu0 %v6900
        %v6902 = vpop.xlane.xlu0 %6901
        %v6903 = vadd.f32 %v6850, %v6852
        %6904 = vadd.xlane.f32.xlu0 %v6903
        %v6905 = vpop.xlane.xlu0 %6904
        %v6906 = vadd.f32 %v6854, %v6856
        %6907 = vadd.xlane.f32.xlu0 %v6906
        %v6908 = vpop.xlane.xlu0 %6907
        %v6909 = vadd.f32 %v6858, %v6860
        %6910 = vadd.xlane.f32.xlu0 %v6909
        %v6911 = vpop.xlane.xlu0 %6910
        %v6912 = vadd.f32 %v6862, %v6864
        %6913 = vadd.xlane.f32.xlu0 %v6912
        %v6914 = vpop.xlane.xlu0 %6913
        %v6915 = vadd.f32 %v6866, %v6868
        %6916 = vadd.xlane.f32.xlu0 %v6915
        %v6917 = vpop.xlane.xlu0 %6916
        %v6918 = vadd.f32 %v6870, %v6872
        %6919 = vadd.xlane.f32.xlu0 %v6918
        %v6920 = vpop.xlane.xlu0 %6919
        %v6921 = vlog2.pop %v6875
        %v6922 = vmul.f32 %v6921, 0.6931472
        %v6923 = vlog2.pop %v6878
        %v6924 = vmul.f32 %v6923, 0.6931472
        %v6925 = vlog2.pop %v6881
        %v6926 = vmul.f32 %v6925, 0.6931472
        %v6927 = vlog2.pop %v6884
        %v6928 = vmul.f32 %v6927, 0.6931472
        %v6929 = vlog2.pop %v6887
        %v6930 = vmul.f32 %v6929, 0.6931472
        %v6931 = vlog2.pop %v6890
        %v6932 = vmul.f32 %v6931, 0.6931472
        %v6933 = vlog2.pop %v6893
        %v6934 = vmul.f32 %v6933, 0.6931472
        %v6935 = vlog2.pop %v6896
        %v6936 = vmul.f32 %v6935, 0.6931472
        %v6937 = vlog2.pop %v6899
        %v6938 = vmul.f32 %v6937, 0.6931472
        %v6939 = vlog2.pop %v6902
        %v6940 = vmul.f32 %v6939, 0.6931472
        %v6941 = vlog2.pop %v6905
        %v6942 = vmul.f32 %v6941, 0.6931472
        %v6943 = vlog2.pop %v6908
        %v6944 = vmul.f32 %v6943, 0.6931472
        %v6945 = vlog2.pop %v6911
        %v6946 = vmul.f32 %v6945, 0.6931472
        %v6947 = vlog2.pop %v6914
        %v6948 = vmul.f32 %v6947, 0.6931472
        %v6949 = vlog2.pop %v6917
        %v6950 = vmul.f32 %v6949, 0.6931472
        %v6951 = vlog2.pop %v6920
        %v6952 = vmul.f32 %v6951, 0.6931472
        %v6953 = vsub.f32 0.0, %v6922
        %v6954 = vsub.f32 0.0, %v6924
        %v6955 = vsub.f32 0.0, %v6926
        %v6956 = vsub.f32 0.0, %v6928
        %v6957 = vsub.f32 0.0, %v6930
        %v6958 = vsub.f32 0.0, %v6932
        %v6959 = vsub.f32 0.0, %v6934
        %v6960 = vsub.f32 0.0, %v6936
        %v6961 = vsub.f32 0.0, %v6938
        %v6962 = vsub.f32 0.0, %v6940
        %v6963 = vsub.f32 0.0, %v6942
        %v6964 = vsub.f32 0.0, %v6944
        %v6965 = vsub.f32 0.0, %v6946
        %v6966 = vsub.f32 0.0, %v6948
        %v6967 = vsub.f32 0.0, %v6950
        %v6968 = vsub.f32 0.0, %v6952
        %v6969 = vmax.f32 %v6953, -11.512925
        %v6970 = vmax.f32 %v6954, -11.512925
        %v6971 = vmax.f32 %v6955, -11.512925
        %v6972 = vmax.f32 %v6956, -11.512925
        %v6973 = vmax.f32 %v6957, -11.512925
        %v6974 = vmax.f32 %v6958, -11.512925
        %v6975 = vmax.f32 %v6959, -11.512925
        %v6976 = vmax.f32 %v6960, -11.512925
        %v6977 = vmax.f32 %v6961, -11.512925
        %v6978 = vmax.f32 %v6962, -11.512925
        %v6979 = vmax.f32 %v6963, -11.512925
        %v6980 = vmax.f32 %v6964, -11.512925
        %v6981 = vmax.f32 %v6965, -11.512925
        %v6982 = vmax.f32 %v6966, -11.512925
        %v6983 = vmax.f32 %v6967, -11.512925
        %v6984 = vmax.f32 %v6968, -11.512925
        %v6985 = vmin.f32 %v6969, -1.000005e-05
        %v6986 = vmin.f32 %v6970, -1.000005e-05
        %v6987 = vmin.f32 %v6971, -1.000005e-05
        %v6988 = vmin.f32 %v6972, -1.000005e-05
        %v6989 = vmin.f32 %v6973, -1.000005e-05
        %v6990 = vmin.f32 %v6974, -1.000005e-05
        %v6991 = vmin.f32 %v6975, -1.000005e-05
        %v6992 = vmin.f32 %v6976, -1.000005e-05
        %v6993 = vmin.f32 %v6977, -1.000005e-05
        %v6994 = vmin.f32 %v6978, -1.000005e-05
        %v6995 = vmin.f32 %v6979, -1.000005e-05
        %v6996 = vmin.f32 %v6980, -1.000005e-05
        %v6997 = vmin.f32 %v6981, -1.000005e-05
        %v6998 = vmin.f32 %v6982, -1.000005e-05
        %v6999 = vmin.f32 %v6983, -1.000005e-05
        %v7000 = vmin.f32 %v6984, -1.000005e-05
        %v7001 = vadd.f32 %v5759, %v6985
        %v7002 = vadd.f32 %v5760, %v6986
        %v7003 = vadd.f32 %v5761, %v6987
        %v7004 = vadd.f32 %v5762, %v6988
        %v7005 = vadd.f32 %v5763, %v6989
        %v7006 = vadd.f32 %v5764, %v6990
        %v7007 = vadd.f32 %v5765, %v6991
        %v7008 = vadd.f32 %v5766, %v6992
        %v7009 = vadd.f32 %v5767, %v6993
        %v7010 = vadd.f32 %v5768, %v6994
        %v7011 = vadd.f32 %v5769, %v6995
        %v7012 = vadd.f32 %v5770, %v6996
        %v7013 = vadd.f32 %v5771, %v6997
        %v7014 = vadd.f32 %v5772, %v6998
        %v7015 = vadd.f32 %v5773, %v6999
        %v7016 = vadd.f32 %v5774, %v7000
        %v7017 = vld [vmem:[#allocation2 + $0x50] sm:$0xff]
        %v7018 = vld [vmem:[#allocation2 + $0xd0] sm:$0xff]
        %v7019 = vld [vmem:[#allocation2 + $0x150] sm:$0xff]
        %v7020 = vld [vmem:[#allocation2 + $0x1d0] sm:$0xff]
        %v7021 = vld [vmem:[#allocation2 + $0x250] sm:$0xff]
        %v7022 = vld [vmem:[#allocation2 + $0x2d0] sm:$0xff]
        %v7023 = vld [vmem:[#allocation2 + $0x350] sm:$0xff]
        %v7024 = vld [vmem:[#allocation2 + $0x3d0] sm:$0xff]
        %v7025 = vld [vmem:[#allocation2 + $0x450] sm:$0xff]
        %v7026 = vld [vmem:[#allocation2 + $0x4d0] sm:$0xff]
        %v7027 = vld [vmem:[#allocation2 + $0x550] sm:$0xff]
        %v7028 = vld [vmem:[#allocation2 + $0x5d0] sm:$0xff]
        %v7029 = vld [vmem:[#allocation2 + $0x650] sm:$0xff]
        %v7030 = vld [vmem:[#allocation2 + $0x6d0] sm:$0xff]
        %v7031 = vld [vmem:[#allocation2 + $0x750] sm:$0xff]
        %v7032 = vld [vmem:[#allocation2 + $0x7d0] sm:$0xff]
        %v7033 = vld [vmem:[%s7 + $0x14] sm:$0x3]
        %v7035 = vlaneseq
        %v7036 = vshrl.u32 %v7035, 7
        %v7037 = vsub.s32 0, %v7036
        %v7038 = vrot.slane %v7033, %v7037
        %v7039 = vlaneseq
        %v7040 = vshrl.u32 %v7039, 7
        %v7041 = vsub.s32 1, %v7040
        %v7042 = vrot.slane %v7033, %v7041
        %v7061 = vunpack.c.l.b16 %v7017
        %v7062 = vunpack.c.h.b16 %v7017
        %v7063 = vunpack.c.l.b16 %v7018
        %v7064 = vunpack.c.h.b16 %v7018
        %v7065 = vunpack.c.l.b16 %v7019
        %v7066 = vunpack.c.h.b16 %v7019
        %v7067 = vunpack.c.l.b16 %v7020
        %v7068 = vunpack.c.h.b16 %v7020
        %v7069 = vunpack.c.l.b16 %v7021
        %v7070 = vunpack.c.h.b16 %v7021
        %v7071 = vunpack.c.l.b16 %v7022
        %v7072 = vunpack.c.h.b16 %v7022
        %v7073 = vunpack.c.l.b16 %v7023
        %v7074 = vunpack.c.h.b16 %v7023
        %v7075 = vunpack.c.l.b16 %v7024
        %v7076 = vunpack.c.h.b16 %v7024
        %v7077 = vunpack.c.l.b16 %v7025
        %v7078 = vunpack.c.h.b16 %v7025
        %v7079 = vunpack.c.l.b16 %v7026
        %v7080 = vunpack.c.h.b16 %v7026
        %v7081 = vunpack.c.l.b16 %v7027
        %v7082 = vunpack.c.h.b16 %v7027
        %v7083 = vunpack.c.l.b16 %v7028
        %v7084 = vunpack.c.h.b16 %v7028
        %v7085 = vunpack.c.l.b16 %v7029
        %v7086 = vunpack.c.h.b16 %v7029
        %v7087 = vunpack.c.l.b16 %v7030
        %v7088 = vunpack.c.h.b16 %v7030
        %v7089 = vunpack.c.l.b16 %v7031
        %v7090 = vunpack.c.h.b16 %v7031
        %v7091 = vunpack.c.l.b16 %v7032
        %v7092 = vunpack.c.h.b16 %v7032
        %v7093 = vpack.c.b16 %v7063, %v7061
        %v7094 = vpack.c.b16 %v7064, %v7062
        %v7095 = vpack.c.b16 %v7067, %v7065
        %v7096 = vpack.c.b16 %v7068, %v7066
        %v7097 = vpack.c.b16 %v7071, %v7069
        %v7098 = vpack.c.b16 %v7072, %v7070
        %v7099 = vpack.c.b16 %v7075, %v7073
        %v7100 = vpack.c.b16 %v7076, %v7074
        %v7101 = vpack.c.b16 %v7079, %v7077
        %v7102 = vpack.c.b16 %v7080, %v7078
        %v7103 = vpack.c.b16 %v7083, %v7081
        %v7104 = vpack.c.b16 %v7084, %v7082
        %v7105 = vpack.c.b16 %v7087, %v7085
        %v7106 = vpack.c.b16 %v7088, %v7086
        %v7107 = vpack.c.b16 %v7091, %v7089
        %v7108 = vpack.c.b16 %v7092, %v7090
        %7125 = vmatprep.subr.bf16.mxu0 %v7108
        %7126 = vmatpush1.bf16.msra.mxu0 %v7107
        %7127 = vmatprep.subr.bf16.mxu0 %v7106
        %7128 = vmatpush1.bf16.msra.mxu0 %v7105
        %7129 = vmatprep.subr.bf16.mxu0 %v7104
        %7130 = vmatpush1.bf16.msra.mxu0 %v7103
        %7131 = vmatprep.subr.bf16.mxu0 %v7102
        %7132 = vmatpush1.bf16.msra.mxu0 %v7101
        %7133 = vmatprep.subr.bf16.mxu0 %v7100
        %7134 = vmatpush1.bf16.msra.mxu0 %v7099
        %7135 = vmatprep.subr.bf16.mxu0 %v7098
        %7136 = vmatpush1.bf16.msra.mxu0 %v7097
        %7137 = vmatprep.subr.bf16.mxu0 %v7096
        %7138 = vmatpush1.bf16.msra.mxu0 %v7095
        %7139 = vmatprep.subr.bf16.mxu0 %v7094
        %7140 = vmatpush1.bf16.msra.mxu0 %v7093
        %7141 = vmatprep.subr.bf16.mxu0 0
        %7142 = vmatpush2.bf16.msra.mxu0 0
        %7143 = vmatprep.subr.bf16.mxu0 0
        %7144 = vmatpush2.bf16.msra.mxu0 0
        %7145 = vmatprep.subr.bf16.mxu0 0
        %7146 = vmatpush2.bf16.msra.mxu0 0
        %7147 = vmatprep.subr.bf16.mxu0 0
        %7148 = vmatpush2.bf16.msra.mxu0 0
        %7149 = vmatprep.subr.bf16.mxu0 0
        %7150 = vmatpush2.bf16.msra.mxu0 0
        %7151 = vmatprep.subr.bf16.mxu0 0
        %7152 = vmatpush2.bf16.msra.mxu0 0
        %7153 = vmatprep.subr.bf16.mxu0 0
        %7154 = vmatpush2.bf16.msra.mxu0 0
        %7155 = vmatprep.subr.bf16.mxu0 0
        %7156 = vmatpush2.bf16.msra.mxu0 0
        %7157 = vmatprep.mubr.bf16.mxu0 0
        %7158 = vmatmul.mubr.bf16.gmra.mxu0 %v780
        %v7159 = vpop.f32.mrf.mxu0
        %v7160 = vadd.f32 %v7038, %v7159
        %v7161 = vpop.f32.mrf.mxu0
        %v7162 = vadd.f32 %v7042, %v7161
        %v7163 = vpop.f32.mrf.mxu0
        %v7164 = vadd.f32 %v7038, %v7163
        %v7165 = vpop.f32.mrf.mxu0
        %v7166 = vadd.f32 %v7042, %v7165
        %7167 = vmatprep.mubr.bf16.mxu0 0
        %7168 = vmatmul.mubr.bf16.gmra.mxu0 %v781
        %v7169 = vpop.f32.mrf.mxu0
        %v7170 = vadd.f32 %v7038, %v7169
        %v7171 = vpop.f32.mrf.mxu0
        %v7172 = vadd.f32 %v7042, %v7171
        %v7173 = vpop.f32.mrf.mxu0
        %v7174 = vadd.f32 %v7038, %v7173
        %v7175 = vpop.f32.mrf.mxu0
        %v7176 = vadd.f32 %v7042, %v7175
        %7177 = vmatprep.mubr.bf16.mxu0 0
        %7178 = vmatmul.mubr.bf16.gmra.mxu0 %v782
        %v7179 = vpop.f32.mrf.mxu0
        %v7180 = vadd.f32 %v7038, %v7179
        %v7181 = vpop.f32.mrf.mxu0
        %v7182 = vadd.f32 %v7042, %v7181
        %v7183 = vpop.f32.mrf.mxu0
        %v7184 = vadd.f32 %v7038, %v7183
        %v7185 = vpop.f32.mrf.mxu0
        %v7186 = vadd.f32 %v7042, %v7185
        %7187 = vmatprep.mubr.bf16.mxu0 0
        %7188 = vmatmul.mubr.bf16.gmra.mxu0 %v783
        %v7189 = vpop.f32.mrf.mxu0
        %v7190 = vadd.f32 %v7038, %v7189
        %v7191 = vpop.f32.mrf.mxu0
        %v7192 = vadd.f32 %v7042, %v7191
        %v7193 = vpop.f32.mrf.mxu0
        %v7194 = vadd.f32 %v7038, %v7193
        %v7195 = vpop.f32.mrf.mxu0
        %v7196 = vadd.f32 %v7042, %v7195
        %7197 = vmatprep.mubr.bf16.mxu0 0
        %7198 = vmatmul.mubr.bf16.gmra.mxu0 %v784
        %v7199 = vpop.f32.mrf.mxu0
        %v7200 = vadd.f32 %v7038, %v7199
        %v7201 = vpop.f32.mrf.mxu0
        %v7202 = vadd.f32 %v7042, %v7201
        %v7203 = vpop.f32.mrf.mxu0
        %v7204 = vadd.f32 %v7038, %v7203
        %v7205 = vpop.f32.mrf.mxu0
        %v7206 = vadd.f32 %v7042, %v7205
        %7207 = vmatprep.mubr.bf16.mxu0 0
        %7208 = vmatmul.mubr.bf16.gmra.mxu0 %v785
        %v7209 = vpop.f32.mrf.mxu0
        %v7210 = vadd.f32 %v7038, %v7209
        %v7211 = vpop.f32.mrf.mxu0
        %v7212 = vadd.f32 %v7042, %v7211
        %v7213 = vpop.f32.mrf.mxu0
        %v7214 = vadd.f32 %v7038, %v7213
        %v7215 = vpop.f32.mrf.mxu0
        %v7216 = vadd.f32 %v7042, %v7215
        %7217 = vmatprep.mubr.bf16.mxu0 0
        %7218 = vmatmul.mubr.bf16.gmra.mxu0 %v786
        %v7219 = vpop.f32.mrf.mxu0
        %v7220 = vadd.f32 %v7038, %v7219
        %v7221 = vpop.f32.mrf.mxu0
        %v7222 = vadd.f32 %v7042, %v7221
        %v7223 = vpop.f32.mrf.mxu0
        %v7224 = vadd.f32 %v7038, %v7223
        %v7225 = vpop.f32.mrf.mxu0
        %v7226 = vadd.f32 %v7042, %v7225
        %7227 = vmatprep.mubr.bf16.mxu0 0
        %7228 = vmatmul.mubr.bf16.gmra.mxu0 %v787
        %v7229 = vpop.f32.mrf.mxu0
        %v7230 = vadd.f32 %v7038, %v7229
        %v7231 = vpop.f32.mrf.mxu0
        %v7232 = vadd.f32 %v7042, %v7231
        %v7233 = vpop.f32.mrf.mxu0
        %v7234 = vadd.f32 %v7038, %v7233
        %v7235 = vpop.f32.mrf.mxu0
        %v7236 = vadd.f32 %v7042, %v7235
        %7237 = vdwg.mxu0
        %7238 = vset.pattern.permute.xlu0 10
        %7239 = vperm.xlu0 %7238, %v788
        %v7240 = vpop.permute.xlu0 %7239
        %7241 = vset.pattern.permute.xlu0 10
        %7242 = vperm.xlu0 %7241, %v789
        %v7243 = vpop.permute.xlu0 %7242
        %7244 = vset.pattern.permute.xlu0 10
        %7245 = vperm.xlu0 %7244, %v790
        %v7246 = vpop.permute.xlu0 %7245
        %7247 = vset.pattern.permute.xlu0 10
        %7248 = vperm.xlu0 %7247, %v791
        %v7249 = vpop.permute.xlu0 %7248
        %7250 = vset.pattern.permute.xlu0 10
        %7251 = vperm.xlu0 %7250, %v792
        %v7252 = vpop.permute.xlu0 %7251
        %7253 = vset.pattern.permute.xlu0 10
        %7254 = vperm.xlu0 %7253, %v793
        %v7255 = vpop.permute.xlu0 %7254
        %7256 = vset.pattern.permute.xlu0 10
        %7257 = vperm.xlu0 %7256, %v794
        %v7258 = vpop.permute.xlu0 %7257
        %7259 = vset.pattern.permute.xlu0 10
        %7260 = vperm.xlu0 %7259, %v795
        %v7261 = vpop.permute.xlu0 %7260
        %7262 = vset.pattern.permute.xlu0 10
        %7263 = vperm.xlu0 %7262, %v796
        %v7264 = vpop.permute.xlu0 %7263
        %7265 = vset.pattern.permute.xlu0 10
        %7266 = vperm.xlu0 %7265, %v797
        %v7267 = vpop.permute.xlu0 %7266
        %7268 = vset.pattern.permute.xlu0 10
        %7269 = vperm.xlu0 %7268, %v798
        %v7270 = vpop.permute.xlu0 %7269
        %7271 = vset.pattern.permute.xlu0 10
        %7272 = vperm.xlu0 %7271, %v799
        %v7273 = vpop.permute.xlu0 %7272
        %7274 = vset.pattern.permute.xlu0 10
        %7275 = vperm.xlu0 %7274, %v800
        %v7276 = vpop.permute.xlu0 %7275
        %7277 = vset.pattern.permute.xlu0 10
        %7278 = vperm.xlu0 %7277, %v801
        %v7279 = vpop.permute.xlu0 %7278
        %7280 = vset.pattern.permute.xlu0 10
        %7281 = vperm.xlu0 %7280, %v802
        %v7282 = vpop.permute.xlu0 %7281
        %7283 = vset.pattern.permute.xlu0 10
        %7284 = vperm.xlu0 %7283, %v803
        %v7285 = vpop.permute.xlu0 %7284
        %vm7286 = vcmp.eq.s32.totalorder %v805, %v7240
        %vm7287 = vcmp.eq.s32.totalorder %v806, %v7240
        %vm7288 = vcmp.eq.s32.totalorder %v805, %v7243
        %vm7289 = vcmp.eq.s32.totalorder %v806, %v7243
        %vm7290 = vcmp.eq.s32.totalorder %v805, %v7246
        %vm7291 = vcmp.eq.s32.totalorder %v806, %v7246
        %vm7292 = vcmp.eq.s32.totalorder %v805, %v7249
        %vm7293 = vcmp.eq.s32.totalorder %v806, %v7249
        %vm7294 = vcmp.eq.s32.totalorder %v805, %v7252
        %vm7295 = vcmp.eq.s32.totalorder %v806, %v7252
        %vm7296 = vcmp.eq.s32.totalorder %v805, %v7255
        %vm7297 = vcmp.eq.s32.totalorder %v806, %v7255
        %vm7298 = vcmp.eq.s32.totalorder %v805, %v7258
        %vm7299 = vcmp.eq.s32.totalorder %v806, %v7258
        %vm7300 = vcmp.eq.s32.totalorder %v805, %v7261
        %vm7301 = vcmp.eq.s32.totalorder %v806, %v7261
        %vm7302 = vcmp.eq.s32.totalorder %v805, %v7264
        %vm7303 = vcmp.eq.s32.totalorder %v806, %v7264
        %vm7304 = vcmp.eq.s32.totalorder %v805, %v7267
        %vm7305 = vcmp.eq.s32.totalorder %v806, %v7267
        %vm7306 = vcmp.eq.s32.totalorder %v805, %v7270
        %vm7307 = vcmp.eq.s32.totalorder %v806, %v7270
        %vm7308 = vcmp.eq.s32.totalorder %v805, %v7273
        %vm7309 = vcmp.eq.s32.totalorder %v806, %v7273
        %vm7310 = vcmp.eq.s32.totalorder %v805, %v7276
        %vm7311 = vcmp.eq.s32.totalorder %v806, %v7276
        %vm7312 = vcmp.eq.s32.totalorder %v805, %v7279
        %vm7313 = vcmp.eq.s32.totalorder %v806, %v7279
        %vm7314 = vcmp.eq.s32.totalorder %v805, %v7282
        %vm7315 = vcmp.eq.s32.totalorder %v806, %v7282
        %vm7316 = vcmp.eq.s32.totalorder %v805, %v7285
        %vm7317 = vcmp.eq.s32.totalorder %v806, %v7285
        %v7318 = vsel %vm7286, %v7160, 0.0
        %v7319 = vsel %vm7287, %v7162, 0.0
        %v7320 = vsel %vm7288, %v7164, 0.0
        %v7321 = vsel %vm7289, %v7166, 0.0
        %v7322 = vsel %vm7290, %v7170, 0.0
        %v7323 = vsel %vm7291, %v7172, 0.0
        %v7324 = vsel %vm7292, %v7174, 0.0
        %v7325 = vsel %vm7293, %v7176, 0.0
        %v7326 = vsel %vm7294, %v7180, 0.0
        %v7327 = vsel %vm7295, %v7182, 0.0
        %v7328 = vsel %vm7296, %v7184, 0.0
        %v7329 = vsel %vm7297, %v7186, 0.0
        %v7330 = vsel %vm7298, %v7190, 0.0
        %v7331 = vsel %vm7299, %v7192, 0.0
        %v7332 = vsel %vm7300, %v7194, 0.0
        %v7333 = vsel %vm7301, %v7196, 0.0
        %v7334 = vsel %vm7302, %v7200, 0.0
        %v7335 = vsel %vm7303, %v7202, 0.0
        %v7336 = vsel %vm7304, %v7204, 0.0
        %v7337 = vsel %vm7305, %v7206, 0.0
        %v7338 = vsel %vm7306, %v7210, 0.0
        %v7339 = vsel %vm7307, %v7212, 0.0
        %v7340 = vsel %vm7308, %v7214, 0.0
        %v7341 = vsel %vm7309, %v7216, 0.0
        %v7342 = vsel %vm7310, %v7220, 0.0
        %v7343 = vsel %vm7311, %v7222, 0.0
        %v7344 = vsel %vm7312, %v7224, 0.0
        %v7345 = vsel %vm7313, %v7226, 0.0
        %v7346 = vsel %vm7314, %v7230, 0.0
        %v7347 = vsel %vm7315, %v7232, 0.0
        %v7348 = vsel %vm7316, %v7234, 0.0
        %v7349 = vsel %vm7317, %v7236, 0.0
        %v7350 = vadd.f32 %v7318, %v7319
        %7351 = vadd.xlane.f32.xlu0 %v7350
        %v7352 = vpop.xlane.xlu0 %7351
        %v7353 = vadd.f32 %v7320, %v7321
        %7354 = vadd.xlane.f32.xlu0 %v7353
        %v7355 = vpop.xlane.xlu0 %7354
        %v7356 = vadd.f32 %v7322, %v7323
        %7357 = vadd.xlane.f32.xlu0 %v7356
        %v7358 = vpop.xlane.xlu0 %7357
        %v7359 = vadd.f32 %v7324, %v7325
        %7360 = vadd.xlane.f32.xlu0 %v7359
        %v7361 = vpop.xlane.xlu0 %7360
        %v7362 = vadd.f32 %v7326, %v7327
        %7363 = vadd.xlane.f32.xlu0 %v7362
        %v7364 = vpop.xlane.xlu0 %7363
        %v7365 = vadd.f32 %v7328, %v7329
        %7366 = vadd.xlane.f32.xlu0 %v7365
        %v7367 = vpop.xlane.xlu0 %7366
        %v7368 = vadd.f32 %v7330, %v7331
        %7369 = vadd.xlane.f32.xlu0 %v7368
        %v7370 = vpop.xlane.xlu0 %7369
        %v7371 = vadd.f32 %v7332, %v7333
        %7372 = vadd.xlane.f32.xlu0 %v7371
        %v7373 = vpop.xlane.xlu0 %7372
        %v7374 = vadd.f32 %v7334, %v7335
        %7375 = vadd.xlane.f32.xlu0 %v7374
        %v7376 = vpop.xlane.xlu0 %7375
        %v7377 = vadd.f32 %v7336, %v7337
        %7378 = vadd.xlane.f32.xlu0 %v7377
        %v7379 = vpop.xlane.xlu0 %7378
        %v7380 = vadd.f32 %v7338, %v7339
        %7381 = vadd.xlane.f32.xlu0 %v7380
        %v7382 = vpop.xlane.xlu0 %7381
        %v7383 = vadd.f32 %v7340, %v7341
        %7384 = vadd.xlane.f32.xlu0 %v7383
        %v7385 = vpop.xlane.xlu0 %7384
        %v7386 = vadd.f32 %v7342, %v7343
        %7387 = vadd.xlane.f32.xlu0 %v7386
        %v7388 = vpop.xlane.xlu0 %7387
        %v7389 = vadd.f32 %v7344, %v7345
        %7390 = vadd.xlane.f32.xlu0 %v7389
        %v7391 = vpop.xlane.xlu0 %7390
        %v7392 = vadd.f32 %v7346, %v7347
        %7393 = vadd.xlane.f32.xlu0 %v7392
        %v7394 = vpop.xlane.xlu0 %7393
        %v7395 = vadd.f32 %v7348, %v7349
        %7396 = vadd.xlane.f32.xlu0 %v7395
        %v7397 = vpop.xlane.xlu0 %7396
        %v7398 = vsub.f32 %v7160, %v7352
        %v7399 = vsub.f32 %v7162, %v7352
        %v7400 = vsub.f32 %v7164, %v7355
        %v7401 = vsub.f32 %v7166, %v7355
        %v7402 = vsub.f32 %v7170, %v7358
        %v7403 = vsub.f32 %v7172, %v7358
        %v7404 = vsub.f32 %v7174, %v7361
        %v7405 = vsub.f32 %v7176, %v7361
        %v7406 = vsub.f32 %v7180, %v7364
        %v7407 = vsub.f32 %v7182, %v7364
        %v7408 = vsub.f32 %v7184, %v7367
        %v7409 = vsub.f32 %v7186, %v7367
        %v7410 = vsub.f32 %v7190, %v7370
        %v7411 = vsub.f32 %v7192, %v7370
        %v7412 = vsub.f32 %v7194, %v7373
        %v7413 = vsub.f32 %v7196, %v7373
        %v7414 = vsub.f32 %v7200, %v7376
        %v7415 = vsub.f32 %v7202, %v7376
        %v7416 = vsub.f32 %v7204, %v7379
        %v7417 = vsub.f32 %v7206, %v7379
        %v7418 = vsub.f32 %v7210, %v7382
        %v7419 = vsub.f32 %v7212, %v7382
        %v7420 = vsub.f32 %v7214, %v7385
        %v7421 = vsub.f32 %v7216, %v7385
        %v7422 = vsub.f32 %v7220, %v7388
        %v7423 = vsub.f32 %v7222, %v7388
        %v7424 = vsub.f32 %v7224, %v7391
        %v7425 = vsub.f32 %v7226, %v7391
        %v7426 = vsub.f32 %v7230, %v7394
        %v7427 = vsub.f32 %v7232, %v7394
        %v7428 = vsub.f32 %v7234, %v7397
        %v7429 = vsub.f32 %v7236, %v7397
        %v7430 = vmul.f32 %v7398, 1.442695
        %v7431 = vpow.pop %v7430
        %v7432 = vmul.f32 %v7399, 1.442695
        %v7433 = vpow.pop %v7432
        %v7434 = vmul.f32 %v7400, 1.442695
        %v7435 = vpow.pop %v7434
        %v7436 = vmul.f32 %v7401, 1.442695
        %v7437 = vpow.pop %v7436
        %v7438 = vmul.f32 %v7402, 1.442695
        %v7439 = vpow.pop %v7438
        %v7440 = vmul.f32 %v7403, 1.442695
        %v7441 = vpow.pop %v7440
        %v7442 = vmul.f32 %v7404, 1.442695
        %v7443 = vpow.pop %v7442
        %v7444 = vmul.f32 %v7405, 1.442695
        %v7445 = vpow.pop %v7444
        %v7446 = vmul.f32 %v7406, 1.442695
        %v7447 = vpow.pop %v7446
        %v7448 = vmul.f32 %v7407, 1.442695
        %v7449 = vpow.pop %v7448
        %v7450 = vmul.f32 %v7408, 1.442695
        %v7451 = vpow.pop %v7450
        %v7452 = vmul.f32 %v7409, 1.442695
        %v7453 = vpow.pop %v7452
        %v7454 = vmul.f32 %v7410, 1.442695
        %v7455 = vpow.pop %v7454
        %v7456 = vmul.f32 %v7411, 1.442695
        %v7457 = vpow.pop %v7456
        %v7458 = vmul.f32 %v7412, 1.442695
        %v7459 = vpow.pop %v7458
        %v7460 = vmul.f32 %v7413, 1.442695
        %v7461 = vpow.pop %v7460
        %v7462 = vmul.f32 %v7414, 1.442695
        %v7463 = vpow.pop %v7462
        %v7464 = vmul.f32 %v7415, 1.442695
        %v7465 = vpow.pop %v7464
        %v7466 = vmul.f32 %v7416, 1.442695
        %v7467 = vpow.pop %v7466
        %v7468 = vmul.f32 %v7417, 1.442695
        %v7469 = vpow.pop %v7468
        %v7470 = vmul.f32 %v7418, 1.442695
        %v7471 = vpow.pop %v7470
        %v7472 = vmul.f32 %v7419, 1.442695
        %v7473 = vpow.pop %v7472
        %v7474 = vmul.f32 %v7420, 1.442695
        %v7475 = vpow.pop %v7474
        %v7476 = vmul.f32 %v7421, 1.442695
        %v7477 = vpow.pop %v7476
        %v7478 = vmul.f32 %v7422, 1.442695
        %v7479 = vpow.pop %v7478
        %v7480 = vmul.f32 %v7423, 1.442695
        %v7481 = vpow.pop %v7480
        %v7482 = vmul.f32 %v7424, 1.442695
        %v7483 = vpow.pop %v7482
        %v7484 = vmul.f32 %v7425, 1.442695
        %v7485 = vpow.pop %v7484
        %v7486 = vmul.f32 %v7426, 1.442695
        %v7487 = vpow.pop %v7486
        %v7488 = vmul.f32 %v7427, 1.442695
        %v7489 = vpow.pop %v7488
        %v7490 = vmul.f32 %v7428, 1.442695
        %v7491 = vpow.pop %v7490
        %v7492 = vmul.f32 %v7429, 1.442695
        %v7493 = vpow.pop %v7492
        %v7494 = vadd.f32 %v7431, %v7433
        %7495 = vadd.xlane.f32.xlu0 %v7494
        %v7496 = vpop.xlane.xlu0 %7495
        %v7497 = vadd.f32 %v7435, %v7437
        %7498 = vadd.xlane.f32.xlu0 %v7497
        %v7499 = vpop.xlane.xlu0 %7498
        %v7500 = vadd.f32 %v7439, %v7441
        %7501 = vadd.xlane.f32.xlu0 %v7500
        %v7502 = vpop.xlane.xlu0 %7501
        %v7503 = vadd.f32 %v7443, %v7445
        %7504 = vadd.xlane.f32.xlu0 %v7503
        %v7505 = vpop.xlane.xlu0 %7504
        %v7506 = vadd.f32 %v7447, %v7449
        %7507 = vadd.xlane.f32.xlu0 %v7506
        %v7508 = vpop.xlane.xlu0 %7507
        %v7509 = vadd.f32 %v7451, %v7453
        %7510 = vadd.xlane.f32.xlu0 %v7509
        %v7511 = vpop.xlane.xlu0 %7510
        %v7512 = vadd.f32 %v7455, %v7457
        %7513 = vadd.xlane.f32.xlu0 %v7512
        %v7514 = vpop.xlane.xlu0 %7513
        %v7515 = vadd.f32 %v7459, %v7461
        %7516 = vadd.xlane.f32.xlu0 %v7515
        %v7517 = vpop.xlane.xlu0 %7516
        %v7518 = vadd.f32 %v7463, %v7465
        %7519 = vadd.xlane.f32.xlu0 %v7518
        %v7520 = vpop.xlane.xlu0 %7519
        %v7521 = vadd.f32 %v7467, %v7469
        %7522 = vadd.xlane.f32.xlu0 %v7521
        %v7523 = vpop.xlane.xlu0 %7522
        %v7524 = vadd.f32 %v7471, %v7473
        %7525 = vadd.xlane.f32.xlu0 %v7524
        %v7526 = vpop.xlane.xlu0 %7525
        %v7527 = vadd.f32 %v7475, %v7477
        %7528 = vadd.xlane.f32.xlu0 %v7527
        %v7529 = vpop.xlane.xlu0 %7528
        %v7530 = vadd.f32 %v7479, %v7481
        %7531 = vadd.xlane.f32.xlu0 %v7530
        %v7532 = vpop.xlane.xlu0 %7531
        %v7533 = vadd.f32 %v7483, %v7485
        %7534 = vadd.xlane.f32.xlu0 %v7533
        %v7535 = vpop.xlane.xlu0 %7534
        %v7536 = vadd.f32 %v7487, %v7489
        %7537 = vadd.xlane.f32.xlu0 %v7536
        %v7538 = vpop.xlane.xlu0 %7537
        %v7539 = vadd.f32 %v7491, %v7493
        %7540 = vadd.xlane.f32.xlu0 %v7539
        %v7541 = vpop.xlane.xlu0 %7540
        %v7542 = vlog2.pop %v7496
        %v7543 = vmul.f32 %v7542, 0.6931472
        %v7544 = vlog2.pop %v7499
        %v7545 = vmul.f32 %v7544, 0.6931472
        %v7546 = vlog2.pop %v7502
        %v7547 = vmul.f32 %v7546, 0.6931472
        %v7548 = vlog2.pop %v7505
        %v7549 = vmul.f32 %v7548, 0.6931472
        %v7550 = vlog2.pop %v7508
        %v7551 = vmul.f32 %v7550, 0.6931472
        %v7552 = vlog2.pop %v7511
        %v7553 = vmul.f32 %v7552, 0.6931472
        %v7554 = vlog2.pop %v7514
        %v7555 = vmul.f32 %v7554, 0.6931472
        %v7556 = vlog2.pop %v7517
        %v7557 = vmul.f32 %v7556, 0.6931472
        %v7558 = vlog2.pop %v7520
        %v7559 = vmul.f32 %v7558, 0.6931472
        %v7560 = vlog2.pop %v7523
        %v7561 = vmul.f32 %v7560, 0.6931472
        %v7562 = vlog2.pop %v7526
        %v7563 = vmul.f32 %v7562, 0.6931472
        %v7564 = vlog2.pop %v7529
        %v7565 = vmul.f32 %v7564, 0.6931472
        %v7566 = vlog2.pop %v7532
        %v7567 = vmul.f32 %v7566, 0.6931472
        %v7568 = vlog2.pop %v7535
        %v7569 = vmul.f32 %v7568, 0.6931472
        %v7570 = vlog2.pop %v7538
        %v7571 = vmul.f32 %v7570, 0.6931472
        %v7572 = vlog2.pop %v7541
        %v7573 = vmul.f32 %v7572, 0.6931472
        %v7574 = vsub.f32 0.0, %v7543
        %v7575 = vsub.f32 0.0, %v7545
        %v7576 = vsub.f32 0.0, %v7547
        %v7577 = vsub.f32 0.0, %v7549
        %v7578 = vsub.f32 0.0, %v7551
        %v7579 = vsub.f32 0.0, %v7553
        %v7580 = vsub.f32 0.0, %v7555
        %v7581 = vsub.f32 0.0, %v7557
        %v7582 = vsub.f32 0.0, %v7559
        %v7583 = vsub.f32 0.0, %v7561
        %v7584 = vsub.f32 0.0, %v7563
        %v7585 = vsub.f32 0.0, %v7565
        %v7586 = vsub.f32 0.0, %v7567
        %v7587 = vsub.f32 0.0, %v7569
        %v7588 = vsub.f32 0.0, %v7571
        %v7589 = vsub.f32 0.0, %v7573
        %v7590 = vmax.f32 %v7574, -11.512925
        %v7591 = vmax.f32 %v7575, -11.512925
        %v7592 = vmax.f32 %v7576, -11.512925
        %v7593 = vmax.f32 %v7577, -11.512925
        %v7594 = vmax.f32 %v7578, -11.512925
        %v7595 = vmax.f32 %v7579, -11.512925
        %v7596 = vmax.f32 %v7580, -11.512925
        %v7597 = vmax.f32 %v7581, -11.512925
        %v7598 = vmax.f32 %v7582, -11.512925
        %v7599 = vmax.f32 %v7583, -11.512925
        %v7600 = vmax.f32 %v7584, -11.512925
        %v7601 = vmax.f32 %v7585, -11.512925
        %v7602 = vmax.f32 %v7586, -11.512925
        %v7603 = vmax.f32 %v7587, -11.512925
        %v7604 = vmax.f32 %v7588, -11.512925
        %v7605 = vmax.f32 %v7589, -11.512925
        %v7606 = vmin.f32 %v7590, -1.000005e-05
        %v7607 = vmin.f32 %v7591, -1.000005e-05
        %v7608 = vmin.f32 %v7592, -1.000005e-05
        %v7609 = vmin.f32 %v7593, -1.000005e-05
        %v7610 = vmin.f32 %v7594, -1.000005e-05
        %v7611 = vmin.f32 %v7595, -1.000005e-05
        %v7612 = vmin.f32 %v7596, -1.000005e-05
        %v7613 = vmin.f32 %v7597, -1.000005e-05
        %v7614 = vmin.f32 %v7598, -1.000005e-05
        %v7615 = vmin.f32 %v7599, -1.000005e-05
        %v7616 = vmin.f32 %v7600, -1.000005e-05
        %v7617 = vmin.f32 %v7601, -1.000005e-05
        %v7618 = vmin.f32 %v7602, -1.000005e-05
        %v7619 = vmin.f32 %v7603, -1.000005e-05
        %v7620 = vmin.f32 %v7604, -1.000005e-05
        %v7621 = vmin.f32 %v7605, -1.000005e-05
        %v7622 = vadd.f32 %v6380, %v7606
        %v7623 = vadd.f32 %v6381, %v7607
        %v7624 = vadd.f32 %v6382, %v7608
        %v7625 = vadd.f32 %v6383, %v7609
        %v7626 = vadd.f32 %v6384, %v7610
        %v7627 = vadd.f32 %v6385, %v7611
        %v7628 = vadd.f32 %v6386, %v7612
        %v7629 = vadd.f32 %v6387, %v7613
        %v7630 = vadd.f32 %v6388, %v7614
        %v7631 = vadd.f32 %v6389, %v7615
        %v7632 = vadd.f32 %v6390, %v7616
        %v7633 = vadd.f32 %v6391, %v7617
        %v7634 = vadd.f32 %v6392, %v7618
        %v7635 = vadd.f32 %v6393, %v7619
        %v7636 = vadd.f32 %v6394, %v7620
        %v7637 = vadd.f32 %v6395, %v7621
        %v7638 = vld [vmem:[#allocation2 + $0x58] sm:$0xff]
        %v7639 = vld [vmem:[#allocation2 + $0xd8] sm:$0xff]
        %v7640 = vld [vmem:[#allocation2 + $0x158] sm:$0xff]
        %v7641 = vld [vmem:[#allocation2 + $0x1d8] sm:$0xff]
        %v7642 = vld [vmem:[#allocation2 + $0x258] sm:$0xff]
        %v7643 = vld [vmem:[#allocation2 + $0x2d8] sm:$0xff]
        %v7644 = vld [vmem:[#allocation2 + $0x358] sm:$0xff]
        %v7645 = vld [vmem:[#allocation2 + $0x3d8] sm:$0xff]
        %v7646 = vld [vmem:[#allocation2 + $0x458] sm:$0xff]
        %v7647 = vld [vmem:[#allocation2 + $0x4d8] sm:$0xff]
        %v7648 = vld [vmem:[#allocation2 + $0x558] sm:$0xff]
        %v7649 = vld [vmem:[#allocation2 + $0x5d8] sm:$0xff]
        %v7650 = vld [vmem:[#allocation2 + $0x658] sm:$0xff]
        %v7651 = vld [vmem:[#allocation2 + $0x6d8] sm:$0xff]
        %v7652 = vld [vmem:[#allocation2 + $0x758] sm:$0xff]
        %v7653 = vld [vmem:[#allocation2 + $0x7d8] sm:$0xff]
        %v7654 = vld [vmem:[%s7 + $0x16] sm:$0x3]
        %v7656 = vlaneseq
        %v7657 = vshrl.u32 %v7656, 7
        %v7658 = vsub.s32 0, %v7657
        %v7659 = vrot.slane %v7654, %v7658
        %v7660 = vlaneseq
        %v7661 = vshrl.u32 %v7660, 7
        %v7662 = vsub.s32 1, %v7661
        %v7663 = vrot.slane %v7654, %v7662
        %v7682 = vunpack.c.l.b16 %v7638
        %v7683 = vunpack.c.h.b16 %v7638
        %v7684 = vunpack.c.l.b16 %v7639
        %v7685 = vunpack.c.h.b16 %v7639
        %v7686 = vunpack.c.l.b16 %v7640
        %v7687 = vunpack.c.h.b16 %v7640
        %v7688 = vunpack.c.l.b16 %v7641
        %v7689 = vunpack.c.h.b16 %v7641
        %v7690 = vunpack.c.l.b16 %v7642
        %v7691 = vunpack.c.h.b16 %v7642
        %v7692 = vunpack.c.l.b16 %v7643
        %v7693 = vunpack.c.h.b16 %v7643
        %v7694 = vunpack.c.l.b16 %v7644
        %v7695 = vunpack.c.h.b16 %v7644
        %v7696 = vunpack.c.l.b16 %v7645
        %v7697 = vunpack.c.h.b16 %v7645
        %v7698 = vunpack.c.l.b16 %v7646
        %v7699 = vunpack.c.h.b16 %v7646
        %v7700 = vunpack.c.l.b16 %v7647
        %v7701 = vunpack.c.h.b16 %v7647
        %v7702 = vunpack.c.l.b16 %v7648
        %v7703 = vunpack.c.h.b16 %v7648
        %v7704 = vunpack.c.l.b16 %v7649
        %v7705 = vunpack.c.h.b16 %v7649
        %v7706 = vunpack.c.l.b16 %v7650
        %v7707 = vunpack.c.h.b16 %v7650
        %v7708 = vunpack.c.l.b16 %v7651
        %v7709 = vunpack.c.h.b16 %v7651
        %v7710 = vunpack.c.l.b16 %v7652
        %v7711 = vunpack.c.h.b16 %v7652
        %v7712 = vunpack.c.l.b16 %v7653
        %v7713 = vunpack.c.h.b16 %v7653
        %v7714 = vpack.c.b16 %v7684, %v7682
        %v7715 = vpack.c.b16 %v7685, %v7683
        %v7716 = vpack.c.b16 %v7688, %v7686
        %v7717 = vpack.c.b16 %v7689, %v7687
        %v7718 = vpack.c.b16 %v7692, %v7690
        %v7719 = vpack.c.b16 %v7693, %v7691
        %v7720 = vpack.c.b16 %v7696, %v7694
        %v7721 = vpack.c.b16 %v7697, %v7695
        %v7722 = vpack.c.b16 %v7700, %v7698
        %v7723 = vpack.c.b16 %v7701, %v7699
        %v7724 = vpack.c.b16 %v7704, %v7702
        %v7725 = vpack.c.b16 %v7705, %v7703
        %v7726 = vpack.c.b16 %v7708, %v7706
        %v7727 = vpack.c.b16 %v7709, %v7707
        %v7728 = vpack.c.b16 %v7712, %v7710
        %v7729 = vpack.c.b16 %v7713, %v7711
        %7746 = vmatprep.subr.bf16.mxu0 %v7729
        %7747 = vmatpush1.bf16.msra.mxu0 %v7728
        %7748 = vmatprep.subr.bf16.mxu0 %v7727
        %7749 = vmatpush1.bf16.msra.mxu0 %v7726
        %7750 = vmatprep.subr.bf16.mxu0 %v7725
        %7751 = vmatpush1.bf16.msra.mxu0 %v7724
        %7752 = vmatprep.subr.bf16.mxu0 %v7723
        %7753 = vmatpush1.bf16.msra.mxu0 %v7722
        %7754 = vmatprep.subr.bf16.mxu0 %v7721
        %7755 = vmatpush1.bf16.msra.mxu0 %v7720
        %7756 = vmatprep.subr.bf16.mxu0 %v7719
        %7757 = vmatpush1.bf16.msra.mxu0 %v7718
        %7758 = vmatprep.subr.bf16.mxu0 %v7717
        %7759 = vmatpush1.bf16.msra.mxu0 %v7716
        %7760 = vmatprep.subr.bf16.mxu0 %v7715
        %7761 = vmatpush1.bf16.msra.mxu0 %v7714
        %7762 = vmatprep.subr.bf16.mxu0 0
        %7763 = vmatpush2.bf16.msra.mxu0 0
        %7764 = vmatprep.subr.bf16.mxu0 0
        %7765 = vmatpush2.bf16.msra.mxu0 0
        %7766 = vmatprep.subr.bf16.mxu0 0
        %7767 = vmatpush2.bf16.msra.mxu0 0
        %7768 = vmatprep.subr.bf16.mxu0 0
        %7769 = vmatpush2.bf16.msra.mxu0 0
        %7770 = vmatprep.subr.bf16.mxu0 0
        %7771 = vmatpush2.bf16.msra.mxu0 0
        %7772 = vmatprep.subr.bf16.mxu0 0
        %7773 = vmatpush2.bf16.msra.mxu0 0
        %7774 = vmatprep.subr.bf16.mxu0 0
        %7775 = vmatpush2.bf16.msra.mxu0 0
        %7776 = vmatprep.subr.bf16.mxu0 0
        %7777 = vmatpush2.bf16.msra.mxu0 0
        %7778 = vmatprep.mubr.bf16.mxu0 0
        %7779 = vmatmul.mubr.bf16.gmra.mxu0 %v780
        %v7780 = vpop.f32.mrf.mxu0
        %v7781 = vadd.f32 %v7659, %v7780
        %v7782 = vpop.f32.mrf.mxu0
        %v7783 = vadd.f32 %v7663, %v7782
        %v7784 = vpop.f32.mrf.mxu0
        %v7785 = vadd.f32 %v7659, %v7784
        %v7786 = vpop.f32.mrf.mxu0
        %v7787 = vadd.f32 %v7663, %v7786
        %7788 = vmatprep.mubr.bf16.mxu0 0
        %7789 = vmatmul.mubr.bf16.gmra.mxu0 %v781
        %v7790 = vpop.f32.mrf.mxu0
        %v7791 = vadd.f32 %v7659, %v7790
        %v7792 = vpop.f32.mrf.mxu0
        %v7793 = vadd.f32 %v7663, %v7792
        %v7794 = vpop.f32.mrf.mxu0
        %v7795 = vadd.f32 %v7659, %v7794
        %v7796 = vpop.f32.mrf.mxu0
        %v7797 = vadd.f32 %v7663, %v7796
        %7798 = vmatprep.mubr.bf16.mxu0 0
        %7799 = vmatmul.mubr.bf16.gmra.mxu0 %v782
        %v7800 = vpop.f32.mrf.mxu0
        %v7801 = vadd.f32 %v7659, %v7800
        %v7802 = vpop.f32.mrf.mxu0
        %v7803 = vadd.f32 %v7663, %v7802
        %v7804 = vpop.f32.mrf.mxu0
        %v7805 = vadd.f32 %v7659, %v7804
        %v7806 = vpop.f32.mrf.mxu0
        %v7807 = vadd.f32 %v7663, %v7806
        %7808 = vmatprep.mubr.bf16.mxu0 0
        %7809 = vmatmul.mubr.bf16.gmra.mxu0 %v783
        %v7810 = vpop.f32.mrf.mxu0
        %v7811 = vadd.f32 %v7659, %v7810
        %v7812 = vpop.f32.mrf.mxu0
        %v7813 = vadd.f32 %v7663, %v7812
        %v7814 = vpop.f32.mrf.mxu0
        %v7815 = vadd.f32 %v7659, %v7814
        %v7816 = vpop.f32.mrf.mxu0
        %v7817 = vadd.f32 %v7663, %v7816
        %7818 = vmatprep.mubr.bf16.mxu0 0
        %7819 = vmatmul.mubr.bf16.gmra.mxu0 %v784
        %v7820 = vpop.f32.mrf.mxu0
        %v7821 = vadd.f32 %v7659, %v7820
        %v7822 = vpop.f32.mrf.mxu0
        %v7823 = vadd.f32 %v7663, %v7822
        %v7824 = vpop.f32.mrf.mxu0
        %v7825 = vadd.f32 %v7659, %v7824
        %v7826 = vpop.f32.mrf.mxu0
        %v7827 = vadd.f32 %v7663, %v7826
        %7828 = vmatprep.mubr.bf16.mxu0 0
        %7829 = vmatmul.mubr.bf16.gmra.mxu0 %v785
        %v7830 = vpop.f32.mrf.mxu0
        %v7831 = vadd.f32 %v7659, %v7830
        %v7832 = vpop.f32.mrf.mxu0
        %v7833 = vadd.f32 %v7663, %v7832
        %v7834 = vpop.f32.mrf.mxu0
        %v7835 = vadd.f32 %v7659, %v7834
        %v7836 = vpop.f32.mrf.mxu0
        %v7837 = vadd.f32 %v7663, %v7836
        %7838 = vmatprep.mubr.bf16.mxu0 0
        %7839 = vmatmul.mubr.bf16.gmra.mxu0 %v786
        %v7840 = vpop.f32.mrf.mxu0
        %v7841 = vadd.f32 %v7659, %v7840
        %v7842 = vpop.f32.mrf.mxu0
        %v7843 = vadd.f32 %v7663, %v7842
        %v7844 = vpop.f32.mrf.mxu0
        %v7845 = vadd.f32 %v7659, %v7844
        %v7846 = vpop.f32.mrf.mxu0
        %v7847 = vadd.f32 %v7663, %v7846
        %7848 = vmatprep.mubr.bf16.mxu0 0
        %7849 = vmatmul.mubr.bf16.gmra.mxu0 %v787
        %v7850 = vpop.f32.mrf.mxu0
        %v7851 = vadd.f32 %v7659, %v7850
        %v7852 = vpop.f32.mrf.mxu0
        %v7853 = vadd.f32 %v7663, %v7852
        %v7854 = vpop.f32.mrf.mxu0
        %v7855 = vadd.f32 %v7659, %v7854
        %v7856 = vpop.f32.mrf.mxu0
        %v7857 = vadd.f32 %v7663, %v7856
        %7858 = vdwg.mxu0
        %7859 = vset.pattern.permute.xlu0 11
        %7860 = vperm.xlu0 %7859, %v788
        %v7861 = vpop.permute.xlu0 %7860
        %7862 = vset.pattern.permute.xlu0 11
        %7863 = vperm.xlu0 %7862, %v789
        %v7864 = vpop.permute.xlu0 %7863
        %7865 = vset.pattern.permute.xlu0 11
        %7866 = vperm.xlu0 %7865, %v790
        %v7867 = vpop.permute.xlu0 %7866
        %7868 = vset.pattern.permute.xlu0 11
        %7869 = vperm.xlu0 %7868, %v791
        %v7870 = vpop.permute.xlu0 %7869
        %7871 = vset.pattern.permute.xlu0 11
        %7872 = vperm.xlu0 %7871, %v792
        %v7873 = vpop.permute.xlu0 %7872
        %7874 = vset.pattern.permute.xlu0 11
        %7875 = vperm.xlu0 %7874, %v793
        %v7876 = vpop.permute.xlu0 %7875
        %7877 = vset.pattern.permute.xlu0 11
        %7878 = vperm.xlu0 %7877, %v794
        %v7879 = vpop.permute.xlu0 %7878
        %7880 = vset.pattern.permute.xlu0 11
        %7881 = vperm.xlu0 %7880, %v795
        %v7882 = vpop.permute.xlu0 %7881
        %7883 = vset.pattern.permute.xlu0 11
        %7884 = vperm.xlu0 %7883, %v796
        %v7885 = vpop.permute.xlu0 %7884
        %7886 = vset.pattern.permute.xlu0 11
        %7887 = vperm.xlu0 %7886, %v797
        %v7888 = vpop.permute.xlu0 %7887
        %7889 = vset.pattern.permute.xlu0 11
        %7890 = vperm.xlu0 %7889, %v798
        %v7891 = vpop.permute.xlu0 %7890
        %7892 = vset.pattern.permute.xlu0 11
        %7893 = vperm.xlu0 %7892, %v799
        %v7894 = vpop.permute.xlu0 %7893
        %7895 = vset.pattern.permute.xlu0 11
        %7896 = vperm.xlu0 %7895, %v800
        %v7897 = vpop.permute.xlu0 %7896
        %7898 = vset.pattern.permute.xlu0 11
        %7899 = vperm.xlu0 %7898, %v801
        %v7900 = vpop.permute.xlu0 %7899
        %7901 = vset.pattern.permute.xlu0 11
        %7902 = vperm.xlu0 %7901, %v802
        %v7903 = vpop.permute.xlu0 %7902
        %7904 = vset.pattern.permute.xlu0 11
        %7905 = vperm.xlu0 %7904, %v803
        %v7906 = vpop.permute.xlu0 %7905
        %vm7907 = vcmp.eq.s32.totalorder %v805, %v7861
        %vm7908 = vcmp.eq.s32.totalorder %v806, %v7861
        %vm7909 = vcmp.eq.s32.totalorder %v805, %v7864
        %vm7910 = vcmp.eq.s32.totalorder %v806, %v7864
        %vm7911 = vcmp.eq.s32.totalorder %v805, %v7867
        %vm7912 = vcmp.eq.s32.totalorder %v806, %v7867
        %vm7913 = vcmp.eq.s32.totalorder %v805, %v7870
        %vm7914 = vcmp.eq.s32.totalorder %v806, %v7870
        %vm7915 = vcmp.eq.s32.totalorder %v805, %v7873
        %vm7916 = vcmp.eq.s32.totalorder %v806, %v7873
        %vm7917 = vcmp.eq.s32.totalorder %v805, %v7876
        %vm7918 = vcmp.eq.s32.totalorder %v806, %v7876
        %vm7919 = vcmp.eq.s32.totalorder %v805, %v7879
        %vm7920 = vcmp.eq.s32.totalorder %v806, %v7879
        %vm7921 = vcmp.eq.s32.totalorder %v805, %v7882
        %vm7922 = vcmp.eq.s32.totalorder %v806, %v7882
        %vm7923 = vcmp.eq.s32.totalorder %v805, %v7885
        %vm7924 = vcmp.eq.s32.totalorder %v806, %v7885
        %vm7925 = vcmp.eq.s32.totalorder %v805, %v7888
        %vm7926 = vcmp.eq.s32.totalorder %v806, %v7888
        %vm7927 = vcmp.eq.s32.totalorder %v805, %v7891
        %vm7928 = vcmp.eq.s32.totalorder %v806, %v7891
        %vm7929 = vcmp.eq.s32.totalorder %v805, %v7894
        %vm7930 = vcmp.eq.s32.totalorder %v806, %v7894
        %vm7931 = vcmp.eq.s32.totalorder %v805, %v7897
        %vm7932 = vcmp.eq.s32.totalorder %v806, %v7897
        %vm7933 = vcmp.eq.s32.totalorder %v805, %v7900
        %vm7934 = vcmp.eq.s32.totalorder %v806, %v7900
        %vm7935 = vcmp.eq.s32.totalorder %v805, %v7903
        %vm7936 = vcmp.eq.s32.totalorder %v806, %v7903
        %vm7937 = vcmp.eq.s32.totalorder %v805, %v7906
        %vm7938 = vcmp.eq.s32.totalorder %v806, %v7906
        %v7939 = vsel %vm7907, %v7781, 0.0
        %v7940 = vsel %vm7908, %v7783, 0.0
        %v7941 = vsel %vm7909, %v7785, 0.0
        %v7942 = vsel %vm7910, %v7787, 0.0
        %v7943 = vsel %vm7911, %v7791, 0.0
        %v7944 = vsel %vm7912, %v7793, 0.0
        %v7945 = vsel %vm7913, %v7795, 0.0
        %v7946 = vsel %vm7914, %v7797, 0.0
        %v7947 = vsel %vm7915, %v7801, 0.0
        %v7948 = vsel %vm7916, %v7803, 0.0
        %v7949 = vsel %vm7917, %v7805, 0.0
        %v7950 = vsel %vm7918, %v7807, 0.0
        %v7951 = vsel %vm7919, %v7811, 0.0
        %v7952 = vsel %vm7920, %v7813, 0.0
        %v7953 = vsel %vm7921, %v7815, 0.0
        %v7954 = vsel %vm7922, %v7817, 0.0
        %v7955 = vsel %vm7923, %v7821, 0.0
        %v7956 = vsel %vm7924, %v7823, 0.0
        %v7957 = vsel %vm7925, %v7825, 0.0
        %v7958 = vsel %vm7926, %v7827, 0.0
        %v7959 = vsel %vm7927, %v7831, 0.0
        %v7960 = vsel %vm7928, %v7833, 0.0
        %v7961 = vsel %vm7929, %v7835, 0.0
        %v7962 = vsel %vm7930, %v7837, 0.0
        %v7963 = vsel %vm7931, %v7841, 0.0
        %v7964 = vsel %vm7932, %v7843, 0.0
        %v7965 = vsel %vm7933, %v7845, 0.0
        %v7966 = vsel %vm7934, %v7847, 0.0
        %v7967 = vsel %vm7935, %v7851, 0.0
        %v7968 = vsel %vm7936, %v7853, 0.0
        %v7969 = vsel %vm7937, %v7855, 0.0
        %v7970 = vsel %vm7938, %v7857, 0.0
        %v7971 = vadd.f32 %v7939, %v7940
        %7972 = vadd.xlane.f32.xlu0 %v7971
        %v7973 = vpop.xlane.xlu0 %7972
        %v7974 = vadd.f32 %v7941, %v7942
        %7975 = vadd.xlane.f32.xlu0 %v7974
        %v7976 = vpop.xlane.xlu0 %7975
        %v7977 = vadd.f32 %v7943, %v7944
        %7978 = vadd.xlane.f32.xlu0 %v7977
        %v7979 = vpop.xlane.xlu0 %7978
        %v7980 = vadd.f32 %v7945, %v7946
        %7981 = vadd.xlane.f32.xlu0 %v7980
        %v7982 = vpop.xlane.xlu0 %7981
        %v7983 = vadd.f32 %v7947, %v7948
        %7984 = vadd.xlane.f32.xlu0 %v7983
        %v7985 = vpop.xlane.xlu0 %7984
        %v7986 = vadd.f32 %v7949, %v7950
        %7987 = vadd.xlane.f32.xlu0 %v7986
        %v7988 = vpop.xlane.xlu0 %7987
        %v7989 = vadd.f32 %v7951, %v7952
        %7990 = vadd.xlane.f32.xlu0 %v7989
        %v7991 = vpop.xlane.xlu0 %7990
        %v7992 = vadd.f32 %v7953, %v7954
        %7993 = vadd.xlane.f32.xlu0 %v7992
        %v7994 = vpop.xlane.xlu0 %7993
        %v7995 = vadd.f32 %v7955, %v7956
        %7996 = vadd.xlane.f32.xlu0 %v7995
        %v7997 = vpop.xlane.xlu0 %7996
        %v7998 = vadd.f32 %v7957, %v7958
        %7999 = vadd.xlane.f32.xlu0 %v7998
        %v8000 = vpop.xlane.xlu0 %7999
        %v8001 = vadd.f32 %v7959, %v7960
        %8002 = vadd.xlane.f32.xlu0 %v8001
        %v8003 = vpop.xlane.xlu0 %8002
        %v8004 = vadd.f32 %v7961, %v7962
        %8005 = vadd.xlane.f32.xlu0 %v8004
        %v8006 = vpop.xlane.xlu0 %8005
        %v8007 = vadd.f32 %v7963, %v7964
        %8008 = vadd.xlane.f32.xlu0 %v8007
        %v8009 = vpop.xlane.xlu0 %8008
        %v8010 = vadd.f32 %v7965, %v7966
        %8011 = vadd.xlane.f32.xlu0 %v8010
        %v8012 = vpop.xlane.xlu0 %8011
        %v8013 = vadd.f32 %v7967, %v7968
        %8014 = vadd.xlane.f32.xlu0 %v8013
        %v8015 = vpop.xlane.xlu0 %8014
        %v8016 = vadd.f32 %v7969, %v7970
        %8017 = vadd.xlane.f32.xlu0 %v8016
        %v8018 = vpop.xlane.xlu0 %8017
        %v8019 = vsub.f32 %v7781, %v7973
        %v8020 = vsub.f32 %v7783, %v7973
        %v8021 = vsub.f32 %v7785, %v7976
        %v8022 = vsub.f32 %v7787, %v7976
        %v8023 = vsub.f32 %v7791, %v7979
        %v8024 = vsub.f32 %v7793, %v7979
        %v8025 = vsub.f32 %v7795, %v7982
        %v8026 = vsub.f32 %v7797, %v7982
        %v8027 = vsub.f32 %v7801, %v7985
        %v8028 = vsub.f32 %v7803, %v7985
        %v8029 = vsub.f32 %v7805, %v7988
        %v8030 = vsub.f32 %v7807, %v7988
        %v8031 = vsub.f32 %v7811, %v7991
        %v8032 = vsub.f32 %v7813, %v7991
        %v8033 = vsub.f32 %v7815, %v7994
        %v8034 = vsub.f32 %v7817, %v7994
        %v8035 = vsub.f32 %v7821, %v7997
        %v8036 = vsub.f32 %v7823, %v7997
        %v8037 = vsub.f32 %v7825, %v8000
        %v8038 = vsub.f32 %v7827, %v8000
        %v8039 = vsub.f32 %v7831, %v8003
        %v8040 = vsub.f32 %v7833, %v8003
        %v8041 = vsub.f32 %v7835, %v8006
        %v8042 = vsub.f32 %v7837, %v8006
        %v8043 = vsub.f32 %v7841, %v8009
        %v8044 = vsub.f32 %v7843, %v8009
        %v8045 = vsub.f32 %v7845, %v8012
        %v8046 = vsub.f32 %v7847, %v8012
        %v8047 = vsub.f32 %v7851, %v8015
        %v8048 = vsub.f32 %v7853, %v8015
        %v8049 = vsub.f32 %v7855, %v8018
        %v8050 = vsub.f32 %v7857, %v8018
        %v8051 = vmul.f32 %v8019, 1.442695
        %v8052 = vpow.pop %v8051
        %v8053 = vmul.f32 %v8020, 1.442695
        %v8054 = vpow.pop %v8053
        %v8055 = vmul.f32 %v8021, 1.442695
        %v8056 = vpow.pop %v8055
        %v8057 = vmul.f32 %v8022, 1.442695
        %v8058 = vpow.pop %v8057
        %v8059 = vmul.f32 %v8023, 1.442695
        %v8060 = vpow.pop %v8059
        %v8061 = vmul.f32 %v8024, 1.442695
        %v8062 = vpow.pop %v8061
        %v8063 = vmul.f32 %v8025, 1.442695
        %v8064 = vpow.pop %v8063
        %v8065 = vmul.f32 %v8026, 1.442695
        %v8066 = vpow.pop %v8065
        %v8067 = vmul.f32 %v8027, 1.442695
        %v8068 = vpow.pop %v8067
        %v8069 = vmul.f32 %v8028, 1.442695
        %v8070 = vpow.pop %v8069
        %v8071 = vmul.f32 %v8029, 1.442695
        %v8072 = vpow.pop %v8071
        %v8073 = vmul.f32 %v8030, 1.442695
        %v8074 = vpow.pop %v8073
        %v8075 = vmul.f32 %v8031, 1.442695
        %v8076 = vpow.pop %v8075
        %v8077 = vmul.f32 %v8032, 1.442695
        %v8078 = vpow.pop %v8077
        %v8079 = vmul.f32 %v8033, 1.442695
        %v8080 = vpow.pop %v8079
        %v8081 = vmul.f32 %v8034, 1.442695
        %v8082 = vpow.pop %v8081
        %v8083 = vmul.f32 %v8035, 1.442695
        %v8084 = vpow.pop %v8083
        %v8085 = vmul.f32 %v8036, 1.442695
        %v8086 = vpow.pop %v8085
        %v8087 = vmul.f32 %v8037, 1.442695
        %v8088 = vpow.pop %v8087
        %v8089 = vmul.f32 %v8038, 1.442695
        %v8090 = vpow.pop %v8089
        %v8091 = vmul.f32 %v8039, 1.442695
        %v8092 = vpow.pop %v8091
        %v8093 = vmul.f32 %v8040, 1.442695
        %v8094 = vpow.pop %v8093
        %v8095 = vmul.f32 %v8041, 1.442695
        %v8096 = vpow.pop %v8095
        %v8097 = vmul.f32 %v8042, 1.442695
        %v8098 = vpow.pop %v8097
        %v8099 = vmul.f32 %v8043, 1.442695
        %v8100 = vpow.pop %v8099
        %v8101 = vmul.f32 %v8044, 1.442695
        %v8102 = vpow.pop %v8101
        %v8103 = vmul.f32 %v8045, 1.442695
        %v8104 = vpow.pop %v8103
        %v8105 = vmul.f32 %v8046, 1.442695
        %v8106 = vpow.pop %v8105
        %v8107 = vmul.f32 %v8047, 1.442695
        %v8108 = vpow.pop %v8107
        %v8109 = vmul.f32 %v8048, 1.442695
        %v8110 = vpow.pop %v8109
        %v8111 = vmul.f32 %v8049, 1.442695
        %v8112 = vpow.pop %v8111
        %v8113 = vmul.f32 %v8050, 1.442695
        %v8114 = vpow.pop %v8113
        %v8115 = vadd.f32 %v8052, %v8054
        %8116 = vadd.xlane.f32.xlu0 %v8115
        %v8117 = vpop.xlane.xlu0 %8116
        %v8118 = vadd.f32 %v8056, %v8058
        %8119 = vadd.xlane.f32.xlu0 %v8118
        %v8120 = vpop.xlane.xlu0 %8119
        %v8121 = vadd.f32 %v8060, %v8062
        %8122 = vadd.xlane.f32.xlu0 %v8121
        %v8123 = vpop.xlane.xlu0 %8122
        %v8124 = vadd.f32 %v8064, %v8066
        %8125 = vadd.xlane.f32.xlu0 %v8124
        %v8126 = vpop.xlane.xlu0 %8125
        %v8127 = vadd.f32 %v8068, %v8070
        %8128 = vadd.xlane.f32.xlu0 %v8127
        %v8129 = vpop.xlane.xlu0 %8128
        %v8130 = vadd.f32 %v8072, %v8074
        %8131 = vadd.xlane.f32.xlu0 %v8130
        %v8132 = vpop.xlane.xlu0 %8131
        %v8133 = vadd.f32 %v8076, %v8078
        %8134 = vadd.xlane.f32.xlu0 %v8133
        %v8135 = vpop.xlane.xlu0 %8134
        %v8136 = vadd.f32 %v8080, %v8082
        %8137 = vadd.xlane.f32.xlu0 %v8136
        %v8138 = vpop.xlane.xlu0 %8137
        %v8139 = vadd.f32 %v8084, %v8086
        %8140 = vadd.xlane.f32.xlu0 %v8139
        %v8141 = vpop.xlane.xlu0 %8140
        %v8142 = vadd.f32 %v8088, %v8090
        %8143 = vadd.xlane.f32.xlu0 %v8142
        %v8144 = vpop.xlane.xlu0 %8143
        %v8145 = vadd.f32 %v8092, %v8094
        %8146 = vadd.xlane.f32.xlu0 %v8145
        %v8147 = vpop.xlane.xlu0 %8146
        %v8148 = vadd.f32 %v8096, %v8098
        %8149 = vadd.xlane.f32.xlu0 %v8148
        %v8150 = vpop.xlane.xlu0 %8149
        %v8151 = vadd.f32 %v8100, %v8102
        %8152 = vadd.xlane.f32.xlu0 %v8151
        %v8153 = vpop.xlane.xlu0 %8152
        %v8154 = vadd.f32 %v8104, %v8106
        %8155 = vadd.xlane.f32.xlu0 %v8154
        %v8156 = vpop.xlane.xlu0 %8155
        %v8157 = vadd.f32 %v8108, %v8110
        %8158 = vadd.xlane.f32.xlu0 %v8157
        %v8159 = vpop.xlane.xlu0 %8158
        %v8160 = vadd.f32 %v8112, %v8114
        %8161 = vadd.xlane.f32.xlu0 %v8160
        %v8162 = vpop.xlane.xlu0 %8161
        %v8163 = vlog2.pop %v8117
        %v8164 = vmul.f32 %v8163, 0.6931472
        %v8165 = vlog2.pop %v8120
        %v8166 = vmul.f32 %v8165, 0.6931472
        %v8167 = vlog2.pop %v8123
        %v8168 = vmul.f32 %v8167, 0.6931472
        %v8169 = vlog2.pop %v8126
        %v8170 = vmul.f32 %v8169, 0.6931472
        %v8171 = vlog2.pop %v8129
        %v8172 = vmul.f32 %v8171, 0.6931472
        %v8173 = vlog2.pop %v8132
        %v8174 = vmul.f32 %v8173, 0.6931472
        %v8175 = vlog2.pop %v8135
        %v8176 = vmul.f32 %v8175, 0.6931472
        %v8177 = vlog2.pop %v8138
        %v8178 = vmul.f32 %v8177, 0.6931472
        %v8179 = vlog2.pop %v8141
        %v8180 = vmul.f32 %v8179, 0.6931472
        %v8181 = vlog2.pop %v8144
        %v8182 = vmul.f32 %v8181, 0.6931472
        %v8183 = vlog2.pop %v8147
        %v8184 = vmul.f32 %v8183, 0.6931472
        %v8185 = vlog2.pop %v8150
        %v8186 = vmul.f32 %v8185, 0.6931472
        %v8187 = vlog2.pop %v8153
        %v8188 = vmul.f32 %v8187, 0.6931472
        %v8189 = vlog2.pop %v8156
        %v8190 = vmul.f32 %v8189, 0.6931472
        %v8191 = vlog2.pop %v8159
        %v8192 = vmul.f32 %v8191, 0.6931472
        %v8193 = vlog2.pop %v8162
        %v8194 = vmul.f32 %v8193, 0.6931472
        %v8195 = vsub.f32 0.0, %v8164
        %v8196 = vsub.f32 0.0, %v8166
        %v8197 = vsub.f32 0.0, %v8168
        %v8198 = vsub.f32 0.0, %v8170
        %v8199 = vsub.f32 0.0, %v8172
        %v8200 = vsub.f32 0.0, %v8174
        %v8201 = vsub.f32 0.0, %v8176
        %v8202 = vsub.f32 0.0, %v8178
        %v8203 = vsub.f32 0.0, %v8180
        %v8204 = vsub.f32 0.0, %v8182
        %v8205 = vsub.f32 0.0, %v8184
        %v8206 = vsub.f32 0.0, %v8186
        %v8207 = vsub.f32 0.0, %v8188
        %v8208 = vsub.f32 0.0, %v8190
        %v8209 = vsub.f32 0.0, %v8192
        %v8210 = vsub.f32 0.0, %v8194
        %v8211 = vmax.f32 %v8195, -11.512925
        %v8212 = vmax.f32 %v8196, -11.512925
        %v8213 = vmax.f32 %v8197, -11.512925
        %v8214 = vmax.f32 %v8198, -11.512925
        %v8215 = vmax.f32 %v8199, -11.512925
        %v8216 = vmax.f32 %v8200, -11.512925
        %v8217 = vmax.f32 %v8201, -11.512925
        %v8218 = vmax.f32 %v8202, -11.512925
        %v8219 = vmax.f32 %v8203, -11.512925
        %v8220 = vmax.f32 %v8204, -11.512925
        %v8221 = vmax.f32 %v8205, -11.512925
        %v8222 = vmax.f32 %v8206, -11.512925
        %v8223 = vmax.f32 %v8207, -11.512925
        %v8224 = vmax.f32 %v8208, -11.512925
        %v8225 = vmax.f32 %v8209, -11.512925
        %v8226 = vmax.f32 %v8210, -11.512925
        %v8227 = vmin.f32 %v8211, -1.000005e-05
        %v8228 = vmin.f32 %v8212, -1.000005e-05
        %v8229 = vmin.f32 %v8213, -1.000005e-05
        %v8230 = vmin.f32 %v8214, -1.000005e-05
        %v8231 = vmin.f32 %v8215, -1.000005e-05
        %v8232 = vmin.f32 %v8216, -1.000005e-05
        %v8233 = vmin.f32 %v8217, -1.000005e-05
        %v8234 = vmin.f32 %v8218, -1.000005e-05
        %v8235 = vmin.f32 %v8219, -1.000005e-05
        %v8236 = vmin.f32 %v8220, -1.000005e-05
        %v8237 = vmin.f32 %v8221, -1.000005e-05
        %v8238 = vmin.f32 %v8222, -1.000005e-05
        %v8239 = vmin.f32 %v8223, -1.000005e-05
        %v8240 = vmin.f32 %v8224, -1.000005e-05
        %v8241 = vmin.f32 %v8225, -1.000005e-05
        %v8242 = vmin.f32 %v8226, -1.000005e-05
        %v8243 = vadd.f32 %v7001, %v8227
        %v8244 = vadd.f32 %v7002, %v8228
        %v8245 = vadd.f32 %v7003, %v8229
        %v8246 = vadd.f32 %v7004, %v8230
        %v8247 = vadd.f32 %v7005, %v8231
        %v8248 = vadd.f32 %v7006, %v8232
        %v8249 = vadd.f32 %v7007, %v8233
        %v8250 = vadd.f32 %v7008, %v8234
        %v8251 = vadd.f32 %v7009, %v8235
        %v8252 = vadd.f32 %v7010, %v8236
        %v8253 = vadd.f32 %v7011, %v8237
        %v8254 = vadd.f32 %v7012, %v8238
        %v8255 = vadd.f32 %v7013, %v8239
        %v8256 = vadd.f32 %v7014, %v8240
        %v8257 = vadd.f32 %v7015, %v8241
        %v8258 = vadd.f32 %v7016, %v8242
        %v8259 = vld [vmem:[#allocation2 + $0x60] sm:$0xff]
        %v8260 = vld [vmem:[#allocation2 + $0xe0] sm:$0xff]
        %v8261 = vld [vmem:[#allocation2 + $0x160] sm:$0xff]
        %v8262 = vld [vmem:[#allocation2 + $0x1e0] sm:$0xff]
        %v8263 = vld [vmem:[#allocation2 + $0x260] sm:$0xff]
        %v8264 = vld [vmem:[#allocation2 + $0x2e0] sm:$0xff]
        %v8265 = vld [vmem:[#allocation2 + $0x360] sm:$0xff]
        %v8266 = vld [vmem:[#allocation2 + $0x3e0] sm:$0xff]
        %v8267 = vld [vmem:[#allocation2 + $0x460] sm:$0xff]
        %v8268 = vld [vmem:[#allocation2 + $0x4e0] sm:$0xff]
        %v8269 = vld [vmem:[#allocation2 + $0x560] sm:$0xff]
        %v8270 = vld [vmem:[#allocation2 + $0x5e0] sm:$0xff]
        %v8271 = vld [vmem:[#allocation2 + $0x660] sm:$0xff]
        %v8272 = vld [vmem:[#allocation2 + $0x6e0] sm:$0xff]
        %v8273 = vld [vmem:[#allocation2 + $0x760] sm:$0xff]
        %v8274 = vld [vmem:[#allocation2 + $0x7e0] sm:$0xff]
        %v8275 = vld [vmem:[%s7 + $0x18] sm:$0x3]
        %v8277 = vlaneseq
        %v8278 = vshrl.u32 %v8277, 7
        %v8279 = vsub.s32 0, %v8278
        %v8280 = vrot.slane %v8275, %v8279
        %v8281 = vlaneseq
        %v8282 = vshrl.u32 %v8281, 7
        %v8283 = vsub.s32 1, %v8282
        %v8284 = vrot.slane %v8275, %v8283
        %v8303 = vunpack.c.l.b16 %v8259
        %v8304 = vunpack.c.h.b16 %v8259
        %v8305 = vunpack.c.l.b16 %v8260
        %v8306 = vunpack.c.h.b16 %v8260
        %v8307 = vunpack.c.l.b16 %v8261
        %v8308 = vunpack.c.h.b16 %v8261
        %v8309 = vunpack.c.l.b16 %v8262
        %v8310 = vunpack.c.h.b16 %v8262
        %v8311 = vunpack.c.l.b16 %v8263
        %v8312 = vunpack.c.h.b16 %v8263
        %v8313 = vunpack.c.l.b16 %v8264
        %v8314 = vunpack.c.h.b16 %v8264
        %v8315 = vunpack.c.l.b16 %v8265
        %v8316 = vunpack.c.h.b16 %v8265
        %v8317 = vunpack.c.l.b16 %v8266
        %v8318 = vunpack.c.h.b16 %v8266
        %v8319 = vunpack.c.l.b16 %v8267
        %v8320 = vunpack.c.h.b16 %v8267
        %v8321 = vunpack.c.l.b16 %v8268
        %v8322 = vunpack.c.h.b16 %v8268
        %v8323 = vunpack.c.l.b16 %v8269
        %v8324 = vunpack.c.h.b16 %v8269
        %v8325 = vunpack.c.l.b16 %v8270
        %v8326 = vunpack.c.h.b16 %v8270
        %v8327 = vunpack.c.l.b16 %v8271
        %v8328 = vunpack.c.h.b16 %v8271
        %v8329 = vunpack.c.l.b16 %v8272
        %v8330 = vunpack.c.h.b16 %v8272
        %v8331 = vunpack.c.l.b16 %v8273
        %v8332 = vunpack.c.h.b16 %v8273
        %v8333 = vunpack.c.l.b16 %v8274
        %v8334 = vunpack.c.h.b16 %v8274
        %v8335 = vpack.c.b16 %v8305, %v8303
        %v8336 = vpack.c.b16 %v8306, %v8304
        %v8337 = vpack.c.b16 %v8309, %v8307
        %v8338 = vpack.c.b16 %v8310, %v8308
        %v8339 = vpack.c.b16 %v8313, %v8311
        %v8340 = vpack.c.b16 %v8314, %v8312
        %v8341 = vpack.c.b16 %v8317, %v8315
        %v8342 = vpack.c.b16 %v8318, %v8316
        %v8343 = vpack.c.b16 %v8321, %v8319
        %v8344 = vpack.c.b16 %v8322, %v8320
        %v8345 = vpack.c.b16 %v8325, %v8323
        %v8346 = vpack.c.b16 %v8326, %v8324
        %v8347 = vpack.c.b16 %v8329, %v8327
        %v8348 = vpack.c.b16 %v8330, %v8328
        %v8349 = vpack.c.b16 %v8333, %v8331
        %v8350 = vpack.c.b16 %v8334, %v8332
        %8367 = vmatprep.subr.bf16.mxu0 %v8350
        %8368 = vmatpush1.bf16.msra.mxu0 %v8349
        %8369 = vmatprep.subr.bf16.mxu0 %v8348
        %8370 = vmatpush1.bf16.msra.mxu0 %v8347
        %8371 = vmatprep.subr.bf16.mxu0 %v8346
        %8372 = vmatpush1.bf16.msra.mxu0 %v8345
        %8373 = vmatprep.subr.bf16.mxu0 %v8344
        %8374 = vmatpush1.bf16.msra.mxu0 %v8343
        %8375 = vmatprep.subr.bf16.mxu0 %v8342
        %8376 = vmatpush1.bf16.msra.mxu0 %v8341
        %8377 = vmatprep.subr.bf16.mxu0 %v8340
        %8378 = vmatpush1.bf16.msra.mxu0 %v8339
        %8379 = vmatprep.subr.bf16.mxu0 %v8338
        %8380 = vmatpush1.bf16.msra.mxu0 %v8337
        %8381 = vmatprep.subr.bf16.mxu0 %v8336
        %8382 = vmatpush1.bf16.msra.mxu0 %v8335
        %8383 = vmatprep.subr.bf16.mxu0 0
        %8384 = vmatpush2.bf16.msra.mxu0 0
        %8385 = vmatprep.subr.bf16.mxu0 0
        %8386 = vmatpush2.bf16.msra.mxu0 0
        %8387 = vmatprep.subr.bf16.mxu0 0
        %8388 = vmatpush2.bf16.msra.mxu0 0
        %8389 = vmatprep.subr.bf16.mxu0 0
        %8390 = vmatpush2.bf16.msra.mxu0 0
        %8391 = vmatprep.subr.bf16.mxu0 0
        %8392 = vmatpush2.bf16.msra.mxu0 0
        %8393 = vmatprep.subr.bf16.mxu0 0
        %8394 = vmatpush2.bf16.msra.mxu0 0
        %8395 = vmatprep.subr.bf16.mxu0 0
        %8396 = vmatpush2.bf16.msra.mxu0 0
        %8397 = vmatprep.subr.bf16.mxu0 0
        %8398 = vmatpush2.bf16.msra.mxu0 0
        %8399 = vmatprep.mubr.bf16.mxu0 0
        %8400 = vmatmul.mubr.bf16.gmra.mxu0 %v780
        %v8401 = vpop.f32.mrf.mxu0
        %v8402 = vadd.f32 %v8280, %v8401
        %v8403 = vpop.f32.mrf.mxu0
        %v8404 = vadd.f32 %v8284, %v8403
        %v8405 = vpop.f32.mrf.mxu0
        %v8406 = vadd.f32 %v8280, %v8405
        %v8407 = vpop.f32.mrf.mxu0
        %v8408 = vadd.f32 %v8284, %v8407
        %8409 = vmatprep.mubr.bf16.mxu0 0
        %8410 = vmatmul.mubr.bf16.gmra.mxu0 %v781
        %v8411 = vpop.f32.mrf.mxu0
        %v8412 = vadd.f32 %v8280, %v8411
        %v8413 = vpop.f32.mrf.mxu0
        %v8414 = vadd.f32 %v8284, %v8413
        %v8415 = vpop.f32.mrf.mxu0
        %v8416 = vadd.f32 %v8280, %v8415
        %v8417 = vpop.f32.mrf.mxu0
        %v8418 = vadd.f32 %v8284, %v8417
        %8419 = vmatprep.mubr.bf16.mxu0 0
        %8420 = vmatmul.mubr.bf16.gmra.mxu0 %v782
        %v8421 = vpop.f32.mrf.mxu0
        %v8422 = vadd.f32 %v8280, %v8421
        %v8423 = vpop.f32.mrf.mxu0
        %v8424 = vadd.f32 %v8284, %v8423
        %v8425 = vpop.f32.mrf.mxu0
        %v8426 = vadd.f32 %v8280, %v8425
        %v8427 = vpop.f32.mrf.mxu0
        %v8428 = vadd.f32 %v8284, %v8427
        %8429 = vmatprep.mubr.bf16.mxu0 0
        %8430 = vmatmul.mubr.bf16.gmra.mxu0 %v783
        %v8431 = vpop.f32.mrf.mxu0
        %v8432 = vadd.f32 %v8280, %v8431
        %v8433 = vpop.f32.mrf.mxu0
        %v8434 = vadd.f32 %v8284, %v8433
        %v8435 = vpop.f32.mrf.mxu0
        %v8436 = vadd.f32 %v8280, %v8435
        %v8437 = vpop.f32.mrf.mxu0
        %v8438 = vadd.f32 %v8284, %v8437
        %8439 = vmatprep.mubr.bf16.mxu0 0
        %8440 = vmatmul.mubr.bf16.gmra.mxu0 %v784
        %v8441 = vpop.f32.mrf.mxu0
        %v8442 = vadd.f32 %v8280, %v8441
        %v8443 = vpop.f32.mrf.mxu0
        %v8444 = vadd.f32 %v8284, %v8443
        %v8445 = vpop.f32.mrf.mxu0
        %v8446 = vadd.f32 %v8280, %v8445
        %v8447 = vpop.f32.mrf.mxu0
        %v8448 = vadd.f32 %v8284, %v8447
        %8449 = vmatprep.mubr.bf16.mxu0 0
        %8450 = vmatmul.mubr.bf16.gmra.mxu0 %v785
        %v8451 = vpop.f32.mrf.mxu0
        %v8452 = vadd.f32 %v8280, %v8451
        %v8453 = vpop.f32.mrf.mxu0
        %v8454 = vadd.f32 %v8284, %v8453
        %v8455 = vpop.f32.mrf.mxu0
        %v8456 = vadd.f32 %v8280, %v8455
        %v8457 = vpop.f32.mrf.mxu0
        %v8458 = vadd.f32 %v8284, %v8457
        %8459 = vmatprep.mubr.bf16.mxu0 0
        %8460 = vmatmul.mubr.bf16.gmra.mxu0 %v786
        %v8461 = vpop.f32.mrf.mxu0
        %v8462 = vadd.f32 %v8280, %v8461
        %v8463 = vpop.f32.mrf.mxu0
        %v8464 = vadd.f32 %v8284, %v8463
        %v8465 = vpop.f32.mrf.mxu0
        %v8466 = vadd.f32 %v8280, %v8465
        %v8467 = vpop.f32.mrf.mxu0
        %v8468 = vadd.f32 %v8284, %v8467
        %8469 = vmatprep.mubr.bf16.mxu0 0
        %8470 = vmatmul.mubr.bf16.gmra.mxu0 %v787
        %v8471 = vpop.f32.mrf.mxu0
        %v8472 = vadd.f32 %v8280, %v8471
        %v8473 = vpop.f32.mrf.mxu0
        %v8474 = vadd.f32 %v8284, %v8473
        %v8475 = vpop.f32.mrf.mxu0
        %v8476 = vadd.f32 %v8280, %v8475
        %v8477 = vpop.f32.mrf.mxu0
        %v8478 = vadd.f32 %v8284, %v8477
        %8479 = vdwg.mxu0
        %8480 = vset.pattern.permute.xlu0 12
        %8481 = vperm.xlu0 %8480, %v788
        %v8482 = vpop.permute.xlu0 %8481
        %8483 = vset.pattern.permute.xlu0 12
        %8484 = vperm.xlu0 %8483, %v789
        %v8485 = vpop.permute.xlu0 %8484
        %8486 = vset.pattern.permute.xlu0 12
        %8487 = vperm.xlu0 %8486, %v790
        %v8488 = vpop.permute.xlu0 %8487
        %8489 = vset.pattern.permute.xlu0 12
        %8490 = vperm.xlu0 %8489, %v791
        %v8491 = vpop.permute.xlu0 %8490
        %8492 = vset.pattern.permute.xlu0 12
        %8493 = vperm.xlu0 %8492, %v792
        %v8494 = vpop.permute.xlu0 %8493
        %8495 = vset.pattern.permute.xlu0 12
        %8496 = vperm.xlu0 %8495, %v793
        %v8497 = vpop.permute.xlu0 %8496
        %8498 = vset.pattern.permute.xlu0 12
        %8499 = vperm.xlu0 %8498, %v794
        %v8500 = vpop.permute.xlu0 %8499
        %8501 = vset.pattern.permute.xlu0 12
        %8502 = vperm.xlu0 %8501, %v795
        %v8503 = vpop.permute.xlu0 %8502
        %8504 = vset.pattern.permute.xlu0 12
        %8505 = vperm.xlu0 %8504, %v796
        %v8506 = vpop.permute.xlu0 %8505
        %8507 = vset.pattern.permute.xlu0 12
        %8508 = vperm.xlu0 %8507, %v797
        %v8509 = vpop.permute.xlu0 %8508
        %8510 = vset.pattern.permute.xlu0 12
        %8511 = vperm.xlu0 %8510, %v798
        %v8512 = vpop.permute.xlu0 %8511
        %8513 = vset.pattern.permute.xlu0 12
        %8514 = vperm.xlu0 %8513, %v799
        %v8515 = vpop.permute.xlu0 %8514
        %8516 = vset.pattern.permute.xlu0 12
        %8517 = vperm.xlu0 %8516, %v800
        %v8518 = vpop.permute.xlu0 %8517
        %8519 = vset.pattern.permute.xlu0 12
        %8520 = vperm.xlu0 %8519, %v801
        %v8521 = vpop.permute.xlu0 %8520
        %8522 = vset.pattern.permute.xlu0 12
        %8523 = vperm.xlu0 %8522, %v802
        %v8524 = vpop.permute.xlu0 %8523
        %8525 = vset.pattern.permute.xlu0 12
        %8526 = vperm.xlu0 %8525, %v803
        %v8527 = vpop.permute.xlu0 %8526
        %vm8528 = vcmp.eq.s32.totalorder %v805, %v8482
        %vm8529 = vcmp.eq.s32.totalorder %v806, %v8482
        %vm8530 = vcmp.eq.s32.totalorder %v805, %v8485
        %vm8531 = vcmp.eq.s32.totalorder %v806, %v8485
        %vm8532 = vcmp.eq.s32.totalorder %v805, %v8488
        %vm8533 = vcmp.eq.s32.totalorder %v806, %v8488
        %vm8534 = vcmp.eq.s32.totalorder %v805, %v8491
        %vm8535 = vcmp.eq.s32.totalorder %v806, %v8491
        %vm8536 = vcmp.eq.s32.totalorder %v805, %v8494
        %vm8537 = vcmp.eq.s32.totalorder %v806, %v8494
        %vm8538 = vcmp.eq.s32.totalorder %v805, %v8497
        %vm8539 = vcmp.eq.s32.totalorder %v806, %v8497
        %vm8540 = vcmp.eq.s32.totalorder %v805, %v8500
        %vm8541 = vcmp.eq.s32.totalorder %v806, %v8500
        %vm8542 = vcmp.eq.s32.totalorder %v805, %v8503
        %vm8543 = vcmp.eq.s32.totalorder %v806, %v8503
        %vm8544 = vcmp.eq.s32.totalorder %v805, %v8506
        %vm8545 = vcmp.eq.s32.totalorder %v806, %v8506
        %vm8546 = vcmp.eq.s32.totalorder %v805, %v8509
        %vm8547 = vcmp.eq.s32.totalorder %v806, %v8509
        %vm8548 = vcmp.eq.s32.totalorder %v805, %v8512
        %vm8549 = vcmp.eq.s32.totalorder %v806, %v8512
        %vm8550 = vcmp.eq.s32.totalorder %v805, %v8515
        %vm8551 = vcmp.eq.s32.totalorder %v806, %v8515
        %vm8552 = vcmp.eq.s32.totalorder %v805, %v8518
        %vm8553 = vcmp.eq.s32.totalorder %v806, %v8518
        %vm8554 = vcmp.eq.s32.totalorder %v805, %v8521
        %vm8555 = vcmp.eq.s32.totalorder %v806, %v8521
        %vm8556 = vcmp.eq.s32.totalorder %v805, %v8524
        %vm8557 = vcmp.eq.s32.totalorder %v806, %v8524
        %vm8558 = vcmp.eq.s32.totalorder %v805, %v8527
        %vm8559 = vcmp.eq.s32.totalorder %v806, %v8527
        %v8560 = vsel %vm8528, %v8402, 0.0
        %v8561 = vsel %vm8529, %v8404, 0.0
        %v8562 = vsel %vm8530, %v8406, 0.0
        %v8563 = vsel %vm8531, %v8408, 0.0
        %v8564 = vsel %vm8532, %v8412, 0.0
        %v8565 = vsel %vm8533, %v8414, 0.0
        %v8566 = vsel %vm8534, %v8416, 0.0
        %v8567 = vsel %vm8535, %v8418, 0.0
        %v8568 = vsel %vm8536, %v8422, 0.0
        %v8569 = vsel %vm8537, %v8424, 0.0
        %v8570 = vsel %vm8538, %v8426, 0.0
        %v8571 = vsel %vm8539, %v8428, 0.0
        %v8572 = vsel %vm8540, %v8432, 0.0
        %v8573 = vsel %vm8541, %v8434, 0.0
        %v8574 = vsel %vm8542, %v8436, 0.0
        %v8575 = vsel %vm8543, %v8438, 0.0
        %v8576 = vsel %vm8544, %v8442, 0.0
        %v8577 = vsel %vm8545, %v8444, 0.0
        %v8578 = vsel %vm8546, %v8446, 0.0
        %v8579 = vsel %vm8547, %v8448, 0.0
        %v8580 = vsel %vm8548, %v8452, 0.0
        %v8581 = vsel %vm8549, %v8454, 0.0
        %v8582 = vsel %vm8550, %v8456, 0.0
        %v8583 = vsel %vm8551, %v8458, 0.0
        %v8584 = vsel %vm8552, %v8462, 0.0
        %v8585 = vsel %vm8553, %v8464, 0.0
        %v8586 = vsel %vm8554, %v8466, 0.0
        %v8587 = vsel %vm8555, %v8468, 0.0
        %v8588 = vsel %vm8556, %v8472, 0.0
        %v8589 = vsel %vm8557, %v8474, 0.0
        %v8590 = vsel %vm8558, %v8476, 0.0
        %v8591 = vsel %vm8559, %v8478, 0.0
        %v8592 = vadd.f32 %v8560, %v8561
        %8593 = vadd.xlane.f32.xlu0 %v8592
        %v8594 = vpop.xlane.xlu0 %8593
        %v8595 = vadd.f32 %v8562, %v8563
        %8596 = vadd.xlane.f32.xlu0 %v8595
        %v8597 = vpop.xlane.xlu0 %8596
        %v8598 = vadd.f32 %v8564, %v8565
        %8599 = vadd.xlane.f32.xlu0 %v8598
        %v8600 = vpop.xlane.xlu0 %8599
        %v8601 = vadd.f32 %v8566, %v8567
        %8602 = vadd.xlane.f32.xlu0 %v8601
        %v8603 = vpop.xlane.xlu0 %8602
        %v8604 = vadd.f32 %v8568, %v8569
        %8605 = vadd.xlane.f32.xlu0 %v8604
        %v8606 = vpop.xlane.xlu0 %8605
        %v8607 = vadd.f32 %v8570, %v8571
        %8608 = vadd.xlane.f32.xlu0 %v8607
        %v8609 = vpop.xlane.xlu0 %8608
        %v8610 = vadd.f32 %v8572, %v8573
        %8611 = vadd.xlane.f32.xlu0 %v8610
        %v8612 = vpop.xlane.xlu0 %8611
        %v8613 = vadd.f32 %v8574, %v8575
        %8614 = vadd.xlane.f32.xlu0 %v8613
        %v8615 = vpop.xlane.xlu0 %8614
        %v8616 = vadd.f32 %v8576, %v8577
        %8617 = vadd.xlane.f32.xlu0 %v8616
        %v8618 = vpop.xlane.xlu0 %8617
        %v8619 = vadd.f32 %v8578, %v8579
        %8620 = vadd.xlane.f32.xlu0 %v8619
        %v8621 = vpop.xlane.xlu0 %8620
        %v8622 = vadd.f32 %v8580, %v8581
        %8623 = vadd.xlane.f32.xlu0 %v8622
        %v8624 = vpop.xlane.xlu0 %8623
        %v8625 = vadd.f32 %v8582, %v8583
        %8626 = vadd.xlane.f32.xlu0 %v8625
        %v8627 = vpop.xlane.xlu0 %8626
        %v8628 = vadd.f32 %v8584, %v8585
        %8629 = vadd.xlane.f32.xlu0 %v8628
        %v8630 = vpop.xlane.xlu0 %8629
        %v8631 = vadd.f32 %v8586, %v8587
        %8632 = vadd.xlane.f32.xlu0 %v8631
        %v8633 = vpop.xlane.xlu0 %8632
        %v8634 = vadd.f32 %v8588, %v8589
        %8635 = vadd.xlane.f32.xlu0 %v8634
        %v8636 = vpop.xlane.xlu0 %8635
        %v8637 = vadd.f32 %v8590, %v8591
        %8638 = vadd.xlane.f32.xlu0 %v8637
        %v8639 = vpop.xlane.xlu0 %8638
        %v8640 = vsub.f32 %v8402, %v8594
        %v8641 = vsub.f32 %v8404, %v8594
        %v8642 = vsub.f32 %v8406, %v8597
        %v8643 = vsub.f32 %v8408, %v8597
        %v8644 = vsub.f32 %v8412, %v8600
        %v8645 = vsub.f32 %v8414, %v8600
        %v8646 = vsub.f32 %v8416, %v8603
        %v8647 = vsub.f32 %v8418, %v8603
        %v8648 = vsub.f32 %v8422, %v8606
        %v8649 = vsub.f32 %v8424, %v8606
        %v8650 = vsub.f32 %v8426, %v8609
        %v8651 = vsub.f32 %v8428, %v8609
        %v8652 = vsub.f32 %v8432, %v8612
        %v8653 = vsub.f32 %v8434, %v8612
        %v8654 = vsub.f32 %v8436, %v8615
        %v8655 = vsub.f32 %v8438, %v8615
        %v8656 = vsub.f32 %v8442, %v8618
        %v8657 = vsub.f32 %v8444, %v8618
        %v8658 = vsub.f32 %v8446, %v8621
        %v8659 = vsub.f32 %v8448, %v8621
        %v8660 = vsub.f32 %v8452, %v8624
        %v8661 = vsub.f32 %v8454, %v8624
        %v8662 = vsub.f32 %v8456, %v8627
        %v8663 = vsub.f32 %v8458, %v8627
        %v8664 = vsub.f32 %v8462, %v8630
        %v8665 = vsub.f32 %v8464, %v8630
        %v8666 = vsub.f32 %v8466, %v8633
        %v8667 = vsub.f32 %v8468, %v8633
        %v8668 = vsub.f32 %v8472, %v8636
        %v8669 = vsub.f32 %v8474, %v8636
        %v8670 = vsub.f32 %v8476, %v8639
        %v8671 = vsub.f32 %v8478, %v8639
        %v8672 = vmul.f32 %v8640, 1.442695
        %v8673 = vpow.pop %v8672
        %v8674 = vmul.f32 %v8641, 1.442695
        %v8675 = vpow.pop %v8674
        %v8676 = vmul.f32 %v8642, 1.442695
        %v8677 = vpow.pop %v8676
        %v8678 = vmul.f32 %v8643, 1.442695
        %v8679 = vpow.pop %v8678
        %v8680 = vmul.f32 %v8644, 1.442695
        %v8681 = vpow.pop %v8680
        %v8682 = vmul.f32 %v8645, 1.442695
        %v8683 = vpow.pop %v8682
        %v8684 = vmul.f32 %v8646, 1.442695
        %v8685 = vpow.pop %v8684
        %v8686 = vmul.f32 %v8647, 1.442695
        %v8687 = vpow.pop %v8686
        %v8688 = vmul.f32 %v8648, 1.442695
        %v8689 = vpow.pop %v8688
        %v8690 = vmul.f32 %v8649, 1.442695
        %v8691 = vpow.pop %v8690
        %v8692 = vmul.f32 %v8650, 1.442695
        %v8693 = vpow.pop %v8692
        %v8694 = vmul.f32 %v8651, 1.442695
        %v8695 = vpow.pop %v8694
        %v8696 = vmul.f32 %v8652, 1.442695
        %v8697 = vpow.pop %v8696
        %v8698 = vmul.f32 %v8653, 1.442695
        %v8699 = vpow.pop %v8698
        %v8700 = vmul.f32 %v8654, 1.442695
        %v8701 = vpow.pop %v8700
        %v8702 = vmul.f32 %v8655, 1.442695
        %v8703 = vpow.pop %v8702
        %v8704 = vmul.f32 %v8656, 1.442695
        %v8705 = vpow.pop %v8704
        %v8706 = vmul.f32 %v8657, 1.442695
        %v8707 = vpow.pop %v8706
        %v8708 = vmul.f32 %v8658, 1.442695
        %v8709 = vpow.pop %v8708
        %v8710 = vmul.f32 %v8659, 1.442695
        %v8711 = vpow.pop %v8710
        %v8712 = vmul.f32 %v8660, 1.442695
        %v8713 = vpow.pop %v8712
        %v8714 = vmul.f32 %v8661, 1.442695
        %v8715 = vpow.pop %v8714
        %v8716 = vmul.f32 %v8662, 1.442695
        %v8717 = vpow.pop %v8716
        %v8718 = vmul.f32 %v8663, 1.442695
        %v8719 = vpow.pop %v8718
        %v8720 = vmul.f32 %v8664, 1.442695
        %v8721 = vpow.pop %v8720
        %v8722 = vmul.f32 %v8665, 1.442695
        %v8723 = vpow.pop %v8722
        %v8724 = vmul.f32 %v8666, 1.442695
        %v8725 = vpow.pop %v8724
        %v8726 = vmul.f32 %v8667, 1.442695
        %v8727 = vpow.pop %v8726
        %v8728 = vmul.f32 %v8668, 1.442695
        %v8729 = vpow.pop %v8728
        %v8730 = vmul.f32 %v8669, 1.442695
        %v8731 = vpow.pop %v8730
        %v8732 = vmul.f32 %v8670, 1.442695
        %v8733 = vpow.pop %v8732
        %v8734 = vmul.f32 %v8671, 1.442695
        %v8735 = vpow.pop %v8734
        %v8736 = vadd.f32 %v8673, %v8675
        %8737 = vadd.xlane.f32.xlu0 %v8736
        %v8738 = vpop.xlane.xlu0 %8737
        %v8739 = vadd.f32 %v8677, %v8679
        %8740 = vadd.xlane.f32.xlu0 %v8739
        %v8741 = vpop.xlane.xlu0 %8740
        %v8742 = vadd.f32 %v8681, %v8683
        %8743 = vadd.xlane.f32.xlu0 %v8742
        %v8744 = vpop.xlane.xlu0 %8743
        %v8745 = vadd.f32 %v8685, %v8687
        %8746 = vadd.xlane.f32.xlu0 %v8745
        %v8747 = vpop.xlane.xlu0 %8746
        %v8748 = vadd.f32 %v8689, %v8691
        %8749 = vadd.xlane.f32.xlu0 %v8748
        %v8750 = vpop.xlane.xlu0 %8749
        %v8751 = vadd.f32 %v8693, %v8695
        %8752 = vadd.xlane.f32.xlu0 %v8751
        %v8753 = vpop.xlane.xlu0 %8752
        %v8754 = vadd.f32 %v8697, %v8699
        %8755 = vadd.xlane.f32.xlu0 %v8754
        %v8756 = vpop.xlane.xlu0 %8755
        %v8757 = vadd.f32 %v8701, %v8703
        %8758 = vadd.xlane.f32.xlu0 %v8757
        %v8759 = vpop.xlane.xlu0 %8758
        %v8760 = vadd.f32 %v8705, %v8707
        %8761 = vadd.xlane.f32.xlu0 %v8760
        %v8762 = vpop.xlane.xlu0 %8761
        %v8763 = vadd.f32 %v8709, %v8711
        %8764 = vadd.xlane.f32.xlu0 %v8763
        %v8765 = vpop.xlane.xlu0 %8764
        %v8766 = vadd.f32 %v8713, %v8715
        %8767 = vadd.xlane.f32.xlu0 %v8766
        %v8768 = vpop.xlane.xlu0 %8767
        %v8769 = vadd.f32 %v8717, %v8719
        %8770 = vadd.xlane.f32.xlu0 %v8769
        %v8771 = vpop.xlane.xlu0 %8770
        %v8772 = vadd.f32 %v8721, %v8723
        %8773 = vadd.xlane.f32.xlu0 %v8772
        %v8774 = vpop.xlane.xlu0 %8773
        %v8775 = vadd.f32 %v8725, %v8727
        %8776 = vadd.xlane.f32.xlu0 %v8775
        %v8777 = vpop.xlane.xlu0 %8776
        %v8778 = vadd.f32 %v8729, %v8731
        %8779 = vadd.xlane.f32.xlu0 %v8778
        %v8780 = vpop.xlane.xlu0 %8779
        %v8781 = vadd.f32 %v8733, %v8735
        %8782 = vadd.xlane.f32.xlu0 %v8781
        %v8783 = vpop.xlane.xlu0 %8782
        %v8784 = vlog2.pop %v8738
        %v8785 = vmul.f32 %v8784, 0.6931472
        %v8786 = vlog2.pop %v8741
        %v8787 = vmul.f32 %v8786, 0.6931472
        %v8788 = vlog2.pop %v8744
        %v8789 = vmul.f32 %v8788, 0.6931472
        %v8790 = vlog2.pop %v8747
        %v8791 = vmul.f32 %v8790, 0.6931472
        %v8792 = vlog2.pop %v8750
        %v8793 = vmul.f32 %v8792, 0.6931472
        %v8794 = vlog2.pop %v8753
        %v8795 = vmul.f32 %v8794, 0.6931472
        %v8796 = vlog2.pop %v8756
        %v8797 = vmul.f32 %v8796, 0.6931472
        %v8798 = vlog2.pop %v8759
        %v8799 = vmul.f32 %v8798, 0.6931472
        %v8800 = vlog2.pop %v8762
        %v8801 = vmul.f32 %v8800, 0.6931472
        %v8802 = vlog2.pop %v8765
        %v8803 = vmul.f32 %v8802, 0.6931472
        %v8804 = vlog2.pop %v8768
        %v8805 = vmul.f32 %v8804, 0.6931472
        %v8806 = vlog2.pop %v8771
        %v8807 = vmul.f32 %v8806, 0.6931472
        %v8808 = vlog2.pop %v8774
        %v8809 = vmul.f32 %v8808, 0.6931472
        %v8810 = vlog2.pop %v8777
        %v8811 = vmul.f32 %v8810, 0.6931472
        %v8812 = vlog2.pop %v8780
        %v8813 = vmul.f32 %v8812, 0.6931472
        %v8814 = vlog2.pop %v8783
        %v8815 = vmul.f32 %v8814, 0.6931472
        %v8816 = vsub.f32 0.0, %v8785
        %v8817 = vsub.f32 0.0, %v8787
        %v8818 = vsub.f32 0.0, %v8789
        %v8819 = vsub.f32 0.0, %v8791
        %v8820 = vsub.f32 0.0, %v8793
        %v8821 = vsub.f32 0.0, %v8795
        %v8822 = vsub.f32 0.0, %v8797
        %v8823 = vsub.f32 0.0, %v8799
        %v8824 = vsub.f32 0.0, %v8801
        %v8825 = vsub.f32 0.0, %v8803
        %v8826 = vsub.f32 0.0, %v8805
        %v8827 = vsub.f32 0.0, %v8807
        %v8828 = vsub.f32 0.0, %v8809
        %v8829 = vsub.f32 0.0, %v8811
        %v8830 = vsub.f32 0.0, %v8813
        %v8831 = vsub.f32 0.0, %v8815
        %v8832 = vmax.f32 %v8816, -11.512925
        %v8833 = vmax.f32 %v8817, -11.512925
        %v8834 = vmax.f32 %v8818, -11.512925
        %v8835 = vmax.f32 %v8819, -11.512925
        %v8836 = vmax.f32 %v8820, -11.512925
        %v8837 = vmax.f32 %v8821, -11.512925
        %v8838 = vmax.f32 %v8822, -11.512925
        %v8839 = vmax.f32 %v8823, -11.512925
        %v8840 = vmax.f32 %v8824, -11.512925
        %v8841 = vmax.f32 %v8825, -11.512925
        %v8842 = vmax.f32 %v8826, -11.512925
        %v8843 = vmax.f32 %v8827, -11.512925
        %v8844 = vmax.f32 %v8828, -11.512925
        %v8845 = vmax.f32 %v8829, -11.512925
        %v8846 = vmax.f32 %v8830, -11.512925
        %v8847 = vmax.f32 %v8831, -11.512925
        %v8848 = vmin.f32 %v8832, -1.000005e-05
        %v8849 = vmin.f32 %v8833, -1.000005e-05
        %v8850 = vmin.f32 %v8834, -1.000005e-05
        %v8851 = vmin.f32 %v8835, -1.000005e-05
        %v8852 = vmin.f32 %v8836, -1.000005e-05
        %v8853 = vmin.f32 %v8837, -1.000005e-05
        %v8854 = vmin.f32 %v8838, -1.000005e-05
        %v8855 = vmin.f32 %v8839, -1.000005e-05
        %v8856 = vmin.f32 %v8840, -1.000005e-05
        %v8857 = vmin.f32 %v8841, -1.000005e-05
        %v8858 = vmin.f32 %v8842, -1.000005e-05
        %v8859 = vmin.f32 %v8843, -1.000005e-05
        %v8860 = vmin.f32 %v8844, -1.000005e-05
        %v8861 = vmin.f32 %v8845, -1.000005e-05
        %v8862 = vmin.f32 %v8846, -1.000005e-05
        %v8863 = vmin.f32 %v8847, -1.000005e-05
        %v8864 = vadd.f32 %v7622, %v8848
        %v8865 = vadd.f32 %v7623, %v8849
        %v8866 = vadd.f32 %v7624, %v8850
        %v8867 = vadd.f32 %v7625, %v8851
        %v8868 = vadd.f32 %v7626, %v8852
        %v8869 = vadd.f32 %v7627, %v8853
        %v8870 = vadd.f32 %v7628, %v8854
        %v8871 = vadd.f32 %v7629, %v8855
        %v8872 = vadd.f32 %v7630, %v8856
        %v8873 = vadd.f32 %v7631, %v8857
        %v8874 = vadd.f32 %v7632, %v8858
        %v8875 = vadd.f32 %v7633, %v8859
        %v8876 = vadd.f32 %v7634, %v8860
        %v8877 = vadd.f32 %v7635, %v8861
        %v8878 = vadd.f32 %v7636, %v8862
        %v8879 = vadd.f32 %v7637, %v8863
        %v8880 = vld [vmem:[#allocation2 + $0x68] sm:$0xff]
        %v8881 = vld [vmem:[#allocation2 + $0xe8] sm:$0xff]
        %v8882 = vld [vmem:[#allocation2 + $0x168] sm:$0xff]
        %v8883 = vld [vmem:[#allocation2 + $0x1e8] sm:$0xff]
        %v8884 = vld [vmem:[#allocation2 + $0x268] sm:$0xff]
        %v8885 = vld [vmem:[#allocation2 + $0x2e8] sm:$0xff]
        %v8886 = vld [vmem:[#allocation2 + $0x368] sm:$0xff]
        %v8887 = vld [vmem:[#allocation2 + $0x3e8] sm:$0xff]
        %v8888 = vld [vmem:[#allocation2 + $0x468] sm:$0xff]
        %v8889 = vld [vmem:[#allocation2 + $0x4e8] sm:$0xff]
        %v8890 = vld [vmem:[#allocation2 + $0x568] sm:$0xff]
        %v8891 = vld [vmem:[#allocation2 + $0x5e8] sm:$0xff]
        %v8892 = vld [vmem:[#allocation2 + $0x668] sm:$0xff]
        %v8893 = vld [vmem:[#allocation2 + $0x6e8] sm:$0xff]
        %v8894 = vld [vmem:[#allocation2 + $0x768] sm:$0xff]
        %v8895 = vld [vmem:[#allocation2 + $0x7e8] sm:$0xff]
        %v8896 = vld [vmem:[%s7 + $0x1a] sm:$0x3]
        %v8898 = vlaneseq
        %v8899 = vshrl.u32 %v8898, 7
        %v8900 = vsub.s32 0, %v8899
        %v8901 = vrot.slane %v8896, %v8900
        %v8902 = vlaneseq
        %v8903 = vshrl.u32 %v8902, 7
        %v8904 = vsub.s32 1, %v8903
        %v8905 = vrot.slane %v8896, %v8904
        %v8924 = vunpack.c.l.b16 %v8880
        %v8925 = vunpack.c.h.b16 %v8880
        %v8926 = vunpack.c.l.b16 %v8881
        %v8927 = vunpack.c.h.b16 %v8881
        %v8928 = vunpack.c.l.b16 %v8882
        %v8929 = vunpack.c.h.b16 %v8882
        %v8930 = vunpack.c.l.b16 %v8883
        %v8931 = vunpack.c.h.b16 %v8883
        %v8932 = vunpack.c.l.b16 %v8884
        %v8933 = vunpack.c.h.b16 %v8884
        %v8934 = vunpack.c.l.b16 %v8885
        %v8935 = vunpack.c.h.b16 %v8885
        %v8936 = vunpack.c.l.b16 %v8886
        %v8937 = vunpack.c.h.b16 %v8886
        %v8938 = vunpack.c.l.b16 %v8887
        %v8939 = vunpack.c.h.b16 %v8887
        %v8940 = vunpack.c.l.b16 %v8888
        %v8941 = vunpack.c.h.b16 %v8888
        %v8942 = vunpack.c.l.b16 %v8889
        %v8943 = vunpack.c.h.b16 %v8889
        %v8944 = vunpack.c.l.b16 %v8890
        %v8945 = vunpack.c.h.b16 %v8890
        %v8946 = vunpack.c.l.b16 %v8891
        %v8947 = vunpack.c.h.b16 %v8891
        %v8948 = vunpack.c.l.b16 %v8892
        %v8949 = vunpack.c.h.b16 %v8892
        %v8950 = vunpack.c.l.b16 %v8893
        %v8951 = vunpack.c.h.b16 %v8893
        %v8952 = vunpack.c.l.b16 %v8894
        %v8953 = vunpack.c.h.b16 %v8894
        %v8954 = vunpack.c.l.b16 %v8895
        %v8955 = vunpack.c.h.b16 %v8895
        %v8956 = vpack.c.b16 %v8926, %v8924
        %v8957 = vpack.c.b16 %v8927, %v8925
        %v8958 = vpack.c.b16 %v8930, %v8928
        %v8959 = vpack.c.b16 %v8931, %v8929
        %v8960 = vpack.c.b16 %v8934, %v8932
        %v8961 = vpack.c.b16 %v8935, %v8933
        %v8962 = vpack.c.b16 %v8938, %v8936
        %v8963 = vpack.c.b16 %v8939, %v8937
        %v8964 = vpack.c.b16 %v8942, %v8940
        %v8965 = vpack.c.b16 %v8943, %v8941
        %v8966 = vpack.c.b16 %v8946, %v8944
        %v8967 = vpack.c.b16 %v8947, %v8945
        %v8968 = vpack.c.b16 %v8950, %v8948
        %v8969 = vpack.c.b16 %v8951, %v8949
        %v8970 = vpack.c.b16 %v8954, %v8952
        %v8971 = vpack.c.b16 %v8955, %v8953
        %8988 = vmatprep.subr.bf16.mxu0 %v8971
        %8989 = vmatpush1.bf16.msra.mxu0 %v8970
        %8990 = vmatprep.subr.bf16.mxu0 %v8969
        %8991 = vmatpush1.bf16.msra.mxu0 %v8968
        %8992 = vmatprep.subr.bf16.mxu0 %v8967
        %8993 = vmatpush1.bf16.msra.mxu0 %v8966
        %8994 = vmatprep.subr.bf16.mxu0 %v8965
        %8995 = vmatpush1.bf16.msra.mxu0 %v8964
        %8996 = vmatprep.subr.bf16.mxu0 %v8963
        %8997 = vmatpush1.bf16.msra.mxu0 %v8962
        %8998 = vmatprep.subr.bf16.mxu0 %v8961
        %8999 = vmatpush1.bf16.msra.mxu0 %v8960
        %9000 = vmatprep.subr.bf16.mxu0 %v8959
        %9001 = vmatpush1.bf16.msra.mxu0 %v8958
        %9002 = vmatprep.subr.bf16.mxu0 %v8957
        %9003 = vmatpush1.bf16.msra.mxu0 %v8956
        %9004 = vmatprep.subr.bf16.mxu0 0
        %9005 = vmatpush2.bf16.msra.mxu0 0
        %9006 = vmatprep.subr.bf16.mxu0 0
        %9007 = vmatpush2.bf16.msra.mxu0 0
        %9008 = vmatprep.subr.bf16.mxu0 0
        %9009 = vmatpush2.bf16.msra.mxu0 0
        %9010 = vmatprep.subr.bf16.mxu0 0
        %9011 = vmatpush2.bf16.msra.mxu0 0
        %9012 = vmatprep.subr.bf16.mxu0 0
        %9013 = vmatpush2.bf16.msra.mxu0 0
        %9014 = vmatprep.subr.bf16.mxu0 0
        %9015 = vmatpush2.bf16.msra.mxu0 0
        %9016 = vmatprep.subr.bf16.mxu0 0
        %9017 = vmatpush2.bf16.msra.mxu0 0
        %9018 = vmatprep.subr.bf16.mxu0 0
        %9019 = vmatpush2.bf16.msra.mxu0 0
        %9020 = vmatprep.mubr.bf16.mxu0 0
        %9021 = vmatmul.mubr.bf16.gmra.mxu0 %v780
        %v9022 = vpop.f32.mrf.mxu0
        %v9023 = vadd.f32 %v8901, %v9022
        %v9024 = vpop.f32.mrf.mxu0
        %v9025 = vadd.f32 %v8905, %v9024
        %v9026 = vpop.f32.mrf.mxu0
        %v9027 = vadd.f32 %v8901, %v9026
        %v9028 = vpop.f32.mrf.mxu0
        %v9029 = vadd.f32 %v8905, %v9028
        %9030 = vmatprep.mubr.bf16.mxu0 0
        %9031 = vmatmul.mubr.bf16.gmra.mxu0 %v781
        %v9032 = vpop.f32.mrf.mxu0
        %v9033 = vadd.f32 %v8901, %v9032
        %v9034 = vpop.f32.mrf.mxu0
        %v9035 = vadd.f32 %v8905, %v9034
        %v9036 = vpop.f32.mrf.mxu0
        %v9037 = vadd.f32 %v8901, %v9036
        %v9038 = vpop.f32.mrf.mxu0
        %v9039 = vadd.f32 %v8905, %v9038
        %9040 = vmatprep.mubr.bf16.mxu0 0
        %9041 = vmatmul.mubr.bf16.gmra.mxu0 %v782
        %v9042 = vpop.f32.mrf.mxu0
        %v9043 = vadd.f32 %v8901, %v9042
        %v9044 = vpop.f32.mrf.mxu0
        %v9045 = vadd.f32 %v8905, %v9044
        %v9046 = vpop.f32.mrf.mxu0
        %v9047 = vadd.f32 %v8901, %v9046
        %v9048 = vpop.f32.mrf.mxu0
        %v9049 = vadd.f32 %v8905, %v9048
        %9050 = vmatprep.mubr.bf16.mxu0 0
        %9051 = vmatmul.mubr.bf16.gmra.mxu0 %v783
        %v9052 = vpop.f32.mrf.mxu0
        %v9053 = vadd.f32 %v8901, %v9052
        %v9054 = vpop.f32.mrf.mxu0
        %v9055 = vadd.f32 %v8905, %v9054
        %v9056 = vpop.f32.mrf.mxu0
        %v9057 = vadd.f32 %v8901, %v9056
        %v9058 = vpop.f32.mrf.mxu0
        %v9059 = vadd.f32 %v8905, %v9058
        %9060 = vmatprep.mubr.bf16.mxu0 0
        %9061 = vmatmul.mubr.bf16.gmra.mxu0 %v784
        %v9062 = vpop.f32.mrf.mxu0
        %v9063 = vadd.f32 %v8901, %v9062
        %v9064 = vpop.f32.mrf.mxu0
        %v9065 = vadd.f32 %v8905, %v9064
        %v9066 = vpop.f32.mrf.mxu0
        %v9067 = vadd.f32 %v8901, %v9066
        %v9068 = vpop.f32.mrf.mxu0
        %v9069 = vadd.f32 %v8905, %v9068
        %9070 = vmatprep.mubr.bf16.mxu0 0
        %9071 = vmatmul.mubr.bf16.gmra.mxu0 %v785
        %v9072 = vpop.f32.mrf.mxu0
        %v9073 = vadd.f32 %v8901, %v9072
        %v9074 = vpop.f32.mrf.mxu0
        %v9075 = vadd.f32 %v8905, %v9074
        %v9076 = vpop.f32.mrf.mxu0
        %v9077 = vadd.f32 %v8901, %v9076
        %v9078 = vpop.f32.mrf.mxu0
        %v9079 = vadd.f32 %v8905, %v9078
        %9080 = vmatprep.mubr.bf16.mxu0 0
        %9081 = vmatmul.mubr.bf16.gmra.mxu0 %v786
        %v9082 = vpop.f32.mrf.mxu0
        %v9083 = vadd.f32 %v8901, %v9082
        %v9084 = vpop.f32.mrf.mxu0
        %v9085 = vadd.f32 %v8905, %v9084
        %v9086 = vpop.f32.mrf.mxu0
        %v9087 = vadd.f32 %v8901, %v9086
        %v9088 = vpop.f32.mrf.mxu0
        %v9089 = vadd.f32 %v8905, %v9088
        %9090 = vmatprep.mubr.bf16.mxu0 0
        %9091 = vmatmul.mubr.bf16.gmra.mxu0 %v787
        %v9092 = vpop.f32.mrf.mxu0
        %v9093 = vadd.f32 %v8901, %v9092
        %v9094 = vpop.f32.mrf.mxu0
        %v9095 = vadd.f32 %v8905, %v9094
        %v9096 = vpop.f32.mrf.mxu0
        %v9097 = vadd.f32 %v8901, %v9096
        %v9098 = vpop.f32.mrf.mxu0
        %v9099 = vadd.f32 %v8905, %v9098
        %9100 = vdwg.mxu0
        %9101 = vset.pattern.permute.xlu0 13
        %9102 = vperm.xlu0 %9101, %v788
        %v9103 = vpop.permute.xlu0 %9102
        %9104 = vset.pattern.permute.xlu0 13
        %9105 = vperm.xlu0 %9104, %v789
        %v9106 = vpop.permute.xlu0 %9105
        %9107 = vset.pattern.permute.xlu0 13
        %9108 = vperm.xlu0 %9107, %v790
        %v9109 = vpop.permute.xlu0 %9108
        %9110 = vset.pattern.permute.xlu0 13
        %9111 = vperm.xlu0 %9110, %v791
        %v9112 = vpop.permute.xlu0 %9111
        %9113 = vset.pattern.permute.xlu0 13
        %9114 = vperm.xlu0 %9113, %v792
        %v9115 = vpop.permute.xlu0 %9114
        %9116 = vset.pattern.permute.xlu0 13
        %9117 = vperm.xlu0 %9116, %v793
        %v9118 = vpop.permute.xlu0 %9117
        %9119 = vset.pattern.permute.xlu0 13
        %9120 = vperm.xlu0 %9119, %v794
        %v9121 = vpop.permute.xlu0 %9120
        %9122 = vset.pattern.permute.xlu0 13
        %9123 = vperm.xlu0 %9122, %v795
        %v9124 = vpop.permute.xlu0 %9123
        %9125 = vset.pattern.permute.xlu0 13
        %9126 = vperm.xlu0 %9125, %v796
        %v9127 = vpop.permute.xlu0 %9126
        %9128 = vset.pattern.permute.xlu0 13
        %9129 = vperm.xlu0 %9128, %v797
        %v9130 = vpop.permute.xlu0 %9129
        %9131 = vset.pattern.permute.xlu0 13
        %9132 = vperm.xlu0 %9131, %v798
        %v9133 = vpop.permute.xlu0 %9132
        %9134 = vset.pattern.permute.xlu0 13
        %9135 = vperm.xlu0 %9134, %v799
        %v9136 = vpop.permute.xlu0 %9135
        %9137 = vset.pattern.permute.xlu0 13
        %9138 = vperm.xlu0 %9137, %v800
        %v9139 = vpop.permute.xlu0 %9138
        %9140 = vset.pattern.permute.xlu0 13
        %9141 = vperm.xlu0 %9140, %v801
        %v9142 = vpop.permute.xlu0 %9141
        %9143 = vset.pattern.permute.xlu0 13
        %9144 = vperm.xlu0 %9143, %v802
        %v9145 = vpop.permute.xlu0 %9144
        %9146 = vset.pattern.permute.xlu0 13
        %9147 = vperm.xlu0 %9146, %v803
        %v9148 = vpop.permute.xlu0 %9147
        %vm9149 = vcmp.eq.s32.totalorder %v805, %v9103
        %vm9150 = vcmp.eq.s32.totalorder %v806, %v9103
        %vm9151 = vcmp.eq.s32.totalorder %v805, %v9106
        %vm9152 = vcmp.eq.s32.totalorder %v806, %v9106
        %vm9153 = vcmp.eq.s32.totalorder %v805, %v9109
        %vm9154 = vcmp.eq.s32.totalorder %v806, %v9109
        %vm9155 = vcmp.eq.s32.totalorder %v805, %v9112
        %vm9156 = vcmp.eq.s32.totalorder %v806, %v9112
        %vm9157 = vcmp.eq.s32.totalorder %v805, %v9115
        %vm9158 = vcmp.eq.s32.totalorder %v806, %v9115
        %vm9159 = vcmp.eq.s32.totalorder %v805, %v9118
        %vm9160 = vcmp.eq.s32.totalorder %v806, %v9118
        %vm9161 = vcmp.eq.s32.totalorder %v805, %v9121
        %vm9162 = vcmp.eq.s32.totalorder %v806, %v9121
        %vm9163 = vcmp.eq.s32.totalorder %v805, %v9124
        %vm9164 = vcmp.eq.s32.totalorder %v806, %v9124
        %vm9165 = vcmp.eq.s32.totalorder %v805, %v9127
        %vm9166 = vcmp.eq.s32.totalorder %v806, %v9127
        %vm9167 = vcmp.eq.s32.totalorder %v805, %v9130
        %vm9168 = vcmp.eq.s32.totalorder %v806, %v9130
        %vm9169 = vcmp.eq.s32.totalorder %v805, %v9133
        %vm9170 = vcmp.eq.s32.totalorder %v806, %v9133
        %vm9171 = vcmp.eq.s32.totalorder %v805, %v9136
        %vm9172 = vcmp.eq.s32.totalorder %v806, %v9136
        %vm9173 = vcmp.eq.s32.totalorder %v805, %v9139
        %vm9174 = vcmp.eq.s32.totalorder %v806, %v9139
        %vm9175 = vcmp.eq.s32.totalorder %v805, %v9142
        %vm9176 = vcmp.eq.s32.totalorder %v806, %v9142
        %vm9177 = vcmp.eq.s32.totalorder %v805, %v9145
        %vm9178 = vcmp.eq.s32.totalorder %v806, %v9145
        %vm9179 = vcmp.eq.s32.totalorder %v805, %v9148
        %vm9180 = vcmp.eq.s32.totalorder %v806, %v9148
        %v9181 = vsel %vm9149, %v9023, 0.0
        %v9182 = vsel %vm9150, %v9025, 0.0
        %v9183 = vsel %vm9151, %v9027, 0.0
        %v9184 = vsel %vm9152, %v9029, 0.0
        %v9185 = vsel %vm9153, %v9033, 0.0
        %v9186 = vsel %vm9154, %v9035, 0.0
        %v9187 = vsel %vm9155, %v9037, 0.0
        %v9188 = vsel %vm9156, %v9039, 0.0
        %v9189 = vsel %vm9157, %v9043, 0.0
        %v9190 = vsel %vm9158, %v9045, 0.0
        %v9191 = vsel %vm9159, %v9047, 0.0
        %v9192 = vsel %vm9160, %v9049, 0.0
        %v9193 = vsel %vm9161, %v9053, 0.0
        %v9194 = vsel %vm9162, %v9055, 0.0
        %v9195 = vsel %vm9163, %v9057, 0.0
        %v9196 = vsel %vm9164, %v9059, 0.0
        %v9197 = vsel %vm9165, %v9063, 0.0
        %v9198 = vsel %vm9166, %v9065, 0.0
        %v9199 = vsel %vm9167, %v9067, 0.0
        %v9200 = vsel %vm9168, %v9069, 0.0
        %v9201 = vsel %vm9169, %v9073, 0.0
        %v9202 = vsel %vm9170, %v9075, 0.0
        %v9203 = vsel %vm9171, %v9077, 0.0
        %v9204 = vsel %vm9172, %v9079, 0.0
        %v9205 = vsel %vm9173, %v9083, 0.0
        %v9206 = vsel %vm9174, %v9085, 0.0
        %v9207 = vsel %vm9175, %v9087, 0.0
        %v9208 = vsel %vm9176, %v9089, 0.0
        %v9209 = vsel %vm9177, %v9093, 0.0
        %v9210 = vsel %vm9178, %v9095, 0.0
        %v9211 = vsel %vm9179, %v9097, 0.0
        %v9212 = vsel %vm9180, %v9099, 0.0
        %v9213 = vadd.f32 %v9181, %v9182
        %9214 = vadd.xlane.f32.xlu0 %v9213
        %v9215 = vpop.xlane.xlu0 %9214
        %v9216 = vadd.f32 %v9183, %v9184
        %9217 = vadd.xlane.f32.xlu0 %v9216
        %v9218 = vpop.xlane.xlu0 %9217
        %v9219 = vadd.f32 %v9185, %v9186
        %9220 = vadd.xlane.f32.xlu0 %v9219
        %v9221 = vpop.xlane.xlu0 %9220
        %v9222 = vadd.f32 %v9187, %v9188
        %9223 = vadd.xlane.f32.xlu0 %v9222
        %v9224 = vpop.xlane.xlu0 %9223
        %v9225 = vadd.f32 %v9189, %v9190
        %9226 = vadd.xlane.f32.xlu0 %v9225
        %v9227 = vpop.xlane.xlu0 %9226
        %v9228 = vadd.f32 %v9191, %v9192
        %9229 = vadd.xlane.f32.xlu0 %v9228
        %v9230 = vpop.xlane.xlu0 %9229
        %v9231 = vadd.f32 %v9193, %v9194
        %9232 = vadd.xlane.f32.xlu0 %v9231
        %v9233 = vpop.xlane.xlu0 %9232
        %v9234 = vadd.f32 %v9195, %v9196
        %9235 = vadd.xlane.f32.xlu0 %v9234
        %v9236 = vpop.xlane.xlu0 %9235
        %v9237 = vadd.f32 %v9197, %v9198
        %9238 = vadd.xlane.f32.xlu0 %v9237
        %v9239 = vpop.xlane.xlu0 %9238
        %v9240 = vadd.f32 %v9199, %v9200
        %9241 = vadd.xlane.f32.xlu0 %v9240
        %v9242 = vpop.xlane.xlu0 %9241
        %v9243 = vadd.f32 %v9201, %v9202
        %9244 = vadd.xlane.f32.xlu0 %v9243
        %v9245 = vpop.xlane.xlu0 %9244
        %v9246 = vadd.f32 %v9203, %v9204
        %9247 = vadd.xlane.f32.xlu0 %v9246
        %v9248 = vpop.xlane.xlu0 %9247
        %v9249 = vadd.f32 %v9205, %v9206
        %9250 = vadd.xlane.f32.xlu0 %v9249
        %v9251 = vpop.xlane.xlu0 %9250
        %v9252 = vadd.f32 %v9207, %v9208
        %9253 = vadd.xlane.f32.xlu0 %v9252
        %v9254 = vpop.xlane.xlu0 %9253
        %v9255 = vadd.f32 %v9209, %v9210
        %9256 = vadd.xlane.f32.xlu0 %v9255
        %v9257 = vpop.xlane.xlu0 %9256
        %v9258 = vadd.f32 %v9211, %v9212
        %9259 = vadd.xlane.f32.xlu0 %v9258
        %v9260 = vpop.xlane.xlu0 %9259
        %v9261 = vsub.f32 %v9023, %v9215
        %v9262 = vsub.f32 %v9025, %v9215
        %v9263 = vsub.f32 %v9027, %v9218
        %v9264 = vsub.f32 %v9029, %v9218
        %v9265 = vsub.f32 %v9033, %v9221
        %v9266 = vsub.f32 %v9035, %v9221
        %v9267 = vsub.f32 %v9037, %v9224
        %v9268 = vsub.f32 %v9039, %v9224
        %v9269 = vsub.f32 %v9043, %v9227
        %v9270 = vsub.f32 %v9045, %v9227
        %v9271 = vsub.f32 %v9047, %v9230
        %v9272 = vsub.f32 %v9049, %v9230
        %v9273 = vsub.f32 %v9053, %v9233
        %v9274 = vsub.f32 %v9055, %v9233
        %v9275 = vsub.f32 %v9057, %v9236
        %v9276 = vsub.f32 %v9059, %v9236
        %v9277 = vsub.f32 %v9063, %v9239
        %v9278 = vsub.f32 %v9065, %v9239
        %v9279 = vsub.f32 %v9067, %v9242
        %v9280 = vsub.f32 %v9069, %v9242
        %v9281 = vsub.f32 %v9073, %v9245
        %v9282 = vsub.f32 %v9075, %v9245
        %v9283 = vsub.f32 %v9077, %v9248
        %v9284 = vsub.f32 %v9079, %v9248
        %v9285 = vsub.f32 %v9083, %v9251
        %v9286 = vsub.f32 %v9085, %v9251
        %v9287 = vsub.f32 %v9087, %v9254
        %v9288 = vsub.f32 %v9089, %v9254
        %v9289 = vsub.f32 %v9093, %v9257
        %v9290 = vsub.f32 %v9095, %v9257
        %v9291 = vsub.f32 %v9097, %v9260
        %v9292 = vsub.f32 %v9099, %v9260
        %v9293 = vmul.f32 %v9261, 1.442695
        %v9294 = vpow.pop %v9293
        %v9295 = vmul.f32 %v9262, 1.442695
        %v9296 = vpow.pop %v9295
        %v9297 = vmul.f32 %v9263, 1.442695
        %v9298 = vpow.pop %v9297
        %v9299 = vmul.f32 %v9264, 1.442695
        %v9300 = vpow.pop %v9299
        %v9301 = vmul.f32 %v9265, 1.442695
        %v9302 = vpow.pop %v9301
        %v9303 = vmul.f32 %v9266, 1.442695
        %v9304 = vpow.pop %v9303
        %v9305 = vmul.f32 %v9267, 1.442695
        %v9306 = vpow.pop %v9305
        %v9307 = vmul.f32 %v9268, 1.442695
        %v9308 = vpow.pop %v9307
        %v9309 = vmul.f32 %v9269, 1.442695
        %v9310 = vpow.pop %v9309
        %v9311 = vmul.f32 %v9270, 1.442695
        %v9312 = vpow.pop %v9311
        %v9313 = vmul.f32 %v9271, 1.442695
        %v9314 = vpow.pop %v9313
        %v9315 = vmul.f32 %v9272, 1.442695
        %v9316 = vpow.pop %v9315
        %v9317 = vmul.f32 %v9273, 1.442695
        %v9318 = vpow.pop %v9317
        %v9319 = vmul.f32 %v9274, 1.442695
        %v9320 = vpow.pop %v9319
        %v9321 = vmul.f32 %v9275, 1.442695
        %v9322 = vpow.pop %v9321
        %v9323 = vmul.f32 %v9276, 1.442695
        %v9324 = vpow.pop %v9323
        %v9325 = vmul.f32 %v9277, 1.442695
        %v9326 = vpow.pop %v9325
        %v9327 = vmul.f32 %v9278, 1.442695
        %v9328 = vpow.pop %v9327
        %v9329 = vmul.f32 %v9279, 1.442695
        %v9330 = vpow.pop %v9329
        %v9331 = vmul.f32 %v9280, 1.442695
        %v9332 = vpow.pop %v9331
        %v9333 = vmul.f32 %v9281, 1.442695
        %v9334 = vpow.pop %v9333
        %v9335 = vmul.f32 %v9282, 1.442695
        %v9336 = vpow.pop %v9335
        %v9337 = vmul.f32 %v9283, 1.442695
        %v9338 = vpow.pop %v9337
        %v9339 = vmul.f32 %v9284, 1.442695
        %v9340 = vpow.pop %v9339
        %v9341 = vmul.f32 %v9285, 1.442695
        %v9342 = vpow.pop %v9341
        %v9343 = vmul.f32 %v9286, 1.442695
        %v9344 = vpow.pop %v9343
        %v9345 = vmul.f32 %v9287, 1.442695
        %v9346 = vpow.pop %v9345
        %v9347 = vmul.f32 %v9288, 1.442695
        %v9348 = vpow.pop %v9347
        %v9349 = vmul.f32 %v9289, 1.442695
        %v9350 = vpow.pop %v9349
        %v9351 = vmul.f32 %v9290, 1.442695
        %v9352 = vpow.pop %v9351
        %v9353 = vmul.f32 %v9291, 1.442695
        %v9354 = vpow.pop %v9353
        %v9355 = vmul.f32 %v9292, 1.442695
        %v9356 = vpow.pop %v9355
        %v9357 = vadd.f32 %v9294, %v9296
        %9358 = vadd.xlane.f32.xlu0 %v9357
        %v9359 = vpop.xlane.xlu0 %9358
        %v9360 = vadd.f32 %v9298, %v9300
        %9361 = vadd.xlane.f32.xlu0 %v9360
        %v9362 = vpop.xlane.xlu0 %9361
        %v9363 = vadd.f32 %v9302, %v9304
        %9364 = vadd.xlane.f32.xlu0 %v9363
        %v9365 = vpop.xlane.xlu0 %9364
        %v9366 = vadd.f32 %v9306, %v9308
        %9367 = vadd.xlane.f32.xlu0 %v9366
        %v9368 = vpop.xlane.xlu0 %9367
        %v9369 = vadd.f32 %v9310, %v9312
        %9370 = vadd.xlane.f32.xlu0 %v9369
        %v9371 = vpop.xlane.xlu0 %9370
        %v9372 = vadd.f32 %v9314, %v9316
        %9373 = vadd.xlane.f32.xlu0 %v9372
        %v9374 = vpop.xlane.xlu0 %9373
        %v9375 = vadd.f32 %v9318, %v9320
        %9376 = vadd.xlane.f32.xlu0 %v9375
        %v9377 = vpop.xlane.xlu0 %9376
        %v9378 = vadd.f32 %v9322, %v9324
        %9379 = vadd.xlane.f32.xlu0 %v9378
        %v9380 = vpop.xlane.xlu0 %9379
        %v9381 = vadd.f32 %v9326, %v9328
        %9382 = vadd.xlane.f32.xlu0 %v9381
        %v9383 = vpop.xlane.xlu0 %9382
        %v9384 = vadd.f32 %v9330, %v9332
        %9385 = vadd.xlane.f32.xlu0 %v9384
        %v9386 = vpop.xlane.xlu0 %9385
        %v9387 = vadd.f32 %v9334, %v9336
        %9388 = vadd.xlane.f32.xlu0 %v9387
        %v9389 = vpop.xlane.xlu0 %9388
        %v9390 = vadd.f32 %v9338, %v9340
        %9391 = vadd.xlane.f32.xlu0 %v9390
        %v9392 = vpop.xlane.xlu0 %9391
        %v9393 = vadd.f32 %v9342, %v9344
        %9394 = vadd.xlane.f32.xlu0 %v9393
        %v9395 = vpop.xlane.xlu0 %9394
        %v9396 = vadd.f32 %v9346, %v9348
        %9397 = vadd.xlane.f32.xlu0 %v9396
        %v9398 = vpop.xlane.xlu0 %9397
        %v9399 = vadd.f32 %v9350, %v9352
        %9400 = vadd.xlane.f32.xlu0 %v9399
        %v9401 = vpop.xlane.xlu0 %9400
        %v9402 = vadd.f32 %v9354, %v9356
        %9403 = vadd.xlane.f32.xlu0 %v9402
        %v9404 = vpop.xlane.xlu0 %9403
        %v9405 = vlog2.pop %v9359
        %v9406 = vmul.f32 %v9405, 0.6931472
        %v9407 = vlog2.pop %v9362
        %v9408 = vmul.f32 %v9407, 0.6931472
        %v9409 = vlog2.pop %v9365
        %v9410 = vmul.f32 %v9409, 0.6931472
        %v9411 = vlog2.pop %v9368
        %v9412 = vmul.f32 %v9411, 0.6931472
        %v9413 = vlog2.pop %v9371
        %v9414 = vmul.f32 %v9413, 0.6931472
        %v9415 = vlog2.pop %v9374
        %v9416 = vmul.f32 %v9415, 0.6931472
        %v9417 = vlog2.pop %v9377
        %v9418 = vmul.f32 %v9417, 0.6931472
        %v9419 = vlog2.pop %v9380
        %v9420 = vmul.f32 %v9419, 0.6931472
        %v9421 = vlog2.pop %v9383
        %v9422 = vmul.f32 %v9421, 0.6931472
        %v9423 = vlog2.pop %v9386
        %v9424 = vmul.f32 %v9423, 0.6931472
        %v9425 = vlog2.pop %v9389
        %v9426 = vmul.f32 %v9425, 0.6931472
        %v9427 = vlog2.pop %v9392
        %v9428 = vmul.f32 %v9427, 0.6931472
        %v9429 = vlog2.pop %v9395
        %v9430 = vmul.f32 %v9429, 0.6931472
        %v9431 = vlog2.pop %v9398
        %v9432 = vmul.f32 %v9431, 0.6931472
        %v9433 = vlog2.pop %v9401
        %v9434 = vmul.f32 %v9433, 0.6931472
        %v9435 = vlog2.pop %v9404
        %v9436 = vmul.f32 %v9435, 0.6931472
        %v9437 = vsub.f32 0.0, %v9406
        %v9438 = vsub.f32 0.0, %v9408
        %v9439 = vsub.f32 0.0, %v9410
        %v9440 = vsub.f32 0.0, %v9412
        %v9441 = vsub.f32 0.0, %v9414
        %v9442 = vsub.f32 0.0, %v9416
        %v9443 = vsub.f32 0.0, %v9418
        %v9444 = vsub.f32 0.0, %v9420
        %v9445 = vsub.f32 0.0, %v9422
        %v9446 = vsub.f32 0.0, %v9424
        %v9447 = vsub.f32 0.0, %v9426
        %v9448 = vsub.f32 0.0, %v9428
        %v9449 = vsub.f32 0.0, %v9430
        %v9450 = vsub.f32 0.0, %v9432
        %v9451 = vsub.f32 0.0, %v9434
        %v9452 = vsub.f32 0.0, %v9436
        %v9453 = vmax.f32 %v9437, -11.512925
        %v9454 = vmax.f32 %v9438, -11.512925
        %v9455 = vmax.f32 %v9439, -11.512925
        %v9456 = vmax.f32 %v9440, -11.512925
        %v9457 = vmax.f32 %v9441, -11.512925
        %v9458 = vmax.f32 %v9442, -11.512925
        %v9459 = vmax.f32 %v9443, -11.512925
        %v9460 = vmax.f32 %v9444, -11.512925
        %v9461 = vmax.f32 %v9445, -11.512925
        %v9462 = vmax.f32 %v9446, -11.512925
        %v9463 = vmax.f32 %v9447, -11.512925
        %v9464 = vmax.f32 %v9448, -11.512925
        %v9465 = vmax.f32 %v9449, -11.512925
        %v9466 = vmax.f32 %v9450, -11.512925
        %v9467 = vmax.f32 %v9451, -11.512925
        %v9468 = vmax.f32 %v9452, -11.512925
        %v9469 = vmin.f32 %v9453, -1.000005e-05
        %v9470 = vmin.f32 %v9454, -1.000005e-05
        %v9471 = vmin.f32 %v9455, -1.000005e-05
        %v9472 = vmin.f32 %v9456, -1.000005e-05
        %v9473 = vmin.f32 %v9457, -1.000005e-05
        %v9474 = vmin.f32 %v9458, -1.000005e-05
        %v9475 = vmin.f32 %v9459, -1.000005e-05
        %v9476 = vmin.f32 %v9460, -1.000005e-05
        %v9477 = vmin.f32 %v9461, -1.000005e-05
        %v9478 = vmin.f32 %v9462, -1.000005e-05
        %v9479 = vmin.f32 %v9463, -1.000005e-05
        %v9480 = vmin.f32 %v9464, -1.000005e-05
        %v9481 = vmin.f32 %v9465, -1.000005e-05
        %v9482 = vmin.f32 %v9466, -1.000005e-05
        %v9483 = vmin.f32 %v9467, -1.000005e-05
        %v9484 = vmin.f32 %v9468, -1.000005e-05
        %v9485 = vadd.f32 %v8243, %v9469
        %v9486 = vadd.f32 %v8244, %v9470
        %v9487 = vadd.f32 %v8245, %v9471
        %v9488 = vadd.f32 %v8246, %v9472
        %v9489 = vadd.f32 %v8247, %v9473
        %v9490 = vadd.f32 %v8248, %v9474
        %v9491 = vadd.f32 %v8249, %v9475
        %v9492 = vadd.f32 %v8250, %v9476
        %v9493 = vadd.f32 %v8251, %v9477
        %v9494 = vadd.f32 %v8252, %v9478
        %v9495 = vadd.f32 %v8253, %v9479
        %v9496 = vadd.f32 %v8254, %v9480
        %v9497 = vadd.f32 %v8255, %v9481
        %v9498 = vadd.f32 %v8256, %v9482
        %v9499 = vadd.f32 %v8257, %v9483
        %v9500 = vadd.f32 %v8258, %v9484
        %v9501 = vld [vmem:[#allocation2 + $0x70] sm:$0xff]
        %v9502 = vld [vmem:[#allocation2 + $0xf0] sm:$0xff]
        %v9503 = vld [vmem:[#allocation2 + $0x170] sm:$0xff]
        %v9504 = vld [vmem:[#allocation2 + $0x1f0] sm:$0xff]
        %v9505 = vld [vmem:[#allocation2 + $0x270] sm:$0xff]
        %v9506 = vld [vmem:[#allocation2 + $0x2f0] sm:$0xff]
        %v9507 = vld [vmem:[#allocation2 + $0x370] sm:$0xff]
        %v9508 = vld [vmem:[#allocation2 + $0x3f0] sm:$0xff]
        %v9509 = vld [vmem:[#allocation2 + $0x470] sm:$0xff]
        %v9510 = vld [vmem:[#allocation2 + $0x4f0] sm:$0xff]
        %v9511 = vld [vmem:[#allocation2 + $0x570] sm:$0xff]
        %v9512 = vld [vmem:[#allocation2 + $0x5f0] sm:$0xff]
        %v9513 = vld [vmem:[#allocation2 + $0x670] sm:$0xff]
        %v9514 = vld [vmem:[#allocation2 + $0x6f0] sm:$0xff]
        %v9515 = vld [vmem:[#allocation2 + $0x770] sm:$0xff]
        %v9516 = vld [vmem:[#allocation2 + $0x7f0] sm:$0xff]
        %v9517 = vld [vmem:[%s7 + $0x1c] sm:$0x3]
        %v9519 = vlaneseq
        %v9520 = vshrl.u32 %v9519, 7
        %v9521 = vsub.s32 0, %v9520
        %v9522 = vrot.slane %v9517, %v9521
        %v9523 = vlaneseq
        %v9524 = vshrl.u32 %v9523, 7
        %v9525 = vsub.s32 1, %v9524
        %v9526 = vrot.slane %v9517, %v9525
        %v9545 = vunpack.c.l.b16 %v9501
        %v9546 = vunpack.c.h.b16 %v9501
        %v9547 = vunpack.c.l.b16 %v9502
        %v9548 = vunpack.c.h.b16 %v9502
        %v9549 = vunpack.c.l.b16 %v9503
        %v9550 = vunpack.c.h.b16 %v9503
        %v9551 = vunpack.c.l.b16 %v9504
        %v9552 = vunpack.c.h.b16 %v9504
        %v9553 = vunpack.c.l.b16 %v9505
        %v9554 = vunpack.c.h.b16 %v9505
        %v9555 = vunpack.c.l.b16 %v9506
        %v9556 = vunpack.c.h.b16 %v9506
        %v9557 = vunpack.c.l.b16 %v9507
        %v9558 = vunpack.c.h.b16 %v9507
        %v9559 = vunpack.c.l.b16 %v9508
        %v9560 = vunpack.c.h.b16 %v9508
        %v9561 = vunpack.c.l.b16 %v9509
        %v9562 = vunpack.c.h.b16 %v9509
        %v9563 = vunpack.c.l.b16 %v9510
        %v9564 = vunpack.c.h.b16 %v9510
        %v9565 = vunpack.c.l.b16 %v9511
        %v9566 = vunpack.c.h.b16 %v9511
        %v9567 = vunpack.c.l.b16 %v9512
        %v9568 = vunpack.c.h.b16 %v9512
        %v9569 = vunpack.c.l.b16 %v9513
        %v9570 = vunpack.c.h.b16 %v9513
        %v9571 = vunpack.c.l.b16 %v9514
        %v9572 = vunpack.c.h.b16 %v9514
        %v9573 = vunpack.c.l.b16 %v9515
        %v9574 = vunpack.c.h.b16 %v9515
        %v9575 = vunpack.c.l.b16 %v9516
        %v9576 = vunpack.c.h.b16 %v9516
        %v9577 = vpack.c.b16 %v9547, %v9545
        %v9578 = vpack.c.b16 %v9548, %v9546
        %v9579 = vpack.c.b16 %v9551, %v9549
        %v9580 = vpack.c.b16 %v9552, %v9550
        %v9581 = vpack.c.b16 %v9555, %v9553
        %v9582 = vpack.c.b16 %v9556, %v9554
        %v9583 = vpack.c.b16 %v9559, %v9557
        %v9584 = vpack.c.b16 %v9560, %v9558
        %v9585 = vpack.c.b16 %v9563, %v9561
        %v9586 = vpack.c.b16 %v9564, %v9562
        %v9587 = vpack.c.b16 %v9567, %v9565
        %v9588 = vpack.c.b16 %v9568, %v9566
        %v9589 = vpack.c.b16 %v9571, %v9569
        %v9590 = vpack.c.b16 %v9572, %v9570
        %v9591 = vpack.c.b16 %v9575, %v9573
        %v9592 = vpack.c.b16 %v9576, %v9574
        %9609 = vmatprep.subr.bf16.mxu0 %v9592
        %9610 = vmatpush1.bf16.msra.mxu0 %v9591
        %9611 = vmatprep.subr.bf16.mxu0 %v9590
        %9612 = vmatpush1.bf16.msra.mxu0 %v9589
        %9613 = vmatprep.subr.bf16.mxu0 %v9588
        %9614 = vmatpush1.bf16.msra.mxu0 %v9587
        %9615 = vmatprep.subr.bf16.mxu0 %v9586
        %9616 = vmatpush1.bf16.msra.mxu0 %v9585
        %9617 = vmatprep.subr.bf16.mxu0 %v9584
        %9618 = vmatpush1.bf16.msra.mxu0 %v9583
        %9619 = vmatprep.subr.bf16.mxu0 %v9582
        %9620 = vmatpush1.bf16.msra.mxu0 %v9581
        %9621 = vmatprep.subr.bf16.mxu0 %v9580
        %9622 = vmatpush1.bf16.msra.mxu0 %v9579
        %9623 = vmatprep.subr.bf16.mxu0 %v9578
        %9624 = vmatpush1.bf16.msra.mxu0 %v9577
        %9625 = vmatprep.subr.bf16.mxu0 0
        %9626 = vmatpush2.bf16.msra.mxu0 0
        %9627 = vmatprep.subr.bf16.mxu0 0
        %9628 = vmatpush2.bf16.msra.mxu0 0
        %9629 = vmatprep.subr.bf16.mxu0 0
        %9630 = vmatpush2.bf16.msra.mxu0 0
        %9631 = vmatprep.subr.bf16.mxu0 0
        %9632 = vmatpush2.bf16.msra.mxu0 0
        %9633 = vmatprep.subr.bf16.mxu0 0
        %9634 = vmatpush2.bf16.msra.mxu0 0
        %9635 = vmatprep.subr.bf16.mxu0 0
        %9636 = vmatpush2.bf16.msra.mxu0 0
        %9637 = vmatprep.subr.bf16.mxu0 0
        %9638 = vmatpush2.bf16.msra.mxu0 0
        %9639 = vmatprep.subr.bf16.mxu0 0
        %9640 = vmatpush2.bf16.msra.mxu0 0
        %9641 = vmatprep.mubr.bf16.mxu0 0
        %9642 = vmatmul.mubr.bf16.gmra.mxu0 %v780
        %v9643 = vpop.f32.mrf.mxu0
        %v9644 = vadd.f32 %v9522, %v9643
        %v9645 = vpop.f32.mrf.mxu0
        %v9646 = vadd.f32 %v9526, %v9645
        %v9647 = vpop.f32.mrf.mxu0
        %v9648 = vadd.f32 %v9522, %v9647
        %v9649 = vpop.f32.mrf.mxu0
        %v9650 = vadd.f32 %v9526, %v9649
        %9651 = vmatprep.mubr.bf16.mxu0 0
        %9652 = vmatmul.mubr.bf16.gmra.mxu0 %v781
        %v9653 = vpop.f32.mrf.mxu0
        %v9654 = vadd.f32 %v9522, %v9653
        %v9655 = vpop.f32.mrf.mxu0
        %v9656 = vadd.f32 %v9526, %v9655
        %v9657 = vpop.f32.mrf.mxu0
        %v9658 = vadd.f32 %v9522, %v9657
        %v9659 = vpop.f32.mrf.mxu0
        %v9660 = vadd.f32 %v9526, %v9659
        %9661 = vmatprep.mubr.bf16.mxu0 0
        %9662 = vmatmul.mubr.bf16.gmra.mxu0 %v782
        %v9663 = vpop.f32.mrf.mxu0
        %v9664 = vadd.f32 %v9522, %v9663
        %v9665 = vpop.f32.mrf.mxu0
        %v9666 = vadd.f32 %v9526, %v9665
        %v9667 = vpop.f32.mrf.mxu0
        %v9668 = vadd.f32 %v9522, %v9667
        %v9669 = vpop.f32.mrf.mxu0
        %v9670 = vadd.f32 %v9526, %v9669
        %9671 = vmatprep.mubr.bf16.mxu0 0
        %9672 = vmatmul.mubr.bf16.gmra.mxu0 %v783
        %v9673 = vpop.f32.mrf.mxu0
        %v9674 = vadd.f32 %v9522, %v9673
        %v9675 = vpop.f32.mrf.mxu0
        %v9676 = vadd.f32 %v9526, %v9675
        %v9677 = vpop.f32.mrf.mxu0
        %v9678 = vadd.f32 %v9522, %v9677
        %v9679 = vpop.f32.mrf.mxu0
        %v9680 = vadd.f32 %v9526, %v9679
        %9681 = vmatprep.mubr.bf16.mxu0 0
        %9682 = vmatmul.mubr.bf16.gmra.mxu0 %v784
        %v9683 = vpop.f32.mrf.mxu0
        %v9684 = vadd.f32 %v9522, %v9683
        %v9685 = vpop.f32.mrf.mxu0
        %v9686 = vadd.f32 %v9526, %v9685
        %v9687 = vpop.f32.mrf.mxu0
        %v9688 = vadd.f32 %v9522, %v9687
        %v9689 = vpop.f32.mrf.mxu0
        %v9690 = vadd.f32 %v9526, %v9689
        %9691 = vmatprep.mubr.bf16.mxu0 0
        %9692 = vmatmul.mubr.bf16.gmra.mxu0 %v785
        %v9693 = vpop.f32.mrf.mxu0
        %v9694 = vadd.f32 %v9522, %v9693
        %v9695 = vpop.f32.mrf.mxu0
        %v9696 = vadd.f32 %v9526, %v9695
        %v9697 = vpop.f32.mrf.mxu0
        %v9698 = vadd.f32 %v9522, %v9697
        %v9699 = vpop.f32.mrf.mxu0
        %v9700 = vadd.f32 %v9526, %v9699
        %9701 = vmatprep.mubr.bf16.mxu0 0
        %9702 = vmatmul.mubr.bf16.gmra.mxu0 %v786
        %v9703 = vpop.f32.mrf.mxu0
        %v9704 = vadd.f32 %v9522, %v9703
        %v9705 = vpop.f32.mrf.mxu0
        %v9706 = vadd.f32 %v9526, %v9705
        %v9707 = vpop.f32.mrf.mxu0
        %v9708 = vadd.f32 %v9522, %v9707
        %v9709 = vpop.f32.mrf.mxu0
        %v9710 = vadd.f32 %v9526, %v9709
        %9711 = vmatprep.mubr.bf16.mxu0 0
        %9712 = vmatmul.mubr.bf16.gmra.mxu0 %v787
        %v9713 = vpop.f32.mrf.mxu0
        %v9714 = vadd.f32 %v9522, %v9713
        %v9715 = vpop.f32.mrf.mxu0
        %v9716 = vadd.f32 %v9526, %v9715
        %v9717 = vpop.f32.mrf.mxu0
        %v9718 = vadd.f32 %v9522, %v9717
        %v9719 = vpop.f32.mrf.mxu0
        %v9720 = vadd.f32 %v9526, %v9719
        %9721 = vdwg.mxu0
        %9722 = vset.pattern.permute.xlu0 14
        %9723 = vperm.xlu0 %9722, %v788
        %v9724 = vpop.permute.xlu0 %9723
        %9725 = vset.pattern.permute.xlu0 14
        %9726 = vperm.xlu0 %9725, %v789
        %v9727 = vpop.permute.xlu0 %9726
        %9728 = vset.pattern.permute.xlu0 14
        %9729 = vperm.xlu0 %9728, %v790
        %v9730 = vpop.permute.xlu0 %9729
        %9731 = vset.pattern.permute.xlu0 14
        %9732 = vperm.xlu0 %9731, %v791
        %v9733 = vpop.permute.xlu0 %9732
        %9734 = vset.pattern.permute.xlu0 14
        %9735 = vperm.xlu0 %9734, %v792
        %v9736 = vpop.permute.xlu0 %9735
        %9737 = vset.pattern.permute.xlu0 14
        %9738 = vperm.xlu0 %9737, %v793
        %v9739 = vpop.permute.xlu0 %9738
        %9740 = vset.pattern.permute.xlu0 14
        %9741 = vperm.xlu0 %9740, %v794
        %v9742 = vpop.permute.xlu0 %9741
        %9743 = vset.pattern.permute.xlu0 14
        %9744 = vperm.xlu0 %9743, %v795
        %v9745 = vpop.permute.xlu0 %9744
        %9746 = vset.pattern.permute.xlu0 14
        %9747 = vperm.xlu0 %9746, %v796
        %v9748 = vpop.permute.xlu0 %9747
        %9749 = vset.pattern.permute.xlu0 14
        %9750 = vperm.xlu0 %9749, %v797
        %v9751 = vpop.permute.xlu0 %9750
        %9752 = vset.pattern.permute.xlu0 14
        %9753 = vperm.xlu0 %9752, %v798
        %v9754 = vpop.permute.xlu0 %9753
        %9755 = vset.pattern.permute.xlu0 14
        %9756 = vperm.xlu0 %9755, %v799
        %v9757 = vpop.permute.xlu0 %9756
        %9758 = vset.pattern.permute.xlu0 14
        %9759 = vperm.xlu0 %9758, %v800
        %v9760 = vpop.permute.xlu0 %9759
        %9761 = vset.pattern.permute.xlu0 14
        %9762 = vperm.xlu0 %9761, %v801
        %v9763 = vpop.permute.xlu0 %9762
        %9764 = vset.pattern.permute.xlu0 14
        %9765 = vperm.xlu0 %9764, %v802
        %v9766 = vpop.permute.xlu0 %9765
        %9767 = vset.pattern.permute.xlu0 14
        %9768 = vperm.xlu0 %9767, %v803
        %v9769 = vpop.permute.xlu0 %9768
        %vm9770 = vcmp.eq.s32.totalorder %v805, %v9724
        %vm9771 = vcmp.eq.s32.totalorder %v806, %v9724
        %vm9772 = vcmp.eq.s32.totalorder %v805, %v9727
        %vm9773 = vcmp.eq.s32.totalorder %v806, %v9727
        %vm9774 = vcmp.eq.s32.totalorder %v805, %v9730
        %vm9775 = vcmp.eq.s32.totalorder %v806, %v9730
        %vm9776 = vcmp.eq.s32.totalorder %v805, %v9733
        %vm9777 = vcmp.eq.s32.totalorder %v806, %v9733
        %vm9778 = vcmp.eq.s32.totalorder %v805, %v9736
        %vm9779 = vcmp.eq.s32.totalorder %v806, %v9736
        %vm9780 = vcmp.eq.s32.totalorder %v805, %v9739
        %vm9781 = vcmp.eq.s32.totalorder %v806, %v9739
        %vm9782 = vcmp.eq.s32.totalorder %v805, %v9742
        %vm9783 = vcmp.eq.s32.totalorder %v806, %v9742
        %vm9784 = vcmp.eq.s32.totalorder %v805, %v9745
        %vm9785 = vcmp.eq.s32.totalorder %v806, %v9745
        %vm9786 = vcmp.eq.s32.totalorder %v805, %v9748
        %vm9787 = vcmp.eq.s32.totalorder %v806, %v9748
        %vm9788 = vcmp.eq.s32.totalorder %v805, %v9751
        %vm9789 = vcmp.eq.s32.totalorder %v806, %v9751
        %vm9790 = vcmp.eq.s32.totalorder %v805, %v9754
        %vm9791 = vcmp.eq.s32.totalorder %v806, %v9754
        %vm9792 = vcmp.eq.s32.totalorder %v805, %v9757
        %vm9793 = vcmp.eq.s32.totalorder %v806, %v9757
        %vm9794 = vcmp.eq.s32.totalorder %v805, %v9760
        %vm9795 = vcmp.eq.s32.totalorder %v806, %v9760
        %vm9796 = vcmp.eq.s32.totalorder %v805, %v9763
        %vm9797 = vcmp.eq.s32.totalorder %v806, %v9763
        %vm9798 = vcmp.eq.s32.totalorder %v805, %v9766
        %vm9799 = vcmp.eq.s32.totalorder %v806, %v9766
        %vm9800 = vcmp.eq.s32.totalorder %v805, %v9769
        %vm9801 = vcmp.eq.s32.totalorder %v806, %v9769
        %v9802 = vsel %vm9770, %v9644, 0.0
        %v9803 = vsel %vm9771, %v9646, 0.0
        %v9804 = vsel %vm9772, %v9648, 0.0
        %v9805 = vsel %vm9773, %v9650, 0.0
        %v9806 = vsel %vm9774, %v9654, 0.0
        %v9807 = vsel %vm9775, %v9656, 0.0
        %v9808 = vsel %vm9776, %v9658, 0.0
        %v9809 = vsel %vm9777, %v9660, 0.0
        %v9810 = vsel %vm9778, %v9664, 0.0
        %v9811 = vsel %vm9779, %v9666, 0.0
        %v9812 = vsel %vm9780, %v9668, 0.0
        %v9813 = vsel %vm9781, %v9670, 0.0
        %v9814 = vsel %vm9782, %v9674, 0.0
        %v9815 = vsel %vm9783, %v9676, 0.0
        %v9816 = vsel %vm9784, %v9678, 0.0
        %v9817 = vsel %vm9785, %v9680, 0.0
        %v9818 = vsel %vm9786, %v9684, 0.0
        %v9819 = vsel %vm9787, %v9686, 0.0
        %v9820 = vsel %vm9788, %v9688, 0.0
        %v9821 = vsel %vm9789, %v9690, 0.0
        %v9822 = vsel %vm9790, %v9694, 0.0
        %v9823 = vsel %vm9791, %v9696, 0.0
        %v9824 = vsel %vm9792, %v9698, 0.0
        %v9825 = vsel %vm9793, %v9700, 0.0
        %v9826 = vsel %vm9794, %v9704, 0.0
        %v9827 = vsel %vm9795, %v9706, 0.0
        %v9828 = vsel %vm9796, %v9708, 0.0
        %v9829 = vsel %vm9797, %v9710, 0.0
        %v9830 = vsel %vm9798, %v9714, 0.0
        %v9831 = vsel %vm9799, %v9716, 0.0
        %v9832 = vsel %vm9800, %v9718, 0.0
        %v9833 = vsel %vm9801, %v9720, 0.0
        %v9834 = vadd.f32 %v9802, %v9803
        %9835 = vadd.xlane.f32.xlu0 %v9834
        %v9836 = vpop.xlane.xlu0 %9835
        %v9837 = vadd.f32 %v9804, %v9805
        %9838 = vadd.xlane.f32.xlu0 %v9837
        %v9839 = vpop.xlane.xlu0 %9838
        %v9840 = vadd.f32 %v9806, %v9807
        %9841 = vadd.xlane.f32.xlu0 %v9840
        %v9842 = vpop.xlane.xlu0 %9841
        %v9843 = vadd.f32 %v9808, %v9809
        %9844 = vadd.xlane.f32.xlu0 %v9843
        %v9845 = vpop.xlane.xlu0 %9844
        %v9846 = vadd.f32 %v9810, %v9811
        %9847 = vadd.xlane.f32.xlu0 %v9846
        %v9848 = vpop.xlane.xlu0 %9847
        %v9849 = vadd.f32 %v9812, %v9813
        %9850 = vadd.xlane.f32.xlu0 %v9849
        %v9851 = vpop.xlane.xlu0 %9850
        %v9852 = vadd.f32 %v9814, %v9815
        %9853 = vadd.xlane.f32.xlu0 %v9852
        %v9854 = vpop.xlane.xlu0 %9853
        %v9855 = vadd.f32 %v9816, %v9817
        %9856 = vadd.xlane.f32.xlu0 %v9855
        %v9857 = vpop.xlane.xlu0 %9856
        %v9858 = vadd.f32 %v9818, %v9819
        %9859 = vadd.xlane.f32.xlu0 %v9858
        %v9860 = vpop.xlane.xlu0 %9859
        %v9861 = vadd.f32 %v9820, %v9821
        %9862 = vadd.xlane.f32.xlu0 %v9861
        %v9863 = vpop.xlane.xlu0 %9862
        %v9864 = vadd.f32 %v9822, %v9823
        %9865 = vadd.xlane.f32.xlu0 %v9864
        %v9866 = vpop.xlane.xlu0 %9865
        %v9867 = vadd.f32 %v9824, %v9825
        %9868 = vadd.xlane.f32.xlu0 %v9867
        %v9869 = vpop.xlane.xlu0 %9868
        %v9870 = vadd.f32 %v9826, %v9827
        %9871 = vadd.xlane.f32.xlu0 %v9870
        %v9872 = vpop.xlane.xlu0 %9871
        %v9873 = vadd.f32 %v9828, %v9829
        %9874 = vadd.xlane.f32.xlu0 %v9873
        %v9875 = vpop.xlane.xlu0 %9874
        %v9876 = vadd.f32 %v9830, %v9831
        %9877 = vadd.xlane.f32.xlu0 %v9876
        %v9878 = vpop.xlane.xlu0 %9877
        %v9879 = vadd.f32 %v9832, %v9833
        %9880 = vadd.xlane.f32.xlu0 %v9879
        %v9881 = vpop.xlane.xlu0 %9880
        %v9882 = vsub.f32 %v9644, %v9836
        %v9883 = vsub.f32 %v9646, %v9836
        %v9884 = vsub.f32 %v9648, %v9839
        %v9885 = vsub.f32 %v9650, %v9839
        %v9886 = vsub.f32 %v9654, %v9842
        %v9887 = vsub.f32 %v9656, %v9842
        %v9888 = vsub.f32 %v9658, %v9845
        %v9889 = vsub.f32 %v9660, %v9845
        %v9890 = vsub.f32 %v9664, %v9848
        %v9891 = vsub.f32 %v9666, %v9848
        %v9892 = vsub.f32 %v9668, %v9851
        %v9893 = vsub.f32 %v9670, %v9851
        %v9894 = vsub.f32 %v9674, %v9854
        %v9895 = vsub.f32 %v9676, %v9854
        %v9896 = vsub.f32 %v9678, %v9857
        %v9897 = vsub.f32 %v9680, %v9857
        %v9898 = vsub.f32 %v9684, %v9860
        %v9899 = vsub.f32 %v9686, %v9860
        %v9900 = vsub.f32 %v9688, %v9863
        %v9901 = vsub.f32 %v9690, %v9863
        %v9902 = vsub.f32 %v9694, %v9866
        %v9903 = vsub.f32 %v9696, %v9866
        %v9904 = vsub.f32 %v9698, %v9869
        %v9905 = vsub.f32 %v9700, %v9869
        %v9906 = vsub.f32 %v9704, %v9872
        %v9907 = vsub.f32 %v9706, %v9872
        %v9908 = vsub.f32 %v9708, %v9875
        %v9909 = vsub.f32 %v9710, %v9875
        %v9910 = vsub.f32 %v9714, %v9878
        %v9911 = vsub.f32 %v9716, %v9878
        %v9912 = vsub.f32 %v9718, %v9881
        %v9913 = vsub.f32 %v9720, %v9881
        %v9914 = vmul.f32 %v9882, 1.442695
        %v9915 = vpow.pop %v9914
        %v9916 = vmul.f32 %v9883, 1.442695
        %v9917 = vpow.pop %v9916
        %v9918 = vmul.f32 %v9884, 1.442695
        %v9919 = vpow.pop %v9918
        %v9920 = vmul.f32 %v9885, 1.442695
        %v9921 = vpow.pop %v9920
        %v9922 = vmul.f32 %v9886, 1.442695
        %v9923 = vpow.pop %v9922
        %v9924 = vmul.f32 %v9887, 1.442695
        %v9925 = vpow.pop %v9924
        %v9926 = vmul.f32 %v9888, 1.442695
        %v9927 = vpow.pop %v9926
        %v9928 = vmul.f32 %v9889, 1.442695
        %v9929 = vpow.pop %v9928
        %v9930 = vmul.f32 %v9890, 1.442695
        %v9931 = vpow.pop %v9930
        %v9932 = vmul.f32 %v9891, 1.442695
        %v9933 = vpow.pop %v9932
        %v9934 = vmul.f32 %v9892, 1.442695
        %v9935 = vpow.pop %v9934
        %v9936 = vmul.f32 %v9893, 1.442695
        %v9937 = vpow.pop %v9936
        %v9938 = vmul.f32 %v9894, 1.442695
        %v9939 = vpow.pop %v9938
        %v9940 = vmul.f32 %v9895, 1.442695
        %v9941 = vpow.pop %v9940
        %v9942 = vmul.f32 %v9896, 1.442695
        %v9943 = vpow.pop %v9942
        %v9944 = vmul.f32 %v9897, 1.442695
        %v9945 = vpow.pop %v9944
        %v9946 = vmul.f32 %v9898, 1.442695
        %v9947 = vpow.pop %v9946
        %v9948 = vmul.f32 %v9899, 1.442695
        %v9949 = vpow.pop %v9948
        %v9950 = vmul.f32 %v9900, 1.442695
        %v9951 = vpow.pop %v9950
        %v9952 = vmul.f32 %v9901, 1.442695
        %v9953 = vpow.pop %v9952
        %v9954 = vmul.f32 %v9902, 1.442695
        %v9955 = vpow.pop %v9954
        %v9956 = vmul.f32 %v9903, 1.442695
        %v9957 = vpow.pop %v9956
        %v9958 = vmul.f32 %v9904, 1.442695
        %v9959 = vpow.pop %v9958
        %v9960 = vmul.f32 %v9905, 1.442695
        %v9961 = vpow.pop %v9960
        %v9962 = vmul.f32 %v9906, 1.442695
        %v9963 = vpow.pop %v9962
        %v9964 = vmul.f32 %v9907, 1.442695
        %v9965 = vpow.pop %v9964
        %v9966 = vmul.f32 %v9908, 1.442695
        %v9967 = vpow.pop %v9966
        %v9968 = vmul.f32 %v9909, 1.442695
        %v9969 = vpow.pop %v9968
        %v9970 = vmul.f32 %v9910, 1.442695
        %v9971 = vpow.pop %v9970
        %v9972 = vmul.f32 %v9911, 1.442695
        %v9973 = vpow.pop %v9972
        %v9974 = vmul.f32 %v9912, 1.442695
        %v9975 = vpow.pop %v9974
        %v9976 = vmul.f32 %v9913, 1.442695
        %v9977 = vpow.pop %v9976
        %v9978 = vadd.f32 %v9915, %v9917
        %9979 = vadd.xlane.f32.xlu0 %v9978
        %v9980 = vpop.xlane.xlu0 %9979
        %v9981 = vadd.f32 %v9919, %v9921
        %9982 = vadd.xlane.f32.xlu0 %v9981
        %v9983 = vpop.xlane.xlu0 %9982
        %v9984 = vadd.f32 %v9923, %v9925
        %9985 = vadd.xlane.f32.xlu0 %v9984
        %v9986 = vpop.xlane.xlu0 %9985
        %v9987 = vadd.f32 %v9927, %v9929
        %9988 = vadd.xlane.f32.xlu0 %v9987
        %v9989 = vpop.xlane.xlu0 %9988
        %v9990 = vadd.f32 %v9931, %v9933
        %9991 = vadd.xlane.f32.xlu0 %v9990
        %v9992 = vpop.xlane.xlu0 %9991
        %v9993 = vadd.f32 %v9935, %v9937
        %9994 = vadd.xlane.f32.xlu0 %v9993
        %v9995 = vpop.xlane.xlu0 %9994
        %v9996 = vadd.f32 %v9939, %v9941
        %9997 = vadd.xlane.f32.xlu0 %v9996
        %v9998 = vpop.xlane.xlu0 %9997
        %v9999 = vadd.f32 %v9943, %v9945
        %10000 = vadd.xlane.f32.xlu0 %v9999
        %v10001 = vpop.xlane.xlu0 %10000
        %v10002 = vadd.f32 %v9947, %v9949
        %10003 = vadd.xlane.f32.xlu0 %v10002
        %v10004 = vpop.xlane.xlu0 %10003
        %v10005 = vadd.f32 %v9951, %v9953
        %10006 = vadd.xlane.f32.xlu0 %v10005
        %v10007 = vpop.xlane.xlu0 %10006
        %v10008 = vadd.f32 %v9955, %v9957
        %10009 = vadd.xlane.f32.xlu0 %v10008
        %v10010 = vpop.xlane.xlu0 %10009
        %v10011 = vadd.f32 %v9959, %v9961
        %10012 = vadd.xlane.f32.xlu0 %v10011
        %v10013 = vpop.xlane.xlu0 %10012
        %v10014 = vadd.f32 %v9963, %v9965
        %10015 = vadd.xlane.f32.xlu0 %v10014
        %v10016 = vpop.xlane.xlu0 %10015
        %v10017 = vadd.f32 %v9967, %v9969
        %10018 = vadd.xlane.f32.xlu0 %v10017
        %v10019 = vpop.xlane.xlu0 %10018
        %v10020 = vadd.f32 %v9971, %v9973
        %10021 = vadd.xlane.f32.xlu0 %v10020
        %v10022 = vpop.xlane.xlu0 %10021
        %v10023 = vadd.f32 %v9975, %v9977
        %10024 = vadd.xlane.f32.xlu0 %v10023
        %v10025 = vpop.xlane.xlu0 %10024
        %v10026 = vlog2.pop %v9980
        %v10027 = vmul.f32 %v10026, 0.6931472
        %v10028 = vlog2.pop %v9983
        %v10029 = vmul.f32 %v10028, 0.6931472
        %v10030 = vlog2.pop %v9986
        %v10031 = vmul.f32 %v10030, 0.6931472
        %v10032 = vlog2.pop %v9989
        %v10033 = vmul.f32 %v10032, 0.6931472
        %v10034 = vlog2.pop %v9992
        %v10035 = vmul.f32 %v10034, 0.6931472
        %v10036 = vlog2.pop %v9995
        %v10037 = vmul.f32 %v10036, 0.6931472
        %v10038 = vlog2.pop %v9998
        %v10039 = vmul.f32 %v10038, 0.6931472
        %v10040 = vlog2.pop %v10001
        %v10041 = vmul.f32 %v10040, 0.6931472
        %v10042 = vlog2.pop %v10004
        %v10043 = vmul.f32 %v10042, 0.6931472
        %v10044 = vlog2.pop %v10007
        %v10045 = vmul.f32 %v10044, 0.6931472
        %v10046 = vlog2.pop %v10010
        %v10047 = vmul.f32 %v10046, 0.6931472
        %v10048 = vlog2.pop %v10013
        %v10049 = vmul.f32 %v10048, 0.6931472
        %v10050 = vlog2.pop %v10016
        %v10051 = vmul.f32 %v10050, 0.6931472
        %v10052 = vlog2.pop %v10019
        %v10053 = vmul.f32 %v10052, 0.6931472
        %v10054 = vlog2.pop %v10022
        %v10055 = vmul.f32 %v10054, 0.6931472
        %v10056 = vlog2.pop %v10025
        %v10057 = vmul.f32 %v10056, 0.6931472
        %v10058 = vsub.f32 0.0, %v10027
        %v10059 = vsub.f32 0.0, %v10029
        %v10060 = vsub.f32 0.0, %v10031
        %v10061 = vsub.f32 0.0, %v10033
        %v10062 = vsub.f32 0.0, %v10035
        %v10063 = vsub.f32 0.0, %v10037
        %v10064 = vsub.f32 0.0, %v10039
        %v10065 = vsub.f32 0.0, %v10041
        %v10066 = vsub.f32 0.0, %v10043
        %v10067 = vsub.f32 0.0, %v10045
        %v10068 = vsub.f32 0.0, %v10047
        %v10069 = vsub.f32 0.0, %v10049
        %v10070 = vsub.f32 0.0, %v10051
        %v10071 = vsub.f32 0.0, %v10053
        %v10072 = vsub.f32 0.0, %v10055
        %v10073 = vsub.f32 0.0, %v10057
        %v10074 = vmax.f32 %v10058, -11.512925
        %v10075 = vmax.f32 %v10059, -11.512925
        %v10076 = vmax.f32 %v10060, -11.512925
        %v10077 = vmax.f32 %v10061, -11.512925
        %v10078 = vmax.f32 %v10062, -11.512925
        %v10079 = vmax.f32 %v10063, -11.512925
        %v10080 = vmax.f32 %v10064, -11.512925
        %v10081 = vmax.f32 %v10065, -11.512925
        %v10082 = vmax.f32 %v10066, -11.512925
        %v10083 = vmax.f32 %v10067, -11.512925
        %v10084 = vmax.f32 %v10068, -11.512925
        %v10085 = vmax.f32 %v10069, -11.512925
        %v10086 = vmax.f32 %v10070, -11.512925
        %v10087 = vmax.f32 %v10071, -11.512925
        %v10088 = vmax.f32 %v10072, -11.512925
        %v10089 = vmax.f32 %v10073, -11.512925
        %v10090 = vmin.f32 %v10074, -1.000005e-05
        %v10091 = vmin.f32 %v10075, -1.000005e-05
        %v10092 = vmin.f32 %v10076, -1.000005e-05
        %v10093 = vmin.f32 %v10077, -1.000005e-05
        %v10094 = vmin.f32 %v10078, -1.000005e-05
        %v10095 = vmin.f32 %v10079, -1.000005e-05
        %v10096 = vmin.f32 %v10080, -1.000005e-05
        %v10097 = vmin.f32 %v10081, -1.000005e-05
        %v10098 = vmin.f32 %v10082, -1.000005e-05
        %v10099 = vmin.f32 %v10083, -1.000005e-05
        %v10100 = vmin.f32 %v10084, -1.000005e-05
        %v10101 = vmin.f32 %v10085, -1.000005e-05
        %v10102 = vmin.f32 %v10086, -1.000005e-05
        %v10103 = vmin.f32 %v10087, -1.000005e-05
        %v10104 = vmin.f32 %v10088, -1.000005e-05
        %v10105 = vmin.f32 %v10089, -1.000005e-05
        %v10106 = vadd.f32 %v8864, %v10090
        %v10107 = vadd.f32 %v8865, %v10091
        %v10108 = vadd.f32 %v8866, %v10092
        %v10109 = vadd.f32 %v8867, %v10093
        %v10110 = vadd.f32 %v8868, %v10094
        %v10111 = vadd.f32 %v8869, %v10095
        %v10112 = vadd.f32 %v8870, %v10096
        %v10113 = vadd.f32 %v8871, %v10097
        %v10114 = vadd.f32 %v8872, %v10098
        %v10115 = vadd.f32 %v8873, %v10099
        %v10116 = vadd.f32 %v8874, %v10100
        %v10117 = vadd.f32 %v8875, %v10101
        %v10118 = vadd.f32 %v8876, %v10102
        %v10119 = vadd.f32 %v8877, %v10103
        %v10120 = vadd.f32 %v8878, %v10104
        %v10121 = vadd.f32 %v8879, %v10105
        %v10122 = vld [vmem:[#allocation2 + $0x78] sm:$0xff]
        %v10123 = vld [vmem:[#allocation2 + $0xf8] sm:$0xff]
        %v10124 = vld [vmem:[#allocation2 + $0x178] sm:$0xff]
        %v10125 = vld [vmem:[#allocation2 + $0x1f8] sm:$0xff]
        %v10126 = vld [vmem:[#allocation2 + $0x278] sm:$0xff]
        %v10127 = vld [vmem:[#allocation2 + $0x2f8] sm:$0xff]
        %v10128 = vld [vmem:[#allocation2 + $0x378] sm:$0xff]
        %v10129 = vld [vmem:[#allocation2 + $0x3f8] sm:$0xff]
        %v10130 = vld [vmem:[#allocation2 + $0x478] sm:$0xff]
        %v10131 = vld [vmem:[#allocation2 + $0x4f8] sm:$0xff]
        %v10132 = vld [vmem:[#allocation2 + $0x578] sm:$0xff]
        %v10133 = vld [vmem:[#allocation2 + $0x5f8] sm:$0xff]
        %v10134 = vld [vmem:[#allocation2 + $0x678] sm:$0xff]
        %v10135 = vld [vmem:[#allocation2 + $0x6f8] sm:$0xff]
        %v10136 = vld [vmem:[#allocation2 + $0x778] sm:$0xff]
        %v10137 = vld [vmem:[#allocation2 + $0x7f8] sm:$0xff]
        %v10138 = vld [vmem:[%s7 + $0x1e] sm:$0x3]
        %v10140 = vlaneseq
        %v10141 = vshrl.u32 %v10140, 7
        %v10142 = vsub.s32 0, %v10141
        %v10143 = vrot.slane %v10138, %v10142
        %v10144 = vlaneseq
        %v10145 = vshrl.u32 %v10144, 7
        %v10146 = vsub.s32 1, %v10145
        %v10147 = vrot.slane %v10138, %v10146
        %v10166 = vunpack.c.l.b16 %v10122
        %v10167 = vunpack.c.h.b16 %v10122
        %v10168 = vunpack.c.l.b16 %v10123
        %v10169 = vunpack.c.h.b16 %v10123
        %v10170 = vunpack.c.l.b16 %v10124
        %v10171 = vunpack.c.h.b16 %v10124
        %v10172 = vunpack.c.l.b16 %v10125
        %v10173 = vunpack.c.h.b16 %v10125
        %v10174 = vunpack.c.l.b16 %v10126
        %v10175 = vunpack.c.h.b16 %v10126
        %v10176 = vunpack.c.l.b16 %v10127
        %v10177 = vunpack.c.h.b16 %v10127
        %v10178 = vunpack.c.l.b16 %v10128
        %v10179 = vunpack.c.h.b16 %v10128
        %v10180 = vunpack.c.l.b16 %v10129
        %v10181 = vunpack.c.h.b16 %v10129
        %v10182 = vunpack.c.l.b16 %v10130
        %v10183 = vunpack.c.h.b16 %v10130
        %v10184 = vunpack.c.l.b16 %v10131
        %v10185 = vunpack.c.h.b16 %v10131
        %v10186 = vunpack.c.l.b16 %v10132
        %v10187 = vunpack.c.h.b16 %v10132
        %v10188 = vunpack.c.l.b16 %v10133
        %v10189 = vunpack.c.h.b16 %v10133
        %v10190 = vunpack.c.l.b16 %v10134
        %v10191 = vunpack.c.h.b16 %v10134
        %v10192 = vunpack.c.l.b16 %v10135
        %v10193 = vunpack.c.h.b16 %v10135
        %v10194 = vunpack.c.l.b16 %v10136
        %v10195 = vunpack.c.h.b16 %v10136
        %v10196 = vunpack.c.l.b16 %v10137
        %v10197 = vunpack.c.h.b16 %v10137
        %v10198 = vpack.c.b16 %v10168, %v10166
        %v10199 = vpack.c.b16 %v10169, %v10167
        %v10200 = vpack.c.b16 %v10172, %v10170
        %v10201 = vpack.c.b16 %v10173, %v10171
        %v10202 = vpack.c.b16 %v10176, %v10174
        %v10203 = vpack.c.b16 %v10177, %v10175
        %v10204 = vpack.c.b16 %v10180, %v10178
        %v10205 = vpack.c.b16 %v10181, %v10179
        %v10206 = vpack.c.b16 %v10184, %v10182
        %v10207 = vpack.c.b16 %v10185, %v10183
        %v10208 = vpack.c.b16 %v10188, %v10186
        %v10209 = vpack.c.b16 %v10189, %v10187
        %v10210 = vpack.c.b16 %v10192, %v10190
        %v10211 = vpack.c.b16 %v10193, %v10191
        %v10212 = vpack.c.b16 %v10196, %v10194
        %v10213 = vpack.c.b16 %v10197, %v10195
        %10230 = vmatprep.subr.bf16.mxu0 %v10213
        %10231 = vmatpush1.bf16.msra.mxu0 %v10212
        %10232 = vmatprep.subr.bf16.mxu0 %v10211
        %10233 = vmatpush1.bf16.msra.mxu0 %v10210
        %10234 = vmatprep.subr.bf16.mxu0 %v10209
        %10235 = vmatpush1.bf16.msra.mxu0 %v10208
        %10236 = vmatprep.subr.bf16.mxu0 %v10207
        %10237 = vmatpush1.bf16.msra.mxu0 %v10206
        %10238 = vmatprep.subr.bf16.mxu0 %v10205
        %10239 = vmatpush1.bf16.msra.mxu0 %v10204
        %10240 = vmatprep.subr.bf16.mxu0 %v10203
        %10241 = vmatpush1.bf16.msra.mxu0 %v10202
        %10242 = vmatprep.subr.bf16.mxu0 %v10201
        %10243 = vmatpush1.bf16.msra.mxu0 %v10200
        %10244 = vmatprep.subr.bf16.mxu0 %v10199
        %10245 = vmatpush1.bf16.msra.mxu0 %v10198
        %10246 = vmatprep.subr.bf16.mxu0 0
        %10247 = vmatpush2.bf16.msra.mxu0 0
        %10248 = vmatprep.subr.bf16.mxu0 0
        %10249 = vmatpush2.bf16.msra.mxu0 0
        %10250 = vmatprep.subr.bf16.mxu0 0
        %10251 = vmatpush2.bf16.msra.mxu0 0
        %10252 = vmatprep.subr.bf16.mxu0 0
        %10253 = vmatpush2.bf16.msra.mxu0 0
        %10254 = vmatprep.subr.bf16.mxu0 0
        %10255 = vmatpush2.bf16.msra.mxu0 0
        %10256 = vmatprep.subr.bf16.mxu0 0
        %10257 = vmatpush2.bf16.msra.mxu0 0
        %10258 = vmatprep.subr.bf16.mxu0 0
        %10259 = vmatpush2.bf16.msra.mxu0 0
        %10260 = vmatprep.subr.bf16.mxu0 0
        %10261 = vmatpush2.bf16.msra.mxu0 0
        %10262 = vmatprep.mubr.bf16.mxu0 0
        %10263 = vmatmul.mubr.bf16.gmra.mxu0 %v780
        %v10264 = vpop.f32.mrf.mxu0
        %v10265 = vadd.f32 %v10143, %v10264
        %v10266 = vpop.f32.mrf.mxu0
        %v10267 = vadd.f32 %v10147, %v10266
        %v10268 = vpop.f32.mrf.mxu0
        %v10269 = vadd.f32 %v10143, %v10268
        %v10270 = vpop.f32.mrf.mxu0
        %v10271 = vadd.f32 %v10147, %v10270
        %10272 = vmatprep.mubr.bf16.mxu0 0
        %10273 = vmatmul.mubr.bf16.gmra.mxu0 %v781
        %v10274 = vpop.f32.mrf.mxu0
        %v10275 = vadd.f32 %v10143, %v10274
        %v10276 = vpop.f32.mrf.mxu0
        %v10277 = vadd.f32 %v10147, %v10276
        %v10278 = vpop.f32.mrf.mxu0
        %v10279 = vadd.f32 %v10143, %v10278
        %v10280 = vpop.f32.mrf.mxu0
        %v10281 = vadd.f32 %v10147, %v10280
        %10282 = vmatprep.mubr.bf16.mxu0 0
        %10283 = vmatmul.mubr.bf16.gmra.mxu0 %v782
        %v10284 = vpop.f32.mrf.mxu0
        %v10285 = vadd.f32 %v10143, %v10284
        %v10286 = vpop.f32.mrf.mxu0
        %v10287 = vadd.f32 %v10147, %v10286
        %v10288 = vpop.f32.mrf.mxu0
        %v10289 = vadd.f32 %v10143, %v10288
        %v10290 = vpop.f32.mrf.mxu0
        %v10291 = vadd.f32 %v10147, %v10290
        %10292 = vmatprep.mubr.bf16.mxu0 0
        %10293 = vmatmul.mubr.bf16.gmra.mxu0 %v783
        %v10294 = vpop.f32.mrf.mxu0
        %v10295 = vadd.f32 %v10143, %v10294
        %v10296 = vpop.f32.mrf.mxu0
        %v10297 = vadd.f32 %v10147, %v10296
        %v10298 = vpop.f32.mrf.mxu0
        %v10299 = vadd.f32 %v10143, %v10298
        %v10300 = vpop.f32.mrf.mxu0
        %v10301 = vadd.f32 %v10147, %v10300
        %10302 = vmatprep.mubr.bf16.mxu0 0
        %10303 = vmatmul.mubr.bf16.gmra.mxu0 %v784
        %v10304 = vpop.f32.mrf.mxu0
        %v10305 = vadd.f32 %v10143, %v10304
        %v10306 = vpop.f32.mrf.mxu0
        %v10307 = vadd.f32 %v10147, %v10306
        %v10308 = vpop.f32.mrf.mxu0
        %v10309 = vadd.f32 %v10143, %v10308
        %v10310 = vpop.f32.mrf.mxu0
        %v10311 = vadd.f32 %v10147, %v10310
        %10312 = vmatprep.mubr.bf16.mxu0 0
        %10313 = vmatmul.mubr.bf16.gmra.mxu0 %v785
        %v10314 = vpop.f32.mrf.mxu0
        %v10315 = vadd.f32 %v10143, %v10314
        %v10316 = vpop.f32.mrf.mxu0
        %v10317 = vadd.f32 %v10147, %v10316
        %v10318 = vpop.f32.mrf.mxu0
        %v10319 = vadd.f32 %v10143, %v10318
        %v10320 = vpop.f32.mrf.mxu0
        %v10321 = vadd.f32 %v10147, %v10320
        %10322 = vmatprep.mubr.bf16.mxu0 0
        %10323 = vmatmul.mubr.bf16.gmra.mxu0 %v786
        %v10324 = vpop.f32.mrf.mxu0
        %v10325 = vadd.f32 %v10143, %v10324
        %v10326 = vpop.f32.mrf.mxu0
        %v10327 = vadd.f32 %v10147, %v10326
        %v10328 = vpop.f32.mrf.mxu0
        %v10329 = vadd.f32 %v10143, %v10328
        %v10330 = vpop.f32.mrf.mxu0
        %v10331 = vadd.f32 %v10147, %v10330
        %10332 = vmatprep.mubr.bf16.mxu0 0
        %10333 = vmatmul.mubr.bf16.gmra.mxu0 %v787
        %v10334 = vpop.f32.mrf.mxu0
        %v10335 = vadd.f32 %v10143, %v10334
        %v10336 = vpop.f32.mrf.mxu0
        %v10337 = vadd.f32 %v10147, %v10336
        %v10338 = vpop.f32.mrf.mxu0
        %v10339 = vadd.f32 %v10143, %v10338
        %v10340 = vpop.f32.mrf.mxu0
        %v10341 = vadd.f32 %v10147, %v10340
        %10342 = vdwg.mxu0
        %10343 = vset.pattern.permute.xlu0 15
        %10344 = vperm.xlu0 %10343, %v788
        %v10345 = vpop.permute.xlu0 %10344
        %10346 = vset.pattern.permute.xlu0 15
        %10347 = vperm.xlu0 %10346, %v789
        %v10348 = vpop.permute.xlu0 %10347
        %10349 = vset.pattern.permute.xlu0 15
        %10350 = vperm.xlu0 %10349, %v790
        %v10351 = vpop.permute.xlu0 %10350
        %10352 = vset.pattern.permute.xlu0 15
        %10353 = vperm.xlu0 %10352, %v791
        %v10354 = vpop.permute.xlu0 %10353
        %10355 = vset.pattern.permute.xlu0 15
        %10356 = vperm.xlu0 %10355, %v792
        %v10357 = vpop.permute.xlu0 %10356
        %10358 = vset.pattern.permute.xlu0 15
        %10359 = vperm.xlu0 %10358, %v793
        %v10360 = vpop.permute.xlu0 %10359
        %10361 = vset.pattern.permute.xlu0 15
        %10362 = vperm.xlu0 %10361, %v794
        %v10363 = vpop.permute.xlu0 %10362
        %10364 = vset.pattern.permute.xlu0 15
        %10365 = vperm.xlu0 %10364, %v795
        %v10366 = vpop.permute.xlu0 %10365
        %10367 = vset.pattern.permute.xlu0 15
        %10368 = vperm.xlu0 %10367, %v796
        %v10369 = vpop.permute.xlu0 %10368
        %10370 = vset.pattern.permute.xlu0 15
        %10371 = vperm.xlu0 %10370, %v797
        %v10372 = vpop.permute.xlu0 %10371
        %10373 = vset.pattern.permute.xlu0 15
        %10374 = vperm.xlu0 %10373, %v798
        %v10375 = vpop.permute.xlu0 %10374
        %10376 = vset.pattern.permute.xlu0 15
        %10377 = vperm.xlu0 %10376, %v799
        %v10378 = vpop.permute.xlu0 %10377
        %10379 = vset.pattern.permute.xlu0 15
        %10380 = vperm.xlu0 %10379, %v800
        %v10381 = vpop.permute.xlu0 %10380
        %10382 = vset.pattern.permute.xlu0 15
        %10383 = vperm.xlu0 %10382, %v801
        %v10384 = vpop.permute.xlu0 %10383
        %10385 = vset.pattern.permute.xlu0 15
        %10386 = vperm.xlu0 %10385, %v802
        %v10387 = vpop.permute.xlu0 %10386
        %10388 = vset.pattern.permute.xlu0 15
        %10389 = vperm.xlu0 %10388, %v803
        %v10390 = vpop.permute.xlu0 %10389
        %vm10391 = vcmp.eq.s32.totalorder %v805, %v10345
        %vm10392 = vcmp.eq.s32.totalorder %v806, %v10345
        %vm10393 = vcmp.eq.s32.totalorder %v805, %v10348
        %vm10394 = vcmp.eq.s32.totalorder %v806, %v10348
        %vm10395 = vcmp.eq.s32.totalorder %v805, %v10351
        %vm10396 = vcmp.eq.s32.totalorder %v806, %v10351
        %vm10397 = vcmp.eq.s32.totalorder %v805, %v10354
        %vm10398 = vcmp.eq.s32.totalorder %v806, %v10354
        %vm10399 = vcmp.eq.s32.totalorder %v805, %v10357
        %vm10400 = vcmp.eq.s32.totalorder %v806, %v10357
        %vm10401 = vcmp.eq.s32.totalorder %v805, %v10360
        %vm10402 = vcmp.eq.s32.totalorder %v806, %v10360
        %vm10403 = vcmp.eq.s32.totalorder %v805, %v10363
        %vm10404 = vcmp.eq.s32.totalorder %v806, %v10363
        %vm10405 = vcmp.eq.s32.totalorder %v805, %v10366
        %vm10406 = vcmp.eq.s32.totalorder %v806, %v10366
        %vm10407 = vcmp.eq.s32.totalorder %v805, %v10369
        %vm10408 = vcmp.eq.s32.totalorder %v806, %v10369
        %vm10409 = vcmp.eq.s32.totalorder %v805, %v10372
        %vm10410 = vcmp.eq.s32.totalorder %v806, %v10372
        %vm10411 = vcmp.eq.s32.totalorder %v805, %v10375
        %vm10412 = vcmp.eq.s32.totalorder %v806, %v10375
        %vm10413 = vcmp.eq.s32.totalorder %v805, %v10378
        %vm10414 = vcmp.eq.s32.totalorder %v806, %v10378
        %vm10415 = vcmp.eq.s32.totalorder %v805, %v10381
        %vm10416 = vcmp.eq.s32.totalorder %v806, %v10381
        %vm10417 = vcmp.eq.s32.totalorder %v805, %v10384
        %vm10418 = vcmp.eq.s32.totalorder %v806, %v10384
        %vm10419 = vcmp.eq.s32.totalorder %v805, %v10387
        %vm10420 = vcmp.eq.s32.totalorder %v806, %v10387
        %vm10421 = vcmp.eq.s32.totalorder %v805, %v10390
        %vm10422 = vcmp.eq.s32.totalorder %v806, %v10390
        %v10423 = vsel %vm10391, %v10265, 0.0
        %v10424 = vsel %vm10392, %v10267, 0.0
        %v10425 = vsel %vm10393, %v10269, 0.0
        %v10426 = vsel %vm10394, %v10271, 0.0
        %v10427 = vsel %vm10395, %v10275, 0.0
        %v10428 = vsel %vm10396, %v10277, 0.0
        %v10429 = vsel %vm10397, %v10279, 0.0
        %v10430 = vsel %vm10398, %v10281, 0.0
        %v10431 = vsel %vm10399, %v10285, 0.0
        %v10432 = vsel %vm10400, %v10287, 0.0
        %v10433 = vsel %vm10401, %v10289, 0.0
        %v10434 = vsel %vm10402, %v10291, 0.0
        %v10435 = vsel %vm10403, %v10295, 0.0
        %v10436 = vsel %vm10404, %v10297, 0.0
        %v10437 = vsel %vm10405, %v10299, 0.0
        %v10438 = vsel %vm10406, %v10301, 0.0
        %v10439 = vsel %vm10407, %v10305, 0.0
        %v10440 = vsel %vm10408, %v10307, 0.0
        %v10441 = vsel %vm10409, %v10309, 0.0
        %v10442 = vsel %vm10410, %v10311, 0.0
        %v10443 = vsel %vm10411, %v10315, 0.0
        %v10444 = vsel %vm10412, %v10317, 0.0
        %v10445 = vsel %vm10413, %v10319, 0.0
        %v10446 = vsel %vm10414, %v10321, 0.0
        %v10447 = vsel %vm10415, %v10325, 0.0
        %v10448 = vsel %vm10416, %v10327, 0.0
        %v10449 = vsel %vm10417, %v10329, 0.0
        %v10450 = vsel %vm10418, %v10331, 0.0
        %v10451 = vsel %vm10419, %v10335, 0.0
        %v10452 = vsel %vm10420, %v10337, 0.0
        %v10453 = vsel %vm10421, %v10339, 0.0
        %v10454 = vsel %vm10422, %v10341, 0.0
        %v10455 = vadd.f32 %v10423, %v10424
        %10456 = vadd.xlane.f32.xlu0 %v10455
        %v10457 = vpop.xlane.xlu0 %10456
        %v10458 = vadd.f32 %v10425, %v10426
        %10459 = vadd.xlane.f32.xlu0 %v10458
        %v10460 = vpop.xlane.xlu0 %10459
        %v10461 = vadd.f32 %v10427, %v10428
        %10462 = vadd.xlane.f32.xlu0 %v10461
        %v10463 = vpop.xlane.xlu0 %10462
        %v10464 = vadd.f32 %v10429, %v10430
        %10465 = vadd.xlane.f32.xlu0 %v10464
        %v10466 = vpop.xlane.xlu0 %10465
        %v10467 = vadd.f32 %v10431, %v10432
        %10468 = vadd.xlane.f32.xlu0 %v10467
        %v10469 = vpop.xlane.xlu0 %10468
        %v10470 = vadd.f32 %v10433, %v10434
        %10471 = vadd.xlane.f32.xlu0 %v10470
        %v10472 = vpop.xlane.xlu0 %10471
        %v10473 = vadd.f32 %v10435, %v10436
        %10474 = vadd.xlane.f32.xlu0 %v10473
        %v10475 = vpop.xlane.xlu0 %10474
        %v10476 = vadd.f32 %v10437, %v10438
        %10477 = vadd.xlane.f32.xlu0 %v10476
        %v10478 = vpop.xlane.xlu0 %10477
        %v10479 = vadd.f32 %v10439, %v10440
        %10480 = vadd.xlane.f32.xlu0 %v10479
        %v10481 = vpop.xlane.xlu0 %10480
        %v10482 = vadd.f32 %v10441, %v10442
        %10483 = vadd.xlane.f32.xlu0 %v10482
        %v10484 = vpop.xlane.xlu0 %10483
        %v10485 = vadd.f32 %v10443, %v10444
        %10486 = vadd.xlane.f32.xlu0 %v10485
        %v10487 = vpop.xlane.xlu0 %10486
        %v10488 = vadd.f32 %v10445, %v10446
        %10489 = vadd.xlane.f32.xlu0 %v10488
        %v10490 = vpop.xlane.xlu0 %10489
        %v10491 = vadd.f32 %v10447, %v10448
        %10492 = vadd.xlane.f32.xlu0 %v10491
        %v10493 = vpop.xlane.xlu0 %10492
        %v10494 = vadd.f32 %v10449, %v10450
        %10495 = vadd.xlane.f32.xlu0 %v10494
        %v10496 = vpop.xlane.xlu0 %10495
        %v10497 = vadd.f32 %v10451, %v10452
        %10498 = vadd.xlane.f32.xlu0 %v10497
        %v10499 = vpop.xlane.xlu0 %10498
        %v10500 = vadd.f32 %v10453, %v10454
        %10501 = vadd.xlane.f32.xlu0 %v10500
        %v10502 = vpop.xlane.xlu0 %10501
        %v10503 = vsub.f32 %v10265, %v10457
        %v10504 = vsub.f32 %v10267, %v10457
        %v10505 = vsub.f32 %v10269, %v10460
        %v10506 = vsub.f32 %v10271, %v10460
        %v10507 = vsub.f32 %v10275, %v10463
        %v10508 = vsub.f32 %v10277, %v10463
        %v10509 = vsub.f32 %v10279, %v10466
        %v10510 = vsub.f32 %v10281, %v10466
        %v10511 = vsub.f32 %v10285, %v10469
        %v10512 = vsub.f32 %v10287, %v10469
        %v10513 = vsub.f32 %v10289, %v10472
        %v10514 = vsub.f32 %v10291, %v10472
        %v10515 = vsub.f32 %v10295, %v10475
        %v10516 = vsub.f32 %v10297, %v10475
        %v10517 = vsub.f32 %v10299, %v10478
        %v10518 = vsub.f32 %v10301, %v10478
        %v10519 = vsub.f32 %v10305, %v10481
        %v10520 = vsub.f32 %v10307, %v10481
        %v10521 = vsub.f32 %v10309, %v10484
        %v10522 = vsub.f32 %v10311, %v10484
        %v10523 = vsub.f32 %v10315, %v10487
        %v10524 = vsub.f32 %v10317, %v10487
        %v10525 = vsub.f32 %v10319, %v10490
        %v10526 = vsub.f32 %v10321, %v10490
        %v10527 = vsub.f32 %v10325, %v10493
        %v10528 = vsub.f32 %v10327, %v10493
        %v10529 = vsub.f32 %v10329, %v10496
        %v10530 = vsub.f32 %v10331, %v10496
        %v10531 = vsub.f32 %v10335, %v10499
        %v10532 = vsub.f32 %v10337, %v10499
        %v10533 = vsub.f32 %v10339, %v10502
        %v10534 = vsub.f32 %v10341, %v10502
        %v10535 = vmul.f32 %v10503, 1.442695
        %v10536 = vpow.pop %v10535
        %v10537 = vmul.f32 %v10504, 1.442695
        %v10538 = vpow.pop %v10537
        %v10539 = vmul.f32 %v10505, 1.442695
        %v10540 = vpow.pop %v10539
        %v10541 = vmul.f32 %v10506, 1.442695
        %v10542 = vpow.pop %v10541
        %v10543 = vmul.f32 %v10507, 1.442695
        %v10544 = vpow.pop %v10543
        %v10545 = vmul.f32 %v10508, 1.442695
        %v10546 = vpow.pop %v10545
        %v10547 = vmul.f32 %v10509, 1.442695
        %v10548 = vpow.pop %v10547
        %v10549 = vmul.f32 %v10510, 1.442695
        %v10550 = vpow.pop %v10549
        %v10551 = vmul.f32 %v10511, 1.442695
        %v10552 = vpow.pop %v10551
        %v10553 = vmul.f32 %v10512, 1.442695
        %v10554 = vpow.pop %v10553
        %v10555 = vmul.f32 %v10513, 1.442695
        %v10556 = vpow.pop %v10555
        %v10557 = vmul.f32 %v10514, 1.442695
        %v10558 = vpow.pop %v10557
        %v10559 = vmul.f32 %v10515, 1.442695
        %v10560 = vpow.pop %v10559
        %v10561 = vmul.f32 %v10516, 1.442695
        %v10562 = vpow.pop %v10561
        %v10563 = vmul.f32 %v10517, 1.442695
        %v10564 = vpow.pop %v10563
        %v10565 = vmul.f32 %v10518, 1.442695
        %v10566 = vpow.pop %v10565
        %v10567 = vmul.f32 %v10519, 1.442695
        %v10568 = vpow.pop %v10567
        %v10569 = vmul.f32 %v10520, 1.442695
        %v10570 = vpow.pop %v10569
        %v10571 = vmul.f32 %v10521, 1.442695
        %v10572 = vpow.pop %v10571
        %v10573 = vmul.f32 %v10522, 1.442695
        %v10574 = vpow.pop %v10573
        %v10575 = vmul.f32 %v10523, 1.442695
        %v10576 = vpow.pop %v10575
        %v10577 = vmul.f32 %v10524, 1.442695
        %v10578 = vpow.pop %v10577
        %v10579 = vmul.f32 %v10525, 1.442695
        %v10580 = vpow.pop %v10579
        %v10581 = vmul.f32 %v10526, 1.442695
        %v10582 = vpow.pop %v10581
        %v10583 = vmul.f32 %v10527, 1.442695
        %v10584 = vpow.pop %v10583
        %v10585 = vmul.f32 %v10528, 1.442695
        %v10586 = vpow.pop %v10585
        %v10587 = vmul.f32 %v10529, 1.442695
        %v10588 = vpow.pop %v10587
        %v10589 = vmul.f32 %v10530, 1.442695
        %v10590 = vpow.pop %v10589
        %v10591 = vmul.f32 %v10531, 1.442695
        %v10592 = vpow.pop %v10591
        %v10593 = vmul.f32 %v10532, 1.442695
        %v10594 = vpow.pop %v10593
        %v10595 = vmul.f32 %v10533, 1.442695
        %v10596 = vpow.pop %v10595
        %v10597 = vmul.f32 %v10534, 1.442695
        %v10598 = vpow.pop %v10597
        %v10599 = vadd.f32 %v10536, %v10538
        %10600 = vadd.xlane.f32.xlu0 %v10599
        %v10601 = vpop.xlane.xlu0 %10600
        %v10602 = vadd.f32 %v10540, %v10542
        %10603 = vadd.xlane.f32.xlu0 %v10602
        %v10604 = vpop.xlane.xlu0 %10603
        %v10605 = vadd.f32 %v10544, %v10546
        %10606 = vadd.xlane.f32.xlu0 %v10605
        %v10607 = vpop.xlane.xlu0 %10606
        %v10608 = vadd.f32 %v10548, %v10550
        %10609 = vadd.xlane.f32.xlu0 %v10608
        %v10610 = vpop.xlane.xlu0 %10609
        %v10611 = vadd.f32 %v10552, %v10554
        %10612 = vadd.xlane.f32.xlu0 %v10611
        %v10613 = vpop.xlane.xlu0 %10612
        %v10614 = vadd.f32 %v10556, %v10558
        %10615 = vadd.xlane.f32.xlu0 %v10614
        %v10616 = vpop.xlane.xlu0 %10615
        %v10617 = vadd.f32 %v10560, %v10562
        %10618 = vadd.xlane.f32.xlu0 %v10617
        %v10619 = vpop.xlane.xlu0 %10618
        %v10620 = vadd.f32 %v10564, %v10566
        %10621 = vadd.xlane.f32.xlu0 %v10620
        %v10622 = vpop.xlane.xlu0 %10621
        %v10623 = vadd.f32 %v10568, %v10570
        %10624 = vadd.xlane.f32.xlu0 %v10623
        %v10625 = vpop.xlane.xlu0 %10624
        %v10626 = vadd.f32 %v10572, %v10574
        %10627 = vadd.xlane.f32.xlu0 %v10626
        %v10628 = vpop.xlane.xlu0 %10627
        %v10629 = vadd.f32 %v10576, %v10578
        %10630 = vadd.xlane.f32.xlu0 %v10629
        %v10631 = vpop.xlane.xlu0 %10630
        %v10632 = vadd.f32 %v10580, %v10582
        %10633 = vadd.xlane.f32.xlu0 %v10632
        %v10634 = vpop.xlane.xlu0 %10633
        %v10635 = vadd.f32 %v10584, %v10586
        %10636 = vadd.xlane.f32.xlu0 %v10635
        %v10637 = vpop.xlane.xlu0 %10636
        %v10638 = vadd.f32 %v10588, %v10590
        %10639 = vadd.xlane.f32.xlu0 %v10638
        %v10640 = vpop.xlane.xlu0 %10639
        %v10641 = vadd.f32 %v10592, %v10594
        %10642 = vadd.xlane.f32.xlu0 %v10641
        %v10643 = vpop.xlane.xlu0 %10642
        %v10644 = vadd.f32 %v10596, %v10598
        %10645 = vadd.xlane.f32.xlu0 %v10644
        %v10646 = vpop.xlane.xlu0 %10645
        %v10647 = vlog2.pop %v10601
        %v10648 = vmul.f32 %v10647, 0.6931472
        %v10649 = vlog2.pop %v10604
        %v10650 = vmul.f32 %v10649, 0.6931472
        %v10651 = vlog2.pop %v10607
        %v10652 = vmul.f32 %v10651, 0.6931472
        %v10653 = vlog2.pop %v10610
        %v10654 = vmul.f32 %v10653, 0.6931472
        %v10655 = vlog2.pop %v10613
        %v10656 = vmul.f32 %v10655, 0.6931472
        %v10657 = vlog2.pop %v10616
        %v10658 = vmul.f32 %v10657, 0.6931472
        %v10659 = vlog2.pop %v10619
        %v10660 = vmul.f32 %v10659, 0.6931472
        %v10661 = vlog2.pop %v10622
        %v10662 = vmul.f32 %v10661, 0.6931472
        %v10663 = vlog2.pop %v10625
        %v10664 = vmul.f32 %v10663, 0.6931472
        %v10665 = vlog2.pop %v10628
        %v10666 = vmul.f32 %v10665, 0.6931472
        %v10667 = vlog2.pop %v10631
        %v10668 = vmul.f32 %v10667, 0.6931472
        %v10669 = vlog2.pop %v10634
        %v10670 = vmul.f32 %v10669, 0.6931472
        %v10671 = vlog2.pop %v10637
        %v10672 = vmul.f32 %v10671, 0.6931472
        %v10673 = vlog2.pop %v10640
        %v10674 = vmul.f32 %v10673, 0.6931472
        %v10675 = vlog2.pop %v10643
        %v10676 = vmul.f32 %v10675, 0.6931472
        %v10677 = vlog2.pop %v10646
        %v10678 = vmul.f32 %v10677, 0.6931472
        %v10679 = vsub.f32 0.0, %v10648
        %v10680 = vsub.f32 0.0, %v10650
        %v10681 = vsub.f32 0.0, %v10652
        %v10682 = vsub.f32 0.0, %v10654
        %v10683 = vsub.f32 0.0, %v10656
        %v10684 = vsub.f32 0.0, %v10658
        %v10685 = vsub.f32 0.0, %v10660
        %v10686 = vsub.f32 0.0, %v10662
        %v10687 = vsub.f32 0.0, %v10664
        %v10688 = vsub.f32 0.0, %v10666
        %v10689 = vsub.f32 0.0, %v10668
        %v10690 = vsub.f32 0.0, %v10670
        %v10691 = vsub.f32 0.0, %v10672
        %v10692 = vsub.f32 0.0, %v10674
        %v10693 = vsub.f32 0.0, %v10676
        %v10694 = vsub.f32 0.0, %v10678
        %v10695 = vmax.f32 %v10679, -11.512925
        %v10696 = vmax.f32 %v10680, -11.512925
        %v10697 = vmax.f32 %v10681, -11.512925
        %v10698 = vmax.f32 %v10682, -11.512925
        %v10699 = vmax.f32 %v10683, -11.512925
        %v10700 = vmax.f32 %v10684, -11.512925
        %v10701 = vmax.f32 %v10685, -11.512925
        %v10702 = vmax.f32 %v10686, -11.512925
        %v10703 = vmax.f32 %v10687, -11.512925
        %v10704 = vmax.f32 %v10688, -11.512925
        %v10705 = vmax.f32 %v10689, -11.512925
        %v10706 = vmax.f32 %v10690, -11.512925
        %v10707 = vmax.f32 %v10691, -11.512925
        %v10708 = vmax.f32 %v10692, -11.512925
        %v10709 = vmax.f32 %v10693, -11.512925
        %v10710 = vmax.f32 %v10694, -11.512925
        %v10711 = vmin.f32 %v10695, -1.000005e-05
        %v10712 = vmin.f32 %v10696, -1.000005e-05
        %v10713 = vmin.f32 %v10697, -1.000005e-05
        %v10714 = vmin.f32 %v10698, -1.000005e-05
        %v10715 = vmin.f32 %v10699, -1.000005e-05
        %v10716 = vmin.f32 %v10700, -1.000005e-05
        %v10717 = vmin.f32 %v10701, -1.000005e-05
        %v10718 = vmin.f32 %v10702, -1.000005e-05
        %v10719 = vmin.f32 %v10703, -1.000005e-05
        %v10720 = vmin.f32 %v10704, -1.000005e-05
        %v10721 = vmin.f32 %v10705, -1.000005e-05
        %v10722 = vmin.f32 %v10706, -1.000005e-05
        %v10723 = vmin.f32 %v10707, -1.000005e-05
        %v10724 = vmin.f32 %v10708, -1.000005e-05
        %v10725 = vmin.f32 %v10709, -1.000005e-05
        %v10726 = vmin.f32 %v10710, -1.000005e-05
        %v10727 = vadd.f32 %v9485, %v10711
        %v10728 = vadd.f32 %v9486, %v10712
        %v10729 = vadd.f32 %v9487, %v10713
        %v10730 = vadd.f32 %v9488, %v10714
        %v10731 = vadd.f32 %v9489, %v10715
        %v10732 = vadd.f32 %v9490, %v10716
        %v10733 = vadd.f32 %v9491, %v10717
        %v10734 = vadd.f32 %v9492, %v10718
        %v10735 = vadd.f32 %v9493, %v10719
        %v10736 = vadd.f32 %v9494, %v10720
        %v10737 = vadd.f32 %v9495, %v10721
        %v10738 = vadd.f32 %v9496, %v10722
        %v10739 = vadd.f32 %v9497, %v10723
        %v10740 = vadd.f32 %v9498, %v10724
        %v10741 = vadd.f32 %v9499, %v10725
        %v10742 = vadd.f32 %v9500, %v10726
        %v10743 = vadd.f32 %v10106, %v10727
        %v10744 = vadd.f32 %v10107, %v10728
        %v10745 = vadd.f32 %v10108, %v10729
        %v10746 = vadd.f32 %v10109, %v10730
        %v10747 = vadd.f32 %v10110, %v10731
        %v10748 = vadd.f32 %v10111, %v10732
        %v10749 = vadd.f32 %v10112, %v10733
        %v10750 = vadd.f32 %v10113, %v10734
        %v10751 = vadd.f32 %v10114, %v10735
        %v10752 = vadd.f32 %v10115, %v10736
        %v10753 = vadd.f32 %v10116, %v10737
        %v10754 = vadd.f32 %v10117, %v10738
        %v10755 = vadd.f32 %v10118, %v10739
        %v10756 = vadd.f32 %v10119, %v10740
        %v10757 = vadd.f32 %v10120, %v10741
        %v10758 = vadd.f32 %v10121, %v10742
        %vm10759 = vcmask 7168
        %10760 = vst.msk [vmem:[%s344] sm:$0xff] %vm10759, %v10743
        %10761 = vst.msk [vmem:[%s344 + $0x8] sm:$0xff] %vm10759, %v10744
        %10762 = vst.msk [vmem:[%s344 + $0x10] sm:$0xff] %vm10759, %v10745
        %10763 = vst.msk [vmem:[%s344 + $0x18] sm:$0xff] %vm10759, %v10746
        %10764 = vst.msk [vmem:[%s344 + $0x20] sm:$0xff] %vm10759, %v10747
        %10765 = vst.msk [vmem:[%s344 + $0x28] sm:$0xff] %vm10759, %v10748
        %10766 = vst.msk [vmem:[%s344 + $0x30] sm:$0xff] %vm10759, %v10749
        %10767 = vst.msk [vmem:[%s344 + $0x38] sm:$0xff] %vm10759, %v10750
        %10768 = vst.msk [vmem:[%s344 + $0x40] sm:$0xff] %vm10759, %v10751
        %10769 = vst.msk [vmem:[%s344 + $0x48] sm:$0xff] %vm10759, %v10752
        %10770 = vst.msk [vmem:[%s344 + $0x50] sm:$0xff] %vm10759, %v10753
        %10771 = vst.msk [vmem:[%s344 + $0x58] sm:$0xff] %vm10759, %v10754
        %10772 = vst.msk [vmem:[%s344 + $0x60] sm:$0xff] %vm10759, %v10755
        %10773 = vst.msk [vmem:[%s344 + $0x68] sm:$0xff] %vm10759, %v10756
        %10774 = vst.msk [vmem:[%s344 + $0x70] sm:$0xff] %vm10759, %v10757
        %10775 = vst.msk [vmem:[%s344 + $0x78] sm:$0xff] %vm10759, %v10758
        %s10776 = smul.u32 16, %s20
        %p10777 = scmp.lt.s32.totalorder %s10776, 31
        %s10778 = scalar_select %p10777, %s10776, 31
        %s10779 = smul.addr %s10778, 8
        %s10780 = scalar_lea.vmem %s8, %s10779
        // Predicated region
        $region57: #{tpu_custom_call.1} parent=51 // pred_check
          %p10781 = pneg %p216
        $region58: #{tpu_custom_call.1} parent=51 // pred_check_branch
          %10783 = sbr.rel (%p10781) target = $region60
        $region59: #{tpu_custom_call.1} parent=51 // pred_region
          %s10784 = smul.u32 16, %s20
        $region60: #{tpu_custom_call.1} parent=51 // pred_fallthru
          _
      $region52: #{tpu_custom_call.1} parent=5 // pred_fallthru
        _
      %p10785 = scmp.le.s32.totalorder 2, %s15
      // Predicated region
      $region61: #{tpu_custom_call.1} parent=5 // pred_check
        %p10786 = pneg %p10785
      $region62: #{tpu_custom_call.1} parent=5 // pred_check_branch
        %10788 = sbr.rel (%p10786) target = $region64
      $region63: #{tpu_custom_call.1} parent=5 // pred_region
        %s10789 = ssub.s32 %s15, 2
        // Predicated region
        $region65: #{tpu_custom_call.1} parent=63 // pred_check
          %p10790 = pneg %p222
        $region66: #{tpu_custom_call.1} parent=63 // pred_check_branch
          %10792 = sbr.rel (%p10790) target = $region68
        $region67: #{tpu_custom_call.1} parent=63 // pred_region
          %s10793 = smul.u32 16, %s21
          %p10794 = scmp.lt.s32.totalorder %s10793, 31
          %s10795 = scalar_select %p10794, %s10793, 31
          %s10796 = smul.addr %s10795, 8
          %s10797 = scalar_lea.vmem %s8, %s10796
        $region68: #{tpu_custom_call.1} parent=63 // pred_fallthru
          _
      $region64: #{tpu_custom_call.1} parent=5 // pred_fallthru
        _
    $region6: #{tpu_custom_call.1} parent=1 // loop_footer
      %s19 = sadd.s32 1, %s15
    $region7: #{tpu_custom_call.1} parent=1 // loop_footer_branch
      %14 = sbr.rel target = $region3
    $region8: #{tpu_custom_call.1} parent=1 // loop_exit
      _
    %10798 = vsyncpa [#allocation3], 1
    %s10799 = scalar_lea.sflag [#allocation3], 1
    %10800 = vsyncpa %s10799, 1

</llo_original>
